<compile_context>
chip_gen: v7x
topology: tpu7x:2x2x1
jax: 0.10.0
libtpu: 0.0.40
codegen_flags: <defaults>
</compile_context>

<pallas_src>
import jax
import jax.numpy as jnp
import numpy as np
from jax import lax
from jax.experimental import pallas as pl
from jax.experimental.pallas import tpu as pltpu

_BN_EPS = 1e-5
_LANE = 128


# --------------------------------------------------------------------------
# helpers
# --------------------------------------------------------------------------
def _round_up(x, m):
    return ((x + m - 1) // m) * m


def _pad_axis(a, target, axis):
    pad = target - a.shape[axis]
    if pad <= 0:
        return a
    widths = [(0, 0)] * a.ndim
    widths[axis] = (0, pad)
    return jnp.pad(a, widths)


def _pick_tile(extent, cap):
    """Largest divisor of `extent` that is <= cap (row-tile size)."""
    t = max(1, min(cap, extent))
    while extent % t:
        t -= 1
    return t


def _vmem_limit_bytes():
    """Generation-aware scoped-VMEM limit (guarded; falls back to 32 MiB)."""
    try:
        phys = pltpu.get_tpu_info().vmem_capacity_bytes
        return int(max(32 << 20, min(phys * 3 // 4, 96 << 20)))
    except Exception:
        return 32 << 20


_VMEM_LIMIT = _vmem_limit_bytes()


# --------------------------------------------------------------------------
# kernels
# --------------------------------------------------------------------------
def _make_conv_kernel(th, h, w_out, nt, apply_input_bn_relu):
    """3x3 conv over a (th+2)-row reflect-padded window (halo via manual DMA).

    * H reflection is folded into the halo-row DMA source indices.
    * W reflection is rebuilt in-kernel from the un-padded resident rows.
    * Optionally applies the previous stage's folded BN (scale/shift) + ReLU
      to the fetched rows before the matmuls (stage-2 fusion).
    * Conv bias is dropped: training-mode BatchNorm removes any per-channel
      constant, so the block output is mathematically unchanged.
    * Emits per-tile per-channel (sum, sum-of-squares) of the f32 accumulator
      for the global BN fold done in plain JAX.
    """

    def kernel(*refs):
        if apply_input_bn_relu:
            (src_ref, scale_ref, shift_ref, w_ref,
             y_ref, stats_ref, rows_ref, sem) = refs
        else:
            src_ref, w_ref, y_ref, stats_ref, rows_ref, sem = refs
            scale_ref = shift_ref = None

        cpad = rows_ref.shape[-1]
        n = pl.program_id(0)
        i = pl.program_id(1)
        r0 = i * th

        # Reflect-padded row window [r0, r0+th+2): padded row -1 -> source
        # row 1, padded row H -> source row H-2, interior rows map directly.
        top_src = jnp.where(i == 0, 1, r0 - 1)
        bot_src = jnp.where(i == nt - 1, h - 2, r0 + th)

        top_cp = pltpu.make_async_copy(src_ref.at[n, top_src],
                                       rows_ref.at[0], sem.at[0])
        body_cp = pltpu.make_async_copy(src_ref.at[n, pl.ds(r0, th)],
                                        rows_ref.at[pl.ds(1, th)], sem.at[1])
        bot_cp = pltpu.make_async_copy(src_ref.at[n, bot_src],
                                       rows_ref.at[th + 1], sem.at[2])
        top_cp.start()
        body_cp.start()
        bot_cp.start()
        top_cp.wait()
        body_cp.wait()
        bot_cp.wait()

        if apply_input_bn_relu:
            # Fused BN1-apply + ReLU (f32 VPU math), written back to the bf16
            # scratch so the MXU feeds from ref views of the scratch.
            v = (rows_ref[...].astype(jnp.float32) * scale_ref[...]
                 + shift_ref[...])
            rows_ref[...] = jnp.maximum(v, 0.0).astype(jnp.bfloat16)

        def dx_slab(dx):
            # Width reflection: padded col q -> source col
            # (1 if q == 0 else W-2 if q == W+1 else q-1).
            if dx == 0:
                return jnp.concatenate(
                    [rows_ref[:, 1:2, :], rows_ref[:, :w_out - 1, :]], axis=1)
            if dx == 1:
                return rows_ref[...]
            return jnp.concatenate(
                [rows_ref[:, 1:, :], rows_ref[:, w_out - 2:w_out - 1, :]],
                axis=1)

        # K-packed im2col: per dx, stack the three dy patches along channels
        # -> 3 MXU matmuls with K = 3*Cp instead of 9 with K = Cp.
        acc = jnp.zeros((th * w_out, cpad), jnp.float32)
        for dx in range(3):
            slab = dx_slab(dx)                               # (th+2, W, Cp)
            lhs = jnp.concatenate([slab[dy:dy + th] for dy in range(3)],
                                  axis=-1)                   # (th, W, 3*Cp)
            lhs = lhs.reshape(th * w_out, 3 * cpad)
            acc = acc + jnp.dot(lhs, w_ref[dx],
                                preferred_element_type=jnp.float32)

        y_ref[...] = acc.reshape(1, th, w_out, cpad).astype(y_ref.dtype)

        # Per-tile BN partials (cross-sublane reduce -> XLU).
        # TODO(synk): single-pass E[x^2]-mean^2 can cancel when |mean| >> std;
        # switch to mean-centred per-tile partials + Chan's parallel formula
        # if tighter accuracy is ever needed.
        stats = jnp.concatenate(
            [jnp.sum(acc, axis=0, keepdims=True),
             jnp.sum(acc * acc, axis=0, keepdims=True)], axis=0)
        stats_ref[...] = stats.reshape(1, 1, 2, cpad)

    return kernel


def _bn_residual_kernel(y_ref, res_ref, scale_ref, shift_ref, out_ref):
    out_ref[...] = (y_ref[...].astype(jnp.float32) * scale_ref[...]
                    + shift_ref[...] + res_ref[...])


# --------------------------------------------------------------------------
# pallas_call wrappers
# --------------------------------------------------------------------------
def _conv_stage(src, w_packed, *, th, h, w_out, in_scale=None, in_shift=None,
                out_dtype=jnp.bfloat16):
    """Row-tiled reflect-pad + conv3x3 pass; returns (conv_out, tile stats)."""
    n_batch = src.shape[0]
    cpad = src.shape[-1]
    nt = h // th
    apply_in = in_scale is not None

    kernel = _make_conv_kernel(th, h, w_out, nt, apply_in)

    inputs = [src]
    in_specs = [pl.BlockSpec(memory_space=pl.ANY)]   # raw HBM ref, manual DMA
    if apply_in:
        inputs += [in_scale, in_shift]
        in_specs += [pl.BlockSpec((1, cpad), lambda n, i: (0, 0)),
                     pl.BlockSpec((1, cpad), lambda n, i: (0, 0))]
    inputs += [w_packed]
    in_specs += [pl.BlockSpec((3, 3 * cpad, cpad), lambda n, i: (0, 0, 0))]

    out_shape = (jax.ShapeDtypeStruct((n_batch, h, w_out, cpad), out_dtype),
                 jax.ShapeDtypeStruct((n_batch, nt, 2, cpad), jnp.float32))
    out_specs = (pl.BlockSpec((1, th, w_out, cpad), lambda n, i: (n, i, 0, 0)),
                 pl.BlockSpec((1, 1, 2, cpad), lambda n, i: (n, i, 0, 0)))

    scratch_shapes = [pltpu.VMEM((th + 2, w_out, cpad), jnp.bfloat16),
                      pltpu.SemaphoreType.DMA((3,))]

    cost = pl.CostEstimate(
        flops=2 * 9 * n_batch * h * w_out * cpad * cpad,
        transcendentals=0,
        bytes_accessed=(src.size * src.dtype.itemsize
                        + w_packed.size * w_packed.dtype.itemsize
                        + n_batch * h * w_out * cpad
                        * jnp.dtype(out_dtype).itemsize
                        + n_batch * nt * 2 * cpad * 4))

    return pl.pallas_call(
        kernel,
        grid=(n_batch, nt),
        in_specs=in_specs,
        out_specs=out_specs,
        out_shape=out_shape,
        scratch_shapes=scratch_shapes,
        compiler_params=pltpu.CompilerParams(
            dimension_semantics=("parallel", "parallel"),
            vmem_limit_bytes=_VMEM_LIMIT),
        cost_estimate=cost,
    )(*inputs)


def _bn_residual(y, res, scale, shift, *, th):
    """Element-wise BN2-apply + residual add (lane-dense output tiles)."""
    n_batch, h, w_out, cpad = y.shape
    nt = h // th
    tile_spec = pl.BlockSpec((1, th, w_out, cpad), lambda n, i: (n, i, 0, 0))
    vec_spec = pl.BlockSpec((1, cpad), lambda n, i: (0, 0))
    return pl.pallas_call(
        _bn_residual_kernel,
        grid=(n_batch, nt),
        in_specs=[tile_spec, tile_spec, vec_spec, vec_spec],
        out_specs=tile_spec,
        out_shape=jax.ShapeDtypeStruct((n_batch, h, w_out, cpad), jnp.float32),
        input_output_aliases={1: 0},        # output aliases the f32 residual
        compiler_params=pltpu.CompilerParams(
            dimension_semantics=("parallel", "parallel"),
            vmem_limit_bytes=_VMEM_LIMIT),
    )(y, res, scale, shift)


def _fold_bn(stats, gamma, beta, count):
    """Reduce per-tile (sum, sumsq) into folded per-channel scale/shift."""
    s = jnp.sum(stats[:, :, 0, :], axis=(0, 1))
    ss = jnp.sum(stats[:, :, 1, :], axis=(0, 1))
    mean = s / count
    var = jnp.maximum(ss / count - mean * mean, 0.0)   # biased (training) var
    inv = lax.rsqrt(var + _BN_EPS)
    scale = gamma[0] * inv
    shift = beta[0] - mean * scale
    return scale[None, :], shift[None, :]


# --------------------------------------------------------------------------
# full block
# --------------------------------------------------------------------------
@jax.jit
def resnet_block(x_nchw, params):
    """Pallas implementation of ResnetBlock.forward (NCHW in / NCHW out)."""
    w1, b1, g1, bt1, w2, b2, g2, bt2 = params
    del b1, b2  # training-mode BatchNorm cancels the conv biases exactly
    n_batch, c, h, w = x_nchw.shape
    cpad = max(_LANE, _round_up(c, _LANE))    # lane-dense channel dim
    th = _pick_tile(h, 16)                    # conv row tile (halo'd window)
    th_r = _pick_tile(h, 64)                  # BN+residual tile (no halo)
    count = n_batch * h * w

    x = jnp.transpose(x_nchw, (0, 2, 3, 1)).astype(jnp.float32)     # NHWC
    x_res = _pad_axis(x, cpad, 3)                                   # residual
    x_bf16 = x_res.astype(jnp.bfloat16)                             # conv1 in

    def pack_w(wt):  # (3,3,C,C) HWIO -> (3, 3*Cp, Cp) bf16, indexed by dx
        wp = _pad_axis(_pad_axis(wt, cpad, 2), cpad, 3)
        return (jnp.transpose(wp, (1, 0, 2, 3))
                .reshape(3, 3 * cpad, cpad).astype(jnp.bfloat16))

    w1p, w2p = pack_w(w1), pack_w(w2)
    g1p, g2p = _pad_axis(g1, cpad, 1), _pad_axis(g2, cpad, 1)
    bt1p, bt2p = _pad_axis(bt1, cpad, 1), _pad_axis(bt2, cpad, 1)

    # Stage 1: reflect-pad + conv1 fused in one kernel (bf16 MXU, f32 acc),
    # bf16 output, per-tile BN1 partial stats.
    y1, st1 = _conv_stage(x_bf16, w1p, th=th, h=h, w_out=w)
    sc1, sh1 = _fold_bn(st1, g1p, bt1p, count)

    # Stage 2: BN1-apply + ReLU fused into conv2's halo'd input window;
    # reflect pad again fused in-kernel (no jnp.pad HBM pass).
    y2, st2 = _conv_stage(y1, w2p, th=th, h=h, w_out=w,
                          in_scale=sc1, in_shift=sh1)
    sc2, sh2 = _fold_bn(st2, g2p, bt2p, count)

    # Stage 3: BN2-apply + residual add.
    out = _bn_residual(y2, x_res, sc2, sh2, th=th_r)

    return jnp.transpose(out[..., :c], (0, 3, 1, 2))                # -> NCHW


# --------------------------------------------------------------------------
# pure-JAX reference (numerical sanity check)
# --------------------------------------------------------------------------
def resnet_block_ref(x_nchw, params):
    (w1, b1, g1, bt1, w2, b2, g2, bt2) = params
    x = jnp.transpose(x_nchw, (0, 2, 3, 1))

    def stage(inp, wt, b, g, bt, relu):
        xp = jnp.pad(inp, ((0, 0), (1, 1), (1, 1), (0, 0)), mode="reflect")
        y = lax.conv_general_dilated(
            xp, wt, (1, 1), "VALID",
            dimension_numbers=("NHWC", "HWIO", "NHWC"))
        y = y + b.reshape(1, 1, 1, -1)
        mean = jnp.mean(y, axis=(0, 1, 2), keepdims=True)
        var = jnp.mean((y - mean) ** 2, axis=(0, 1, 2), keepdims=True)
        y = (y - mean) * lax.rsqrt(var + _BN_EPS)
        y = y * g.reshape(1, 1, 1, -1) + bt.reshape(1, 1, 1, -1)
        return jnp.maximum(y, 0.0) if relu else y

    h = stage(x, w1, b1, g1, bt1, True)
    out = stage(h, w2, b2, g2, bt2, False) + x
    return jnp.transpose(out, (0, 3, 1, 2))


def init_params(key, dim):
    """Deterministic synthetic parameters (shapes match nn.Conv2d/BatchNorm2d)."""
    ks = jax.random.split(key, 8)
    scale = 1.0 / np.sqrt(dim * 9)

    def conv_w(k):  # HWIO layout: (3, 3, C_in, C_out)
        return scale * jax.random.normal(k, (3, 3, dim, dim), jnp.float32)

    def vec(k, s=0.1):
        return s * jax.random.normal(k, (1, dim), jnp.float32)

    w1, b1 = conv_w(ks[0]), vec(ks[1])
    g1, bt1 = 1.0 + vec(ks[2]), vec(ks[3])
    w2, b2 = conv_w(ks[4]), vec(ks[5])
    g2, bt2 = 1.0 + vec(ks[6]), vec(ks[7])
    return (w1, b1, g1, bt1, w2, b2, g2, bt2)


if __name__ == "__main__":
    N, C, H, W = 2, 8, 16, 16  # batch=2, dim=8, spatial=16

    key = jax.random.PRNGKey(0)
    kx, kp = jax.random.split(key)
    x = jax.random.normal(kx, (N, C, H, W), jnp.float32)
    params = init_params(kp, C)

    out = jax.block_until_ready(resnet_block(x, params))

    assert out.shape == (N, C, H, W), out.shape
    assert bool(jnp.all(jnp.isfinite(out)))

    ref = resnet_block_ref(x, params)
    np.testing.assert_allclose(np.asarray(out), np.asarray(ref),
                               rtol=7e-2, atol=7e-2)

    print("KERNEL_OK")
</pallas_src>

<mosaic_0001>
module attributes {stable_mosaic.version = 11 : i64} {
  func.func @kernel(%arg0: i32, %arg1: i32, %arg2: memref<2x16x16x128xbf16, #tpu.memory_space<any>>, %arg3: memref<3x384x128xbf16, #tpu.memory_space<vmem>>, %arg4: memref<1x16x16x128xbf16, #tpu.memory_space<vmem>>, %arg5: memref<1x1x2x128xf32, #tpu.memory_space<vmem>>, %arg6: memref<18x16x128xbf16, #tpu.memory_space<vmem>>, %arg7: memref<3x!tpu.dma_semaphore, #tpu.memory_space<semaphore_mem>>) attributes {dimension_semantics = [#tpu.dimension_semantics<parallel>, #tpu.dimension_semantics<parallel>], iteration_bounds = array<i64: 2, 1>, scalar_prefetch = 0 : i64, scratch_operands = 2 : i64, tpu.core_type = #tpu.core_type<tc>, window_params = [{}, {pipeline_mode = #tpu.pipeline_mode<synchronous>, transform_indices = @transform_1, window_bounds = array<i64: 3, 384, 128>}, {transform_indices = @transform_2, window_bounds = array<i64: 1, 16, 16, 128>}, {transform_indices = @transform_3, window_bounds = array<i64: 1, 1, 2, 128>}]} {
    %c16_i32 = arith.constant 16 : i32
    %0 = arith.muli %arg1, %c16_i32 : i32
    %c0_i32 = arith.constant 0 : i32
    %1 = arith.cmpi eq, %arg1, %c0_i32 : i32
    %c1_i32 = arith.constant 1 : i32
    %2 = arith.subi %0, %c1_i32 : i32
    %c1_i32_0 = arith.constant 1 : i32
    %3 = arith.select %1, %c1_i32_0, %2 : i32
    %c0_i32_1 = arith.constant 0 : i32
    %4 = arith.cmpi eq, %arg1, %c0_i32_1 : i32
    %c16_i32_2 = arith.constant 16 : i32
    %5 = arith.addi %0, %c16_i32_2 : i32
    %c14_i32 = arith.constant 14 : i32
    %6 = arith.select %4, %c14_i32, %5 : i32
    %c0_i32_3 = arith.constant 0 : i32
    %c0_i32_4 = arith.constant 0 : i32
    %c0_i32_5 = arith.constant 0 : i32
    %c0_i32_6 = arith.constant 0 : i32
    %7 = tpu.memref_slice %arg2[%arg0, %3, %c0_i32_5, %c0_i32_6] : memref<2x16x16x128xbf16, #tpu.memory_space<any>> -> memref<1x1x16x128xbf16, #tpu.memory_space<any>>
    %8 = tpu.memref_squeeze %7 : memref<1x1x16x128xbf16, #tpu.memory_space<any>> -> memref<16x128xbf16, #tpu.memory_space<any>>
    %c0_i32_7 = arith.constant 0 : i32
    %c0_i32_8 = arith.constant 0 : i32
    %9 = tpu.memref_slice %arg6[%c0_i32_3, %c0_i32_7, %c0_i32_8] : memref<18x16x128xbf16, #tpu.memory_space<vmem>> -> memref<1x16x128xbf16, #tpu.memory_space<vmem>>
    %10 = tpu.memref_squeeze %9 : memref<1x16x128xbf16, #tpu.memory_space<vmem>> -> memref<16x128xbf16, #tpu.memory_space<vmem>>
    %11 = tpu.memref_slice %arg7[%c0_i32_4] : memref<3x!tpu.dma_semaphore, #tpu.memory_space<semaphore_mem>> -> memref<1x!tpu.dma_semaphore, #tpu.memory_space<semaphore_mem>>
    %12 = tpu.memref_squeeze %11 : memref<1x!tpu.dma_semaphore, #tpu.memory_space<semaphore_mem>> -> memref<!tpu.dma_semaphore, #tpu.memory_space<semaphore_mem>>
    tpu.enqueue_dma source(%8 : memref<16x128xbf16, #tpu.memory_space<any>>) target(%10 : memref<16x128xbf16, #tpu.memory_space<vmem>>) target_semaphore(%12 : memref<!tpu.dma_semaphore, #tpu.memory_space<semaphore_mem>>)
    %c1_i32_9 = arith.constant 1 : i32
    %c0_i32_10 = arith.constant 0 : i32
    %c0_i32_11 = arith.constant 0 : i32
    %13 = tpu.memref_slice %arg2[%arg0, %0, %c0_i32_10, %c0_i32_11] : memref<2x16x16x128xbf16, #tpu.memory_space<any>> -> memref<1x16x16x128xbf16, #tpu.memory_space<any>>
    %14 = tpu.memref_squeeze %13 : memref<1x16x16x128xbf16, #tpu.memory_space<any>> -> memref<16x16x128xbf16, #tpu.memory_space<any>>
    %c1_i32_12 = arith.constant 1 : i32
    %c0_i32_13 = arith.constant 0 : i32
    %c0_i32_14 = arith.constant 0 : i32
    %15 = tpu.memref_slice %arg6[%c1_i32_12, %c0_i32_13, %c0_i32_14] : memref<18x16x128xbf16, #tpu.memory_space<vmem>> -> memref<16x16x128xbf16, #tpu.memory_space<vmem>>
    %16 = tpu.memref_slice %arg7[%c1_i32_9] : memref<3x!tpu.dma_semaphore, #tpu.memory_space<semaphore_mem>> -> memref<1x!tpu.dma_semaphore, #tpu.memory_space<semaphore_mem>>
    %17 = tpu.memref_squeeze %16 : memref<1x!tpu.dma_semaphore, #tpu.memory_space<semaphore_mem>> -> memref<!tpu.dma_semaphore, #tpu.memory_space<semaphore_mem>>
    tpu.enqueue_dma source(%14 : memref<16x16x128xbf16, #tpu.memory_space<any>>) target(%15 : memref<16x16x128xbf16, #tpu.memory_space<vmem>>) target_semaphore(%17 : memref<!tpu.dma_semaphore, #tpu.memory_space<semaphore_mem>>)
    %c17_i32 = arith.constant 17 : i32
    %c2_i32 = arith.constant 2 : i32
    %c0_i32_15 = arith.constant 0 : i32
    %c0_i32_16 = arith.constant 0 : i32
    %18 = tpu.memref_slice %arg2[%arg0, %6, %c0_i32_15, %c0_i32_16] : memref<2x16x16x128xbf16, #tpu.memory_space<any>> -> memref<1x1x16x128xbf16, #tpu.memory_space<any>>
    %19 = tpu.memref_squeeze %18 : memref<1x1x16x128xbf16, #tpu.memory_space<any>> -> memref<16x128xbf16, #tpu.memory_space<any>>
    %c0_i32_17 = arith.constant 0 : i32
    %c0_i32_18 = arith.constant 0 : i32
    %20 = tpu.memref_slice %arg6[%c17_i32, %c0_i32_17, %c0_i32_18] : memref<18x16x128xbf16, #tpu.memory_space<vmem>> -> memref<1x16x128xbf16, #tpu.memory_space<vmem>>
    %21 = tpu.memref_squeeze %20 : memref<1x16x128xbf16, #tpu.memory_space<vmem>> -> memref<16x128xbf16, #tpu.memory_space<vmem>>
    %22 = tpu.memref_slice %arg7[%c2_i32] : memref<3x!tpu.dma_semaphore, #tpu.memory_space<semaphore_mem>> -> memref<1x!tpu.dma_semaphore, #tpu.memory_space<semaphore_mem>>
    %23 = tpu.memref_squeeze %22 : memref<1x!tpu.dma_semaphore, #tpu.memory_space<semaphore_mem>> -> memref<!tpu.dma_semaphore, #tpu.memory_space<semaphore_mem>>
    tpu.enqueue_dma source(%19 : memref<16x128xbf16, #tpu.memory_space<any>>) target(%21 : memref<16x128xbf16, #tpu.memory_space<vmem>>) target_semaphore(%23 : memref<!tpu.dma_semaphore, #tpu.memory_space<semaphore_mem>>)
    %c0_i32_19 = arith.constant 0 : i32
    %c0_i32_20 = arith.constant 0 : i32
    %c0_i32_21 = arith.constant 0 : i32
    %c0_i32_22 = arith.constant 0 : i32
    %24 = tpu.memref_slice %arg2[%arg0, %3, %c0_i32_21, %c0_i32_22] : memref<2x16x16x128xbf16, #tpu.memory_space<any>> -> memref<1x1x16x128xbf16, #tpu.memory_space<any>>
    %25 = tpu.memref_squeeze %24 : memref<1x1x16x128xbf16, #tpu.memory_space<any>> -> memref<16x128xbf16, #tpu.memory_space<any>>
    %c0_i32_23 = arith.constant 0 : i32
    %c0_i32_24 = arith.constant 0 : i32
    %26 = tpu.memref_slice %arg6[%c0_i32_19, %c0_i32_23, %c0_i32_24] : memref<18x16x128xbf16, #tpu.memory_space<vmem>> -> memref<1x16x128xbf16, #tpu.memory_space<vmem>>
    %27 = tpu.memref_squeeze %26 : memref<1x16x128xbf16, #tpu.memory_space<vmem>> -> memref<16x128xbf16, #tpu.memory_space<vmem>>
    %28 = tpu.memref_slice %arg7[%c0_i32_20] : memref<3x!tpu.dma_semaphore, #tpu.memory_space<semaphore_mem>> -> memref<1x!tpu.dma_semaphore, #tpu.memory_space<semaphore_mem>>
    %29 = tpu.memref_squeeze %28 : memref<1x!tpu.dma_semaphore, #tpu.memory_space<semaphore_mem>> -> memref<!tpu.dma_semaphore, #tpu.memory_space<semaphore_mem>>
    tpu.wait_dma2 semaphore(%29 : memref<!tpu.dma_semaphore, #tpu.memory_space<semaphore_mem>>) src(%25 : memref<16x128xbf16, #tpu.memory_space<any>>) dst(%27 : memref<16x128xbf16, #tpu.memory_space<vmem>>)
    %c1_i32_25 = arith.constant 1 : i32
    %c0_i32_26 = arith.constant 0 : i32
    %c0_i32_27 = arith.constant 0 : i32
    %30 = tpu.memref_slice %arg2[%arg0, %0, %c0_i32_26, %c0_i32_27] : memref<2x16x16x128xbf16, #tpu.memory_space<any>> -> memref<1x16x16x128xbf16, #tpu.memory_space<any>>
    %31 = tpu.memref_squeeze %30 : memref<1x16x16x128xbf16, #tpu.memory_space<any>> -> memref<16x16x128xbf16, #tpu.memory_space<any>>
    %c1_i32_28 = arith.constant 1 : i32
    %c0_i32_29 = arith.constant 0 : i32
    %c0_i32_30 = arith.constant 0 : i32
    %32 = tpu.memref_slice %arg6[%c1_i32_28, %c0_i32_29, %c0_i32_30] : memref<18x16x128xbf16, #tpu.memory_space<vmem>> -> memref<16x16x128xbf16, #tpu.memory_space<vmem>>
    %33 = tpu.memref_slice %arg7[%c1_i32_25] : memref<3x!tpu.dma_semaphore, #tpu.memory_space<semaphore_mem>> -> memref<1x!tpu.dma_semaphore, #tpu.memory_space<semaphore_mem>>
    %34 = tpu.memref_squeeze %33 : memref<1x!tpu.dma_semaphore, #tpu.memory_space<semaphore_mem>> -> memref<!tpu.dma_semaphore, #tpu.memory_space<semaphore_mem>>
    tpu.wait_dma2 semaphore(%34 : memref<!tpu.dma_semaphore, #tpu.memory_space<semaphore_mem>>) src(%31 : memref<16x16x128xbf16, #tpu.memory_space<any>>) dst(%32 : memref<16x16x128xbf16, #tpu.memory_space<vmem>>)
    %c17_i32_31 = arith.constant 17 : i32
    %c2_i32_32 = arith.constant 2 : i32
    %c0_i32_33 = arith.constant 0 : i32
    %c0_i32_34 = arith.constant 0 : i32
    %35 = tpu.memref_slice %arg2[%arg0, %6, %c0_i32_33, %c0_i32_34] : memref<2x16x16x128xbf16, #tpu.memory_space<any>> -> memref<1x1x16x128xbf16, #tpu.memory_space<any>>
    %36 = tpu.memref_squeeze %35 : memref<1x1x16x128xbf16, #tpu.memory_space<any>> -> memref<16x128xbf16, #tpu.memory_space<any>>
    %c0_i32_35 = arith.constant 0 : i32
    %c0_i32_36 = arith.constant 0 : i32
    %37 = tpu.memref_slice %arg6[%c17_i32_31, %c0_i32_35, %c0_i32_36] : memref<18x16x128xbf16, #tpu.memory_space<vmem>> -> memref<1x16x128xbf16, #tpu.memory_space<vmem>>
    %38 = tpu.memref_squeeze %37 : memref<1x16x128xbf16, #tpu.memory_space<vmem>> -> memref<16x128xbf16, #tpu.memory_space<vmem>>
    %39 = tpu.memref_slice %arg7[%c2_i32_32] : memref<3x!tpu.dma_semaphore, #tpu.memory_space<semaphore_mem>> -> memref<1x!tpu.dma_semaphore, #tpu.memory_space<semaphore_mem>>
    %40 = tpu.memref_squeeze %39 : memref<1x!tpu.dma_semaphore, #tpu.memory_space<semaphore_mem>> -> memref<!tpu.dma_semaphore, #tpu.memory_space<semaphore_mem>>
    tpu.wait_dma2 semaphore(%40 : memref<!tpu.dma_semaphore, #tpu.memory_space<semaphore_mem>>) src(%36 : memref<16x128xbf16, #tpu.memory_space<any>>) dst(%38 : memref<16x128xbf16, #tpu.memory_space<vmem>>)
    %cst = arith.constant 0.000000e+00 : f32
    %41 = vector.broadcast %cst : f32 to vector<256x128xf32>
    %c0 = arith.constant 0 : index
    %c1 = arith.constant 1 : index
    %c0_37 = arith.constant 0 : index
    %42 = vector.load %arg6[%c0, %c1, %c0_37] : memref<18x16x128xbf16, #tpu.memory_space<vmem>>, vector<18x1x128xbf16>
    %c0_38 = arith.constant 0 : index
    %c0_39 = arith.constant 0 : index
    %c0_40 = arith.constant 0 : index
    %43 = vector.load %arg6[%c0_38, %c0_39, %c0_40] : memref<18x16x128xbf16, #tpu.memory_space<vmem>>, vector<18x15x128xbf16>
    %44 = tpu.concatenate %42, %43 in 1 : vector<18x1x128xbf16>, vector<18x15x128xbf16> -> vector<18x16x128xbf16>
    %45 = vector.extract_strided_slice %44 {offsets = [0, 0, 0], sizes = [16, 16, 128], strides = [1, 1, 1]} : vector<18x16x128xbf16> to vector<16x16x128xbf16>
    %46 = vector.extract_strided_slice %44 {offsets = [1, 0, 0], sizes = [16, 16, 128], strides = [1, 1, 1]} : vector<18x16x128xbf16> to vector<16x16x128xbf16>
    %47 = vector.extract_strided_slice %44 {offsets = [2, 0, 0], sizes = [16, 16, 128], strides = [1, 1, 1]} : vector<18x16x128xbf16> to vector<16x16x128xbf16>
    %48 = tpu.concatenate %45, %46, %47 in 2 : vector<16x16x128xbf16>, vector<16x16x128xbf16>, vector<16x16x128xbf16> -> vector<16x16x384xbf16>
    %49 = vector.shape_cast %48 : vector<16x16x384xbf16> to vector<256x384xbf16>
    %c0_41 = arith.constant 0 : index
    %c0_42 = arith.constant 0 : index
    %c0_43 = arith.constant 0 : index
    %50 = vector.load %arg3[%c0_41, %c0_42, %c0_43] : memref<3x384x128xbf16, #tpu.memory_space<vmem>>, vector<1x384x128xbf16>
    %51 = vector.shape_cast %50 : vector<1x384x128xbf16> to vector<384x128xbf16>
    %cst_44 = arith.constant dense<0.000000e+00> : vector<256x128xf32>
    %52 = tpu.matmul %49, %51, %cst_44 {dimension_numbers = #tpu.dot_dimension_numbers<[1], [0], [0], [1], [0, 0, 1, 1], [], []>} : vector<256x384xbf16>, vector<384x128xbf16>, vector<256x128xf32> -> vector<256x128xf32>
    %53 = arith.addf %41, %52 : vector<256x128xf32>
    %c0_45 = arith.constant 0 : index
    %c0_46 = arith.constant 0 : index
    %c0_47 = arith.constant 0 : index
    %54 = vector.load %arg6[%c0_45, %c0_46, %c0_47] : memref<18x16x128xbf16, #tpu.memory_space<vmem>>, vector<18x16x128xbf16>
    %55 = vector.extract_strided_slice %54 {offsets = [0, 0, 0], sizes = [16, 16, 128], strides = [1, 1, 1]} : vector<18x16x128xbf16> to vector<16x16x128xbf16>
    %56 = vector.extract_strided_slice %54 {offsets = [1, 0, 0], sizes = [16, 16, 128], strides = [1, 1, 1]} : vector<18x16x128xbf16> to vector<16x16x128xbf16>
    %57 = vector.extract_strided_slice %54 {offsets = [2, 0, 0], sizes = [16, 16, 128], strides = [1, 1, 1]} : vector<18x16x128xbf16> to vector<16x16x128xbf16>
    %58 = tpu.concatenate %55, %56, %57 in 2 : vector<16x16x128xbf16>, vector<16x16x128xbf16>, vector<16x16x128xbf16> -> vector<16x16x384xbf16>
    %59 = vector.shape_cast %58 : vector<16x16x384xbf16> to vector<256x384xbf16>
    %c1_48 = arith.constant 1 : index
    %c0_49 = arith.constant 0 : index
    %c0_50 = arith.constant 0 : index
    %60 = vector.load %arg3[%c1_48, %c0_49, %c0_50] : memref<3x384x128xbf16, #tpu.memory_space<vmem>>, vector<1x384x128xbf16>
    %61 = vector.shape_cast %60 : vector<1x384x128xbf16> to vector<384x128xbf16>
    %cst_51 = arith.constant dense<0.000000e+00> : vector<256x128xf32>
    %62 = tpu.matmul %59, %61, %cst_51 {dimension_numbers = #tpu.dot_dimension_numbers<[1], [0], [0], [1], [0, 0, 1, 1], [], []>} : vector<256x384xbf16>, vector<384x128xbf16>, vector<256x128xf32> -> vector<256x128xf32>
    %63 = arith.addf %53, %62 : vector<256x128xf32>
    %c0_52 = arith.constant 0 : index
    %c1_53 = arith.constant 1 : index
    %c0_54 = arith.constant 0 : index
    %64 = vector.load %arg6[%c0_52, %c1_53, %c0_54] : memref<18x16x128xbf16, #tpu.memory_space<vmem>>, vector<18x15x128xbf16>
    %c0_55 = arith.constant 0 : index
    %c14 = arith.constant 14 : index
    %c0_56 = arith.constant 0 : index
    %65 = vector.load %arg6[%c0_55, %c14, %c0_56] : memref<18x16x128xbf16, #tpu.memory_space<vmem>>, vector<18x1x128xbf16>
    %66 = tpu.concatenate %64, %65 in 1 : vector<18x15x128xbf16>, vector<18x1x128xbf16> -> vector<18x16x128xbf16>
    %67 = vector.extract_strided_slice %66 {offsets = [0, 0, 0], sizes = [16, 16, 128], strides = [1, 1, 1]} : vector<18x16x128xbf16> to vector<16x16x128xbf16>
    %68 = vector.extract_strided_slice %66 {offsets = [1, 0, 0], sizes = [16, 16, 128], strides = [1, 1, 1]} : vector<18x16x128xbf16> to vector<16x16x128xbf16>
    %69 = vector.extract_strided_slice %66 {offsets = [2, 0, 0], sizes = [16, 16, 128], strides = [1, 1, 1]} : vector<18x16x128xbf16> to vector<16x16x128xbf16>
    %70 = tpu.concatenate %67, %68, %69 in 2 : vector<16x16x128xbf16>, vector<16x16x128xbf16>, vector<16x16x128xbf16> -> vector<16x16x384xbf16>
    %71 = vector.shape_cast %70 : vector<16x16x384xbf16> to vector<256x384xbf16>
    %c2 = arith.constant 2 : index
    %c0_57 = arith.constant 0 : index
    %c0_58 = arith.constant 0 : index
    %72 = vector.load %arg3[%c2, %c0_57, %c0_58] : memref<3x384x128xbf16, #tpu.memory_space<vmem>>, vector<1x384x128xbf16>
    %73 = vector.shape_cast %72 : vector<1x384x128xbf16> to vector<384x128xbf16>
    %cst_59 = arith.constant dense<0.000000e+00> : vector<256x128xf32>
    %74 = tpu.matmul %71, %73, %cst_59 {dimension_numbers = #tpu.dot_dimension_numbers<[1], [0], [0], [1], [0, 0, 1, 1], [], []>} : vector<256x384xbf16>, vector<384x128xbf16>, vector<256x128xf32> -> vector<256x128xf32>
    %75 = arith.addf %63, %74 : vector<256x128xf32>
    %76 = vector.shape_cast %75 : vector<256x128xf32> to vector<1x16x16x128xf32>
    %77 = arith.truncf %76 : vector<1x16x16x128xf32> to vector<1x16x16x128xbf16>
    %c0_60 = arith.constant 0 : index
    %c0_61 = arith.constant 0 : index
    %c0_62 = arith.constant 0 : index
    %c0_63 = arith.constant 0 : index
    %78 = vector.load %arg4[%c0_60, %c0_61, %c0_62, %c0_63] : memref<1x16x16x128xbf16, #tpu.memory_space<vmem>>, vector<1x16x16x128xbf16>
    tpu.vector_store %arg4[%c0_60, %c0_61, %c0_62, %c0_63], %77 {strides = array<i32>} : memref<1x16x16x128xbf16, #tpu.memory_space<vmem>>, vector<1x16x16x128xbf16>,
    %cst_64 = arith.constant dense<0.000000e+00> : vector<128xf32>
    %79 = vector.multi_reduction <add>, %75, %cst_64 [0] : vector<256x128xf32> to vector<128xf32>
    %80 = vector.shape_cast %79 : vector<128xf32> to vector<1x128xf32>
    %81 = arith.mulf %75, %75 : vector<256x128xf32>
    %cst_65 = arith.constant dense<0.000000e+00> : vector<128xf32>
    %82 = vector.multi_reduction <add>, %81, %cst_65 [0] : vector<256x128xf32> to vector<128xf32>
    %83 = vector.shape_cast %82 : vector<128xf32> to vector<1x128xf32>
    %84 = tpu.concatenate %80, %83 in 0 : vector<1x128xf32>, vector<1x128xf32> -> vector<2x128xf32>
    %85 = vector.shape_cast %84 : vector<2x128xf32> to vector<1x1x2x128xf32>
    %c0_66 = arith.constant 0 : index
    %c0_67 = arith.constant 0 : index
    %c0_68 = arith.constant 0 : index
    %c0_69 = arith.constant 0 : index
    %86 = vector.load %arg5[%c0_66, %c0_67, %c0_68, %c0_69] : memref<1x1x2x128xf32, #tpu.memory_space<vmem>>, vector<1x1x2x128xf32>
    tpu.vector_store %arg5[%c0_66, %c0_67, %c0_68, %c0_69], %85 {strides = array<i32>} : memref<1x1x2x128xf32, #tpu.memory_space<vmem>>, vector<1x1x2x128xf32>,
    return
  }
  func.func @transform_1(%arg0: i32, %arg1: i32) -> (i32, i32, i32) {
    %c0_i32 = arith.constant 0 : i32
    %c0_i32_0 = arith.constant 0 : i32
    %c0_i32_1 = arith.constant 0 : i32
    %c0_i32_2 = arith.constant 0 : i32
    return %c0_i32, %c0_i32_0, %c0_i32_1 : i32, i32, i32
  }
  func.func @transform_2(%arg0: i32, %arg1: i32) -> (i32, i32, i32, i32) {
    %c0_i32 = arith.constant 0 : i32
    %c0_i32_0 = arith.constant 0 : i32
    %c0_i32_1 = arith.constant 0 : i32
    return %arg0, %arg1, %c0_i32, %c0_i32_0 : i32, i32, i32, i32
  }
  func.func @transform_3(%arg0: i32, %arg1: i32) -> (i32, i32, i32, i32) {
    %c0_i32 = arith.constant 0 : i32
    %c0_i32_0 = arith.constant 0 : i32
    %c0_i32_1 = arith.constant 0 : i32
    return %arg0, %arg1, %c0_i32, %c0_i32_0 : i32, i32, i32, i32
  }
}

module attributes {stable_mosaic.version = 11 : i64} {
  func.func @kernel(%arg0: i32, %arg1: i32, %arg2: memref<2x16x16x128xbf16, #tpu.memory_space<any>>, %arg3: memref<1x128xf32, #tpu.memory_space<vmem>>, %arg4: memref<1x128xf32, #tpu.memory_space<vmem>>, %arg5: memref<3x384x128xbf16, #tpu.memory_space<vmem>>, %arg6: memref<1x16x16x128xbf16, #tpu.memory_space<vmem>>, %arg7: memref<1x1x2x128xf32, #tpu.memory_space<vmem>>, %arg8: memref<18x16x128xbf16, #tpu.memory_space<vmem>>, %arg9: memref<3x!tpu.dma_semaphore, #tpu.memory_space<semaphore_mem>>) attributes {dimension_semantics = [#tpu.dimension_semantics<parallel>, #tpu.dimension_semantics<parallel>], iteration_bounds = array<i64: 2, 1>, scalar_prefetch = 0 : i64, scratch_operands = 2 : i64, tpu.core_type = #tpu.core_type<tc>, window_params = [{}, {pipeline_mode = #tpu.pipeline_mode<synchronous>, transform_indices = @transform_1, window_bounds = array<i64: 1, 128>}, {pipeline_mode = #tpu.pipeline_mode<synchronous>, transform_indices = @transform_2, window_bounds = array<i64: 1, 128>}, {pipeline_mode = #tpu.pipeline_mode<synchronous>, transform_indices = @transform_3, window_bounds = array<i64: 3, 384, 128>}, {transform_indices = @transform_4, window_bounds = array<i64: 1, 16, 16, 128>}, {transform_indices = @transform_5, window_bounds = array<i64: 1, 1, 2, 128>}]} {
    %c16_i32 = arith.constant 16 : i32
    %0 = arith.muli %arg1, %c16_i32 : i32
    %c0_i32 = arith.constant 0 : i32
    %1 = arith.cmpi eq, %arg1, %c0_i32 : i32
    %c1_i32 = arith.constant 1 : i32
    %2 = arith.subi %0, %c1_i32 : i32
    %c1_i32_0 = arith.constant 1 : i32
    %3 = arith.select %1, %c1_i32_0, %2 : i32
    %c0_i32_1 = arith.constant 0 : i32
    %4 = arith.cmpi eq, %arg1, %c0_i32_1 : i32
    %c16_i32_2 = arith.constant 16 : i32
    %5 = arith.addi %0, %c16_i32_2 : i32
    %c14_i32 = arith.constant 14 : i32
    %6 = arith.select %4, %c14_i32, %5 : i32
    %c0_i32_3 = arith.constant 0 : i32
    %c0_i32_4 = arith.constant 0 : i32
    %c0_i32_5 = arith.constant 0 : i32
    %c0_i32_6 = arith.constant 0 : i32
    %7 = tpu.memref_slice %arg2[%arg0, %3, %c0_i32_5, %c0_i32_6] : memref<2x16x16x128xbf16, #tpu.memory_space<any>> -> memref<1x1x16x128xbf16, #tpu.memory_space<any>>
    %8 = tpu.memref_squeeze %7 : memref<1x1x16x128xbf16, #tpu.memory_space<any>> -> memref<16x128xbf16, #tpu.memory_space<any>>
    %c0_i32_7 = arith.constant 0 : i32
    %c0_i32_8 = arith.constant 0 : i32
    %9 = tpu.memref_slice %arg8[%c0_i32_3, %c0_i32_7, %c0_i32_8] : memref<18x16x128xbf16, #tpu.memory_space<vmem>> -> memref<1x16x128xbf16, #tpu.memory_space<vmem>>
    %10 = tpu.memref_squeeze %9 : memref<1x16x128xbf16, #tpu.memory_space<vmem>> -> memref<16x128xbf16, #tpu.memory_space<vmem>>
    %11 = tpu.memref_slice %arg9[%c0_i32_4] : memref<3x!tpu.dma_semaphore, #tpu.memory_space<semaphore_mem>> -> memref<1x!tpu.dma_semaphore, #tpu.memory_space<semaphore_mem>>
    %12 = tpu.memref_squeeze %11 : memref<1x!tpu.dma_semaphore, #tpu.memory_space<semaphore_mem>> -> memref<!tpu.dma_semaphore, #tpu.memory_space<semaphore_mem>>
    tpu.enqueue_dma source(%8 : memref<16x128xbf16, #tpu.memory_space<any>>) target(%10 : memref<16x128xbf16, #tpu.memory_space<vmem>>) target_semaphore(%12 : memref<!tpu.dma_semaphore, #tpu.memory_space<semaphore_mem>>)
    %c1_i32_9 = arith.constant 1 : i32
    %c0_i32_10 = arith.constant 0 : i32
    %c0_i32_11 = arith.constant 0 : i32
    %13 = tpu.memref_slice %arg2[%arg0, %0, %c0_i32_10, %c0_i32_11] : memref<2x16x16x128xbf16, #tpu.memory_space<any>> -> memref<1x16x16x128xbf16, #tpu.memory_space<any>>
    %14 = tpu.memref_squeeze %13 : memref<1x16x16x128xbf16, #tpu.memory_space<any>> -> memref<16x16x128xbf16, #tpu.memory_space<any>>
    %c1_i32_12 = arith.constant 1 : i32
    %c0_i32_13 = arith.constant 0 : i32
    %c0_i32_14 = arith.constant 0 : i32
    %15 = tpu.memref_slice %arg8[%c1_i32_12, %c0_i32_13, %c0_i32_14] : memref<18x16x128xbf16, #tpu.memory_space<vmem>> -> memref<16x16x128xbf16, #tpu.memory_space<vmem>>
    %16 = tpu.memref_slice %arg9[%c1_i32_9] : memref<3x!tpu.dma_semaphore, #tpu.memory_space<semaphore_mem>> -> memref<1x!tpu.dma_semaphore, #tpu.memory_space<semaphore_mem>>
    %17 = tpu.memref_squeeze %16 : memref<1x!tpu.dma_semaphore, #tpu.memory_space<semaphore_mem>> -> memref<!tpu.dma_semaphore, #tpu.memory_space<semaphore_mem>>
    tpu.enqueue_dma source(%14 : memref<16x16x128xbf16, #tpu.memory_space<any>>) target(%15 : memref<16x16x128xbf16, #tpu.memory_space<vmem>>) target_semaphore(%17 : memref<!tpu.dma_semaphore, #tpu.memory_space<semaphore_mem>>)
    %c17_i32 = arith.constant 17 : i32
    %c2_i32 = arith.constant 2 : i32
    %c0_i32_15 = arith.constant 0 : i32
    %c0_i32_16 = arith.constant 0 : i32
    %18 = tpu.memref_slice %arg2[%arg0, %6, %c0_i32_15, %c0_i32_16] : memref<2x16x16x128xbf16, #tpu.memory_space<any>> -> memref<1x1x16x128xbf16, #tpu.memory_space<any>>
    %19 = tpu.memref_squeeze %18 : memref<1x1x16x128xbf16, #tpu.memory_space<any>> -> memref<16x128xbf16, #tpu.memory_space<any>>
    %c0_i32_17 = arith.constant 0 : i32
    %c0_i32_18 = arith.constant 0 : i32
    %20 = tpu.memref_slice %arg8[%c17_i32, %c0_i32_17, %c0_i32_18] : memref<18x16x128xbf16, #tpu.memory_space<vmem>> -> memref<1x16x128xbf16, #tpu.memory_space<vmem>>
    %21 = tpu.memref_squeeze %20 : memref<1x16x128xbf16, #tpu.memory_space<vmem>> -> memref<16x128xbf16, #tpu.memory_space<vmem>>
    %22 = tpu.memref_slice %arg9[%c2_i32] : memref<3x!tpu.dma_semaphore, #tpu.memory_space<semaphore_mem>> -> memref<1x!tpu.dma_semaphore, #tpu.memory_space<semaphore_mem>>
    %23 = tpu.memref_squeeze %22 : memref<1x!tpu.dma_semaphore, #tpu.memory_space<semaphore_mem>> -> memref<!tpu.dma_semaphore, #tpu.memory_space<semaphore_mem>>
    tpu.enqueue_dma source(%19 : memref<16x128xbf16, #tpu.memory_space<any>>) target(%21 : memref<16x128xbf16, #tpu.memory_space<vmem>>) target_semaphore(%23 : memref<!tpu.dma_semaphore, #tpu.memory_space<semaphore_mem>>)
    %c0_i32_19 = arith.constant 0 : i32
    %c0_i32_20 = arith.constant 0 : i32
    %c0_i32_21 = arith.constant 0 : i32
    %c0_i32_22 = arith.constant 0 : i32
    %24 = tpu.memref_slice %arg2[%arg0, %3, %c0_i32_21, %c0_i32_22] : memref<2x16x16x128xbf16, #tpu.memory_space<any>> -> memref<1x1x16x128xbf16, #tpu.memory_space<any>>
    %25 = tpu.memref_squeeze %24 : memref<1x1x16x128xbf16, #tpu.memory_space<any>> -> memref<16x128xbf16, #tpu.memory_space<any>>
    %c0_i32_23 = arith.constant 0 : i32
    %c0_i32_24 = arith.constant 0 : i32
    %26 = tpu.memref_slice %arg8[%c0_i32_19, %c0_i32_23, %c0_i32_24] : memref<18x16x128xbf16, #tpu.memory_space<vmem>> -> memref<1x16x128xbf16, #tpu.memory_space<vmem>>
    %27 = tpu.memref_squeeze %26 : memref<1x16x128xbf16, #tpu.memory_space<vmem>> -> memref<16x128xbf16, #tpu.memory_space<vmem>>
    %28 = tpu.memref_slice %arg9[%c0_i32_20] : memref<3x!tpu.dma_semaphore, #tpu.memory_space<semaphore_mem>> -> memref<1x!tpu.dma_semaphore, #tpu.memory_space<semaphore_mem>>
    %29 = tpu.memref_squeeze %28 : memref<1x!tpu.dma_semaphore, #tpu.memory_space<semaphore_mem>> -> memref<!tpu.dma_semaphore, #tpu.memory_space<semaphore_mem>>
    tpu.wait_dma2 semaphore(%29 : memref<!tpu.dma_semaphore, #tpu.memory_space<semaphore_mem>>) src(%25 : memref<16x128xbf16, #tpu.memory_space<any>>) dst(%27 : memref<16x128xbf16, #tpu.memory_space<vmem>>)
    %c1_i32_25 = arith.constant 1 : i32
    %c0_i32_26 = arith.constant 0 : i32
    %c0_i32_27 = arith.constant 0 : i32
    %30 = tpu.memref_slice %arg2[%arg0, %0, %c0_i32_26, %c0_i32_27] : memref<2x16x16x128xbf16, #tpu.memory_space<any>> -> memref<1x16x16x128xbf16, #tpu.memory_space<any>>
    %31 = tpu.memref_squeeze %30 : memref<1x16x16x128xbf16, #tpu.memory_space<any>> -> memref<16x16x128xbf16, #tpu.memory_space<any>>
    %c1_i32_28 = arith.constant 1 : i32
    %c0_i32_29 = arith.constant 0 : i32
    %c0_i32_30 = arith.constant 0 : i32
    %32 = tpu.memref_slice %arg8[%c1_i32_28, %c0_i32_29, %c0_i32_30] : memref<18x16x128xbf16, #tpu.memory_space<vmem>> -> memref<16x16x128xbf16, #tpu.memory_space<vmem>>
    %33 = tpu.memref_slice %arg9[%c1_i32_25] : memref<3x!tpu.dma_semaphore, #tpu.memory_space<semaphore_mem>> -> memref<1x!tpu.dma_semaphore, #tpu.memory_space<semaphore_mem>>
    %34 = tpu.memref_squeeze %33 : memref<1x!tpu.dma_semaphore, #tpu.memory_space<semaphore_mem>> -> memref<!tpu.dma_semaphore, #tpu.memory_space<semaphore_mem>>
    tpu.wait_dma2 semaphore(%34 : memref<!tpu.dma_semaphore, #tpu.memory_space<semaphore_mem>>) src(%31 : memref<16x16x128xbf16, #tpu.memory_space<any>>) dst(%32 : memref<16x16x128xbf16, #tpu.memory_space<vmem>>)
    %c17_i32_31 = arith.constant 17 : i32
    %c2_i32_32 = arith.constant 2 : i32
    %c0_i32_33 = arith.constant 0 : i32
    %c0_i32_34 = arith.constant 0 : i32
    %35 = tpu.memref_slice %arg2[%arg0, %6, %c0_i32_33, %c0_i32_34] : memref<2x16x16x128xbf16, #tpu.memory_space<any>> -> memref<1x1x16x128xbf16, #tpu.memory_space<any>>
    %36 = tpu.memref_squeeze %35 : memref<1x1x16x128xbf16, #tpu.memory_space<any>> -> memref<16x128xbf16, #tpu.memory_space<any>>
    %c0_i32_35 = arith.constant 0 : i32
    %c0_i32_36 = arith.constant 0 : i32
    %37 = tpu.memref_slice %arg8[%c17_i32_31, %c0_i32_35, %c0_i32_36] : memref<18x16x128xbf16, #tpu.memory_space<vmem>> -> memref<1x16x128xbf16, #tpu.memory_space<vmem>>
    %38 = tpu.memref_squeeze %37 : memref<1x16x128xbf16, #tpu.memory_space<vmem>> -> memref<16x128xbf16, #tpu.memory_space<vmem>>
    %39 = tpu.memref_slice %arg9[%c2_i32_32] : memref<3x!tpu.dma_semaphore, #tpu.memory_space<semaphore_mem>> -> memref<1x!tpu.dma_semaphore, #tpu.memory_space<semaphore_mem>>
    %40 = tpu.memref_squeeze %39 : memref<1x!tpu.dma_semaphore, #tpu.memory_space<semaphore_mem>> -> memref<!tpu.dma_semaphore, #tpu.memory_space<semaphore_mem>>
    tpu.wait_dma2 semaphore(%40 : memref<!tpu.dma_semaphore, #tpu.memory_space<semaphore_mem>>) src(%36 : memref<16x128xbf16, #tpu.memory_space<any>>) dst(%38 : memref<16x128xbf16, #tpu.memory_space<vmem>>)
    %c0 = arith.constant 0 : index
    %c0_37 = arith.constant 0 : index
    %c0_38 = arith.constant 0 : index
    %41 = vector.load %arg8[%c0, %c0_37, %c0_38] : memref<18x16x128xbf16, #tpu.memory_space<vmem>>, vector<18x16x128xbf16>
    %42 = arith.extf %41 : vector<18x16x128xbf16> to vector<18x16x128xf32>
    %c0_39 = arith.constant 0 : index
    %c0_40 = arith.constant 0 : index
    %43 = vector.load %arg3[%c0_39, %c0_40] : memref<1x128xf32, #tpu.memory_space<vmem>>, vector<1x128xf32>
    %44 = vector.shape_cast %43 : vector<1x128xf32> to vector<1x1x128xf32>
    %45 = vector.broadcast %44 : vector<1x1x128xf32> to vector<18x16x128xf32>
    %46 = arith.mulf %42, %45 : vector<18x16x128xf32>
    %c0_41 = arith.constant 0 : index
    %c0_42 = arith.constant 0 : index
    %47 = vector.load %arg4[%c0_41, %c0_42] : memref<1x128xf32, #tpu.memory_space<vmem>>, vector<1x128xf32>
    %48 = vector.shape_cast %47 : vector<1x128xf32> to vector<1x1x128xf32>
    %49 = vector.broadcast %48 : vector<1x1x128xf32> to vector<18x16x128xf32>
    %50 = arith.addf %46, %49 : vector<18x16x128xf32>
    %cst = arith.constant 0.000000e+00 : f32
    %51 = vector.broadcast %cst : f32 to vector<18x16x128xf32>
    %52 = arith.maximumf %50, %51 : vector<18x16x128xf32>
    %53 = arith.truncf %52 : vector<18x16x128xf32> to vector<18x16x128xbf16>
    %c0_43 = arith.constant 0 : index
    %c0_44 = arith.constant 0 : index
    %c0_45 = arith.constant 0 : index
    %54 = vector.load %arg8[%c0_43, %c0_44, %c0_45] : memref<18x16x128xbf16, #tpu.memory_space<vmem>>, vector<18x16x128xbf16>
    tpu.vector_store %arg8[%c0_43, %c0_44, %c0_45], %53 {strides = array<i32>} : memref<18x16x128xbf16, #tpu.memory_space<vmem>>, vector<18x16x128xbf16>,
    %cst_46 = arith.constant 0.000000e+00 : f32
    %55 = vector.broadcast %cst_46 : f32 to vector<256x128xf32>
    %c0_47 = arith.constant 0 : index
    %c1 = arith.constant 1 : index
    %c0_48 = arith.constant 0 : index
    %56 = vector.load %arg8[%c0_47, %c1, %c0_48] : memref<18x16x128xbf16, #tpu.memory_space<vmem>>, vector<18x1x128xbf16>
    %c0_49 = arith.constant 0 : index
    %c0_50 = arith.constant 0 : index
    %c0_51 = arith.constant 0 : index
    %57 = vector.load %arg8[%c0_49, %c0_50, %c0_51] : memref<18x16x128xbf16, #tpu.memory_space<vmem>>, vector<18x15x128xbf16>
    %58 = tpu.concatenate %56, %57 in 1 : vector<18x1x128xbf16>, vector<18x15x128xbf16> -> vector<18x16x128xbf16>
    %59 = vector.extract_strided_slice %58 {offsets = [0, 0, 0], sizes = [16, 16, 128], strides = [1, 1, 1]} : vector<18x16x128xbf16> to vector<16x16x128xbf16>
    %60 = vector.extract_strided_slice %58 {offsets = [1, 0, 0], sizes = [16, 16, 128], strides = [1, 1, 1]} : vector<18x16x128xbf16> to vector<16x16x128xbf16>
    %61 = vector.extract_strided_slice %58 {offsets = [2, 0, 0], sizes = [16, 16, 128], strides = [1, 1, 1]} : vector<18x16x128xbf16> to vector<16x16x128xbf16>
    %62 = tpu.concatenate %59, %60, %61 in 2 : vector<16x16x128xbf16>, vector<16x16x128xbf16>, vector<16x16x128xbf16> -> vector<16x16x384xbf16>
    %63 = vector.shape_cast %62 : vector<16x16x384xbf16> to vector<256x384xbf16>
    %c0_52 = arith.constant 0 : index
    %c0_53 = arith.constant 0 : index
    %c0_54 = arith.constant 0 : index
    %64 = vector.load %arg5[%c0_52, %c0_53, %c0_54] : memref<3x384x128xbf16, #tpu.memory_space<vmem>>, vector<1x384x128xbf16>
    %65 = vector.shape_cast %64 : vector<1x384x128xbf16> to vector<384x128xbf16>
    %cst_55 = arith.constant dense<0.000000e+00> : vector<256x128xf32>
    %66 = tpu.matmul %63, %65, %cst_55 {dimension_numbers = #tpu.dot_dimension_numbers<[1], [0], [0], [1], [0, 0, 1, 1], [], []>} : vector<256x384xbf16>, vector<384x128xbf16>, vector<256x128xf32> -> vector<256x128xf32>
    %67 = arith.addf %55, %66 : vector<256x128xf32>
    %c0_56 = arith.constant 0 : index
    %c0_57 = arith.constant 0 : index
    %c0_58 = arith.constant 0 : index
    %68 = vector.load %arg8[%c0_56, %c0_57, %c0_58] : memref<18x16x128xbf16, #tpu.memory_space<vmem>>, vector<18x16x128xbf16>
    %69 = vector.extract_strided_slice %68 {offsets = [0, 0, 0], sizes = [16, 16, 128], strides = [1, 1, 1]} : vector<18x16x128xbf16> to vector<16x16x128xbf16>
    %70 = vector.extract_strided_slice %68 {offsets = [1, 0, 0], sizes = [16, 16, 128], strides = [1, 1, 1]} : vector<18x16x128xbf16> to vector<16x16x128xbf16>
    %71 = vector.extract_strided_slice %68 {offsets = [2, 0, 0], sizes = [16, 16, 128], strides = [1, 1, 1]} : vector<18x16x128xbf16> to vector<16x16x128xbf16>
    %72 = tpu.concatenate %69, %70, %71 in 2 : vector<16x16x128xbf16>, vector<16x16x128xbf16>, vector<16x16x128xbf16> -> vector<16x16x384xbf16>
    %73 = vector.shape_cast %72 : vector<16x16x384xbf16> to vector<256x384xbf16>
    %c1_59 = arith.constant 1 : index
    %c0_60 = arith.constant 0 : index
    %c0_61 = arith.constant 0 : index
    %74 = vector.load %arg5[%c1_59, %c0_60, %c0_61] : memref<3x384x128xbf16, #tpu.memory_space<vmem>>, vector<1x384x128xbf16>
    %75 = vector.shape_cast %74 : vector<1x384x128xbf16> to vector<384x128xbf16>
    %cst_62 = arith.constant dense<0.000000e+00> : vector<256x128xf32>
    %76 = tpu.matmul %73, %75, %cst_62 {dimension_numbers = #tpu.dot_dimension_numbers<[1], [0], [0], [1], [0, 0, 1, 1], [], []>} : vector<256x384xbf16>, vector<384x128xbf16>, vector<256x128xf32> -> vector<256x128xf32>
    %77 = arith.addf %67, %76 : vector<256x128xf32>
    %c0_63 = arith.constant 0 : index
    %c1_64 = arith.constant 1 : index
    %c0_65 = arith.constant 0 : index
    %78 = vector.load %arg8[%c0_63, %c1_64, %c0_65] : memref<18x16x128xbf16, #tpu.memory_space<vmem>>, vector<18x15x128xbf16>
    %c0_66 = arith.constant 0 : index
    %c14 = arith.constant 14 : index
    %c0_67 = arith.constant 0 : index
    %79 = vector.load %arg8[%c0_66, %c14, %c0_67] : memref<18x16x128xbf16, #tpu.memory_space<vmem>>, vector<18x1x128xbf16>
    %80 = tpu.concatenate %78, %79 in 1 : vector<18x15x128xbf16>, vector<18x1x128xbf16> -> vector<18x16x128xbf16>
    %81 = vector.extract_strided_slice %80 {offsets = [0, 0, 0], sizes = [16, 16, 128], strides = [1, 1, 1]} : vector<18x16x128xbf16> to vector<16x16x128xbf16>
    %82 = vector.extract_strided_slice %80 {offsets = [1, 0, 0], sizes = [16, 16, 128], strides = [1, 1, 1]} : vector<18x16x128xbf16> to vector<16x16x128xbf16>
    %83 = vector.extract_strided_slice %80 {offsets = [2, 0, 0], sizes = [16, 16, 128], strides = [1, 1, 1]} : vector<18x16x128xbf16> to vector<16x16x128xbf16>
    %84 = tpu.concatenate %81, %82, %83 in 2 : vector<16x16x128xbf16>, vector<16x16x128xbf16>, vector<16x16x128xbf16> -> vector<16x16x384xbf16>
    %85 = vector.shape_cast %84 : vector<16x16x384xbf16> to vector<256x384xbf16>
    %c2 = arith.constant 2 : index
    %c0_68 = arith.constant 0 : index
    %c0_69 = arith.constant 0 : index
    %86 = vector.load %arg5[%c2, %c0_68, %c0_69] : memref<3x384x128xbf16, #tpu.memory_space<vmem>>, vector<1x384x128xbf16>
    %87 = vector.shape_cast %86 : vector<1x384x128xbf16> to vector<384x128xbf16>
    %cst_70 = arith.constant dense<0.000000e+00> : vector<256x128xf32>
    %88 = tpu.matmul %85, %87, %cst_70 {dimension_numbers = #tpu.dot_dimension_numbers<[1], [0], [0], [1], [0, 0, 1, 1], [], []>} : vector<256x384xbf16>, vector<384x128xbf16>, vector<256x128xf32> -> vector<256x128xf32>
    %89 = arith.addf %77, %88 : vector<256x128xf32>
    %90 = vector.shape_cast %89 : vector<256x128xf32> to vector<1x16x16x128xf32>
    %91 = arith.truncf %90 : vector<1x16x16x128xf32> to vector<1x16x16x128xbf16>
    %c0_71 = arith.constant 0 : index
    %c0_72 = arith.constant 0 : index
    %c0_73 = arith.constant 0 : index
    %c0_74 = arith.constant 0 : index
    %92 = vector.load %arg6[%c0_71, %c0_72, %c0_73, %c0_74] : memref<1x16x16x128xbf16, #tpu.memory_space<vmem>>, vector<1x16x16x128xbf16>
    tpu.vector_store %arg6[%c0_71, %c0_72, %c0_73, %c0_74], %91 {strides = array<i32>} : memref<1x16x16x128xbf16, #tpu.memory_space<vmem>>, vector<1x16x16x128xbf16>,
    %cst_75 = arith.constant dense<0.000000e+00> : vector<128xf32>
    %93 = vector.multi_reduction <add>, %89, %cst_75 [0] : vector<256x128xf32> to vector<128xf32>
    %94 = vector.shape_cast %93 : vector<128xf32> to vector<1x128xf32>
    %95 = arith.mulf %89, %89 : vector<256x128xf32>
    %cst_76 = arith.constant dense<0.000000e+00> : vector<128xf32>
    %96 = vector.multi_reduction <add>, %95, %cst_76 [0] : vector<256x128xf32> to vector<128xf32>
    %97 = vector.shape_cast %96 : vector<128xf32> to vector<1x128xf32>
    %98 = tpu.concatenate %94, %97 in 0 : vector<1x128xf32>, vector<1x128xf32> -> vector<2x128xf32>
    %99 = vector.shape_cast %98 : vector<2x128xf32> to vector<1x1x2x128xf32>
    %c0_77 = arith.constant 0 : index
    %c0_78 = arith.constant 0 : index
    %c0_79 = arith.constant 0 : index
    %c0_80 = arith.constant 0 : index
    %100 = vector.load %arg7[%c0_77, %c0_78, %c0_79, %c0_80] : memref<1x1x2x128xf32, #tpu.memory_space<vmem>>, vector<1x1x2x128xf32>
    tpu.vector_store %arg7[%c0_77, %c0_78, %c0_79, %c0_80], %99 {strides = array<i32>} : memref<1x1x2x128xf32, #tpu.memory_space<vmem>>, vector<1x1x2x128xf32>,
    return
  }
  func.func @transform_1(%arg0: i32, %arg1: i32) -> (i32, i32) {
    %c0_i32 = arith.constant 0 : i32
    %c0_i32_0 = arith.constant 0 : i32
    %c0_i32_1 = arith.constant 0 : i32
    return %c0_i32, %c0_i32_0 : i32, i32
  }
  func.func @transform_2(%arg0: i32, %arg1: i32) -> (i32, i32) {
    %c0_i32 = arith.constant 0 : i32
    %c0_i32_0 = arith.constant 0 : i32
    %c0_i32_1 = arith.constant 0 : i32
    return %c0_i32, %c0_i32_0 : i32, i32
  }
  func.func @transform_3(%arg0: i32, %arg1: i32) -> (i32, i32, i32) {
    %c0_i32 = arith.constant 0 : i32
    %c0_i32_0 = arith.constant 0 : i32
    %c0_i32_1 = arith.constant 0 : i32
    %c0_i32_2 = arith.constant 0 : i32
    return %c0_i32, %c0_i32_0, %c0_i32_1 : i32, i32, i32
  }
  func.func @transform_4(%arg0: i32, %arg1: i32) -> (i32, i32, i32, i32) {
    %c0_i32 = arith.constant 0 : i32
    %c0_i32_0 = arith.constant 0 : i32
    %c0_i32_1 = arith.constant 0 : i32
    return %arg0, %arg1, %c0_i32, %c0_i32_0 : i32, i32, i32, i32
  }
  func.func @transform_5(%arg0: i32, %arg1: i32) -> (i32, i32, i32, i32) {
    %c0_i32 = arith.constant 0 : i32
    %c0_i32_0 = arith.constant 0 : i32
    %c0_i32_1 = arith.constant 0 : i32
    return %arg0, %arg1, %c0_i32, %c0_i32_0 : i32, i32, i32, i32
  }
}

module attributes {stable_mosaic.version = 11 : i64} {
  func.func @_bn_residual_kernel(%arg0: i32, %arg1: i32, %arg2: memref<1x16x16x128xbf16, #tpu.memory_space<vmem>>, %arg3: memref<1x16x16x128xf32, #tpu.memory_space<vmem>>, %arg4: memref<1x128xf32, #tpu.memory_space<vmem>>, %arg5: memref<1x128xf32, #tpu.memory_space<vmem>>, %arg6: memref<1x16x16x128xf32, #tpu.memory_space<vmem>>) attributes {dimension_semantics = [#tpu.dimension_semantics<parallel>, #tpu.dimension_semantics<parallel>], iteration_bounds = array<i64: 2, 1>, scalar_prefetch = 0 : i64, scratch_operands = 0 : i64, tpu.core_type = #tpu.core_type<tc>, window_params = [{transform_indices = @transform_0, window_bounds = array<i64: 1, 16, 16, 128>}, {transform_indices = @transform_1, window_bounds = array<i64: 1, 16, 16, 128>}, {pipeline_mode = #tpu.pipeline_mode<synchronous>, transform_indices = @transform_2, window_bounds = array<i64: 1, 128>}, {pipeline_mode = #tpu.pipeline_mode<synchronous>, transform_indices = @transform_3, window_bounds = array<i64: 1, 128>}, {transform_indices = @transform_4, window_bounds = array<i64: 1, 16, 16, 128>}]} {
    %c0 = arith.constant 0 : index
    %c0_0 = arith.constant 0 : index
    %c0_1 = arith.constant 0 : index
    %c0_2 = arith.constant 0 : index
    %0 = vector.load %arg2[%c0, %c0_0, %c0_1, %c0_2] : memref<1x16x16x128xbf16, #tpu.memory_space<vmem>>, vector<1x16x16x128xbf16>
    %1 = arith.extf %0 : vector<1x16x16x128xbf16> to vector<1x16x16x128xf32>
    %c0_3 = arith.constant 0 : index
    %c0_4 = arith.constant 0 : index
    %2 = vector.load %arg4[%c0_3, %c0_4] : memref<1x128xf32, #tpu.memory_space<vmem>>, vector<1x128xf32>
    %3 = vector.shape_cast %2 : vector<1x128xf32> to vector<1x1x1x128xf32>
    %4 = vector.broadcast %3 : vector<1x1x1x128xf32> to vector<1x16x16x128xf32>
    %5 = arith.mulf %1, %4 : vector<1x16x16x128xf32>
    %c0_5 = arith.constant 0 : index
    %c0_6 = arith.constant 0 : index
    %6 = vector.load %arg5[%c0_5, %c0_6] : memref<1x128xf32, #tpu.memory_space<vmem>>, vector<1x128xf32>
    %7 = vector.shape_cast %6 : vector<1x128xf32> to vector<1x1x1x128xf32>
    %8 = vector.broadcast %7 : vector<1x1x1x128xf32> to vector<1x16x16x128xf32>
    %9 = arith.addf %5, %8 : vector<1x16x16x128xf32>
    %c0_7 = arith.constant 0 : index
    %c0_8 = arith.constant 0 : index
    %c0_9 = arith.constant 0 : index
    %c0_10 = arith.constant 0 : index
    %10 = vector.load %arg3[%c0_7, %c0_8, %c0_9, %c0_10] : memref<1x16x16x128xf32, #tpu.memory_space<vmem>>, vector<1x16x16x128xf32>
    %11 = arith.addf %9, %10 : vector<1x16x16x128xf32>
    %c0_11 = arith.constant 0 : index
    %c0_12 = arith.constant 0 : index
    %c0_13 = arith.constant 0 : index
    %c0_14 = arith.constant 0 : index
    %12 = vector.load %arg6[%c0_11, %c0_12, %c0_13, %c0_14] : memref<1x16x16x128xf32, #tpu.memory_space<vmem>>, vector<1x16x16x128xf32>
    tpu.vector_store %arg6[%c0_11, %c0_12, %c0_13, %c0_14], %11 {strides = array<i32>} : memref<1x16x16x128xf32, #tpu.memory_space<vmem>>, vector<1x16x16x128xf32>,
    return
  }
  func.func @transform_0(%arg0: i32, %arg1: i32) -> (i32, i32, i32, i32) {
    %c0_i32 = arith.constant 0 : i32
    %c0_i32_0 = arith.constant 0 : i32
    %c0_i32_1 = arith.constant 0 : i32
    return %arg0, %arg1, %c0_i32, %c0_i32_0 : i32, i32, i32, i32
  }
  func.func @transform_1(%arg0: i32, %arg1: i32) -> (i32, i32, i32, i32) {
    %c0_i32 = arith.constant 0 : i32
    %c0_i32_0 = arith.constant 0 : i32
    %c0_i32_1 = arith.constant 0 : i32
    return %arg0, %arg1, %c0_i32, %c0_i32_0 : i32, i32, i32, i32
  }
  func.func @transform_2(%arg0: i32, %arg1: i32) -> (i32, i32) {
    %c0_i32 = arith.constant 0 : i32
    %c0_i32_0 = arith.constant 0 : i32
    %c0_i32_1 = arith.constant 0 : i32
    return %c0_i32, %c0_i32_0 : i32, i32
  }
  func.func @transform_3(%arg0: i32, %arg1: i32) -> (i32, i32) {
    %c0_i32 = arith.constant 0 : i32
    %c0_i32_0 = arith.constant 0 : i32
    %c0_i32_1 = arith.constant 0 : i32
    return %c0_i32, %c0_i32_0 : i32, i32
  }
  func.func @transform_4(%arg0: i32, %arg1: i32) -> (i32, i32, i32, i32) {
    %c0_i32 = arith.constant 0 : i32
    %c0_i32_0 = arith.constant 0 : i32
    %c0_i32_1 = arith.constant 0 : i32
    return %arg0, %arg1, %c0_i32, %c0_i32_0 : i32, i32, i32, i32
  }
}

</mosaic_0001>

<llo_original>
// kernel: resnet_block.5
$region0: #{resnet_block.5}
  #allocation0 [shape = 'u32[]', space=smem, size = 0x4, offset = 0x4, fixed_abs, tag = 'smem constant byte address 0x4 - core index']
  #allocation1 [shape = 'u32[144,128]{1,0:T(1,128)}', space=vmem, size = 0x12000, scoped, tag = 'internal scratch']
  %s0 = inlined_call_operand.vmem [shape: bf16[2,16,16,128], index: 0, kind: input, shape index: {}]
  %s1 = inlined_call_operand.vmem [shape: f32[2,16,16,128], index: 1, kind: input, shape index: {}, may-alias: {1,4}]
  %s2 = inlined_call_operand.vmem [shape: f32[1,128], index: 2, kind: input, shape index: {}]
  %s3 = inlined_call_operand.vmem [shape: f32[1,128], index: 3, kind: input, shape index: {}]
  %s4 = inlined_call_operand.vmem [shape: f32[2,16,16,128], index: 4, kind: output, shape index: {}, may-alias: {1,4}]
  %s5 = sld [smem:[#allocation0]]
  $region49: #{resnet_block.5} parent=0
    _
  %s7 = ssub.s32 1, %s5
  %s8 = scalar_select 0, %s7, %s5
  loop: start=0, step=1, limit=4
  $region2: #{resnet_block.5} parent=0 // loop_pre_header
    _
  $region3: #{resnet_block.5} parent=0 // loop_header
    %s10 = sphi 0, %s14
    %p11 = scmp.ge.s32.totalorder %s10, 4
    %s17 = sphi 0, %s29
    %s18 = sphi 0, %s25
    %s19 = sphi 0, %s17
    %s20 = sphi 0, %s18
    %s21 = sphi 0, %s19
    %s22 = sphi 0, %s20
    %s34 = sphi 0, %s36
    %s37 = sphi 0, %s34
    %s38 = sphi 0, %s37
    %s54 = sphi 0, %s38
    %s62 = sphi 0, %s64
    %s65 = sphi 0, %s62
    %s66 = sphi 0, %s65
    %s82 = sphi 0, %s66
    %s86 = sphi 0, %s86
    %s88 = sphi 0, %s86
    %s89 = sphi 0, %s88
    %s103 = sphi 0, %s89
    %s107 = sphi 0, %s107
    %s109 = sphi 0, %s107
    %s110 = sphi 0, %s109
    %s124 = sphi 0, %s110
    %s132 = sphi 0, %s134
    %s135 = sphi 0, %s132
    %s136 = sphi 0, %s135
    %s152 = sphi 0, %s136
  $region4: #{resnet_block.5} parent=0 // loop_header_branch
    %13 = sbr.rel (%p11) target = $region8
  $region5: #{resnet_block.5} parent=0 // loop_body
    %s15 = ssub.s32 %s10, 1
    %s16 = ssub.s32 %s10, 2
    %s23 = sadd.s32 1, %s18
    %p24 = scmp.ge.s32.totalorder %s23, 1
    %s25 = scalar_select %p24, 0, %s23
    %s26 = sadd.s32 1, %s17
    %s27 = scalar_select %p24, %s26, %s17
    %p28 = scmp.ge.s32.totalorder %s27, 2
    %s29 = scalar_select %p28, 0, %s27
    %s30 = ssub.s32 %s17, %s29
    %s31 = ssub.s32 %s18, %s25
    %s32 = sor.u32 %s30, %s31
    %p33 = scmp.eq.s32.totalorder %s32, 0
    %s35 = sadd.s32 %s34, 1
    %s36 = scalar_select %p33, %s34, %s35
    %p39 = pneg %p33
    %p40 = scmp.eq.s32.totalorder %s10, 1
    %p41 = por %p39, %p40
    %p42 = scmp.ne.s32.totalorder %s34, %s37
    %p43 = scmp.eq.s32.totalorder %s10, 0
    %p44 = por %p42, %p43
    %p45 = scmp.ne.s32.totalorder %s34, %s37
    %p46 = scmp.eq.s32.totalorder %s15, 1
    %p47 = por %p45, %p46
    %p48 = scmp.ne.s32.totalorder %s37, %s38
    %p49 = scmp.eq.s32.totalorder %s15, 0
    %p50 = por %p48, %p49
    %p51 = scmp.ne.s32.totalorder %s37, %s38
    %p52 = scmp.eq.s32.totalorder %s16, 1
    %p53 = por %p51, %p52
    %p55 = scmp.ne.s32.totalorder %s38, %s54
    %p56 = scmp.eq.s32.totalorder %s16, 0
    %p57 = por %p55, %p56
    %s58 = ssub.s32 %s17, %s29
    %s59 = ssub.s32 %s18, %s25
    %s60 = sor.u32 %s58, %s59
    %p61 = scmp.eq.s32.totalorder %s60, 0
    %s63 = sadd.s32 %s62, 1
    %s64 = scalar_select %p61, %s62, %s63
    %p67 = pneg %p61
    %p68 = scmp.eq.s32.totalorder %s10, 1
    %p69 = por %p67, %p68
    %p70 = scmp.ne.s32.totalorder %s62, %s65
    %p71 = scmp.eq.s32.totalorder %s10, 0
    %p72 = por %p70, %p71
    %p73 = scmp.ne.s32.totalorder %s62, %s65
    %p74 = scmp.eq.s32.totalorder %s15, 1
    %p75 = por %p73, %p74
    %p76 = scmp.ne.s32.totalorder %s65, %s66
    %p77 = scmp.eq.s32.totalorder %s15, 0
    %p78 = por %p76, %p77
    %p79 = scmp.ne.s32.totalorder %s65, %s66
    %p80 = scmp.eq.s32.totalorder %s16, 1
    %p81 = por %p79, %p80
    %p83 = scmp.ne.s32.totalorder %s66, %s82
    %p84 = scmp.eq.s32.totalorder %s16, 0
    %p85 = por %p83, %p84
    %s87 = sadd.s32 %s86, 1
    %p90 = scmp.eq.s32.totalorder %s10, 1
    %p91 = scmp.ne.s32.totalorder %s86, %s88
    %p92 = scmp.eq.s32.totalorder %s10, 0
    %p93 = por %p91, %p92
    %p94 = scmp.ne.s32.totalorder %s86, %s88
    %p95 = scmp.eq.s32.totalorder %s15, 1
    %p96 = por %p94, %p95
    %p97 = scmp.ne.s32.totalorder %s88, %s89
    %p98 = scmp.eq.s32.totalorder %s15, 0
    %p99 = por %p97, %p98
    %p100 = scmp.ne.s32.totalorder %s88, %s89
    %p101 = scmp.eq.s32.totalorder %s16, 1
    %p102 = por %p100, %p101
    %p104 = scmp.ne.s32.totalorder %s89, %s103
    %p105 = scmp.eq.s32.totalorder %s16, 0
    %p106 = por %p104, %p105
    %s108 = sadd.s32 %s107, 1
    %p111 = scmp.eq.s32.totalorder %s10, 1
    %p112 = scmp.ne.s32.totalorder %s107, %s109
    %p113 = scmp.eq.s32.totalorder %s10, 0
    %p114 = por %p112, %p113
    %p115 = scmp.ne.s32.totalorder %s107, %s109
    %p116 = scmp.eq.s32.totalorder %s15, 1
    %p117 = por %p115, %p116
    %p118 = scmp.ne.s32.totalorder %s109, %s110
    %p119 = scmp.eq.s32.totalorder %s15, 0
    %p120 = por %p118, %p119
    %p121 = scmp.ne.s32.totalorder %s109, %s110
    %p122 = scmp.eq.s32.totalorder %s16, 1
    %p123 = por %p121, %p122
    %p125 = scmp.ne.s32.totalorder %s110, %s124
    %p126 = scmp.eq.s32.totalorder %s16, 0
    %p127 = por %p125, %p126
    %s128 = ssub.s32 %s17, %s29
    %s129 = ssub.s32 %s18, %s25
    %s130 = sor.u32 %s128, %s129
    %p131 = scmp.eq.s32.totalorder %s130, 0
    %s133 = sadd.s32 %s132, 1
    %s134 = scalar_select %p131, %s132, %s133
    %p137 = pneg %p131
    %p138 = scmp.eq.s32.totalorder %s10, 1
    %p139 = por %p137, %p138
    %p140 = scmp.ne.s32.totalorder %s132, %s135
    %p141 = scmp.eq.s32.totalorder %s10, 0
    %p142 = por %p140, %p141
    %p143 = scmp.ne.s32.totalorder %s132, %s135
    %p144 = scmp.eq.s32.totalorder %s15, 1
    %p145 = por %p143, %p144
    %p146 = scmp.ne.s32.totalorder %s135, %s136
    %p147 = scmp.eq.s32.totalorder %s15, 0
    %p148 = por %p146, %p147
    %p149 = scmp.ne.s32.totalorder %s135, %s136
    %p150 = scmp.eq.s32.totalorder %s16, 1
    %p151 = por %p149, %p150
    %p153 = scmp.ne.s32.totalorder %s136, %s152
    %p154 = scmp.eq.s32.totalorder %s16, 0
    %p155 = por %p153, %p154
    %p156 = scmp.le.s32.totalorder 1, %s10
    %p157 = scmp.lt.s32.totalorder %s10, 3
    %p158 = pnand %p156, %p157
    %p159 = pneg %p158
    // Predicated region
    $region9: #{resnet_block.5} parent=5 // pred_check
      _
    $region10: #{resnet_block.5} parent=5 // pred_check_branch
      %161 = sbr.rel (%p158) target = $region12
    $region11: #{resnet_block.5} parent=5 // pred_region
      %s162 = ssub.s32 %s10, 1
      // Predicated region
      $region13: #{resnet_block.5} parent=11 // pred_check
        %p163 = pneg %p99
      $region14: #{resnet_block.5} parent=11 // pred_check_branch
        %165 = sbr.rel (%p163) target = $region16
      $region15: #{resnet_block.5} parent=11 // pred_region
        _
      $region16: #{resnet_block.5} parent=11 // pred_fallthru
        _
      // Predicated region
      $region17: #{resnet_block.5} parent=11 // pred_check
        %p166 = pneg %p120
      $region18: #{resnet_block.5} parent=11 // pred_check_branch
        %168 = sbr.rel (%p166) target = $region20
      $region19: #{resnet_block.5} parent=11 // pred_region
        _
      $region20: #{resnet_block.5} parent=11 // pred_fallthru
        _
    $region12: #{resnet_block.5} parent=5 // pred_fallthru
      _
    %p169 = scmp.lt.s32.totalorder %s10, 2
    // Predicated region
    $region21: #{resnet_block.5} parent=5 // pred_check
      %p170 = pneg %p169
    $region22: #{resnet_block.5} parent=5 // pred_check_branch
      %172 = sbr.rel (%p170) target = $region24
    $region23: #{resnet_block.5} parent=5 // pred_region
      // Predicated region
      $region25: #{resnet_block.5} parent=23 // pred_check
        %p173 = pneg %p44
      $region26: #{resnet_block.5} parent=23 // pred_check_branch
        %175 = sbr.rel (%p173) target = $region28
      $region27: #{resnet_block.5} parent=23 // pred_region
        %s176 = smul.u32 16, %s18
        %p177 = scmp.lt.s32.totalorder %s17, 1
        %s178 = scalar_select %p177, %s17, 1
        %p179 = scmp.lt.s32.totalorder %s176, 15
        %s180 = scalar_select %p179, %s176, 15
        %s181 = smul.addr %s180, 2
        %s182 = smul.addr %s178, 32
        %s183 = sadd.s32 %s181, %s182
        %s184 = smul.addr %s183, 4
        %s185 = scalar_lea.vmem %s0, %s184
        %s186 = smul.u32 16, %s18
      $region28: #{resnet_block.5} parent=23 // pred_fallthru
        _
      // Predicated region
      $region29: #{resnet_block.5} parent=23 // pred_check
        %p187 = pneg %p72
      $region30: #{resnet_block.5} parent=23 // pred_check_branch
        %189 = sbr.rel (%p187) target = $region32
      $region31: #{resnet_block.5} parent=23 // pred_region
        %s190 = smul.u32 16, %s18
        %p191 = scmp.lt.s32.totalorder %s17, 1
        %s192 = scalar_select %p191, %s17, 1
        %p193 = scmp.lt.s32.totalorder %s190, 15
        %s194 = scalar_select %p193, %s190, 15
        %s195 = smul.addr %s194, 2
        %s196 = smul.addr %s192, 32
        %s197 = sadd.s32 %s195, %s196
        %s198 = smul.addr %s197, 8
        %s199 = scalar_lea.vmem %s1, %s198
        %s200 = smul.u32 16, %s18
      $region32: #{resnet_block.5} parent=23 // pred_fallthru
        _
    $region24: #{resnet_block.5} parent=5 // pred_fallthru
      _
    %p201 = scmp.le.s32.totalorder 1, %s10
    %p202 = scmp.lt.s32.totalorder %s10, 3
    %p203 = pnand %p201, %p202
    %p204 = pneg %p203
    // Predicated region
    $region33: #{resnet_block.5} parent=5 // pred_check
      _
    $region34: #{resnet_block.5} parent=5 // pred_check_branch
      %206 = sbr.rel (%p203) target = $region36
    $region35: #{resnet_block.5} parent=5 // pred_region
      %s207 = ssub.s32 %s10, 1
      %s208 = smul.u32 16, %s20
      %p209 = scmp.lt.s32.totalorder %s19, 1
      %s210 = scalar_select %p209, %s19, 1
      %p211 = scmp.lt.s32.totalorder %s208, 15
      %s212 = scalar_select %p211, %s208, 15
      %s213 = smul.addr %s212, 2
      %s214 = smul.addr %s210, 32
      %s215 = sadd.s32 %s213, %s214
      %s216 = smul.addr %s215, 4
      %s217 = scalar_lea.vmem %s0, %s216
      %p218 = pneg %p50
      %p219 = pneg %p47
      %s220 = smul.u32 16, %s20
      %p221 = scmp.lt.s32.totalorder %s19, 1
      %s222 = scalar_select %p221, %s19, 1
      %p223 = scmp.lt.s32.totalorder %s220, 15
      %s224 = scalar_select %p223, %s220, 15
      %s225 = smul.addr %s224, 2
      %s226 = smul.addr %s222, 32
      %s227 = sadd.s32 %s225, %s226
      %s228 = smul.addr %s227, 8
      %s229 = scalar_lea.vmem %s1, %s228
      %p230 = pneg %p78
      %p231 = pneg %p75
      %p232 = pneg %p99
      %p233 = pneg %p96
      %p234 = pneg %p120
      %p235 = pneg %p117
      %p236 = pneg %p148
      %p237 = pneg %p145
      %s238 = smul.u32 16, %s20
      %p239 = scmp.lt.s32.totalorder %s19, 1
      %s240 = scalar_select %p239, %s19, 1
      %p241 = scmp.lt.s32.totalorder %s238, 15
      %s242 = scalar_select %p241, %s238, 15
      %s243 = smul.addr %s242, 2
      %s244 = smul.addr %s240, 32
      %s245 = sadd.s32 %s243, %s244
      %s246 = smul.addr %s245, 8
      %s247 = scalar_lea.vmem %s4, %s246
      %s248 = smul.u32 16, %s20
      %p249 = scmp.lt.s32.totalorder %s19, 1
      %s250 = scalar_select %p249, %s19, 1
      %p251 = scmp.lt.s32.totalorder %s248, 15
      %s252 = scalar_select %p251, %s248, 15
      %s253 = smul.addr %s252, 2
      %s254 = smul.addr %s250, 32
      %s255 = sadd.s32 %s253, %s254
      %s256 = smul.addr %s255, 4
      %s257 = scalar_lea.vmem %s0, %s256
      %s258 = smul.u32 16, %s20
      %s259 = smul.u32 16, %s20
      %p260 = scmp.lt.s32.totalorder %s19, 1
      %s261 = scalar_select %p260, %s19, 1
      %p262 = scmp.lt.s32.totalorder %s259, 15
      %s263 = scalar_select %p262, %s259, 15
      %s264 = smul.addr %s263, 2
      %s265 = smul.addr %s261, 32
      %s266 = sadd.s32 %s264, %s265
      %s267 = smul.addr %s266, 8
      %s268 = scalar_lea.vmem %s1, %s267
      %s269 = smul.u32 16, %s20
      %s270 = smul.u32 16, %s20
      %p271 = scmp.lt.s32.totalorder %s19, 1
      %s272 = scalar_select %p271, %s19, 1
      %p273 = scmp.lt.s32.totalorder %s270, 15
      %s274 = scalar_select %p273, %s270, 15
      %s275 = smul.addr %s274, 2
      %s276 = smul.addr %s272, 32
      %s277 = sadd.s32 %s275, %s276
      %s278 = smul.addr %s277, 8
      %s279 = scalar_lea.vmem %s4, %s278
      %s280 = smul.u32 16, %s20
      %v281 = vld [vmem:[%s257] sm:$0xf]
      %v282 = vld [vmem:[%s257 + $0x4] sm:$0xf]
      %v283 = vld [vmem:[%s257 + $0x8] sm:$0xf]
      %v284 = vld [vmem:[%s257 + $0xc] sm:$0xf]
      %v285 = vld [vmem:[%s257 + $0x10] sm:$0xf]
      %v286 = vld [vmem:[%s257 + $0x14] sm:$0xf]
      %v287 = vld [vmem:[%s257 + $0x18] sm:$0xf]
      %v288 = vld [vmem:[%s257 + $0x1c] sm:$0xf]
      %v289 = vld [vmem:[%s257 + $0x20] sm:$0xf]
      %v290 = vld [vmem:[%s257 + $0x24] sm:$0xf]
      %v291 = vld [vmem:[%s257 + $0x28] sm:$0xf]
      %v292 = vld [vmem:[%s257 + $0x2c] sm:$0xf]
      %v293 = vld [vmem:[%s257 + $0x30] sm:$0xf]
      %v294 = vld [vmem:[%s257 + $0x34] sm:$0xf]
      %v295 = vld [vmem:[%s257 + $0x38] sm:$0xf]
      %v296 = vld [vmem:[%s257 + $0x3c] sm:$0xf]
      %v297 = vld [vmem:[%s257 + $0x40] sm:$0xf]
      %v298 = vld [vmem:[%s257 + $0x44] sm:$0xf]
      %v299 = vld [vmem:[%s257 + $0x48] sm:$0xf]
      %v300 = vld [vmem:[%s257 + $0x4c] sm:$0xf]
      %v301 = vld [vmem:[%s257 + $0x50] sm:$0xf]
      %v302 = vld [vmem:[%s257 + $0x54] sm:$0xf]
      %v303 = vld [vmem:[%s257 + $0x58] sm:$0xf]
      %v304 = vld [vmem:[%s257 + $0x5c] sm:$0xf]
      %v305 = vld [vmem:[%s257 + $0x60] sm:$0xf]
      %v306 = vld [vmem:[%s257 + $0x64] sm:$0xf]
      %v307 = vld [vmem:[%s257 + $0x68] sm:$0xf]
      %v308 = vld [vmem:[%s257 + $0x6c] sm:$0xf]
      %v309 = vld [vmem:[%s257 + $0x70] sm:$0xf]
      %v310 = vld [vmem:[%s257 + $0x74] sm:$0xf]
      %v311 = vld [vmem:[%s257 + $0x78] sm:$0xf]
      %v312 = vld [vmem:[%s257 + $0x7c] sm:$0xf]
      %v313 = vunpack.c.l.bf16 %v281
      %v314 = vunpack.c.l.bf16 %v282
      %v315 = vunpack.c.l.bf16 %v283
      %v316 = vunpack.c.l.bf16 %v284
      %v317 = vunpack.c.l.bf16 %v285
      %v318 = vunpack.c.l.bf16 %v286
      %v319 = vunpack.c.l.bf16 %v287
      %v320 = vunpack.c.l.bf16 %v288
      %v321 = vunpack.c.l.bf16 %v289
      %v322 = vunpack.c.l.bf16 %v290
      %v323 = vunpack.c.l.bf16 %v291
      %v324 = vunpack.c.l.bf16 %v292
      %v325 = vunpack.c.l.bf16 %v293
      %v326 = vunpack.c.l.bf16 %v294
      %v327 = vunpack.c.l.bf16 %v295
      %v328 = vunpack.c.l.bf16 %v296
      %v329 = vunpack.c.l.bf16 %v297
      %v330 = vunpack.c.l.bf16 %v298
      %v331 = vunpack.c.l.bf16 %v299
      %v332 = vunpack.c.l.bf16 %v300
      %v333 = vunpack.c.l.bf16 %v301
      %v334 = vunpack.c.l.bf16 %v302
      %v335 = vunpack.c.l.bf16 %v303
      %v336 = vunpack.c.l.bf16 %v304
      %v337 = vunpack.c.l.bf16 %v305
      %v338 = vunpack.c.l.bf16 %v306
      %v339 = vunpack.c.l.bf16 %v307
      %v340 = vunpack.c.l.bf16 %v308
      %v341 = vunpack.c.l.bf16 %v309
      %v342 = vunpack.c.l.bf16 %v310
      %v343 = vunpack.c.l.bf16 %v311
      %v344 = vunpack.c.l.bf16 %v312
      %v345 = vld [vmem:[%s2] sm:$0x1]
      %v347 = vlaneseq
      %v348 = vshrl.u32 %v347, 7
      %v349 = vsub.s32 0, %v348
      %v350 = vrot.slane %v345, %v349
      %v352 = vmul.f32 %v313, %v350
      %v353 = vmul.f32 %v314, %v350
      %v354 = vmul.f32 %v315, %v350
      %v355 = vmul.f32 %v316, %v350
      %v356 = vmul.f32 %v317, %v350
      %v357 = vmul.f32 %v318, %v350
      %v358 = vmul.f32 %v319, %v350
      %v359 = vmul.f32 %v320, %v350
      %v360 = vmul.f32 %v321, %v350
      %v361 = vmul.f32 %v322, %v350
      %v362 = vmul.f32 %v323, %v350
      %v363 = vmul.f32 %v324, %v350
      %v364 = vmul.f32 %v325, %v350
      %v365 = vmul.f32 %v326, %v350
      %v366 = vmul.f32 %v327, %v350
      %v367 = vmul.f32 %v328, %v350
      %v368 = vmul.f32 %v329, %v350
      %v369 = vmul.f32 %v330, %v350
      %v370 = vmul.f32 %v331, %v350
      %v371 = vmul.f32 %v332, %v350
      %v372 = vmul.f32 %v333, %v350
      %v373 = vmul.f32 %v334, %v350
      %v374 = vmul.f32 %v335, %v350
      %v375 = vmul.f32 %v336, %v350
      %v376 = vmul.f32 %v337, %v350
      %v377 = vmul.f32 %v338, %v350
      %v378 = vmul.f32 %v339, %v350
      %v379 = vmul.f32 %v340, %v350
      %v380 = vmul.f32 %v341, %v350
      %v381 = vmul.f32 %v342, %v350
      %v382 = vmul.f32 %v343, %v350
      %v383 = vmul.f32 %v344, %v350
      %v384 = vld [vmem:[%s3] sm:$0x1]
      %v386 = vlaneseq
      %v387 = vshrl.u32 %v386, 7
      %v388 = vsub.s32 0, %v387
      %v389 = vrot.slane %v384, %v388
      %v391 = vadd.f32 %v352, %v389
      %v392 = vadd.f32 %v353, %v389
      %v393 = vadd.f32 %v354, %v389
      %v394 = vadd.f32 %v355, %v389
      %v395 = vadd.f32 %v356, %v389
      %v396 = vadd.f32 %v357, %v389
      %v397 = vadd.f32 %v358, %v389
      %v398 = vadd.f32 %v359, %v389
      %v399 = vadd.f32 %v360, %v389
      %v400 = vadd.f32 %v361, %v389
      %v401 = vadd.f32 %v362, %v389
      %v402 = vadd.f32 %v363, %v389
      %v403 = vadd.f32 %v364, %v389
      %v404 = vadd.f32 %v365, %v389
      %v405 = vadd.f32 %v366, %v389
      %v406 = vadd.f32 %v367, %v389
      %v407 = vadd.f32 %v368, %v389
      %v408 = vadd.f32 %v369, %v389
      %v409 = vadd.f32 %v370, %v389
      %v410 = vadd.f32 %v371, %v389
      %v411 = vadd.f32 %v372, %v389
      %v412 = vadd.f32 %v373, %v389
      %v413 = vadd.f32 %v374, %v389
      %v414 = vadd.f32 %v375, %v389
      %v415 = vadd.f32 %v376, %v389
      %v416 = vadd.f32 %v377, %v389
      %v417 = vadd.f32 %v378, %v389
      %v418 = vadd.f32 %v379, %v389
      %v419 = vadd.f32 %v380, %v389
      %v420 = vadd.f32 %v381, %v389
      %v421 = vadd.f32 %v382, %v389
      %v422 = vadd.f32 %v383, %v389
      %v423 = vld [vmem:[%s268] sm:$0xff]
      %v424 = vld [vmem:[%s268 + $0x8] sm:$0xff]
      %v425 = vld [vmem:[%s268 + $0x10] sm:$0xff]
      %v426 = vld [vmem:[%s268 + $0x18] sm:$0xff]
      %v427 = vld [vmem:[%s268 + $0x20] sm:$0xff]
      %v428 = vld [vmem:[%s268 + $0x28] sm:$0xff]
      %v429 = vld [vmem:[%s268 + $0x30] sm:$0xff]
      %v430 = vld [vmem:[%s268 + $0x38] sm:$0xff]
      %v431 = vld [vmem:[%s268 + $0x40] sm:$0xff]
      %v432 = vld [vmem:[%s268 + $0x48] sm:$0xff]
      %v433 = vld [vmem:[%s268 + $0x50] sm:$0xff]
      %v434 = vld [vmem:[%s268 + $0x58] sm:$0xff]
      %v435 = vld [vmem:[%s268 + $0x60] sm:$0xff]
      %v436 = vld [vmem:[%s268 + $0x68] sm:$0xff]
      %v437 = vld [vmem:[%s268 + $0x70] sm:$0xff]
      %v438 = vld [vmem:[%s268 + $0x78] sm:$0xff]
      %v439 = vld [vmem:[%s268 + $0x80] sm:$0xff]
      %v440 = vld [vmem:[%s268 + $0x88] sm:$0xff]
      %v441 = vld [vmem:[%s268 + $0x90] sm:$0xff]
      %v442 = vld [vmem:[%s268 + $0x98] sm:$0xff]
      %v443 = vld [vmem:[%s268 + $0xa0] sm:$0xff]
      %v444 = vld [vmem:[%s268 + $0xa8] sm:$0xff]
      %v445 = vld [vmem:[%s268 + $0xb0] sm:$0xff]
      %v446 = vld [vmem:[%s268 + $0xb8] sm:$0xff]
      %v447 = vld [vmem:[%s268 + $0xc0] sm:$0xff]
      %v448 = vld [vmem:[%s268 + $0xc8] sm:$0xff]
      %v449 = vld [vmem:[%s268 + $0xd0] sm:$0xff]
      %v450 = vld [vmem:[%s268 + $0xd8] sm:$0xff]
      %v451 = vld [vmem:[%s268 + $0xe0] sm:$0xff]
      %v452 = vld [vmem:[%s268 + $0xe8] sm:$0xff]
      %v453 = vld [vmem:[%s268 + $0xf0] sm:$0xff]
      %v454 = vld [vmem:[%s268 + $0xf8] sm:$0xff]
      %v455 = vadd.f32 %v391, %v423
      %v456 = vadd.f32 %v392, %v424
      %v457 = vadd.f32 %v393, %v425
      %v458 = vadd.f32 %v394, %v426
      %v459 = vadd.f32 %v395, %v427
      %v460 = vadd.f32 %v396, %v428
      %v461 = vadd.f32 %v397, %v429
      %v462 = vadd.f32 %v398, %v430
      %v463 = vadd.f32 %v399, %v431
      %v464 = vadd.f32 %v400, %v432
      %v465 = vadd.f32 %v401, %v433
      %v466 = vadd.f32 %v402, %v434
      %v467 = vadd.f32 %v403, %v435
      %v468 = vadd.f32 %v404, %v436
      %v469 = vadd.f32 %v405, %v437
      %v470 = vadd.f32 %v406, %v438
      %v471 = vadd.f32 %v407, %v439
      %v472 = vadd.f32 %v408, %v440
      %v473 = vadd.f32 %v409, %v441
      %v474 = vadd.f32 %v410, %v442
      %v475 = vadd.f32 %v411, %v443
      %v476 = vadd.f32 %v412, %v444
      %v477 = vadd.f32 %v413, %v445
      %v478 = vadd.f32 %v414, %v446
      %v479 = vadd.f32 %v415, %v447
      %v480 = vadd.f32 %v416, %v448
      %v481 = vadd.f32 %v417, %v449
      %v482 = vadd.f32 %v418, %v450
      %v483 = vadd.f32 %v419, %v451
      %v484 = vadd.f32 %v420, %v452
      %v485 = vadd.f32 %v421, %v453
      %v486 = vadd.f32 %v422, %v454
      %487 = vst [vmem:[%s279] sm:$0xff] %v455
      %488 = vst [vmem:[%s279 + $0x8] sm:$0xff] %v456
      %489 = vst [vmem:[%s279 + $0x10] sm:$0xff] %v457
      %490 = vst [vmem:[%s279 + $0x18] sm:$0xff] %v458
      %491 = vst [vmem:[%s279 + $0x20] sm:$0xff] %v459
      %492 = vst [vmem:[%s279 + $0x28] sm:$0xff] %v460
      %493 = vst [vmem:[%s279 + $0x30] sm:$0xff] %v461
      %494 = vst [vmem:[%s279 + $0x38] sm:$0xff] %v462
      %495 = vst [vmem:[%s279 + $0x40] sm:$0xff] %v463
      %496 = vst [vmem:[%s279 + $0x48] sm:$0xff] %v464
      %497 = vst [vmem:[%s279 + $0x50] sm:$0xff] %v465
      %498 = vst [vmem:[%s279 + $0x58] sm:$0xff] %v466
      %499 = vst [vmem:[%s279 + $0x60] sm:$0xff] %v467
      %500 = vst [vmem:[%s279 + $0x68] sm:$0xff] %v468
      %501 = vst [vmem:[%s279 + $0x70] sm:$0xff] %v469
      %502 = vst [vmem:[%s279 + $0x78] sm:$0xff] %v470
      %503 = vst [vmem:[%s279 + $0x80] sm:$0xff] %v471
      %504 = vst [vmem:[%s279 + $0x88] sm:$0xff] %v472
      %505 = vst [vmem:[%s279 + $0x90] sm:$0xff] %v473
      %506 = vst [vmem:[%s279 + $0x98] sm:$0xff] %v474
      %507 = vst [vmem:[%s279 + $0xa0] sm:$0xff] %v475
      %508 = vst [vmem:[%s279 + $0xa8] sm:$0xff] %v476
      %509 = vst [vmem:[%s279 + $0xb0] sm:$0xff] %v477
      %510 = vst [vmem:[%s279 + $0xb8] sm:$0xff] %v478
      %511 = vst [vmem:[%s279 + $0xc0] sm:$0xff] %v479
      %512 = vst [vmem:[%s279 + $0xc8] sm:$0xff] %v480
      %513 = vst [vmem:[%s279 + $0xd0] sm:$0xff] %v481
      %514 = vst [vmem:[%s279 + $0xd8] sm:$0xff] %v482
      %515 = vst [vmem:[%s279 + $0xe0] sm:$0xff] %v483
      %516 = vst [vmem:[%s279 + $0xe8] sm:$0xff] %v484
      %517 = vst [vmem:[%s279 + $0xf0] sm:$0xff] %v485
      %518 = vst [vmem:[%s279 + $0xf8] sm:$0xff] %v486
      %s519 = smul.u32 16, %s20
      %p520 = scmp.lt.s32.totalorder %s19, 1
      %s521 = scalar_select %p520, %s19, 1
      %p522 = scmp.lt.s32.totalorder %s519, 15
      %s523 = scalar_select %p522, %s519, 15
      %s524 = smul.addr %s523, 2
      %s525 = smul.addr %s521, 32
      %s526 = sadd.s32 %s524, %s525
      %s527 = smul.addr %s526, 8
      %s528 = scalar_lea.vmem %s4, %s527
      // Predicated region
      $region37: #{resnet_block.5} parent=35 // pred_check
        %p529 = pneg %p145
      $region38: #{resnet_block.5} parent=35 // pred_check_branch
        %531 = sbr.rel (%p529) target = $region40
      $region39: #{resnet_block.5} parent=35 // pred_region
        %s532 = smul.u32 16, %s20
      $region40: #{resnet_block.5} parent=35 // pred_fallthru
        _
    $region36: #{resnet_block.5} parent=5 // pred_fallthru
      _
    %p533 = scmp.le.s32.totalorder 2, %s10
    // Predicated region
    $region41: #{resnet_block.5} parent=5 // pred_check
      %p534 = pneg %p533
    $region42: #{resnet_block.5} parent=5 // pred_check_branch
      %536 = sbr.rel (%p534) target = $region44
    $region43: #{resnet_block.5} parent=5 // pred_region
      %s537 = ssub.s32 %s10, 2
      // Predicated region
      $region45: #{resnet_block.5} parent=43 // pred_check
        %p538 = pneg %p151
      $region46: #{resnet_block.5} parent=43 // pred_check_branch
        %540 = sbr.rel (%p538) target = $region48
      $region47: #{resnet_block.5} parent=43 // pred_region
        %s541 = smul.u32 16, %s22
        %p542 = scmp.lt.s32.totalorder %s21, 1
        %s543 = scalar_select %p542, %s21, 1
        %p544 = scmp.lt.s32.totalorder %s541, 15
        %s545 = scalar_select %p544, %s541, 15
        %s546 = smul.addr %s545, 2
        %s547 = smul.addr %s543, 32
        %s548 = sadd.s32 %s546, %s547
        %s549 = smul.addr %s548, 8
        %s550 = scalar_lea.vmem %s4, %s549
      $region48: #{resnet_block.5} parent=43 // pred_fallthru
        _
    $region44: #{resnet_block.5} parent=5 // pred_fallthru
      _
  $region6: #{resnet_block.5} parent=0 // loop_footer
    %s14 = sadd.s32 1, %s10
  $region7: #{resnet_block.5} parent=0 // loop_footer_branch
    %9 = sbr.rel target = $region3
  $region8: #{resnet_block.5} parent=0 // loop_exit
    _

// kernel: resnet_block.4
$region0: #{resnet_block.4}
  #allocation0 [shape = 'u32[]', space=smem, size = 0x4, offset = 0x4, fixed_abs, tag = 'smem constant byte address 0x4 - core index']
  #allocation1 [shape = 'u32[144,128]{1,0:T(1,128)}', space=vmem, size = 0x12000, scoped, tag = 'internal scratch']
  #allocation2 [shape = 'bf16[18,16,128]{2,1,0:T(16,128)(2,1)}', space=vmem, size = 0x12000, scoped, tag = 'scratch operand']
  #allocation3 [shape = 's32[3]{0}', space=sflag, size = 0xc, scoped, tag = 'scratch operand']
  #allocation4 [shape = 's32[]', space=sflag, size = 0x4, offset = 0, fixed_abs, tag = 'sflag constant byte address 0x0 - dummy sync flag']
  #allocation5 [shape = 's32[]', space=sflag, size = 0x4, offset = 0, fixed_abs, tag = 'sflag constant byte address 0x0 - dummy sync flag']
  #allocation6 [shape = 's32[]', space=sflag, size = 0x4, offset = 0, fixed_abs, tag = 'sflag constant byte address 0x0 - dummy sync flag']
  %s0 = inlined_call_operand.vmem [shape: bf16[2,16,16,128], index: 0, kind: input, shape index: {}]
  %s1 = inlined_call_operand.vmem [shape: f32[1,128], index: 1, kind: input, shape index: {}]
  %s2 = inlined_call_operand.vmem [shape: f32[1,128], index: 2, kind: input, shape index: {}]
  %s3 = inlined_call_operand.vmem [shape: bf16[3,384,128], index: 3, kind: input, shape index: {}]
  %s4 = inlined_call_operand.vmem [shape: bf16[2,16,16,128], index: 4, kind: output, shape index: {0}]
  %s5 = inlined_call_operand.vmem [shape: f32[2,1,2,128], index: 5, kind: output, shape index: {1}]
  %6 = xla_tuple %s4, %s5
  %s7 = sld [smem:[#allocation0]]
  $region155: #{resnet_block.4} parent=0
    _
  %s9 = ssub.s32 1, %s7
  %s10 = scalar_select 0, %s9, %s7
  loop: start=0, step=1, limit=4
  $region2: #{resnet_block.4} parent=0 // loop_pre_header
    _
  $region3: #{resnet_block.4} parent=0 // loop_header
    %s12 = sphi 0, %s16
    %p13 = scmp.ge.s32.totalorder %s12, 4
    %s19 = sphi 0, %s31
    %s20 = sphi 0, %s27
    %s21 = sphi 0, %s19
    %s22 = sphi 0, %s20
    %s23 = sphi 0, %s21
    %s24 = sphi 0, %s22
    %s32 = sphi 0, %s32
    %s34 = sphi 0, %s32
    %s35 = sphi 0, %s34
    %s49 = sphi 0, %s35
    %s53 = sphi 0, %s53
    %s55 = sphi 0, %s53
    %s56 = sphi 0, %s55
    %s70 = sphi 0, %s56
    %s74 = sphi 0, %s74
    %s76 = sphi 0, %s74
    %s77 = sphi 0, %s76
    %s91 = sphi 0, %s77
    %s99 = sphi 0, %s101
    %s102 = sphi 0, %s99
    %s103 = sphi 0, %s102
    %s119 = sphi 0, %s103
    %s127 = sphi 0, %s129
    %s130 = sphi 0, %s127
    %s131 = sphi 0, %s130
    %s147 = sphi 0, %s131
  $region4: #{resnet_block.4} parent=0 // loop_header_branch
    %15 = sbr.rel (%p13) target = $region8
  $region5: #{resnet_block.4} parent=0 // loop_body
    %s17 = ssub.s32 %s12, 1
    %s18 = ssub.s32 %s12, 2
    %s25 = sadd.s32 1, %s20
    %p26 = scmp.ge.s32.totalorder %s25, 1
    %s27 = scalar_select %p26, 0, %s25
    %s28 = sadd.s32 1, %s19
    %s29 = scalar_select %p26, %s28, %s19
    %p30 = scmp.ge.s32.totalorder %s29, 2
    %s31 = scalar_select %p30, 0, %s29
    %s33 = sadd.s32 %s32, 1
    %p36 = scmp.eq.s32.totalorder %s12, 1
    %p37 = scmp.ne.s32.totalorder %s32, %s34
    %p38 = scmp.eq.s32.totalorder %s12, 0
    %p39 = por %p37, %p38
    %p40 = scmp.ne.s32.totalorder %s32, %s34
    %p41 = scmp.eq.s32.totalorder %s17, 1
    %p42 = por %p40, %p41
    %p43 = scmp.ne.s32.totalorder %s34, %s35
    %p44 = scmp.eq.s32.totalorder %s17, 0
    %p45 = por %p43, %p44
    %p46 = scmp.ne.s32.totalorder %s34, %s35
    %p47 = scmp.eq.s32.totalorder %s18, 1
    %p48 = por %p46, %p47
    %p50 = scmp.ne.s32.totalorder %s35, %s49
    %p51 = scmp.eq.s32.totalorder %s18, 0
    %p52 = por %p50, %p51
    %s54 = sadd.s32 %s53, 1
    %p57 = scmp.eq.s32.totalorder %s12, 1
    %p58 = scmp.ne.s32.totalorder %s53, %s55
    %p59 = scmp.eq.s32.totalorder %s12, 0
    %p60 = por %p58, %p59
    %p61 = scmp.ne.s32.totalorder %s53, %s55
    %p62 = scmp.eq.s32.totalorder %s17, 1
    %p63 = por %p61, %p62
    %p64 = scmp.ne.s32.totalorder %s55, %s56
    %p65 = scmp.eq.s32.totalorder %s17, 0
    %p66 = por %p64, %p65
    %p67 = scmp.ne.s32.totalorder %s55, %s56
    %p68 = scmp.eq.s32.totalorder %s18, 1
    %p69 = por %p67, %p68
    %p71 = scmp.ne.s32.totalorder %s56, %s70
    %p72 = scmp.eq.s32.totalorder %s18, 0
    %p73 = por %p71, %p72
    %s75 = sadd.s32 %s74, 1
    %p78 = scmp.eq.s32.totalorder %s12, 1
    %p79 = scmp.ne.s32.totalorder %s74, %s76
    %p80 = scmp.eq.s32.totalorder %s12, 0
    %p81 = por %p79, %p80
    %p82 = scmp.ne.s32.totalorder %s74, %s76
    %p83 = scmp.eq.s32.totalorder %s17, 1
    %p84 = por %p82, %p83
    %p85 = scmp.ne.s32.totalorder %s76, %s77
    %p86 = scmp.eq.s32.totalorder %s17, 0
    %p87 = por %p85, %p86
    %p88 = scmp.ne.s32.totalorder %s76, %s77
    %p89 = scmp.eq.s32.totalorder %s18, 1
    %p90 = por %p88, %p89
    %p92 = scmp.ne.s32.totalorder %s77, %s91
    %p93 = scmp.eq.s32.totalorder %s18, 0
    %p94 = por %p92, %p93
    %s95 = ssub.s32 %s19, %s31
    %s96 = ssub.s32 %s20, %s27
    %s97 = sor.u32 %s95, %s96
    %p98 = scmp.eq.s32.totalorder %s97, 0
    %s100 = sadd.s32 %s99, 1
    %s101 = scalar_select %p98, %s99, %s100
    %p104 = pneg %p98
    %p105 = scmp.eq.s32.totalorder %s12, 1
    %p106 = por %p104, %p105
    %p107 = scmp.ne.s32.totalorder %s99, %s102
    %p108 = scmp.eq.s32.totalorder %s12, 0
    %p109 = por %p107, %p108
    %p110 = scmp.ne.s32.totalorder %s99, %s102
    %p111 = scmp.eq.s32.totalorder %s17, 1
    %p112 = por %p110, %p111
    %p113 = scmp.ne.s32.totalorder %s102, %s103
    %p114 = scmp.eq.s32.totalorder %s17, 0
    %p115 = por %p113, %p114
    %p116 = scmp.ne.s32.totalorder %s102, %s103
    %p117 = scmp.eq.s32.totalorder %s18, 1
    %p118 = por %p116, %p117
    %p120 = scmp.ne.s32.totalorder %s103, %s119
    %p121 = scmp.eq.s32.totalorder %s18, 0
    %p122 = por %p120, %p121
    %s123 = ssub.s32 %s19, %s31
    %s124 = ssub.s32 %s20, %s27
    %s125 = sor.u32 %s123, %s124
    %p126 = scmp.eq.s32.totalorder %s125, 0
    %s128 = sadd.s32 %s127, 1
    %s129 = scalar_select %p126, %s127, %s128
    %p132 = pneg %p126
    %p133 = scmp.eq.s32.totalorder %s12, 1
    %p134 = por %p132, %p133
    %p135 = scmp.ne.s32.totalorder %s127, %s130
    %p136 = scmp.eq.s32.totalorder %s12, 0
    %p137 = por %p135, %p136
    %p138 = scmp.ne.s32.totalorder %s127, %s130
    %p139 = scmp.eq.s32.totalorder %s17, 1
    %p140 = por %p138, %p139
    %p141 = scmp.ne.s32.totalorder %s130, %s131
    %p142 = scmp.eq.s32.totalorder %s17, 0
    %p143 = por %p141, %p142
    %p144 = scmp.ne.s32.totalorder %s130, %s131
    %p145 = scmp.eq.s32.totalorder %s18, 1
    %p146 = por %p144, %p145
    %p148 = scmp.ne.s32.totalorder %s131, %s147
    %p149 = scmp.eq.s32.totalorder %s18, 0
    %p150 = por %p148, %p149
    %p151 = scmp.le.s32.totalorder 1, %s12
    %p152 = scmp.lt.s32.totalorder %s12, 3
    %p153 = pnand %p151, %p152
    %p154 = pneg %p153
    // Predicated region
    $region9: #{resnet_block.4} parent=5 // pred_check
      _
    $region10: #{resnet_block.4} parent=5 // pred_check_branch
      %156 = sbr.rel (%p153) target = $region12
    $region11: #{resnet_block.4} parent=5 // pred_region
      %s157 = ssub.s32 %s12, 1
      // Predicated region
      $region13: #{resnet_block.4} parent=11 // pred_check
        %p158 = pneg %p45
      $region14: #{resnet_block.4} parent=11 // pred_check_branch
        %160 = sbr.rel (%p158) target = $region16
      $region15: #{resnet_block.4} parent=11 // pred_region
        _
      $region16: #{resnet_block.4} parent=11 // pred_fallthru
        _
      // Predicated region
      $region17: #{resnet_block.4} parent=11 // pred_check
        %p161 = pneg %p66
      $region18: #{resnet_block.4} parent=11 // pred_check_branch
        %163 = sbr.rel (%p161) target = $region20
      $region19: #{resnet_block.4} parent=11 // pred_region
        _
      $region20: #{resnet_block.4} parent=11 // pred_fallthru
        _
      // Predicated region
      $region21: #{resnet_block.4} parent=11 // pred_check
        %p164 = pneg %p87
      $region22: #{resnet_block.4} parent=11 // pred_check_branch
        %166 = sbr.rel (%p164) target = $region24
      $region23: #{resnet_block.4} parent=11 // pred_region
        _
      $region24: #{resnet_block.4} parent=11 // pred_fallthru
        _
    $region12: #{resnet_block.4} parent=5 // pred_fallthru
      _
    %p167 = scmp.lt.s32.totalorder %s12, 2
    // Predicated region
    $region25: #{resnet_block.4} parent=5 // pred_check
      %p168 = pneg %p167
    $region26: #{resnet_block.4} parent=5 // pred_check_branch
      %170 = sbr.rel (%p168) target = $region28
    $region27: #{resnet_block.4} parent=5 // pred_region
      _
    $region28: #{resnet_block.4} parent=5 // pred_fallthru
      _
    %p171 = scmp.le.s32.totalorder 1, %s12
    %p172 = scmp.lt.s32.totalorder %s12, 3
    %p173 = pnand %p171, %p172
    %p174 = pneg %p173
    // Predicated region
    $region29: #{resnet_block.4} parent=5 // pred_check
      _
    $region30: #{resnet_block.4} parent=5 // pred_check_branch
      %176 = sbr.rel (%p173) target = $region32
    $region31: #{resnet_block.4} parent=5 // pred_region
      %s177 = ssub.s32 %s12, 1
      %p178 = pneg %p45
      %p179 = pneg %p42
      %p180 = pneg %p66
      %p181 = pneg %p63
      %p182 = pneg %p87
      %p183 = pneg %p84
      %p184 = pneg %p115
      %p185 = pneg %p112
      %s186 = smul.u32 16, %s22
      %p187 = scmp.lt.s32.totalorder %s21, 1
      %s188 = scalar_select %p187, %s21, 1
      %p189 = scmp.lt.s32.totalorder %s186, 15
      %s190 = scalar_select %p189, %s186, 15
      %s191 = smul.addr %s190, 2
      %s192 = smul.addr %s188, 32
      %s193 = sadd.s32 %s191, %s192
      %s194 = smul.addr %s193, 4
      %s195 = scalar_lea.vmem %s4, %s194
      %p196 = pneg %p143
      %p197 = pneg %p140
      %p198 = scmp.lt.s32.totalorder %s21, 1
      %s199 = scalar_select %p198, %s21, 1
      %p200 = scmp.lt.s32.totalorder %s22, 0
      %s201 = scalar_select %p200, %s22, 0
      %s202 = sadd.s32 %s201, %s199
      %s203 = smul.addr %s202, 2
      %s204 = scalar_lea.vmem %s5, %s203
      %s205 = smul.u32 16, %s22
      %p206 = scmp.lt.s32.totalorder %s21, 1
      %s207 = scalar_select %p206, %s21, 1
      %p208 = scmp.lt.s32.totalorder %s205, 15
      %s209 = scalar_select %p208, %s205, 15
      %s210 = smul.addr %s209, 2
      %s211 = smul.addr %s207, 32
      %s212 = sadd.s32 %s210, %s211
      %s213 = smul.addr %s212, 4
      %s214 = scalar_lea.vmem %s4, %s213
      %s215 = smul.u32 16, %s22
      %p216 = scmp.lt.s32.totalorder %s21, 1
      %s217 = scalar_select %p216, %s21, 1
      %p218 = scmp.lt.s32.totalorder %s22, 0
      %s219 = scalar_select %p218, %s22, 0
      %s220 = sadd.s32 %s219, %s217
      %s221 = smul.addr %s220, 2
      %s222 = scalar_lea.vmem %s5, %s221
      %s224 = smul.u32 %s22, 16
      %p225 = scmp.eq.s32.totalorder %s22, 0
      %s226 = ssub.s32 %s224, 1
      %s227 = scalar_select %p225, 1, %s226
      %s228 = sadd.s32 %s224, 16
      %s229 = scalar_select %p225, 14, %s228
      %s230 = smul.u32 %s227, 2
      %s231 = smul.u32 %s21, 32
      %s232 = sadd.s32 %s230, %s231
      %s233 = smul.addr %s232, 4
      %s234 = scalar_lea.vmem %s0, %s233
      %p236 = scmp.lt.u32.totalorder 8, 8
      %p237 = pneg %p236
      // Predicated region
      $region33: #{resnet_block.4} parent=31 // pred_check
        _
      $region34: #{resnet_block.4} parent=31 // pred_check_branch
        %239 = sbr.rel (%p236) target = $region36
      $region35: #{resnet_block.4} parent=31 // pred_region
        %s254 = sand.u32 8, 7
        %p255 = scmp.eq.s32.totalorder %s254, 0
        // Predicated region
        $region48: #{resnet_block.4} parent=35 // pred_check
          %p256 = pneg %p255
        $region49: #{resnet_block.4} parent=35 // pred_check_branch
          %258 = sbr.rel (%p256) target = $region51
        $region50: #{resnet_block.4} parent=35 // pred_region
          loop: start=0, step=1, limit=1
          $region52: #{resnet_block.4} parent=50 // loop_pre_header
            _
          $region53: #{resnet_block.4} parent=50 // loop_header
            %s260 = sphi 0, %s264
            %p261 = scmp.ge.s32.totalorder %s260, 1
            %s265 = sphi %s234, %s234
            %s266 = sphi [#allocation2], [#allocation2]
          $region54: #{resnet_block.4} parent=50 // loop_header_branch
            %263 = sbr.rel (%p261) target = $region58
          $region55: #{resnet_block.4} parent=50 // loop_body
            %v267 = vld [vmem:[%s265] sm:$0xff]
            %268 = vst [vmem:[%s266] sm:$0xff] %v267
          $region56: #{resnet_block.4} parent=50 // loop_footer
            %s264 = sadd.s32 1, %s260
          $region57: #{resnet_block.4} parent=50 // loop_footer_branch
            %259 = sbr.rel target = $region53
          $region58: #{resnet_block.4} parent=50 // loop_exit
            _
        $region51: #{resnet_block.4} parent=35 // pred_fallthru
          _
        %p269 = pneg %p255
        // Predicated region
        $region59: #{resnet_block.4} parent=35 // pred_check
          _
        $region60: #{resnet_block.4} parent=35 // pred_check_branch
          %271 = sbr.rel (%p255) target = $region62
        $region61: #{resnet_block.4} parent=35 // pred_region
          %s272 = sand.u32 8, 7
        $region62: #{resnet_block.4} parent=35 // pred_fallthru
          _
      $region36: #{resnet_block.4} parent=31 // pred_fallthru
        _
      // Predicated region
      $region37: #{resnet_block.4} parent=31 // pred_check
        %p240 = pneg %p236
      $region38: #{resnet_block.4} parent=31 // pred_check_branch
        %242 = sbr.rel (%p240) target = $region40
      $region39: #{resnet_block.4} parent=31 // pred_region
        %s243 = sshllo.u32 0, 8
        loop: start=0, step=1, limit=1
        $region41: #{resnet_block.4} parent=39 // loop_pre_header
          _
        $region42: #{resnet_block.4} parent=39 // loop_header
          %s245 = sphi 0, %s249
          %p246 = scmp.ge.s32.totalorder %s245, 1
          %s250 = sphi %s234, %s234
          %s251 = sphi [#allocation2], [#allocation2]
        $region43: #{resnet_block.4} parent=39 // loop_header_branch
          %248 = sbr.rel (%p246) target = $region47
        $region44: #{resnet_block.4} parent=39 // loop_body
          %v252 = vld [vmem:[%s250] sm:%s243]
          %253 = vst [vmem:[%s251] sm:%s243] %v252
        $region45: #{resnet_block.4} parent=39 // loop_footer
          %s249 = sadd.s32 1, %s245
        $region46: #{resnet_block.4} parent=39 // loop_footer_branch
          %244 = sbr.rel target = $region42
        $region47: #{resnet_block.4} parent=39 // loop_exit
          _
      $region40: #{resnet_block.4} parent=31 // pred_fallthru
        _
      // Predicated region
      $region63: #{resnet_block.4} parent=31 // pred_check
        _
      $region64: #{resnet_block.4} parent=31 // pred_check_branch
        %275 = sbr.rel (0) target = $region66
      $region65: #{resnet_block.4} parent=31 // pred_region
        %276 = vsyncadd [#allocation3], 128
      $region66: #{resnet_block.4} parent=31 // pred_fallthru
        _
      %s277 = smul.u32 %s224, 2
      %s278 = sadd.s32 %s277, %s231
      %s279 = smul.addr %s278, 4
      %s280 = scalar_lea.vmem %s0, %s279
      %s281 = scalar_lea.vmem [#allocation2], 8
      %s282 = scalar_lea.sflag [#allocation3], 1
      %p284 = scmp.lt.u32.totalorder 128, 8
      %p285 = pneg %p284
      // Predicated region
      $region67: #{resnet_block.4} parent=31 // pred_check
        _
      $region68: #{resnet_block.4} parent=31 // pred_check_branch
        %287 = sbr.rel (%p284) target = $region70
      $region69: #{resnet_block.4} parent=31 // pred_region
        %s302 = sand.u32 128, 7
        %p303 = scmp.eq.s32.totalorder %s302, 0
        // Predicated region
        $region82: #{resnet_block.4} parent=69 // pred_check
          %p304 = pneg %p303
        $region83: #{resnet_block.4} parent=69 // pred_check_branch
          %306 = sbr.rel (%p304) target = $region85
        $region84: #{resnet_block.4} parent=69 // pred_region
          loop: start=0, step=1, limit=1
          $region86: #{resnet_block.4} parent=84 // loop_pre_header
            _
          $region87: #{resnet_block.4} parent=84 // loop_header
            %s308 = sphi 0, %s312
            %p309 = scmp.ge.s32.totalorder %s308, 1
            %s313 = sphi %s280, %s280
            %s314 = sphi %s281, %s281
          $region88: #{resnet_block.4} parent=84 // loop_header_branch
            %311 = sbr.rel (%p309) target = $region92
          $region89: #{resnet_block.4} parent=84 // loop_body
            %v315 = vld [vmem:[%s313] sm:$0xff]
            %316 = vst [vmem:[%s314] sm:$0xff] %v315
            %v317 = vld [vmem:[%s313 + $0x8] sm:$0xff]
            %318 = vst [vmem:[%s314 + $0x8] sm:$0xff] %v317
            %v319 = vld [vmem:[%s313 + $0x10] sm:$0xff]
            %320 = vst [vmem:[%s314 + $0x10] sm:$0xff] %v319
            %v321 = vld [vmem:[%s313 + $0x18] sm:$0xff]
            %322 = vst [vmem:[%s314 + $0x18] sm:$0xff] %v321
            %v323 = vld [vmem:[%s313 + $0x20] sm:$0xff]
            %324 = vst [vmem:[%s314 + $0x20] sm:$0xff] %v323
            %v325 = vld [vmem:[%s313 + $0x28] sm:$0xff]
            %326 = vst [vmem:[%s314 + $0x28] sm:$0xff] %v325
            %v327 = vld [vmem:[%s313 + $0x30] sm:$0xff]
            %328 = vst [vmem:[%s314 + $0x30] sm:$0xff] %v327
            %v329 = vld [vmem:[%s313 + $0x38] sm:$0xff]
            %330 = vst [vmem:[%s314 + $0x38] sm:$0xff] %v329
            %v331 = vld [vmem:[%s313 + $0x40] sm:$0xff]
            %332 = vst [vmem:[%s314 + $0x40] sm:$0xff] %v331
            %v333 = vld [vmem:[%s313 + $0x48] sm:$0xff]
            %334 = vst [vmem:[%s314 + $0x48] sm:$0xff] %v333
            %v335 = vld [vmem:[%s313 + $0x50] sm:$0xff]
            %336 = vst [vmem:[%s314 + $0x50] sm:$0xff] %v335
            %v337 = vld [vmem:[%s313 + $0x58] sm:$0xff]
            %338 = vst [vmem:[%s314 + $0x58] sm:$0xff] %v337
            %v339 = vld [vmem:[%s313 + $0x60] sm:$0xff]
            %340 = vst [vmem:[%s314 + $0x60] sm:$0xff] %v339
            %v341 = vld [vmem:[%s313 + $0x68] sm:$0xff]
            %342 = vst [vmem:[%s314 + $0x68] sm:$0xff] %v341
            %v343 = vld [vmem:[%s313 + $0x70] sm:$0xff]
            %344 = vst [vmem:[%s314 + $0x70] sm:$0xff] %v343
            %v345 = vld [vmem:[%s313 + $0x78] sm:$0xff]
            %346 = vst [vmem:[%s314 + $0x78] sm:$0xff] %v345
          $region90: #{resnet_block.4} parent=84 // loop_footer
            %s312 = sadd.s32 1, %s308
          $region91: #{resnet_block.4} parent=84 // loop_footer_branch
            %307 = sbr.rel target = $region87
          $region92: #{resnet_block.4} parent=84 // loop_exit
            _
        $region85: #{resnet_block.4} parent=69 // pred_fallthru
          _
        %p347 = pneg %p303
        // Predicated region
        $region93: #{resnet_block.4} parent=69 // pred_check
          _
        $region94: #{resnet_block.4} parent=69 // pred_check_branch
          %349 = sbr.rel (%p303) target = $region96
        $region95: #{resnet_block.4} parent=69 // pred_region
          %s350 = sand.u32 128, 7
        $region96: #{resnet_block.4} parent=69 // pred_fallthru
          _
      $region70: #{resnet_block.4} parent=31 // pred_fallthru
        _
      // Predicated region
      $region71: #{resnet_block.4} parent=31 // pred_check
        %p288 = pneg %p284
      $region72: #{resnet_block.4} parent=31 // pred_check_branch
        %290 = sbr.rel (%p288) target = $region74
      $region73: #{resnet_block.4} parent=31 // pred_region
        %s291 = sshllo.u32 0, 128
        loop: start=0, step=1, limit=1
        $region75: #{resnet_block.4} parent=73 // loop_pre_header
          _
        $region76: #{resnet_block.4} parent=73 // loop_header
          %s293 = sphi 0, %s297
          %p294 = scmp.ge.s32.totalorder %s293, 1
          %s298 = sphi %s280, %s280
          %s299 = sphi %s281, %s281
        $region77: #{resnet_block.4} parent=73 // loop_header_branch
          %296 = sbr.rel (%p294) target = $region81
        $region78: #{resnet_block.4} parent=73 // loop_body
          %v300 = vld [vmem:[%s298] sm:%s291]
          %301 = vst [vmem:[%s299] sm:%s291] %v300
        $region79: #{resnet_block.4} parent=73 // loop_footer
          %s297 = sadd.s32 1, %s293
        $region80: #{resnet_block.4} parent=73 // loop_footer_branch
          %292 = sbr.rel target = $region76
        $region81: #{resnet_block.4} parent=73 // loop_exit
          _
      $region74: #{resnet_block.4} parent=31 // pred_fallthru
        _
      // Predicated region
      $region97: #{resnet_block.4} parent=31 // pred_check
        _
      $region98: #{resnet_block.4} parent=31 // pred_check_branch
        %353 = sbr.rel (0) target = $region100
      $region99: #{resnet_block.4} parent=31 // pred_region
        %354 = vsyncadd %s282, 2048
      $region100: #{resnet_block.4} parent=31 // pred_fallthru
        _
      %s355 = smul.u32 %s229, 2
      %s356 = sadd.s32 %s355, %s231
      %s357 = smul.addr %s356, 4
      %s358 = scalar_lea.vmem %s0, %s357
      %s359 = scalar_lea.vmem [#allocation2], 136
      %s360 = scalar_lea.sflag [#allocation3], 2
      %p362 = scmp.lt.u32.totalorder 8, 8
      %p363 = pneg %p362
      // Predicated region
      $region101: #{resnet_block.4} parent=31 // pred_check
        _
      $region102: #{resnet_block.4} parent=31 // pred_check_branch
        %365 = sbr.rel (%p362) target = $region104
      $region103: #{resnet_block.4} parent=31 // pred_region
        %s380 = sand.u32 8, 7
        %p381 = scmp.eq.s32.totalorder %s380, 0
        // Predicated region
        $region116: #{resnet_block.4} parent=103 // pred_check
          %p382 = pneg %p381
        $region117: #{resnet_block.4} parent=103 // pred_check_branch
          %384 = sbr.rel (%p382) target = $region119
        $region118: #{resnet_block.4} parent=103 // pred_region
          loop: start=0, step=1, limit=1
          $region120: #{resnet_block.4} parent=118 // loop_pre_header
            _
          $region121: #{resnet_block.4} parent=118 // loop_header
            %s386 = sphi 0, %s390
            %p387 = scmp.ge.s32.totalorder %s386, 1
            %s391 = sphi %s358, %s358
            %s392 = sphi %s359, %s359
          $region122: #{resnet_block.4} parent=118 // loop_header_branch
            %389 = sbr.rel (%p387) target = $region126
          $region123: #{resnet_block.4} parent=118 // loop_body
            %v393 = vld [vmem:[%s391] sm:$0xff]
            %394 = vst [vmem:[%s392] sm:$0xff] %v393
          $region124: #{resnet_block.4} parent=118 // loop_footer
            %s390 = sadd.s32 1, %s386
          $region125: #{resnet_block.4} parent=118 // loop_footer_branch
            %385 = sbr.rel target = $region121
          $region126: #{resnet_block.4} parent=118 // loop_exit
            _
        $region119: #{resnet_block.4} parent=103 // pred_fallthru
          _
        %p395 = pneg %p381
        // Predicated region
        $region127: #{resnet_block.4} parent=103 // pred_check
          _
        $region128: #{resnet_block.4} parent=103 // pred_check_branch
          %397 = sbr.rel (%p381) target = $region130
        $region129: #{resnet_block.4} parent=103 // pred_region
          %s398 = sand.u32 8, 7
        $region130: #{resnet_block.4} parent=103 // pred_fallthru
          _
      $region104: #{resnet_block.4} parent=31 // pred_fallthru
        _
      // Predicated region
      $region105: #{resnet_block.4} parent=31 // pred_check
        %p366 = pneg %p362
      $region106: #{resnet_block.4} parent=31 // pred_check_branch
        %368 = sbr.rel (%p366) target = $region108
      $region107: #{resnet_block.4} parent=31 // pred_region
        %s369 = sshllo.u32 0, 8
        loop: start=0, step=1, limit=1
        $region109: #{resnet_block.4} parent=107 // loop_pre_header
          _
        $region110: #{resnet_block.4} parent=107 // loop_header
          %s371 = sphi 0, %s375
          %p372 = scmp.ge.s32.totalorder %s371, 1
          %s376 = sphi %s358, %s358
          %s377 = sphi %s359, %s359
        $region111: #{resnet_block.4} parent=107 // loop_header_branch
          %374 = sbr.rel (%p372) target = $region115
        $region112: #{resnet_block.4} parent=107 // loop_body
          %v378 = vld [vmem:[%s376] sm:%s369]
          %379 = vst [vmem:[%s377] sm:%s369] %v378
        $region113: #{resnet_block.4} parent=107 // loop_footer
          %s375 = sadd.s32 1, %s371
        $region114: #{resnet_block.4} parent=107 // loop_footer_branch
          %370 = sbr.rel target = $region110
        $region115: #{resnet_block.4} parent=107 // loop_exit
          _
      $region108: #{resnet_block.4} parent=31 // pred_fallthru
        _
      // Predicated region
      $region131: #{resnet_block.4} parent=31 // pred_check
        _
      $region132: #{resnet_block.4} parent=31 // pred_check_branch
        %401 = sbr.rel (0) target = $region134
      $region133: #{resnet_block.4} parent=31 // pred_region
        %402 = vsyncadd %s360, 128
      $region134: #{resnet_block.4} parent=31 // pred_fallthru
        _
      %s403 = smul.u32 4, 2
      %s404 = smul.u32 %s403, 1
      %s405 = sshll.u32 %s404, 4
      %406 = dma.done [#allocation3], %s405
      %s407 = smul.u32 4, 16
      %s408 = smul.u32 %s407, 2
      %s409 = smul.u32 %s408, 1
      %s410 = sshll.u32 %s409, 4
      %411 = dma.done %s282, %s410
      %s412 = sshll.u32 %s404, 4
      %413 = dma.done %s360, %s412
      %v414 = vld [vmem:[#allocation2] sm:$0xff]
      %v415 = vld [vmem:[#allocation2 + $0x8] sm:$0xff]
      %v416 = vld [vmem:[#allocation2 + $0x10] sm:$0xff]
      %v417 = vld [vmem:[#allocation2 + $0x18] sm:$0xff]
      %v418 = vld [vmem:[#allocation2 + $0x20] sm:$0xff]
      %v419 = vld [vmem:[#allocation2 + $0x28] sm:$0xff]
      %v420 = vld [vmem:[#allocation2 + $0x30] sm:$0xff]
      %v421 = vld [vmem:[#allocation2 + $0x38] sm:$0xff]
      %v422 = vld [vmem:[#allocation2 + $0x40] sm:$0xff]
      %v423 = vld [vmem:[#allocation2 + $0x48] sm:$0xff]
      %v424 = vld [vmem:[#allocation2 + $0x50] sm:$0xff]
      %v425 = vld [vmem:[#allocation2 + $0x58] sm:$0xff]
      %v426 = vld [vmem:[#allocation2 + $0x60] sm:$0xff]
      %v427 = vld [vmem:[#allocation2 + $0x68] sm:$0xff]
      %v428 = vld [vmem:[#allocation2 + $0x70] sm:$0xff]
      %v429 = vld [vmem:[#allocation2 + $0x78] sm:$0xff]
      %v430 = vld [vmem:[#allocation2 + $0x80] sm:$0xff]
      %v431 = vld [vmem:[#allocation2 + $0x88] sm:$0xff]
      %v432 = vunpack.c.l.bf16 %v414
      %v433 = vunpack.c.h.bf16 %v414
      %v434 = vunpack.c.l.bf16 %v415
      %v435 = vunpack.c.h.bf16 %v415
      %v436 = vunpack.c.l.bf16 %v416
      %v437 = vunpack.c.h.bf16 %v416
      %v438 = vunpack.c.l.bf16 %v417
      %v439 = vunpack.c.h.bf16 %v417
      %v440 = vunpack.c.l.bf16 %v418
      %v441 = vunpack.c.h.bf16 %v418
      %v442 = vunpack.c.l.bf16 %v419
      %v443 = vunpack.c.h.bf16 %v419
      %v444 = vunpack.c.l.bf16 %v420
      %v445 = vunpack.c.h.bf16 %v420
      %v446 = vunpack.c.l.bf16 %v421
      %v447 = vunpack.c.h.bf16 %v421
      %v448 = vunpack.c.l.bf16 %v422
      %v449 = vunpack.c.h.bf16 %v422
      %v450 = vunpack.c.l.bf16 %v423
      %v451 = vunpack.c.h.bf16 %v423
      %v452 = vunpack.c.l.bf16 %v424
      %v453 = vunpack.c.h.bf16 %v424
      %v454 = vunpack.c.l.bf16 %v425
      %v455 = vunpack.c.h.bf16 %v425
      %v456 = vunpack.c.l.bf16 %v426
      %v457 = vunpack.c.h.bf16 %v426
      %v458 = vunpack.c.l.bf16 %v427
      %v459 = vunpack.c.h.bf16 %v427
      %v460 = vunpack.c.l.bf16 %v428
      %v461 = vunpack.c.h.bf16 %v428
      %v462 = vunpack.c.l.bf16 %v429
      %v463 = vunpack.c.h.bf16 %v429
      %v464 = vunpack.c.l.bf16 %v430
      %v465 = vunpack.c.h.bf16 %v430
      %v466 = vunpack.c.l.bf16 %v431
      %v467 = vunpack.c.h.bf16 %v431
      %v468 = vld [vmem:[%s1] sm:$0x1]
      %v470 = vlaneseq
      %v471 = vshrl.u32 %v470, 7
      %v472 = vsub.s32 0, %v471
      %v473 = vrot.slane %v468, %v472
      %v475 = vmul.f32 %v432, %v473
      %v476 = vmul.f32 %v433, %v473
      %v477 = vmul.f32 %v434, %v473
      %v478 = vmul.f32 %v435, %v473
      %v479 = vmul.f32 %v436, %v473
      %v480 = vmul.f32 %v437, %v473
      %v481 = vmul.f32 %v438, %v473
      %v482 = vmul.f32 %v439, %v473
      %v483 = vmul.f32 %v440, %v473
      %v484 = vmul.f32 %v441, %v473
      %v485 = vmul.f32 %v442, %v473
      %v486 = vmul.f32 %v443, %v473
      %v487 = vmul.f32 %v444, %v473
      %v488 = vmul.f32 %v445, %v473
      %v489 = vmul.f32 %v446, %v473
      %v490 = vmul.f32 %v447, %v473
      %v491 = vmul.f32 %v448, %v473
      %v492 = vmul.f32 %v449, %v473
      %v493 = vmul.f32 %v450, %v473
      %v494 = vmul.f32 %v451, %v473
      %v495 = vmul.f32 %v452, %v473
      %v496 = vmul.f32 %v453, %v473
      %v497 = vmul.f32 %v454, %v473
      %v498 = vmul.f32 %v455, %v473
      %v499 = vmul.f32 %v456, %v473
      %v500 = vmul.f32 %v457, %v473
      %v501 = vmul.f32 %v458, %v473
      %v502 = vmul.f32 %v459, %v473
      %v503 = vmul.f32 %v460, %v473
      %v504 = vmul.f32 %v461, %v473
      %v505 = vmul.f32 %v462, %v473
      %v506 = vmul.f32 %v463, %v473
      %v507 = vmul.f32 %v464, %v473
      %v508 = vmul.f32 %v465, %v473
      %v509 = vmul.f32 %v466, %v473
      %v510 = vmul.f32 %v467, %v473
      %v511 = vld [vmem:[%s2] sm:$0x1]
      %v513 = vlaneseq
      %v514 = vshrl.u32 %v513, 7
      %v515 = vsub.s32 0, %v514
      %v516 = vrot.slane %v511, %v515
      %v518 = vadd.f32 %v475, %v516
      %v519 = vadd.f32 %v476, %v516
      %v520 = vadd.f32 %v477, %v516
      %v521 = vadd.f32 %v478, %v516
      %v522 = vadd.f32 %v479, %v516
      %v523 = vadd.f32 %v480, %v516
      %v524 = vadd.f32 %v481, %v516
      %v525 = vadd.f32 %v482, %v516
      %v526 = vadd.f32 %v483, %v516
      %v527 = vadd.f32 %v484, %v516
      %v528 = vadd.f32 %v485, %v516
      %v529 = vadd.f32 %v486, %v516
      %v530 = vadd.f32 %v487, %v516
      %v531 = vadd.f32 %v488, %v516
      %v532 = vadd.f32 %v489, %v516
      %v533 = vadd.f32 %v490, %v516
      %v534 = vadd.f32 %v491, %v516
      %v535 = vadd.f32 %v492, %v516
      %v536 = vadd.f32 %v493, %v516
      %v537 = vadd.f32 %v494, %v516
      %v538 = vadd.f32 %v495, %v516
      %v539 = vadd.f32 %v496, %v516
      %v540 = vadd.f32 %v497, %v516
      %v541 = vadd.f32 %v498, %v516
      %v542 = vadd.f32 %v499, %v516
      %v543 = vadd.f32 %v500, %v516
      %v544 = vadd.f32 %v501, %v516
      %v545 = vadd.f32 %v502, %v516
      %v546 = vadd.f32 %v503, %v516
      %v547 = vadd.f32 %v504, %v516
      %v548 = vadd.f32 %v505, %v516
      %v549 = vadd.f32 %v506, %v516
      %v550 = vadd.f32 %v507, %v516
      %v551 = vadd.f32 %v508, %v516
      %v552 = vadd.f32 %v509, %v516
      %v553 = vadd.f32 %v510, %v516
      %v554 = vmax.f32 %v518, 0.0
      %v555 = vmax.f32 %v519, 0.0
      %v556 = vmax.f32 %v520, 0.0
      %v557 = vmax.f32 %v521, 0.0
      %v558 = vmax.f32 %v522, 0.0
      %v559 = vmax.f32 %v523, 0.0
      %v560 = vmax.f32 %v524, 0.0
      %v561 = vmax.f32 %v525, 0.0
      %v562 = vmax.f32 %v526, 0.0
      %v563 = vmax.f32 %v527, 0.0
      %v564 = vmax.f32 %v528, 0.0
      %v565 = vmax.f32 %v529, 0.0
      %v566 = vmax.f32 %v530, 0.0
      %v567 = vmax.f32 %v531, 0.0
      %v568 = vmax.f32 %v532, 0.0
      %v569 = vmax.f32 %v533, 0.0
      %v570 = vmax.f32 %v534, 0.0
      %v571 = vmax.f32 %v535, 0.0
      %v572 = vmax.f32 %v536, 0.0
      %v573 = vmax.f32 %v537, 0.0
      %v574 = vmax.f32 %v538, 0.0
      %v575 = vmax.f32 %v539, 0.0
      %v576 = vmax.f32 %v540, 0.0
      %v577 = vmax.f32 %v541, 0.0
      %v578 = vmax.f32 %v542, 0.0
      %v579 = vmax.f32 %v543, 0.0
      %v580 = vmax.f32 %v544, 0.0
      %v581 = vmax.f32 %v545, 0.0
      %v582 = vmax.f32 %v546, 0.0
      %v583 = vmax.f32 %v547, 0.0
      %v584 = vmax.f32 %v548, 0.0
      %v585 = vmax.f32 %v549, 0.0
      %v586 = vmax.f32 %v550, 0.0
      %v587 = vmax.f32 %v551, 0.0
      %v588 = vmax.f32 %v552, 0.0
      %v589 = vmax.f32 %v553, 0.0
      %v590 = vpack.c.bf16 %v555, %v554
      %v591 = vpack.c.bf16 %v557, %v556
      %v592 = vpack.c.bf16 %v559, %v558
      %v593 = vpack.c.bf16 %v561, %v560
      %v594 = vpack.c.bf16 %v563, %v562
      %v595 = vpack.c.bf16 %v565, %v564
      %v596 = vpack.c.bf16 %v567, %v566
      %v597 = vpack.c.bf16 %v569, %v568
      %v598 = vpack.c.bf16 %v571, %v570
      %v599 = vpack.c.bf16 %v573, %v572
      %v600 = vpack.c.bf16 %v575, %v574
      %v601 = vpack.c.bf16 %v577, %v576
      %v602 = vpack.c.bf16 %v579, %v578
      %v603 = vpack.c.bf16 %v581, %v580
      %v604 = vpack.c.bf16 %v583, %v582
      %v605 = vpack.c.bf16 %v585, %v584
      %v606 = vpack.c.bf16 %v587, %v586
      %v607 = vpack.c.bf16 %v589, %v588
      %608 = vst [vmem:[#allocation2] sm:$0xff] %v590
      %609 = vst [vmem:[#allocation2 + $0x8] sm:$0xff] %v591
      %610 = vst [vmem:[#allocation2 + $0x10] sm:$0xff] %v592
      %611 = vst [vmem:[#allocation2 + $0x18] sm:$0xff] %v593
      %612 = vst [vmem:[#allocation2 + $0x20] sm:$0xff] %v594
      %613 = vst [vmem:[#allocation2 + $0x28] sm:$0xff] %v595
      %614 = vst [vmem:[#allocation2 + $0x30] sm:$0xff] %v596
      %615 = vst [vmem:[#allocation2 + $0x38] sm:$0xff] %v597
      %616 = vst [vmem:[#allocation2 + $0x40] sm:$0xff] %v598
      %617 = vst [vmem:[#allocation2 + $0x48] sm:$0xff] %v599
      %618 = vst [vmem:[#allocation2 + $0x50] sm:$0xff] %v600
      %619 = vst [vmem:[#allocation2 + $0x58] sm:$0xff] %v601
      %620 = vst [vmem:[#allocation2 + $0x60] sm:$0xff] %v602
      %621 = vst [vmem:[#allocation2 + $0x68] sm:$0xff] %v603
      %622 = vst [vmem:[#allocation2 + $0x70] sm:$0xff] %v604
      %623 = vst [vmem:[#allocation2 + $0x78] sm:$0xff] %v605
      %624 = vst [vmem:[#allocation2 + $0x80] sm:$0xff] %v606
      %625 = vst [vmem:[#allocation2 + $0x88] sm:$0xff] %v607
      %v626 = vld [vmem:[#allocation2] sm:$0x1]
      %v627 = vld [vmem:[#allocation2 + $0x8] sm:$0x1]
      %v628 = vld [vmem:[#allocation2 + $0x10] sm:$0x1]
      %v629 = vld [vmem:[#allocation2 + $0x18] sm:$0x1]
      %v630 = vld [vmem:[#allocation2 + $0x20] sm:$0x1]
      %v631 = vld [vmem:[#allocation2 + $0x28] sm:$0x1]
      %v632 = vld [vmem:[#allocation2 + $0x30] sm:$0x1]
      %v633 = vld [vmem:[#allocation2 + $0x38] sm:$0x1]
      %v634 = vld [vmem:[#allocation2 + $0x40] sm:$0x1]
      %v635 = vld [vmem:[#allocation2 + $0x48] sm:$0x1]
      %v636 = vld [vmem:[#allocation2 + $0x50] sm:$0x1]
      %v637 = vld [vmem:[#allocation2 + $0x58] sm:$0x1]
      %v638 = vld [vmem:[#allocation2 + $0x60] sm:$0x1]
      %v639 = vld [vmem:[#allocation2 + $0x68] sm:$0x1]
      %v640 = vld [vmem:[#allocation2 + $0x70] sm:$0x1]
      %v641 = vld [vmem:[#allocation2 + $0x78] sm:$0x1]
      %v642 = vld [vmem:[#allocation2 + $0x80] sm:$0x1]
      %v643 = vld [vmem:[#allocation2 + $0x88] sm:$0x1]
      %v644 = vld [vmem:[#allocation2] sm:$0xff]
      %v645 = vld [vmem:[#allocation2 + $0x8] sm:$0xff]
      %v646 = vld [vmem:[#allocation2 + $0x10] sm:$0xff]
      %v647 = vld [vmem:[#allocation2 + $0x18] sm:$0xff]
      %v648 = vld [vmem:[#allocation2 + $0x20] sm:$0xff]
      %v649 = vld [vmem:[#allocation2 + $0x28] sm:$0xff]
      %v650 = vld [vmem:[#allocation2 + $0x30] sm:$0xff]
      %v651 = vld [vmem:[#allocation2 + $0x38] sm:$0xff]
      %v652 = vld [vmem:[#allocation2 + $0x40] sm:$0xff]
      %v653 = vld [vmem:[#allocation2 + $0x48] sm:$0xff]
      %v654 = vld [vmem:[#allocation2 + $0x50] sm:$0xff]
      %v655 = vld [vmem:[#allocation2 + $0x58] sm:$0xff]
      %v656 = vld [vmem:[#allocation2 + $0x60] sm:$0xff]
      %v657 = vld [vmem:[#allocation2 + $0x68] sm:$0xff]
      %v658 = vld [vmem:[#allocation2 + $0x70] sm:$0xff]
      %v659 = vld [vmem:[#allocation2 + $0x78] sm:$0xff]
      %v660 = vld [vmem:[#allocation2 + $0x80] sm:$0xff]
      %v661 = vld [vmem:[#allocation2 + $0x88] sm:$0xff]
      %v663 = vshrl.u32 %v626, 16
      %v666 = vshrl.u32 %v627, 16
      %v669 = vshrl.u32 %v628, 16
      %v672 = vshrl.u32 %v629, 16
      %v675 = vshrl.u32 %v630, 16
      %v678 = vshrl.u32 %v631, 16
      %v681 = vshrl.u32 %v632, 16
      %v684 = vshrl.u32 %v633, 16
      %v687 = vshrl.u32 %v634, 16
      %v690 = vshrl.u32 %v635, 16
      %v693 = vshrl.u32 %v636, 16
      %v696 = vshrl.u32 %v637, 16
      %v699 = vshrl.u32 %v638, 16
      %v702 = vshrl.u32 %v639, 16
      %v705 = vshrl.u32 %v640, 16
      %v708 = vshrl.u32 %v641, 16
      %v711 = vshrl.u32 %v642, 16
      %v714 = vshrl.u32 %v643, 16
      %v735 = vshrl.u32 %v644, 16
      %v737 = vrot.slane %v735, 7
      %v738 = vshll.u32 %v644, 16
      %v740 = vor.u32 %v737, %v738
      %v742 = vshrl.u32 %v645, 16
      %v744 = vrot.slane %v742, 7
      %v745 = vshll.u32 %v645, 16
      %v747 = vor.u32 %v744, %v745
      %v749 = vshrl.u32 %v646, 16
      %v751 = vrot.slane %v749, 7
      %v752 = vshll.u32 %v646, 16
      %v754 = vor.u32 %v751, %v752
      %v756 = vshrl.u32 %v647, 16
      %v758 = vrot.slane %v756, 7
      %v759 = vshll.u32 %v647, 16
      %v761 = vor.u32 %v758, %v759
      %v763 = vshrl.u32 %v648, 16
      %v765 = vrot.slane %v763, 7
      %v766 = vshll.u32 %v648, 16
      %v768 = vor.u32 %v765, %v766
      %v770 = vshrl.u32 %v649, 16
      %v772 = vrot.slane %v770, 7
      %v773 = vshll.u32 %v649, 16
      %v775 = vor.u32 %v772, %v773
      %v777 = vshrl.u32 %v650, 16
      %v779 = vrot.slane %v777, 7
      %v780 = vshll.u32 %v650, 16
      %v782 = vor.u32 %v779, %v780
      %v784 = vshrl.u32 %v651, 16
      %v786 = vrot.slane %v784, 7
      %v787 = vshll.u32 %v651, 16
      %v789 = vor.u32 %v786, %v787
      %v791 = vshrl.u32 %v652, 16
      %v793 = vrot.slane %v791, 7
      %v794 = vshll.u32 %v652, 16
      %v796 = vor.u32 %v793, %v794
      %v798 = vshrl.u32 %v653, 16
      %v800 = vrot.slane %v798, 7
      %v801 = vshll.u32 %v653, 16
      %v803 = vor.u32 %v800, %v801
      %v805 = vshrl.u32 %v654, 16
      %v807 = vrot.slane %v805, 7
      %v808 = vshll.u32 %v654, 16
      %v810 = vor.u32 %v807, %v808
      %v812 = vshrl.u32 %v655, 16
      %v814 = vrot.slane %v812, 7
      %v815 = vshll.u32 %v655, 16
      %v817 = vor.u32 %v814, %v815
      %v819 = vshrl.u32 %v656, 16
      %v821 = vrot.slane %v819, 7
      %v822 = vshll.u32 %v656, 16
      %v824 = vor.u32 %v821, %v822
      %v826 = vshrl.u32 %v657, 16
      %v828 = vrot.slane %v826, 7
      %v829 = vshll.u32 %v657, 16
      %v831 = vor.u32 %v828, %v829
      %v833 = vshrl.u32 %v658, 16
      %v835 = vrot.slane %v833, 7
      %v836 = vshll.u32 %v658, 16
      %v838 = vor.u32 %v835, %v836
      %v840 = vshrl.u32 %v659, 16
      %v842 = vrot.slane %v840, 7
      %v843 = vshll.u32 %v659, 16
      %v845 = vor.u32 %v842, %v843
      %v847 = vshrl.u32 %v660, 16
      %v849 = vrot.slane %v847, 7
      %v850 = vshll.u32 %v660, 16
      %v852 = vor.u32 %v849, %v850
      %v854 = vshrl.u32 %v661, 16
      %v856 = vrot.slane %v854, 7
      %v857 = vshll.u32 %v661, 16
      %v859 = vor.u32 %v856, %v857
      %vm878 = vcmask 1040384
      %vm879 = vsmask.f32 256
      %vm880 = vmand %vm878, %vm879
      %v881 = vsel %vm880, %v663, %v740
      %v882 = vsel %vm880, %v666, %v747
      %v883 = vsel %vm880, %v669, %v754
      %v884 = vsel %vm880, %v672, %v761
      %v885 = vsel %vm880, %v675, %v768
      %v886 = vsel %vm880, %v678, %v775
      %v887 = vsel %vm880, %v681, %v782
      %v888 = vsel %vm880, %v684, %v789
      %v889 = vsel %vm880, %v687, %v796
      %v890 = vsel %vm880, %v690, %v803
      %v891 = vsel %vm880, %v693, %v810
      %v892 = vsel %vm880, %v696, %v817
      %v893 = vsel %vm880, %v699, %v824
      %v894 = vsel %vm880, %v702, %v831
      %v895 = vsel %vm880, %v705, %v838
      %v896 = vsel %vm880, %v708, %v845
      %v897 = vsel %vm880, %v711, %v852
      %v898 = vsel %vm880, %v714, %v859
      %v899 = vld [vmem:[%s3] sm:$0xf]
      %v900 = vld [vmem:[%s3 + $0x4] sm:$0xf]
      %v901 = vld [vmem:[%s3 + $0x8] sm:$0xf]
      %v902 = vld [vmem:[%s3 + $0xc] sm:$0xf]
      %v903 = vld [vmem:[%s3 + $0x10] sm:$0xf]
      %v904 = vld [vmem:[%s3 + $0x14] sm:$0xf]
      %v905 = vld [vmem:[%s3 + $0x18] sm:$0xf]
      %v906 = vld [vmem:[%s3 + $0x1c] sm:$0xf]
      %v907 = vld [vmem:[%s3 + $0x20] sm:$0xf]
      %v908 = vld [vmem:[%s3 + $0x24] sm:$0xf]
      %v909 = vld [vmem:[%s3 + $0x28] sm:$0xf]
      %v910 = vld [vmem:[%s3 + $0x2c] sm:$0xf]
      %v911 = vld [vmem:[%s3 + $0x30] sm:$0xf]
      %v912 = vld [vmem:[%s3 + $0x34] sm:$0xf]
      %v913 = vld [vmem:[%s3 + $0x38] sm:$0xf]
      %v914 = vld [vmem:[%s3 + $0x3c] sm:$0xf]
      %v915 = vld [vmem:[%s3 + $0x40] sm:$0xf]
      %v916 = vld [vmem:[%s3 + $0x44] sm:$0xf]
      %v917 = vld [vmem:[%s3 + $0x48] sm:$0xf]
      %v918 = vld [vmem:[%s3 + $0x4c] sm:$0xf]
      %v919 = vld [vmem:[%s3 + $0x50] sm:$0xf]
      %v920 = vld [vmem:[%s3 + $0x54] sm:$0xf]
      %v921 = vld [vmem:[%s3 + $0x58] sm:$0xf]
      %v922 = vld [vmem:[%s3 + $0x5c] sm:$0xf]
      %v923 = vld [vmem:[%s3 + $0x60] sm:$0xf]
      %v924 = vld [vmem:[%s3 + $0x64] sm:$0xf]
      %v925 = vld [vmem:[%s3 + $0x68] sm:$0xf]
      %v926 = vld [vmem:[%s3 + $0x6c] sm:$0xf]
      %v927 = vld [vmem:[%s3 + $0x70] sm:$0xf]
      %v928 = vld [vmem:[%s3 + $0x74] sm:$0xf]
      %v929 = vld [vmem:[%s3 + $0x78] sm:$0xf]
      %v930 = vld [vmem:[%s3 + $0x7c] sm:$0xf]
      %v931 = vld [vmem:[%s3 + $0x80] sm:$0xf]
      %v932 = vld [vmem:[%s3 + $0x84] sm:$0xf]
      %v933 = vld [vmem:[%s3 + $0x88] sm:$0xf]
      %v934 = vld [vmem:[%s3 + $0x8c] sm:$0xf]
      %v935 = vld [vmem:[%s3 + $0x90] sm:$0xf]
      %v936 = vld [vmem:[%s3 + $0x94] sm:$0xf]
      %v937 = vld [vmem:[%s3 + $0x98] sm:$0xf]
      %v938 = vld [vmem:[%s3 + $0x9c] sm:$0xf]
      %v939 = vld [vmem:[%s3 + $0xa0] sm:$0xf]
      %v940 = vld [vmem:[%s3 + $0xa4] sm:$0xf]
      %v941 = vld [vmem:[%s3 + $0xa8] sm:$0xf]
      %v942 = vld [vmem:[%s3 + $0xac] sm:$0xf]
      %v943 = vld [vmem:[%s3 + $0xb0] sm:$0xf]
      %v944 = vld [vmem:[%s3 + $0xb4] sm:$0xf]
      %v945 = vld [vmem:[%s3 + $0xb8] sm:$0xf]
      %v946 = vld [vmem:[%s3 + $0xbc] sm:$0xf]
      %s947 = scalar_lea.vmem %s3, 192
      %v948 = vld [vmem:[%s947] sm:$0xf]
      %v949 = vld [vmem:[%s947 + $0x4] sm:$0xf]
      %v950 = vld [vmem:[%s947 + $0x8] sm:$0xf]
      %v951 = vld [vmem:[%s947 + $0xc] sm:$0xf]
      %v952 = vld [vmem:[%s947 + $0x10] sm:$0xf]
      %v953 = vld [vmem:[%s947 + $0x14] sm:$0xf]
      %v954 = vld [vmem:[%s947 + $0x18] sm:$0xf]
      %v955 = vld [vmem:[%s947 + $0x1c] sm:$0xf]
      %v956 = vld [vmem:[%s947 + $0x20] sm:$0xf]
      %v957 = vld [vmem:[%s947 + $0x24] sm:$0xf]
      %v958 = vld [vmem:[%s947 + $0x28] sm:$0xf]
      %v959 = vld [vmem:[%s947 + $0x2c] sm:$0xf]
      %v960 = vld [vmem:[%s947 + $0x30] sm:$0xf]
      %v961 = vld [vmem:[%s947 + $0x34] sm:$0xf]
      %v962 = vld [vmem:[%s947 + $0x38] sm:$0xf]
      %v963 = vld [vmem:[%s947 + $0x3c] sm:$0xf]
      %v964 = vld [vmem:[%s947 + $0x40] sm:$0xf]
      %v965 = vld [vmem:[%s947 + $0x44] sm:$0xf]
      %v966 = vld [vmem:[%s947 + $0x48] sm:$0xf]
      %v967 = vld [vmem:[%s947 + $0x4c] sm:$0xf]
      %v968 = vld [vmem:[%s947 + $0x50] sm:$0xf]
      %v969 = vld [vmem:[%s947 + $0x54] sm:$0xf]
      %v970 = vld [vmem:[%s947 + $0x58] sm:$0xf]
      %v971 = vld [vmem:[%s947 + $0x5c] sm:$0xf]
      %v972 = vld [vmem:[%s947 + $0x60] sm:$0xf]
      %v973 = vld [vmem:[%s947 + $0x64] sm:$0xf]
      %v974 = vld [vmem:[%s947 + $0x68] sm:$0xf]
      %v975 = vld [vmem:[%s947 + $0x6c] sm:$0xf]
      %v976 = vld [vmem:[%s947 + $0x70] sm:$0xf]
      %v977 = vld [vmem:[%s947 + $0x74] sm:$0xf]
      %v978 = vld [vmem:[%s947 + $0x78] sm:$0xf]
      %v979 = vld [vmem:[%s947 + $0x7c] sm:$0xf]
      %v980 = vld [vmem:[%s947 + $0x80] sm:$0xf]
      %v981 = vld [vmem:[%s947 + $0x84] sm:$0xf]
      %v982 = vld [vmem:[%s947 + $0x88] sm:$0xf]
      %v983 = vld [vmem:[%s947 + $0x8c] sm:$0xf]
      %v984 = vld [vmem:[%s947 + $0x90] sm:$0xf]
      %v985 = vld [vmem:[%s947 + $0x94] sm:$0xf]
      %v986 = vld [vmem:[%s947 + $0x98] sm:$0xf]
      %v987 = vld [vmem:[%s947 + $0x9c] sm:$0xf]
      %v988 = vld [vmem:[%s947 + $0xa0] sm:$0xf]
      %v989 = vld [vmem:[%s947 + $0xa4] sm:$0xf]
      %v990 = vld [vmem:[%s947 + $0xa8] sm:$0xf]
      %v991 = vld [vmem:[%s947 + $0xac] sm:$0xf]
      %v992 = vld [vmem:[%s947 + $0xb0] sm:$0xf]
      %v993 = vld [vmem:[%s947 + $0xb4] sm:$0xf]
      %v994 = vld [vmem:[%s947 + $0xb8] sm:$0xf]
      %v995 = vld [vmem:[%s947 + $0xbc] sm:$0xf]
      %v1044 = vunpack.c.l.b16 %v948
      %v1045 = vunpack.c.l.b16 %v949
      %v1046 = vunpack.c.l.b16 %v950
      %v1047 = vunpack.c.l.b16 %v951
      %v1048 = vunpack.c.l.b16 %v952
      %v1049 = vunpack.c.l.b16 %v953
      %v1050 = vunpack.c.l.b16 %v954
      %v1051 = vunpack.c.l.b16 %v955
      %v1052 = vunpack.c.l.b16 %v956
      %v1053 = vunpack.c.l.b16 %v957
      %v1054 = vunpack.c.l.b16 %v958
      %v1055 = vunpack.c.l.b16 %v959
      %v1056 = vunpack.c.l.b16 %v960
      %v1057 = vunpack.c.l.b16 %v961
      %v1058 = vunpack.c.l.b16 %v962
      %v1059 = vunpack.c.l.b16 %v963
      %v1060 = vunpack.c.l.b16 %v964
      %v1061 = vunpack.c.l.b16 %v965
      %v1062 = vunpack.c.l.b16 %v966
      %v1063 = vunpack.c.l.b16 %v967
      %v1064 = vunpack.c.l.b16 %v968
      %v1065 = vunpack.c.l.b16 %v969
      %v1066 = vunpack.c.l.b16 %v970
      %v1067 = vunpack.c.l.b16 %v971
      %v1068 = vunpack.c.l.b16 %v972
      %v1069 = vunpack.c.l.b16 %v973
      %v1070 = vunpack.c.l.b16 %v974
      %v1071 = vunpack.c.l.b16 %v975
      %v1072 = vunpack.c.l.b16 %v976
      %v1073 = vunpack.c.l.b16 %v977
      %v1074 = vunpack.c.l.b16 %v978
      %v1075 = vunpack.c.l.b16 %v979
      %v1076 = vunpack.c.l.b16 %v980
      %v1077 = vunpack.c.l.b16 %v981
      %v1078 = vunpack.c.l.b16 %v982
      %v1079 = vunpack.c.l.b16 %v983
      %v1080 = vunpack.c.l.b16 %v984
      %v1081 = vunpack.c.l.b16 %v985
      %v1082 = vunpack.c.l.b16 %v986
      %v1083 = vunpack.c.l.b16 %v987
      %v1084 = vunpack.c.l.b16 %v988
      %v1085 = vunpack.c.l.b16 %v989
      %v1086 = vunpack.c.l.b16 %v990
      %v1087 = vunpack.c.l.b16 %v991
      %v1088 = vunpack.c.l.b16 %v992
      %v1089 = vunpack.c.l.b16 %v993
      %v1090 = vunpack.c.l.b16 %v994
      %v1091 = vunpack.c.l.b16 %v995
      %v1092 = vpack.c.b16 %v1045, %v1044
      %v1093 = vpack.c.b16 %v1047, %v1046
      %v1094 = vpack.c.b16 %v1049, %v1048
      %v1095 = vpack.c.b16 %v1051, %v1050
      %v1096 = vpack.c.b16 %v1053, %v1052
      %v1097 = vpack.c.b16 %v1055, %v1054
      %v1098 = vpack.c.b16 %v1057, %v1056
      %v1099 = vpack.c.b16 %v1059, %v1058
      %v1100 = vpack.c.b16 %v1061, %v1060
      %v1101 = vpack.c.b16 %v1063, %v1062
      %v1102 = vpack.c.b16 %v1065, %v1064
      %v1103 = vpack.c.b16 %v1067, %v1066
      %v1104 = vpack.c.b16 %v1069, %v1068
      %v1105 = vpack.c.b16 %v1071, %v1070
      %v1106 = vpack.c.b16 %v1073, %v1072
      %v1107 = vpack.c.b16 %v1075, %v1074
      %v1108 = vpack.c.b16 %v1077, %v1076
      %v1109 = vpack.c.b16 %v1079, %v1078
      %v1110 = vpack.c.b16 %v1081, %v1080
      %v1111 = vpack.c.b16 %v1083, %v1082
      %v1112 = vpack.c.b16 %v1085, %v1084
      %v1113 = vpack.c.b16 %v1087, %v1086
      %v1114 = vpack.c.b16 %v1089, %v1088
      %v1115 = vpack.c.b16 %v1091, %v1090
      %1140 = vmatprep.subr.bf16.mxu0 0
      %1141 = vmatpush1.bf16.msra.mxu0 %v1092
      %1142 = vmatprep.subr.bf16.mxu0 0
      %1143 = vmatpush1.bf16.msra.mxu0 %v1093
      %1144 = vmatprep.subr.bf16.mxu0 0
      %1145 = vmatpush1.bf16.msra.mxu0 %v1094
      %1146 = vmatprep.subr.bf16.mxu0 0
      %1147 = vmatpush1.bf16.msra.mxu0 %v1095
      %1148 = vmatprep.subr.bf16.mxu0 0
      %1149 = vmatpush1.bf16.msra.mxu0 %v1096
      %1150 = vmatprep.subr.bf16.mxu0 0
      %1151 = vmatpush1.bf16.msra.mxu0 %v1097
      %1152 = vmatprep.subr.bf16.mxu0 0
      %1153 = vmatpush1.bf16.msra.mxu0 %v1098
      %1154 = vmatprep.subr.bf16.mxu0 0
      %1155 = vmatpush1.bf16.msra.mxu0 %v1099
      %1156 = vmatprep.subr.bf16.mxu0 0
      %1157 = vmatpush1.bf16.msra.mxu0 %v1100
      %1158 = vmatprep.subr.bf16.mxu0 0
      %1159 = vmatpush1.bf16.msra.mxu0 %v1101
      %1160 = vmatprep.subr.bf16.mxu0 0
      %1161 = vmatpush1.bf16.msra.mxu0 %v1102
      %1162 = vmatprep.subr.bf16.mxu0 0
      %1163 = vmatpush1.bf16.msra.mxu0 %v1103
      %1164 = vmatprep.subr.bf16.mxu0 0
      %1165 = vmatpush1.bf16.msra.mxu0 %v1104
      %1166 = vmatprep.subr.bf16.mxu0 0
      %1167 = vmatpush1.bf16.msra.mxu0 %v1105
      %1168 = vmatprep.subr.bf16.mxu0 0
      %1169 = vmatpush1.bf16.msra.mxu0 %v1106
      %1170 = vmatprep.subr.bf16.mxu0 0
      %1171 = vmatpush1.bf16.msra.mxu0 %v1107
      %1172 = vmatprep.mubr.bf16.mxu0 %v645
      %1173 = vmatmul.mubr.bf16.gmra.mrb[0].mxu0 %v644
      %v1174 = vpop.f32.mrb[0].mxu0
      %v1175 = vadd.f32 0.0, %v1174
      %v1176 = vpop.f32.mrb[0].mxu0
      %v1177 = vpop.f32.mrb[0].mxu0
      %v1178 = vadd.f32 0.0, %v1177
      %v1179 = vpop.f32.mrb[0].mxu0
      %1180 = vmatprep.mubr.bf16.mxu0 %v646
      %1181 = vmatmul.mubr.bf16.gmra.mrb[0].mxu0 %v645
      %v1182 = vpop.f32.mrb[0].mxu0
      %v1183 = vadd.f32 0.0, %v1182
      %v1184 = vpop.f32.mrb[0].mxu0
      %v1185 = vpop.f32.mrb[0].mxu0
      %v1186 = vadd.f32 0.0, %v1185
      %v1187 = vpop.f32.mrb[0].mxu0
      %1188 = vmatprep.mubr.bf16.mxu0 %v647
      %1189 = vmatmul.mubr.bf16.gmra.mrb[0].mxu0 %v646
      %v1190 = vpop.f32.mrb[0].mxu0
      %v1191 = vadd.f32 0.0, %v1190
      %v1192 = vpop.f32.mrb[0].mxu0
      %v1193 = vpop.f32.mrb[0].mxu0
      %v1194 = vadd.f32 0.0, %v1193
      %v1195 = vpop.f32.mrb[0].mxu0
      %1196 = vmatprep.mubr.bf16.mxu0 %v648
      %1197 = vmatmul.mubr.bf16.gmra.mrb[0].mxu0 %v647
      %v1198 = vpop.f32.mrb[0].mxu0
      %v1199 = vadd.f32 0.0, %v1198
      %v1200 = vpop.f32.mrb[0].mxu0
      %v1201 = vpop.f32.mrb[0].mxu0
      %v1202 = vadd.f32 0.0, %v1201
      %v1203 = vpop.f32.mrb[0].mxu0
      %1204 = vmatprep.mubr.bf16.mxu0 %v649
      %1205 = vmatmul.mubr.bf16.gmra.mrb[0].mxu0 %v648
      %v1206 = vpop.f32.mrb[0].mxu0
      %v1207 = vadd.f32 0.0, %v1206
      %v1208 = vpop.f32.mrb[0].mxu0
      %v1209 = vpop.f32.mrb[0].mxu0
      %v1210 = vadd.f32 0.0, %v1209
      %v1211 = vpop.f32.mrb[0].mxu0
      %1212 = vmatprep.mubr.bf16.mxu0 %v650
      %1213 = vmatmul.mubr.bf16.gmra.mrb[0].mxu0 %v649
      %v1214 = vpop.f32.mrb[0].mxu0
      %v1215 = vadd.f32 0.0, %v1214
      %v1216 = vpop.f32.mrb[0].mxu0
      %v1217 = vpop.f32.mrb[0].mxu0
      %v1218 = vadd.f32 0.0, %v1217
      %v1219 = vpop.f32.mrb[0].mxu0
      %1220 = vmatprep.mubr.bf16.mxu0 %v651
      %1221 = vmatmul.mubr.bf16.gmra.mrb[0].mxu0 %v650
      %v1222 = vpop.f32.mrb[0].mxu0
      %v1223 = vadd.f32 0.0, %v1222
      %v1224 = vpop.f32.mrb[0].mxu0
      %v1225 = vpop.f32.mrb[0].mxu0
      %v1226 = vadd.f32 0.0, %v1225
      %v1227 = vpop.f32.mrb[0].mxu0
      %1228 = vmatprep.mubr.bf16.mxu0 %v652
      %1229 = vmatmul.mubr.bf16.gmra.mrb[0].mxu0 %v651
      %v1230 = vpop.f32.mrb[0].mxu0
      %v1231 = vadd.f32 0.0, %v1230
      %v1232 = vpop.f32.mrb[0].mxu0
      %v1233 = vpop.f32.mrb[0].mxu0
      %v1234 = vadd.f32 0.0, %v1233
      %v1235 = vpop.f32.mrb[0].mxu0
      %1236 = vmatprep.mubr.bf16.mxu0 %v653
      %1237 = vmatmul.mubr.bf16.gmra.mrb[0].mxu0 %v652
      %v1238 = vpop.f32.mrb[0].mxu0
      %v1239 = vadd.f32 0.0, %v1238
      %v1240 = vpop.f32.mrb[0].mxu0
      %v1241 = vpop.f32.mrb[0].mxu0
      %v1242 = vadd.f32 0.0, %v1241
      %v1243 = vpop.f32.mrb[0].mxu0
      %1244 = vmatprep.mubr.bf16.mxu0 %v654
      %1245 = vmatmul.mubr.bf16.gmra.mrb[0].mxu0 %v653
      %v1246 = vpop.f32.mrb[0].mxu0
      %v1247 = vadd.f32 0.0, %v1246
      %v1248 = vpop.f32.mrb[0].mxu0
      %v1249 = vpop.f32.mrb[0].mxu0
      %v1250 = vadd.f32 0.0, %v1249
      %v1251 = vpop.f32.mrb[0].mxu0
      %1252 = vmatprep.mubr.bf16.mxu0 %v655
      %1253 = vmatmul.mubr.bf16.gmra.mrb[0].mxu0 %v654
      %v1254 = vpop.f32.mrb[0].mxu0
      %v1255 = vadd.f32 0.0, %v1254
      %v1256 = vpop.f32.mrb[0].mxu0
      %v1257 = vpop.f32.mrb[0].mxu0
      %v1258 = vadd.f32 0.0, %v1257
      %v1259 = vpop.f32.mrb[0].mxu0
      %1260 = vmatprep.mubr.bf16.mxu0 %v656
      %1261 = vmatmul.mubr.bf16.gmra.mrb[0].mxu0 %v655
      %v1262 = vpop.f32.mrb[0].mxu0
      %v1263 = vadd.f32 0.0, %v1262
      %v1264 = vpop.f32.mrb[0].mxu0
      %v1265 = vpop.f32.mrb[0].mxu0
      %v1266 = vadd.f32 0.0, %v1265
      %v1267 = vpop.f32.mrb[0].mxu0
      %1268 = vmatprep.mubr.bf16.mxu0 %v657
      %1269 = vmatmul.mubr.bf16.gmra.mrb[0].mxu0 %v656
      %v1270 = vpop.f32.mrb[0].mxu0
      %v1271 = vadd.f32 0.0, %v1270
      %v1272 = vpop.f32.mrb[0].mxu0
      %v1273 = vpop.f32.mrb[0].mxu0
      %v1274 = vadd.f32 0.0, %v1273
      %v1275 = vpop.f32.mrb[0].mxu0
      %1276 = vmatprep.mubr.bf16.mxu0 %v658
      %1277 = vmatmul.mubr.bf16.gmra.mrb[0].mxu0 %v657
      %v1278 = vpop.f32.mrb[0].mxu0
      %v1279 = vadd.f32 0.0, %v1278
      %v1280 = vpop.f32.mrb[0].mxu0
      %v1281 = vpop.f32.mrb[0].mxu0
      %v1282 = vadd.f32 0.0, %v1281
      %v1283 = vpop.f32.mrb[0].mxu0
      %1284 = vmatprep.mubr.bf16.mxu0 %v659
      %1285 = vmatmul.mubr.bf16.gmra.mrb[0].mxu0 %v658
      %v1286 = vpop.f32.mrb[0].mxu0
      %v1287 = vadd.f32 0.0, %v1286
      %v1288 = vpop.f32.mrb[0].mxu0
      %v1289 = vpop.f32.mrb[0].mxu0
      %v1290 = vadd.f32 0.0, %v1289
      %v1291 = vpop.f32.mrb[0].mxu0
      %1292 = vmatprep.mubr.bf16.mxu0 %v660
      %1293 = vmatmul.mubr.bf16.gmra.mrb[0].mxu0 %v659
      %v1294 = vpop.f32.mrb[0].mxu0
      %v1295 = vadd.f32 0.0, %v1294
      %v1296 = vpop.f32.mrb[0].mxu0
      %v1297 = vpop.f32.mrb[0].mxu0
      %v1298 = vadd.f32 0.0, %v1297
      %v1299 = vpop.f32.mrb[0].mxu0
      %1300 = vdwg.mxu0
      %1301 = vmatprep.subr.bf16.mxu0 0
      %1302 = vmatpush1.bf16.msra.mxu0 %v1108
      %1303 = vmatprep.subr.bf16.mxu0 0
      %1304 = vmatpush1.bf16.msra.mxu0 %v1109
      %1305 = vmatprep.subr.bf16.mxu0 0
      %1306 = vmatpush1.bf16.msra.mxu0 %v1110
      %1307 = vmatprep.subr.bf16.mxu0 0
      %1308 = vmatpush1.bf16.msra.mxu0 %v1111
      %1309 = vmatprep.subr.bf16.mxu0 0
      %1310 = vmatpush1.bf16.msra.mxu0 %v1112
      %1311 = vmatprep.subr.bf16.mxu0 0
      %1312 = vmatpush1.bf16.msra.mxu0 %v1113
      %1313 = vmatprep.subr.bf16.mxu0 0
      %1314 = vmatpush1.bf16.msra.mxu0 %v1114
      %1315 = vmatprep.subr.bf16.mxu0 0
      %1316 = vmatpush1.bf16.msra.mxu0 %v1115
      %1317 = vmatprep.subr.bf16.mxu0 0
      %1318 = vmatpush1.bf16.msra.mxu0 0
      %1319 = vmatprep.subr.bf16.mxu0 0
      %1320 = vmatpush1.bf16.msra.mxu0 0
      %1321 = vmatprep.subr.bf16.mxu0 0
      %1322 = vmatpush1.bf16.msra.mxu0 0
      %1323 = vmatprep.subr.bf16.mxu0 0
      %1324 = vmatpush1.bf16.msra.mxu0 0
      %1325 = vmatprep.subr.bf16.mxu0 0
      %1326 = vmatpush1.bf16.msra.mxu0 0
      %1327 = vmatprep.subr.bf16.mxu0 0
      %1328 = vmatpush1.bf16.msra.mxu0 0
      %1329 = vmatprep.subr.bf16.mxu0 0
      %1330 = vmatpush1.bf16.msra.mxu0 0
      %1331 = vmatprep.subr.bf16.mxu0 0
      %1332 = vmatpush1.bf16.msra.mxu0 0
      %1333 = vmatprep.mubr.bf16.mxu0 0
      %1334 = vmatmul.mubr.bf16.gmra.mrb[0].mxu0 %v646
      %v1335 = vpop.f32.mrb[0].mxu0
      %v1336 = vadd.f32 %v1175, %v1335
      %v1337 = vpop.f32.mrb[0].mxu0
      %v1338 = vpop.f32.mrb[0].mxu0
      %v1339 = vadd.f32 %v1178, %v1338
      %v1340 = vpop.f32.mrb[0].mxu0
      %1341 = vmatprep.mubr.bf16.mxu0 0
      %1342 = vmatmul.mubr.bf16.gmra.mrb[0].mxu0 %v647
      %v1343 = vpop.f32.mrb[0].mxu0
      %v1344 = vadd.f32 %v1183, %v1343
      %v1345 = vpop.f32.mrb[0].mxu0
      %v1346 = vpop.f32.mrb[0].mxu0
      %v1347 = vadd.f32 %v1186, %v1346
      %v1348 = vpop.f32.mrb[0].mxu0
      %1349 = vmatprep.mubr.bf16.mxu0 0
      %1350 = vmatmul.mubr.bf16.gmra.mrb[0].mxu0 %v648
      %v1351 = vpop.f32.mrb[0].mxu0
      %v1352 = vadd.f32 %v1191, %v1351
      %v1353 = vpop.f32.mrb[0].mxu0
      %v1354 = vpop.f32.mrb[0].mxu0
      %v1355 = vadd.f32 %v1194, %v1354
      %v1356 = vpop.f32.mrb[0].mxu0
      %1357 = vmatprep.mubr.bf16.mxu0 0
      %1358 = vmatmul.mubr.bf16.gmra.mrb[0].mxu0 %v649
      %v1359 = vpop.f32.mrb[0].mxu0
      %v1360 = vadd.f32 %v1199, %v1359
      %v1361 = vpop.f32.mrb[0].mxu0
      %v1362 = vpop.f32.mrb[0].mxu0
      %v1363 = vadd.f32 %v1202, %v1362
      %v1364 = vpop.f32.mrb[0].mxu0
      %1365 = vmatprep.mubr.bf16.mxu0 0
      %1366 = vmatmul.mubr.bf16.gmra.mrb[0].mxu0 %v650
      %v1367 = vpop.f32.mrb[0].mxu0
      %v1368 = vadd.f32 %v1207, %v1367
      %v1369 = vpop.f32.mrb[0].mxu0
      %v1370 = vpop.f32.mrb[0].mxu0
      %v1371 = vadd.f32 %v1210, %v1370
      %v1372 = vpop.f32.mrb[0].mxu0
      %1373 = vmatprep.mubr.bf16.mxu0 0
      %1374 = vmatmul.mubr.bf16.gmra.mrb[0].mxu0 %v651
      %v1375 = vpop.f32.mrb[0].mxu0
      %v1376 = vadd.f32 %v1215, %v1375
      %v1377 = vpop.f32.mrb[0].mxu0
      %v1378 = vpop.f32.mrb[0].mxu0
      %v1379 = vadd.f32 %v1218, %v1378
      %v1380 = vpop.f32.mrb[0].mxu0
      %1381 = vmatprep.mubr.bf16.mxu0 0
      %1382 = vmatmul.mubr.bf16.gmra.mrb[0].mxu0 %v652
      %v1383 = vpop.f32.mrb[0].mxu0
      %v1384 = vadd.f32 %v1223, %v1383
      %v1385 = vpop.f32.mrb[0].mxu0
      %v1386 = vpop.f32.mrb[0].mxu0
      %v1387 = vadd.f32 %v1226, %v1386
      %v1388 = vpop.f32.mrb[0].mxu0
      %1389 = vmatprep.mubr.bf16.mxu0 0
      %1390 = vmatmul.mubr.bf16.gmra.mrb[0].mxu0 %v653
      %v1391 = vpop.f32.mrb[0].mxu0
      %v1392 = vadd.f32 %v1231, %v1391
      %v1393 = vpop.f32.mrb[0].mxu0
      %v1394 = vpop.f32.mrb[0].mxu0
      %v1395 = vadd.f32 %v1234, %v1394
      %v1396 = vpop.f32.mrb[0].mxu0
      %1397 = vmatprep.mubr.bf16.mxu0 0
      %1398 = vmatmul.mubr.bf16.gmra.mrb[0].mxu0 %v654
      %v1399 = vpop.f32.mrb[0].mxu0
      %v1400 = vadd.f32 %v1239, %v1399
      %v1401 = vpop.f32.mrb[0].mxu0
      %v1402 = vpop.f32.mrb[0].mxu0
      %v1403 = vadd.f32 %v1242, %v1402
      %v1404 = vpop.f32.mrb[0].mxu0
      %1405 = vmatprep.mubr.bf16.mxu0 0
      %1406 = vmatmul.mubr.bf16.gmra.mrb[0].mxu0 %v655
      %v1407 = vpop.f32.mrb[0].mxu0
      %v1408 = vadd.f32 %v1247, %v1407
      %v1409 = vpop.f32.mrb[0].mxu0
      %v1410 = vpop.f32.mrb[0].mxu0
      %v1411 = vadd.f32 %v1250, %v1410
      %v1412 = vpop.f32.mrb[0].mxu0
      %1413 = vmatprep.mubr.bf16.mxu0 0
      %1414 = vmatmul.mubr.bf16.gmra.mrb[0].mxu0 %v656
      %v1415 = vpop.f32.mrb[0].mxu0
      %v1416 = vadd.f32 %v1255, %v1415
      %v1417 = vpop.f32.mrb[0].mxu0
      %v1418 = vpop.f32.mrb[0].mxu0
      %v1419 = vadd.f32 %v1258, %v1418
      %v1420 = vpop.f32.mrb[0].mxu0
      %1421 = vmatprep.mubr.bf16.mxu0 0
      %1422 = vmatmul.mubr.bf16.gmra.mrb[0].mxu0 %v657
      %v1423 = vpop.f32.mrb[0].mxu0
      %v1424 = vadd.f32 %v1263, %v1423
      %v1425 = vpop.f32.mrb[0].mxu0
      %v1426 = vpop.f32.mrb[0].mxu0
      %v1427 = vadd.f32 %v1266, %v1426
      %v1428 = vpop.f32.mrb[0].mxu0
      %1429 = vmatprep.mubr.bf16.mxu0 0
      %1430 = vmatmul.mubr.bf16.gmra.mrb[0].mxu0 %v658
      %v1431 = vpop.f32.mrb[0].mxu0
      %v1432 = vadd.f32 %v1271, %v1431
      %v1433 = vpop.f32.mrb[0].mxu0
      %v1434 = vpop.f32.mrb[0].mxu0
      %v1435 = vadd.f32 %v1274, %v1434
      %v1436 = vpop.f32.mrb[0].mxu0
      %1437 = vmatprep.mubr.bf16.mxu0 0
      %1438 = vmatmul.mubr.bf16.gmra.mrb[0].mxu0 %v659
      %v1439 = vpop.f32.mrb[0].mxu0
      %v1440 = vadd.f32 %v1279, %v1439
      %v1441 = vpop.f32.mrb[0].mxu0
      %v1442 = vpop.f32.mrb[0].mxu0
      %v1443 = vadd.f32 %v1282, %v1442
      %v1444 = vpop.f32.mrb[0].mxu0
      %1445 = vmatprep.mubr.bf16.mxu0 0
      %1446 = vmatmul.mubr.bf16.gmra.mrb[0].mxu0 %v660
      %v1447 = vpop.f32.mrb[0].mxu0
      %v1448 = vadd.f32 %v1287, %v1447
      %v1449 = vpop.f32.mrb[0].mxu0
      %v1450 = vpop.f32.mrb[0].mxu0
      %v1451 = vadd.f32 %v1290, %v1450
      %v1452 = vpop.f32.mrb[0].mxu0
      %1453 = vmatprep.mubr.bf16.mxu0 0
      %1454 = vmatmul.mubr.bf16.gmra.mrb[0].mxu0 %v661
      %v1455 = vpop.f32.mrb[0].mxu0
      %v1456 = vadd.f32 %v1295, %v1455
      %v1457 = vpop.f32.mrb[0].mxu0
      %v1458 = vpop.f32.mrb[0].mxu0
      %v1459 = vadd.f32 %v1298, %v1458
      %v1460 = vpop.f32.mrb[0].mxu0
      %1461 = vdwg.mxu0
      %v1510 = vunpack.c.l.b16 %v899
      %v1511 = vunpack.c.l.b16 %v900
      %v1512 = vunpack.c.l.b16 %v901
      %v1513 = vunpack.c.l.b16 %v902
      %v1514 = vunpack.c.l.b16 %v903
      %v1515 = vunpack.c.l.b16 %v904
      %v1516 = vunpack.c.l.b16 %v905
      %v1517 = vunpack.c.l.b16 %v906
      %v1518 = vunpack.c.l.b16 %v907
      %v1519 = vunpack.c.l.b16 %v908
      %v1520 = vunpack.c.l.b16 %v909
      %v1521 = vunpack.c.l.b16 %v910
      %v1522 = vunpack.c.l.b16 %v911
      %v1523 = vunpack.c.l.b16 %v912
      %v1524 = vunpack.c.l.b16 %v913
      %v1525 = vunpack.c.l.b16 %v914
      %v1526 = vunpack.c.l.b16 %v915
      %v1527 = vunpack.c.l.b16 %v916
      %v1528 = vunpack.c.l.b16 %v917
      %v1529 = vunpack.c.l.b16 %v918
      %v1530 = vunpack.c.l.b16 %v919
      %v1531 = vunpack.c.l.b16 %v920
      %v1532 = vunpack.c.l.b16 %v921
      %v1533 = vunpack.c.l.b16 %v922
      %v1534 = vunpack.c.l.b16 %v923
      %v1535 = vunpack.c.l.b16 %v924
      %v1536 = vunpack.c.l.b16 %v925
      %v1537 = vunpack.c.l.b16 %v926
      %v1538 = vunpack.c.l.b16 %v927
      %v1539 = vunpack.c.l.b16 %v928
      %v1540 = vunpack.c.l.b16 %v929
      %v1541 = vunpack.c.l.b16 %v930
      %v1542 = vunpack.c.l.b16 %v931
      %v1543 = vunpack.c.l.b16 %v932
      %v1544 = vunpack.c.l.b16 %v933
      %v1545 = vunpack.c.l.b16 %v934
      %v1546 = vunpack.c.l.b16 %v935
      %v1547 = vunpack.c.l.b16 %v936
      %v1548 = vunpack.c.l.b16 %v937
      %v1549 = vunpack.c.l.b16 %v938
      %v1550 = vunpack.c.l.b16 %v939
      %v1551 = vunpack.c.l.b16 %v940
      %v1552 = vunpack.c.l.b16 %v941
      %v1553 = vunpack.c.l.b16 %v942
      %v1554 = vunpack.c.l.b16 %v943
      %v1555 = vunpack.c.l.b16 %v944
      %v1556 = vunpack.c.l.b16 %v945
      %v1557 = vunpack.c.l.b16 %v946
      %v1558 = vpack.c.b16 %v1511, %v1510
      %v1559 = vpack.c.b16 %v1513, %v1512
      %v1560 = vpack.c.b16 %v1515, %v1514
      %v1561 = vpack.c.b16 %v1517, %v1516
      %v1562 = vpack.c.b16 %v1519, %v1518
      %v1563 = vpack.c.b16 %v1521, %v1520
      %v1564 = vpack.c.b16 %v1523, %v1522
      %v1565 = vpack.c.b16 %v1525, %v1524
      %v1566 = vpack.c.b16 %v1527, %v1526
      %v1567 = vpack.c.b16 %v1529, %v1528
      %v1568 = vpack.c.b16 %v1531, %v1530
      %v1569 = vpack.c.b16 %v1533, %v1532
      %v1570 = vpack.c.b16 %v1535, %v1534
      %v1571 = vpack.c.b16 %v1537, %v1536
      %v1572 = vpack.c.b16 %v1539, %v1538
      %v1573 = vpack.c.b16 %v1541, %v1540
      %v1574 = vpack.c.b16 %v1543, %v1542
      %v1575 = vpack.c.b16 %v1545, %v1544
      %v1576 = vpack.c.b16 %v1547, %v1546
      %v1577 = vpack.c.b16 %v1549, %v1548
      %v1578 = vpack.c.b16 %v1551, %v1550
      %v1579 = vpack.c.b16 %v1553, %v1552
      %v1580 = vpack.c.b16 %v1555, %v1554
      %v1581 = vpack.c.b16 %v1557, %v1556
      %1606 = vmatprep.subr.bf16.mxu0 0
      %1607 = vmatpush1.bf16.msra.mxu0 %v1558
      %1608 = vmatprep.subr.bf16.mxu0 0
      %1609 = vmatpush1.bf16.msra.mxu0 %v1559
      %1610 = vmatprep.subr.bf16.mxu0 0
      %1611 = vmatpush1.bf16.msra.mxu0 %v1560
      %1612 = vmatprep.subr.bf16.mxu0 0
      %1613 = vmatpush1.bf16.msra.mxu0 %v1561
      %1614 = vmatprep.subr.bf16.mxu0 0
      %1615 = vmatpush1.bf16.msra.mxu0 %v1562
      %1616 = vmatprep.subr.bf16.mxu0 0
      %1617 = vmatpush1.bf16.msra.mxu0 %v1563
      %1618 = vmatprep.subr.bf16.mxu0 0
      %1619 = vmatpush1.bf16.msra.mxu0 %v1564
      %1620 = vmatprep.subr.bf16.mxu0 0
      %1621 = vmatpush1.bf16.msra.mxu0 %v1565
      %1622 = vmatprep.subr.bf16.mxu0 0
      %1623 = vmatpush1.bf16.msra.mxu0 %v1566
      %1624 = vmatprep.subr.bf16.mxu0 0
      %1625 = vmatpush1.bf16.msra.mxu0 %v1567
      %1626 = vmatprep.subr.bf16.mxu0 0
      %1627 = vmatpush1.bf16.msra.mxu0 %v1568
      %1628 = vmatprep.subr.bf16.mxu0 0
      %1629 = vmatpush1.bf16.msra.mxu0 %v1569
      %1630 = vmatprep.subr.bf16.mxu0 0
      %1631 = vmatpush1.bf16.msra.mxu0 %v1570
      %1632 = vmatprep.subr.bf16.mxu0 0
      %1633 = vmatpush1.bf16.msra.mxu0 %v1571
      %1634 = vmatprep.subr.bf16.mxu0 0
      %1635 = vmatpush1.bf16.msra.mxu0 %v1572
      %1636 = vmatprep.subr.bf16.mxu0 0
      %1637 = vmatpush1.bf16.msra.mxu0 %v1573
      %1638 = vmatprep.mubr.bf16.mxu0 %v882
      %1639 = vmatmul.mubr.bf16.gmra.mrb[0].mxu0 %v881
      %v1640 = vpop.f32.mrb[0].mxu0
      %v1641 = vadd.f32 %v1336, %v1640
      %v1642 = vpop.f32.mrb[0].mxu0
      %v1643 = vpop.f32.mrb[0].mxu0
      %v1644 = vadd.f32 %v1339, %v1643
      %v1645 = vpop.f32.mrb[0].mxu0
      %1646 = vmatprep.mubr.bf16.mxu0 %v883
      %1647 = vmatmul.mubr.bf16.gmra.mrb[0].mxu0 %v882
      %v1648 = vpop.f32.mrb[0].mxu0
      %v1649 = vadd.f32 %v1344, %v1648
      %v1650 = vpop.f32.mrb[0].mxu0
      %v1651 = vpop.f32.mrb[0].mxu0
      %v1652 = vadd.f32 %v1347, %v1651
      %v1653 = vpop.f32.mrb[0].mxu0
      %1654 = vmatprep.mubr.bf16.mxu0 %v884
      %1655 = vmatmul.mubr.bf16.gmra.mrb[0].mxu0 %v883
      %v1656 = vpop.f32.mrb[0].mxu0
      %v1657 = vadd.f32 %v1352, %v1656
      %v1658 = vpop.f32.mrb[0].mxu0
      %v1659 = vpop.f32.mrb[0].mxu0
      %v1660 = vadd.f32 %v1355, %v1659
      %v1661 = vpop.f32.mrb[0].mxu0
      %1662 = vmatprep.mubr.bf16.mxu0 %v885
      %1663 = vmatmul.mubr.bf16.gmra.mrb[0].mxu0 %v884
      %v1664 = vpop.f32.mrb[0].mxu0
      %v1665 = vadd.f32 %v1360, %v1664
      %v1666 = vpop.f32.mrb[0].mxu0
      %v1667 = vpop.f32.mrb[0].mxu0
      %v1668 = vadd.f32 %v1363, %v1667
      %v1669 = vpop.f32.mrb[0].mxu0
      %1670 = vmatprep.mubr.bf16.mxu0 %v886
      %1671 = vmatmul.mubr.bf16.gmra.mrb[0].mxu0 %v885
      %v1672 = vpop.f32.mrb[0].mxu0
      %v1673 = vadd.f32 %v1368, %v1672
      %v1674 = vpop.f32.mrb[0].mxu0
      %v1675 = vpop.f32.mrb[0].mxu0
      %v1676 = vadd.f32 %v1371, %v1675
      %v1677 = vpop.f32.mrb[0].mxu0
      %1678 = vmatprep.mubr.bf16.mxu0 %v887
      %1679 = vmatmul.mubr.bf16.gmra.mrb[0].mxu0 %v886
      %v1680 = vpop.f32.mrb[0].mxu0
      %v1681 = vadd.f32 %v1376, %v1680
      %v1682 = vpop.f32.mrb[0].mxu0
      %v1683 = vpop.f32.mrb[0].mxu0
      %v1684 = vadd.f32 %v1379, %v1683
      %v1685 = vpop.f32.mrb[0].mxu0
      %1686 = vmatprep.mubr.bf16.mxu0 %v888
      %1687 = vmatmul.mubr.bf16.gmra.mrb[0].mxu0 %v887
      %v1688 = vpop.f32.mrb[0].mxu0
      %v1689 = vadd.f32 %v1384, %v1688
      %v1690 = vpop.f32.mrb[0].mxu0
      %v1691 = vpop.f32.mrb[0].mxu0
      %v1692 = vadd.f32 %v1387, %v1691
      %v1693 = vpop.f32.mrb[0].mxu0
      %1694 = vmatprep.mubr.bf16.mxu0 %v889
      %1695 = vmatmul.mubr.bf16.gmra.mrb[0].mxu0 %v888
      %v1696 = vpop.f32.mrb[0].mxu0
      %v1697 = vadd.f32 %v1392, %v1696
      %v1698 = vpop.f32.mrb[0].mxu0
      %v1699 = vpop.f32.mrb[0].mxu0
      %v1700 = vadd.f32 %v1395, %v1699
      %v1701 = vpop.f32.mrb[0].mxu0
      %1702 = vmatprep.mubr.bf16.mxu0 %v890
      %1703 = vmatmul.mubr.bf16.gmra.mrb[0].mxu0 %v889
      %v1704 = vpop.f32.mrb[0].mxu0
      %v1705 = vadd.f32 %v1400, %v1704
      %v1706 = vpop.f32.mrb[0].mxu0
      %v1707 = vpop.f32.mrb[0].mxu0
      %v1708 = vadd.f32 %v1403, %v1707
      %v1709 = vpop.f32.mrb[0].mxu0
      %1710 = vmatprep.mubr.bf16.mxu0 %v891
      %1711 = vmatmul.mubr.bf16.gmra.mrb[0].mxu0 %v890
      %v1712 = vpop.f32.mrb[0].mxu0
      %v1713 = vadd.f32 %v1408, %v1712
      %v1714 = vpop.f32.mrb[0].mxu0
      %v1715 = vpop.f32.mrb[0].mxu0
      %v1716 = vadd.f32 %v1411, %v1715
      %v1717 = vpop.f32.mrb[0].mxu0
      %1718 = vmatprep.mubr.bf16.mxu0 %v892
      %1719 = vmatmul.mubr.bf16.gmra.mrb[0].mxu0 %v891
      %v1720 = vpop.f32.mrb[0].mxu0
      %v1721 = vadd.f32 %v1416, %v1720
      %v1722 = vpop.f32.mrb[0].mxu0
      %v1723 = vpop.f32.mrb[0].mxu0
      %v1724 = vadd.f32 %v1419, %v1723
      %v1725 = vpop.f32.mrb[0].mxu0
      %1726 = vmatprep.mubr.bf16.mxu0 %v893
      %1727 = vmatmul.mubr.bf16.gmra.mrb[0].mxu0 %v892
      %v1728 = vpop.f32.mrb[0].mxu0
      %v1729 = vadd.f32 %v1424, %v1728
      %v1730 = vpop.f32.mrb[0].mxu0
      %v1731 = vpop.f32.mrb[0].mxu0
      %v1732 = vadd.f32 %v1427, %v1731
      %v1733 = vpop.f32.mrb[0].mxu0
      %1734 = vmatprep.mubr.bf16.mxu0 %v894
      %1735 = vmatmul.mubr.bf16.gmra.mrb[0].mxu0 %v893
      %v1736 = vpop.f32.mrb[0].mxu0
      %v1737 = vadd.f32 %v1432, %v1736
      %v1738 = vpop.f32.mrb[0].mxu0
      %v1739 = vpop.f32.mrb[0].mxu0
      %v1740 = vadd.f32 %v1435, %v1739
      %v1741 = vpop.f32.mrb[0].mxu0
      %1742 = vmatprep.mubr.bf16.mxu0 %v895
      %1743 = vmatmul.mubr.bf16.gmra.mrb[0].mxu0 %v894
      %v1744 = vpop.f32.mrb[0].mxu0
      %v1745 = vadd.f32 %v1440, %v1744
      %v1746 = vpop.f32.mrb[0].mxu0
      %v1747 = vpop.f32.mrb[0].mxu0
      %v1748 = vadd.f32 %v1443, %v1747
      %v1749 = vpop.f32.mrb[0].mxu0
      %1750 = vmatprep.mubr.bf16.mxu0 %v896
      %1751 = vmatmul.mubr.bf16.gmra.mrb[0].mxu0 %v895
      %v1752 = vpop.f32.mrb[0].mxu0
      %v1753 = vadd.f32 %v1448, %v1752
      %v1754 = vpop.f32.mrb[0].mxu0
      %v1755 = vpop.f32.mrb[0].mxu0
      %v1756 = vadd.f32 %v1451, %v1755
      %v1757 = vpop.f32.mrb[0].mxu0
      %1758 = vmatprep.mubr.bf16.mxu0 %v897
      %1759 = vmatmul.mubr.bf16.gmra.mrb[0].mxu0 %v896
      %v1760 = vpop.f32.mrb[0].mxu0
      %v1761 = vadd.f32 %v1456, %v1760
      %v1762 = vpop.f32.mrb[0].mxu0
      %v1763 = vpop.f32.mrb[0].mxu0
      %v1764 = vadd.f32 %v1459, %v1763
      %v1765 = vpop.f32.mrb[0].mxu0
      %1766 = vdwg.mxu0
      %1767 = vmatprep.subr.bf16.mxu0 0
      %1768 = vmatpush1.bf16.msra.mxu0 %v1574
      %1769 = vmatprep.subr.bf16.mxu0 0
      %1770 = vmatpush1.bf16.msra.mxu0 %v1575
      %1771 = vmatprep.subr.bf16.mxu0 0
      %1772 = vmatpush1.bf16.msra.mxu0 %v1576
      %1773 = vmatprep.subr.bf16.mxu0 0
      %1774 = vmatpush1.bf16.msra.mxu0 %v1577
      %1775 = vmatprep.subr.bf16.mxu0 0
      %1776 = vmatpush1.bf16.msra.mxu0 %v1578
      %1777 = vmatprep.subr.bf16.mxu0 0
      %1778 = vmatpush1.bf16.msra.mxu0 %v1579
      %1779 = vmatprep.subr.bf16.mxu0 0
      %1780 = vmatpush1.bf16.msra.mxu0 %v1580
      %1781 = vmatprep.subr.bf16.mxu0 0
      %1782 = vmatpush1.bf16.msra.mxu0 %v1581
      %1783 = vmatprep.subr.bf16.mxu0 0
      %1784 = vmatpush1.bf16.msra.mxu0 0
      %1785 = vmatprep.subr.bf16.mxu0 0
      %1786 = vmatpush1.bf16.msra.mxu0 0
      %1787 = vmatprep.subr.bf16.mxu0 0
      %1788 = vmatpush1.bf16.msra.mxu0 0
      %1789 = vmatprep.subr.bf16.mxu0 0
      %1790 = vmatpush1.bf16.msra.mxu0 0
      %1791 = vmatprep.subr.bf16.mxu0 0
      %1792 = vmatpush1.bf16.msra.mxu0 0
      %1793 = vmatprep.subr.bf16.mxu0 0
      %1794 = vmatpush1.bf16.msra.mxu0 0
      %1795 = vmatprep.subr.bf16.mxu0 0
      %1796 = vmatpush1.bf16.msra.mxu0 0
      %1797 = vmatprep.subr.bf16.mxu0 0
      %1798 = vmatpush1.bf16.msra.mxu0 0
      %1799 = vmatprep.mubr.bf16.mxu0 0
      %1800 = vmatmul.mubr.bf16.gmra.mrb[0].mxu0 %v883
      %v1801 = vpop.f32.mrb[0].mxu0
      %v1802 = vadd.f32 %v1641, %v1801
      %v1803 = vpop.f32.mrb[0].mxu0
      %v1804 = vpop.f32.mrb[0].mxu0
      %v1805 = vadd.f32 %v1644, %v1804
      %v1806 = vpop.f32.mrb[0].mxu0
      %1807 = vmatprep.mubr.bf16.mxu0 0
      %1808 = vmatmul.mubr.bf16.gmra.mrb[0].mxu0 %v884
      %v1809 = vpop.f32.mrb[0].mxu0
      %v1810 = vadd.f32 %v1649, %v1809
      %v1811 = vpop.f32.mrb[0].mxu0
      %v1812 = vpop.f32.mrb[0].mxu0
      %v1813 = vadd.f32 %v1652, %v1812
      %v1814 = vpop.f32.mrb[0].mxu0
      %1815 = vmatprep.mubr.bf16.mxu0 0
      %1816 = vmatmul.mubr.bf16.gmra.mrb[0].mxu0 %v885
      %v1817 = vpop.f32.mrb[0].mxu0
      %v1818 = vadd.f32 %v1657, %v1817
      %v1819 = vpop.f32.mrb[0].mxu0
      %v1820 = vpop.f32.mrb[0].mxu0
      %v1821 = vadd.f32 %v1660, %v1820
      %v1822 = vpop.f32.mrb[0].mxu0
      %1823 = vmatprep.mubr.bf16.mxu0 0
      %1824 = vmatmul.mubr.bf16.gmra.mrb[0].mxu0 %v886
      %v1825 = vpop.f32.mrb[0].mxu0
      %v1826 = vadd.f32 %v1665, %v1825
      %v1827 = vpop.f32.mrb[0].mxu0
      %v1828 = vpop.f32.mrb[0].mxu0
      %v1829 = vadd.f32 %v1668, %v1828
      %v1830 = vpop.f32.mrb[0].mxu0
      %1831 = vmatprep.mubr.bf16.mxu0 0
      %1832 = vmatmul.mubr.bf16.gmra.mrb[0].mxu0 %v887
      %v1833 = vpop.f32.mrb[0].mxu0
      %v1834 = vadd.f32 %v1673, %v1833
      %v1835 = vpop.f32.mrb[0].mxu0
      %v1836 = vpop.f32.mrb[0].mxu0
      %v1837 = vadd.f32 %v1676, %v1836
      %v1838 = vpop.f32.mrb[0].mxu0
      %1839 = vmatprep.mubr.bf16.mxu0 0
      %1840 = vmatmul.mubr.bf16.gmra.mrb[0].mxu0 %v888
      %v1841 = vpop.f32.mrb[0].mxu0
      %v1842 = vadd.f32 %v1681, %v1841
      %v1843 = vpop.f32.mrb[0].mxu0
      %v1844 = vpop.f32.mrb[0].mxu0
      %v1845 = vadd.f32 %v1684, %v1844
      %v1846 = vpop.f32.mrb[0].mxu0
      %1847 = vmatprep.mubr.bf16.mxu0 0
      %1848 = vmatmul.mubr.bf16.gmra.mrb[0].mxu0 %v889
      %v1849 = vpop.f32.mrb[0].mxu0
      %v1850 = vadd.f32 %v1689, %v1849
      %v1851 = vpop.f32.mrb[0].mxu0
      %v1852 = vpop.f32.mrb[0].mxu0
      %v1853 = vadd.f32 %v1692, %v1852
      %v1854 = vpop.f32.mrb[0].mxu0
      %1855 = vmatprep.mubr.bf16.mxu0 0
      %1856 = vmatmul.mubr.bf16.gmra.mrb[0].mxu0 %v890
      %v1857 = vpop.f32.mrb[0].mxu0
      %v1858 = vadd.f32 %v1697, %v1857
      %v1859 = vpop.f32.mrb[0].mxu0
      %v1860 = vpop.f32.mrb[0].mxu0
      %v1861 = vadd.f32 %v1700, %v1860
      %v1862 = vpop.f32.mrb[0].mxu0
      %1863 = vmatprep.mubr.bf16.mxu0 0
      %1864 = vmatmul.mubr.bf16.gmra.mrb[0].mxu0 %v891
      %v1865 = vpop.f32.mrb[0].mxu0
      %v1866 = vadd.f32 %v1705, %v1865
      %v1867 = vpop.f32.mrb[0].mxu0
      %v1868 = vpop.f32.mrb[0].mxu0
      %v1869 = vadd.f32 %v1708, %v1868
      %v1870 = vpop.f32.mrb[0].mxu0
      %1871 = vmatprep.mubr.bf16.mxu0 0
      %1872 = vmatmul.mubr.bf16.gmra.mrb[0].mxu0 %v892
      %v1873 = vpop.f32.mrb[0].mxu0
      %v1874 = vadd.f32 %v1713, %v1873
      %v1875 = vpop.f32.mrb[0].mxu0
      %v1876 = vpop.f32.mrb[0].mxu0
      %v1877 = vadd.f32 %v1716, %v1876
      %v1878 = vpop.f32.mrb[0].mxu0
      %1879 = vmatprep.mubr.bf16.mxu0 0
      %1880 = vmatmul.mubr.bf16.gmra.mrb[0].mxu0 %v893
      %v1881 = vpop.f32.mrb[0].mxu0
      %v1882 = vadd.f32 %v1721, %v1881
      %v1883 = vpop.f32.mrb[0].mxu0
      %v1884 = vpop.f32.mrb[0].mxu0
      %v1885 = vadd.f32 %v1724, %v1884
      %v1886 = vpop.f32.mrb[0].mxu0
      %1887 = vmatprep.mubr.bf16.mxu0 0
      %1888 = vmatmul.mubr.bf16.gmra.mrb[0].mxu0 %v894
      %v1889 = vpop.f32.mrb[0].mxu0
      %v1890 = vadd.f32 %v1729, %v1889
      %v1891 = vpop.f32.mrb[0].mxu0
      %v1892 = vpop.f32.mrb[0].mxu0
      %v1893 = vadd.f32 %v1732, %v1892
      %v1894 = vpop.f32.mrb[0].mxu0
      %1895 = vmatprep.mubr.bf16.mxu0 0
      %1896 = vmatmul.mubr.bf16.gmra.mrb[0].mxu0 %v895
      %v1897 = vpop.f32.mrb[0].mxu0
      %v1898 = vadd.f32 %v1737, %v1897
      %v1899 = vpop.f32.mrb[0].mxu0
      %v1900 = vpop.f32.mrb[0].mxu0
      %v1901 = vadd.f32 %v1740, %v1900
      %v1902 = vpop.f32.mrb[0].mxu0
      %1903 = vmatprep.mubr.bf16.mxu0 0
      %1904 = vmatmul.mubr.bf16.gmra.mrb[0].mxu0 %v896
      %v1905 = vpop.f32.mrb[0].mxu0
      %v1906 = vadd.f32 %v1745, %v1905
      %v1907 = vpop.f32.mrb[0].mxu0
      %v1908 = vpop.f32.mrb[0].mxu0
      %v1909 = vadd.f32 %v1748, %v1908
      %v1910 = vpop.f32.mrb[0].mxu0
      %1911 = vmatprep.mubr.bf16.mxu0 0
      %1912 = vmatmul.mubr.bf16.gmra.mrb[0].mxu0 %v897
      %v1913 = vpop.f32.mrb[0].mxu0
      %v1914 = vadd.f32 %v1753, %v1913
      %v1915 = vpop.f32.mrb[0].mxu0
      %v1916 = vpop.f32.mrb[0].mxu0
      %v1917 = vadd.f32 %v1756, %v1916
      %v1918 = vpop.f32.mrb[0].mxu0
      %1919 = vmatprep.mubr.bf16.mxu0 0
      %1920 = vmatmul.mubr.bf16.gmra.mrb[0].mxu0 %v898
      %v1921 = vpop.f32.mrb[0].mxu0
      %v1922 = vadd.f32 %v1761, %v1921
      %v1923 = vpop.f32.mrb[0].mxu0
      %v1924 = vpop.f32.mrb[0].mxu0
      %v1925 = vadd.f32 %v1764, %v1924
      %v1926 = vpop.f32.mrb[0].mxu0
      %1927 = vdwg.mxu0
      %v1928 = vld [vmem:[#allocation2] sm:$0x80]
      %v1929 = vld [vmem:[#allocation2 + $0x8] sm:$0x80]
      %v1930 = vld [vmem:[#allocation2 + $0x10] sm:$0x80]
      %v1931 = vld [vmem:[#allocation2 + $0x18] sm:$0x80]
      %v1932 = vld [vmem:[#allocation2 + $0x20] sm:$0x80]
      %v1933 = vld [vmem:[#allocation2 + $0x28] sm:$0x80]
      %v1934 = vld [vmem:[#allocation2 + $0x30] sm:$0x80]
      %v1935 = vld [vmem:[#allocation2 + $0x38] sm:$0x80]
      %v1936 = vld [vmem:[#allocation2 + $0x40] sm:$0x80]
      %v1937 = vld [vmem:[#allocation2 + $0x48] sm:$0x80]
      %v1938 = vld [vmem:[#allocation2 + $0x50] sm:$0x80]
      %v1939 = vld [vmem:[#allocation2 + $0x58] sm:$0x80]
      %v1940 = vld [vmem:[#allocation2 + $0x60] sm:$0x80]
      %v1941 = vld [vmem:[#allocation2 + $0x68] sm:$0x80]
      %v1942 = vld [vmem:[#allocation2 + $0x70] sm:$0x80]
      %v1943 = vld [vmem:[#allocation2 + $0x78] sm:$0x80]
      %v1944 = vld [vmem:[#allocation2 + $0x80] sm:$0x80]
      %v1945 = vld [vmem:[#allocation2 + $0x88] sm:$0x80]
      %v1946 = vrot.slane %v738, 1
      %v1947 = vor.u32 %v735, %v1946
      %v1948 = vrot.slane %v745, 1
      %v1949 = vor.u32 %v742, %v1948
      %v1950 = vrot.slane %v752, 1
      %v1951 = vor.u32 %v749, %v1950
      %v1952 = vrot.slane %v759, 1
      %v1953 = vor.u32 %v756, %v1952
      %v1954 = vrot.slane %v766, 1
      %v1955 = vor.u32 %v763, %v1954
      %v1956 = vrot.slane %v773, 1
      %v1957 = vor.u32 %v770, %v1956
      %v1958 = vrot.slane %v780, 1
      %v1959 = vor.u32 %v777, %v1958
      %v1960 = vrot.slane %v787, 1
      %v1961 = vor.u32 %v784, %v1960
      %v1962 = vrot.slane %v794, 1
      %v1963 = vor.u32 %v791, %v1962
      %v1964 = vrot.slane %v801, 1
      %v1965 = vor.u32 %v798, %v1964
      %v1966 = vrot.slane %v808, 1
      %v1967 = vor.u32 %v805, %v1966
      %v1968 = vrot.slane %v815, 1
      %v1969 = vor.u32 %v812, %v1968
      %v1970 = vrot.slane %v822, 1
      %v1971 = vor.u32 %v819, %v1970
      %v1972 = vrot.slane %v829, 1
      %v1973 = vor.u32 %v826, %v1972
      %v1974 = vrot.slane %v836, 1
      %v1975 = vor.u32 %v833, %v1974
      %v1976 = vrot.slane %v843, 1
      %v1977 = vor.u32 %v840, %v1976
      %v1978 = vrot.slane %v850, 1
      %v1979 = vor.u32 %v847, %v1978
      %v1980 = vrot.slane %v857, 1
      %v1981 = vor.u32 %v854, %v1980
      %v2001 = vshll.u32 %v1928, 16
      %v2004 = vshll.u32 %v1929, 16
      %v2007 = vshll.u32 %v1930, 16
      %v2010 = vshll.u32 %v1931, 16
      %v2013 = vshll.u32 %v1932, 16
      %v2016 = vshll.u32 %v1933, 16
      %v2019 = vshll.u32 %v1934, 16
      %v2022 = vshll.u32 %v1935, 16
      %v2025 = vshll.u32 %v1936, 16
      %v2028 = vshll.u32 %v1937, 16
      %v2031 = vshll.u32 %v1938, 16
      %v2034 = vshll.u32 %v1939, 16
      %v2037 = vshll.u32 %v1940, 16
      %v2040 = vshll.u32 %v1941, 16
      %v2043 = vshll.u32 %v1942, 16
      %v2046 = vshll.u32 %v1943, 16
      %v2049 = vshll.u32 %v1944, 16
      %v2052 = vshll.u32 %v1945, 16
      %vm2072 = vcmask 1047552
      %vm2073 = vsmask.f32 7424
      %vm2074 = vmand %vm2072, %vm2073
      %v2075 = vsel %vm2074, %v1947, %v2001
      %v2076 = vsel %vm2074, %v1949, %v2004
      %v2077 = vsel %vm2074, %v1951, %v2007
      %v2078 = vsel %vm2074, %v1953, %v2010
      %v2079 = vsel %vm2074, %v1955, %v2013
      %v2080 = vsel %vm2074, %v1957, %v2016
      %v2081 = vsel %vm2074, %v1959, %v2019
      %v2082 = vsel %vm2074, %v1961, %v2022
      %v2083 = vsel %vm2074, %v1963, %v2025
      %v2084 = vsel %vm2074, %v1965, %v2028
      %v2085 = vsel %vm2074, %v1967, %v2031
      %v2086 = vsel %vm2074, %v1969, %v2034
      %v2087 = vsel %vm2074, %v1971, %v2037
      %v2088 = vsel %vm2074, %v1973, %v2040
      %v2089 = vsel %vm2074, %v1975, %v2043
      %v2090 = vsel %vm2074, %v1977, %v2046
      %v2091 = vsel %vm2074, %v1979, %v2049
      %v2092 = vsel %vm2074, %v1981, %v2052
      %s2093 = scalar_lea.vmem %s3, 384
      %v2094 = vld [vmem:[%s2093] sm:$0xf]
      %v2095 = vld [vmem:[%s2093 + $0x4] sm:$0xf]
      %v2096 = vld [vmem:[%s2093 + $0x8] sm:$0xf]
      %v2097 = vld [vmem:[%s2093 + $0xc] sm:$0xf]
      %v2098 = vld [vmem:[%s2093 + $0x10] sm:$0xf]
      %v2099 = vld [vmem:[%s2093 + $0x14] sm:$0xf]
      %v2100 = vld [vmem:[%s2093 + $0x18] sm:$0xf]
      %v2101 = vld [vmem:[%s2093 + $0x1c] sm:$0xf]
      %v2102 = vld [vmem:[%s2093 + $0x20] sm:$0xf]
      %v2103 = vld [vmem:[%s2093 + $0x24] sm:$0xf]
      %v2104 = vld [vmem:[%s2093 + $0x28] sm:$0xf]
      %v2105 = vld [vmem:[%s2093 + $0x2c] sm:$0xf]
      %v2106 = vld [vmem:[%s2093 + $0x30] sm:$0xf]
      %v2107 = vld [vmem:[%s2093 + $0x34] sm:$0xf]
      %v2108 = vld [vmem:[%s2093 + $0x38] sm:$0xf]
      %v2109 = vld [vmem:[%s2093 + $0x3c] sm:$0xf]
      %v2110 = vld [vmem:[%s2093 + $0x40] sm:$0xf]
      %v2111 = vld [vmem:[%s2093 + $0x44] sm:$0xf]
      %v2112 = vld [vmem:[%s2093 + $0x48] sm:$0xf]
      %v2113 = vld [vmem:[%s2093 + $0x4c] sm:$0xf]
      %v2114 = vld [vmem:[%s2093 + $0x50] sm:$0xf]
      %v2115 = vld [vmem:[%s2093 + $0x54] sm:$0xf]
      %v2116 = vld [vmem:[%s2093 + $0x58] sm:$0xf]
      %v2117 = vld [vmem:[%s2093 + $0x5c] sm:$0xf]
      %v2118 = vld [vmem:[%s2093 + $0x60] sm:$0xf]
      %v2119 = vld [vmem:[%s2093 + $0x64] sm:$0xf]
      %v2120 = vld [vmem:[%s2093 + $0x68] sm:$0xf]
      %v2121 = vld [vmem:[%s2093 + $0x6c] sm:$0xf]
      %v2122 = vld [vmem:[%s2093 + $0x70] sm:$0xf]
      %v2123 = vld [vmem:[%s2093 + $0x74] sm:$0xf]
      %v2124 = vld [vmem:[%s2093 + $0x78] sm:$0xf]
      %v2125 = vld [vmem:[%s2093 + $0x7c] sm:$0xf]
      %v2126 = vld [vmem:[%s2093 + $0x80] sm:$0xf]
      %v2127 = vld [vmem:[%s2093 + $0x84] sm:$0xf]
      %v2128 = vld [vmem:[%s2093 + $0x88] sm:$0xf]
      %v2129 = vld [vmem:[%s2093 + $0x8c] sm:$0xf]
      %v2130 = vld [vmem:[%s2093 + $0x90] sm:$0xf]
      %v2131 = vld [vmem:[%s2093 + $0x94] sm:$0xf]
      %v2132 = vld [vmem:[%s2093 + $0x98] sm:$0xf]
      %v2133 = vld [vmem:[%s2093 + $0x9c] sm:$0xf]
      %v2134 = vld [vmem:[%s2093 + $0xa0] sm:$0xf]
      %v2135 = vld [vmem:[%s2093 + $0xa4] sm:$0xf]
      %v2136 = vld [vmem:[%s2093 + $0xa8] sm:$0xf]
      %v2137 = vld [vmem:[%s2093 + $0xac] sm:$0xf]
      %v2138 = vld [vmem:[%s2093 + $0xb0] sm:$0xf]
      %v2139 = vld [vmem:[%s2093 + $0xb4] sm:$0xf]
      %v2140 = vld [vmem:[%s2093 + $0xb8] sm:$0xf]
      %v2141 = vld [vmem:[%s2093 + $0xbc] sm:$0xf]
      %v2190 = vunpack.c.l.b16 %v2094
      %v2191 = vunpack.c.l.b16 %v2095
      %v2192 = vunpack.c.l.b16 %v2096
      %v2193 = vunpack.c.l.b16 %v2097
      %v2194 = vunpack.c.l.b16 %v2098
      %v2195 = vunpack.c.l.b16 %v2099
      %v2196 = vunpack.c.l.b16 %v2100
      %v2197 = vunpack.c.l.b16 %v2101
      %v2198 = vunpack.c.l.b16 %v2102
      %v2199 = vunpack.c.l.b16 %v2103
      %v2200 = vunpack.c.l.b16 %v2104
      %v2201 = vunpack.c.l.b16 %v2105
      %v2202 = vunpack.c.l.b16 %v2106
      %v2203 = vunpack.c.l.b16 %v2107
      %v2204 = vunpack.c.l.b16 %v2108
      %v2205 = vunpack.c.l.b16 %v2109
      %v2206 = vunpack.c.l.b16 %v2110
      %v2207 = vunpack.c.l.b16 %v2111
      %v2208 = vunpack.c.l.b16 %v2112
      %v2209 = vunpack.c.l.b16 %v2113
      %v2210 = vunpack.c.l.b16 %v2114
      %v2211 = vunpack.c.l.b16 %v2115
      %v2212 = vunpack.c.l.b16 %v2116
      %v2213 = vunpack.c.l.b16 %v2117
      %v2214 = vunpack.c.l.b16 %v2118
      %v2215 = vunpack.c.l.b16 %v2119
      %v2216 = vunpack.c.l.b16 %v2120
      %v2217 = vunpack.c.l.b16 %v2121
      %v2218 = vunpack.c.l.b16 %v2122
      %v2219 = vunpack.c.l.b16 %v2123
      %v2220 = vunpack.c.l.b16 %v2124
      %v2221 = vunpack.c.l.b16 %v2125
      %v2222 = vunpack.c.l.b16 %v2126
      %v2223 = vunpack.c.l.b16 %v2127
      %v2224 = vunpack.c.l.b16 %v2128
      %v2225 = vunpack.c.l.b16 %v2129
      %v2226 = vunpack.c.l.b16 %v2130
      %v2227 = vunpack.c.l.b16 %v2131
      %v2228 = vunpack.c.l.b16 %v2132
      %v2229 = vunpack.c.l.b16 %v2133
      %v2230 = vunpack.c.l.b16 %v2134
      %v2231 = vunpack.c.l.b16 %v2135
      %v2232 = vunpack.c.l.b16 %v2136
      %v2233 = vunpack.c.l.b16 %v2137
      %v2234 = vunpack.c.l.b16 %v2138
      %v2235 = vunpack.c.l.b16 %v2139
      %v2236 = vunpack.c.l.b16 %v2140
      %v2237 = vunpack.c.l.b16 %v2141
      %v2238 = vpack.c.b16 %v2191, %v2190
      %v2239 = vpack.c.b16 %v2193, %v2192
      %v2240 = vpack.c.b16 %v2195, %v2194
      %v2241 = vpack.c.b16 %v2197, %v2196
      %v2242 = vpack.c.b16 %v2199, %v2198
      %v2243 = vpack.c.b16 %v2201, %v2200
      %v2244 = vpack.c.b16 %v2203, %v2202
      %v2245 = vpack.c.b16 %v2205, %v2204
      %v2246 = vpack.c.b16 %v2207, %v2206
      %v2247 = vpack.c.b16 %v2209, %v2208
      %v2248 = vpack.c.b16 %v2211, %v2210
      %v2249 = vpack.c.b16 %v2213, %v2212
      %v2250 = vpack.c.b16 %v2215, %v2214
      %v2251 = vpack.c.b16 %v2217, %v2216
      %v2252 = vpack.c.b16 %v2219, %v2218
      %v2253 = vpack.c.b16 %v2221, %v2220
      %v2254 = vpack.c.b16 %v2223, %v2222
      %v2255 = vpack.c.b16 %v2225, %v2224
      %v2256 = vpack.c.b16 %v2227, %v2226
      %v2257 = vpack.c.b16 %v2229, %v2228
      %v2258 = vpack.c.b16 %v2231, %v2230
      %v2259 = vpack.c.b16 %v2233, %v2232
      %v2260 = vpack.c.b16 %v2235, %v2234
      %v2261 = vpack.c.b16 %v2237, %v2236
      %2286 = vmatprep.subr.bf16.mxu0 0
      %2287 = vmatpush1.bf16.msra.mxu0 %v2238
      %2288 = vmatprep.subr.bf16.mxu0 0
      %2289 = vmatpush1.bf16.msra.mxu0 %v2239
      %2290 = vmatprep.subr.bf16.mxu0 0
      %2291 = vmatpush1.bf16.msra.mxu0 %v2240
      %2292 = vmatprep.subr.bf16.mxu0 0
      %2293 = vmatpush1.bf16.msra.mxu0 %v2241
      %2294 = vmatprep.subr.bf16.mxu0 0
      %2295 = vmatpush1.bf16.msra.mxu0 %v2242
      %2296 = vmatprep.subr.bf16.mxu0 0
      %2297 = vmatpush1.bf16.msra.mxu0 %v2243
      %2298 = vmatprep.subr.bf16.mxu0 0
      %2299 = vmatpush1.bf16.msra.mxu0 %v2244
      %2300 = vmatprep.subr.bf16.mxu0 0
      %2301 = vmatpush1.bf16.msra.mxu0 %v2245
      %2302 = vmatprep.subr.bf16.mxu0 0
      %2303 = vmatpush1.bf16.msra.mxu0 %v2246
      %2304 = vmatprep.subr.bf16.mxu0 0
      %2305 = vmatpush1.bf16.msra.mxu0 %v2247
      %2306 = vmatprep.subr.bf16.mxu0 0
      %2307 = vmatpush1.bf16.msra.mxu0 %v2248
      %2308 = vmatprep.subr.bf16.mxu0 0
      %2309 = vmatpush1.bf16.msra.mxu0 %v2249
      %2310 = vmatprep.subr.bf16.mxu0 0
      %2311 = vmatpush1.bf16.msra.mxu0 %v2250
      %2312 = vmatprep.subr.bf16.mxu0 0
      %2313 = vmatpush1.bf16.msra.mxu0 %v2251
      %2314 = vmatprep.subr.bf16.mxu0 0
      %2315 = vmatpush1.bf16.msra.mxu0 %v2252
      %2316 = vmatprep.subr.bf16.mxu0 0
      %2317 = vmatpush1.bf16.msra.mxu0 %v2253
      %2318 = vmatprep.mubr.bf16.mxu0 %v2076
      %2319 = vmatmul.mubr.bf16.gmra.mrb[0].mxu0 %v2075
      %v2320 = vpop.f32.mrb[0].mxu0
      %v2321 = vadd.f32 0.0, %v2320
      %v2322 = vpop.f32.mrb[0].mxu0
      %v2323 = vpop.f32.mrb[0].mxu0
      %v2324 = vadd.f32 0.0, %v2323
      %v2325 = vpop.f32.mrb[0].mxu0
      %2326 = vmatprep.mubr.bf16.mxu0 %v2077
      %2327 = vmatmul.mubr.bf16.gmra.mrb[0].mxu0 %v2076
      %v2328 = vpop.f32.mrb[0].mxu0
      %v2329 = vadd.f32 0.0, %v2328
      %v2330 = vpop.f32.mrb[0].mxu0
      %v2331 = vpop.f32.mrb[0].mxu0
      %v2332 = vadd.f32 0.0, %v2331
      %v2333 = vpop.f32.mrb[0].mxu0
      %2334 = vmatprep.mubr.bf16.mxu0 %v2078
      %2335 = vmatmul.mubr.bf16.gmra.mrb[0].mxu0 %v2077
      %v2336 = vpop.f32.mrb[0].mxu0
      %v2337 = vadd.f32 0.0, %v2336
      %v2338 = vpop.f32.mrb[0].mxu0
      %v2339 = vpop.f32.mrb[0].mxu0
      %v2340 = vadd.f32 0.0, %v2339
      %v2341 = vpop.f32.mrb[0].mxu0
      %2342 = vmatprep.mubr.bf16.mxu0 %v2079
      %2343 = vmatmul.mubr.bf16.gmra.mrb[0].mxu0 %v2078
      %v2344 = vpop.f32.mrb[0].mxu0
      %v2345 = vadd.f32 0.0, %v2344
      %v2346 = vpop.f32.mrb[0].mxu0
      %v2347 = vpop.f32.mrb[0].mxu0
      %v2348 = vadd.f32 0.0, %v2347
      %v2349 = vpop.f32.mrb[0].mxu0
      %2350 = vmatprep.mubr.bf16.mxu0 %v2080
      %2351 = vmatmul.mubr.bf16.gmra.mrb[0].mxu0 %v2079
      %v2352 = vpop.f32.mrb[0].mxu0
      %v2353 = vadd.f32 0.0, %v2352
      %v2354 = vpop.f32.mrb[0].mxu0
      %v2355 = vpop.f32.mrb[0].mxu0
      %v2356 = vadd.f32 0.0, %v2355
      %v2357 = vpop.f32.mrb[0].mxu0
      %2358 = vmatprep.mubr.bf16.mxu0 %v2081
      %2359 = vmatmul.mubr.bf16.gmra.mrb[0].mxu0 %v2080
      %v2360 = vpop.f32.mrb[0].mxu0
      %v2361 = vadd.f32 0.0, %v2360
      %v2362 = vpop.f32.mrb[0].mxu0
      %v2363 = vpop.f32.mrb[0].mxu0
      %v2364 = vadd.f32 0.0, %v2363
      %v2365 = vpop.f32.mrb[0].mxu0
      %2366 = vmatprep.mubr.bf16.mxu0 %v2082
      %2367 = vmatmul.mubr.bf16.gmra.mrb[0].mxu0 %v2081
      %v2368 = vpop.f32.mrb[0].mxu0
      %v2369 = vadd.f32 0.0, %v2368
      %v2370 = vpop.f32.mrb[0].mxu0
      %v2371 = vpop.f32.mrb[0].mxu0
      %v2372 = vadd.f32 0.0, %v2371
      %v2373 = vpop.f32.mrb[0].mxu0
      %2374 = vmatprep.mubr.bf16.mxu0 %v2083
      %2375 = vmatmul.mubr.bf16.gmra.mrb[0].mxu0 %v2082
      %v2376 = vpop.f32.mrb[0].mxu0
      %v2377 = vadd.f32 0.0, %v2376
      %v2378 = vpop.f32.mrb[0].mxu0
      %v2379 = vpop.f32.mrb[0].mxu0
      %v2380 = vadd.f32 0.0, %v2379
      %v2381 = vpop.f32.mrb[0].mxu0
      %2382 = vmatprep.mubr.bf16.mxu0 %v2084
      %2383 = vmatmul.mubr.bf16.gmra.mrb[0].mxu0 %v2083
      %v2384 = vpop.f32.mrb[0].mxu0
      %v2385 = vadd.f32 0.0, %v2384
      %v2386 = vpop.f32.mrb[0].mxu0
      %v2387 = vpop.f32.mrb[0].mxu0
      %v2388 = vadd.f32 0.0, %v2387
      %v2389 = vpop.f32.mrb[0].mxu0
      %2390 = vmatprep.mubr.bf16.mxu0 %v2085
      %2391 = vmatmul.mubr.bf16.gmra.mrb[0].mxu0 %v2084
      %v2392 = vpop.f32.mrb[0].mxu0
      %v2393 = vadd.f32 0.0, %v2392
      %v2394 = vpop.f32.mrb[0].mxu0
      %v2395 = vpop.f32.mrb[0].mxu0
      %v2396 = vadd.f32 0.0, %v2395
      %v2397 = vpop.f32.mrb[0].mxu0
      %2398 = vmatprep.mubr.bf16.mxu0 %v2086
      %2399 = vmatmul.mubr.bf16.gmra.mrb[0].mxu0 %v2085
      %v2400 = vpop.f32.mrb[0].mxu0
      %v2401 = vadd.f32 0.0, %v2400
      %v2402 = vpop.f32.mrb[0].mxu0
      %v2403 = vpop.f32.mrb[0].mxu0
      %v2404 = vadd.f32 0.0, %v2403
      %v2405 = vpop.f32.mrb[0].mxu0
      %2406 = vmatprep.mubr.bf16.mxu0 %v2087
      %2407 = vmatmul.mubr.bf16.gmra.mrb[0].mxu0 %v2086
      %v2408 = vpop.f32.mrb[0].mxu0
      %v2409 = vadd.f32 0.0, %v2408
      %v2410 = vpop.f32.mrb[0].mxu0
      %v2411 = vpop.f32.mrb[0].mxu0
      %v2412 = vadd.f32 0.0, %v2411
      %v2413 = vpop.f32.mrb[0].mxu0
      %2414 = vmatprep.mubr.bf16.mxu0 %v2088
      %2415 = vmatmul.mubr.bf16.gmra.mrb[0].mxu0 %v2087
      %v2416 = vpop.f32.mrb[0].mxu0
      %v2417 = vadd.f32 0.0, %v2416
      %v2418 = vpop.f32.mrb[0].mxu0
      %v2419 = vpop.f32.mrb[0].mxu0
      %v2420 = vadd.f32 0.0, %v2419
      %v2421 = vpop.f32.mrb[0].mxu0
      %2422 = vmatprep.mubr.bf16.mxu0 %v2089
      %2423 = vmatmul.mubr.bf16.gmra.mrb[0].mxu0 %v2088
      %v2424 = vpop.f32.mrb[0].mxu0
      %v2425 = vadd.f32 0.0, %v2424
      %v2426 = vpop.f32.mrb[0].mxu0
      %v2427 = vpop.f32.mrb[0].mxu0
      %v2428 = vadd.f32 0.0, %v2427
      %v2429 = vpop.f32.mrb[0].mxu0
      %2430 = vmatprep.mubr.bf16.mxu0 %v2090
      %2431 = vmatmul.mubr.bf16.gmra.mrb[0].mxu0 %v2089
      %v2432 = vpop.f32.mrb[0].mxu0
      %v2433 = vadd.f32 0.0, %v2432
      %v2434 = vpop.f32.mrb[0].mxu0
      %v2435 = vpop.f32.mrb[0].mxu0
      %v2436 = vadd.f32 0.0, %v2435
      %v2437 = vpop.f32.mrb[0].mxu0
      %2438 = vmatprep.mubr.bf16.mxu0 %v2091
      %2439 = vmatmul.mubr.bf16.gmra.mrb[0].mxu0 %v2090
      %v2440 = vpop.f32.mrb[0].mxu0
      %v2441 = vadd.f32 0.0, %v2440
      %v2442 = vpop.f32.mrb[0].mxu0
      %v2443 = vpop.f32.mrb[0].mxu0
      %v2444 = vadd.f32 0.0, %v2443
      %v2445 = vpop.f32.mrb[0].mxu0
      %2446 = vdwg.mxu0
      %2447 = vmatprep.subr.bf16.mxu0 0
      %2448 = vmatpush1.bf16.msra.mxu0 %v2254
      %2449 = vmatprep.subr.bf16.mxu0 0
      %2450 = vmatpush1.bf16.msra.mxu0 %v2255
      %2451 = vmatprep.subr.bf16.mxu0 0
      %2452 = vmatpush1.bf16.msra.mxu0 %v2256
      %2453 = vmatprep.subr.bf16.mxu0 0
      %2454 = vmatpush1.bf16.msra.mxu0 %v2257
      %2455 = vmatprep.subr.bf16.mxu0 0
      %2456 = vmatpush1.bf16.msra.mxu0 %v2258
      %2457 = vmatprep.subr.bf16.mxu0 0
      %2458 = vmatpush1.bf16.msra.mxu0 %v2259
      %2459 = vmatprep.subr.bf16.mxu0 0
      %2460 = vmatpush1.bf16.msra.mxu0 %v2260
      %2461 = vmatprep.subr.bf16.mxu0 0
      %2462 = vmatpush1.bf16.msra.mxu0 %v2261
      %2463 = vmatprep.subr.bf16.mxu0 0
      %2464 = vmatpush1.bf16.msra.mxu0 0
      %2465 = vmatprep.subr.bf16.mxu0 0
      %2466 = vmatpush1.bf16.msra.mxu0 0
      %2467 = vmatprep.subr.bf16.mxu0 0
      %2468 = vmatpush1.bf16.msra.mxu0 0
      %2469 = vmatprep.subr.bf16.mxu0 0
      %2470 = vmatpush1.bf16.msra.mxu0 0
      %2471 = vmatprep.subr.bf16.mxu0 0
      %2472 = vmatpush1.bf16.msra.mxu0 0
      %2473 = vmatprep.subr.bf16.mxu0 0
      %2474 = vmatpush1.bf16.msra.mxu0 0
      %2475 = vmatprep.subr.bf16.mxu0 0
      %2476 = vmatpush1.bf16.msra.mxu0 0
      %2477 = vmatprep.subr.bf16.mxu0 0
      %2478 = vmatpush1.bf16.msra.mxu0 0
      %2479 = vmatprep.mubr.bf16.mxu0 0
      %2480 = vmatmul.mubr.bf16.gmra.mrb[0].mxu0 %v2077
      %v2481 = vpop.f32.mrb[0].mxu0
      %v2482 = vadd.f32 %v2321, %v2481
      %v2483 = vpop.f32.mrb[0].mxu0
      %v2484 = vpop.f32.mrb[0].mxu0
      %v2485 = vadd.f32 %v2324, %v2484
      %v2486 = vpop.f32.mrb[0].mxu0
      %2487 = vmatprep.mubr.bf16.mxu0 0
      %2488 = vmatmul.mubr.bf16.gmra.mrb[0].mxu0 %v2078
      %v2489 = vpop.f32.mrb[0].mxu0
      %v2490 = vadd.f32 %v2329, %v2489
      %v2491 = vpop.f32.mrb[0].mxu0
      %v2492 = vpop.f32.mrb[0].mxu0
      %v2493 = vadd.f32 %v2332, %v2492
      %v2494 = vpop.f32.mrb[0].mxu0
      %2495 = vmatprep.mubr.bf16.mxu0 0
      %2496 = vmatmul.mubr.bf16.gmra.mrb[0].mxu0 %v2079
      %v2497 = vpop.f32.mrb[0].mxu0
      %v2498 = vadd.f32 %v2337, %v2497
      %v2499 = vpop.f32.mrb[0].mxu0
      %v2500 = vpop.f32.mrb[0].mxu0
      %v2501 = vadd.f32 %v2340, %v2500
      %v2502 = vpop.f32.mrb[0].mxu0
      %2503 = vmatprep.mubr.bf16.mxu0 0
      %2504 = vmatmul.mubr.bf16.gmra.mrb[0].mxu0 %v2080
      %v2505 = vpop.f32.mrb[0].mxu0
      %v2506 = vadd.f32 %v2345, %v2505
      %v2507 = vpop.f32.mrb[0].mxu0
      %v2508 = vpop.f32.mrb[0].mxu0
      %v2509 = vadd.f32 %v2348, %v2508
      %v2510 = vpop.f32.mrb[0].mxu0
      %2511 = vmatprep.mubr.bf16.mxu0 0
      %2512 = vmatmul.mubr.bf16.gmra.mrb[0].mxu0 %v2081
      %v2513 = vpop.f32.mrb[0].mxu0
      %v2514 = vadd.f32 %v2353, %v2513
      %v2515 = vpop.f32.mrb[0].mxu0
      %v2516 = vpop.f32.mrb[0].mxu0
      %v2517 = vadd.f32 %v2356, %v2516
      %v2518 = vpop.f32.mrb[0].mxu0
      %2519 = vmatprep.mubr.bf16.mxu0 0
      %2520 = vmatmul.mubr.bf16.gmra.mrb[0].mxu0 %v2082
      %v2521 = vpop.f32.mrb[0].mxu0
      %v2522 = vadd.f32 %v2361, %v2521
      %v2523 = vpop.f32.mrb[0].mxu0
      %v2524 = vpop.f32.mrb[0].mxu0
      %v2525 = vadd.f32 %v2364, %v2524
      %v2526 = vpop.f32.mrb[0].mxu0
      %2527 = vmatprep.mubr.bf16.mxu0 0
      %2528 = vmatmul.mubr.bf16.gmra.mrb[0].mxu0 %v2083
      %v2529 = vpop.f32.mrb[0].mxu0
      %v2530 = vadd.f32 %v2369, %v2529
      %v2531 = vpop.f32.mrb[0].mxu0
      %v2532 = vpop.f32.mrb[0].mxu0
      %v2533 = vadd.f32 %v2372, %v2532
      %v2534 = vpop.f32.mrb[0].mxu0
      %2535 = vmatprep.mubr.bf16.mxu0 0
      %2536 = vmatmul.mubr.bf16.gmra.mrb[0].mxu0 %v2084
      %v2537 = vpop.f32.mrb[0].mxu0
      %v2538 = vadd.f32 %v2377, %v2537
      %v2539 = vpop.f32.mrb[0].mxu0
      %v2540 = vpop.f32.mrb[0].mxu0
      %v2541 = vadd.f32 %v2380, %v2540
      %v2542 = vpop.f32.mrb[0].mxu0
      %2543 = vmatprep.mubr.bf16.mxu0 0
      %2544 = vmatmul.mubr.bf16.gmra.mrb[0].mxu0 %v2085
      %v2545 = vpop.f32.mrb[0].mxu0
      %v2546 = vadd.f32 %v2385, %v2545
      %v2547 = vpop.f32.mrb[0].mxu0
      %v2548 = vpop.f32.mrb[0].mxu0
      %v2549 = vadd.f32 %v2388, %v2548
      %v2550 = vpop.f32.mrb[0].mxu0
      %2551 = vmatprep.mubr.bf16.mxu0 0
      %2552 = vmatmul.mubr.bf16.gmra.mrb[0].mxu0 %v2086
      %v2553 = vpop.f32.mrb[0].mxu0
      %v2554 = vadd.f32 %v2393, %v2553
      %v2555 = vpop.f32.mrb[0].mxu0
      %v2556 = vpop.f32.mrb[0].mxu0
      %v2557 = vadd.f32 %v2396, %v2556
      %v2558 = vpop.f32.mrb[0].mxu0
      %2559 = vmatprep.mubr.bf16.mxu0 0
      %2560 = vmatmul.mubr.bf16.gmra.mrb[0].mxu0 %v2087
      %v2561 = vpop.f32.mrb[0].mxu0
      %v2562 = vadd.f32 %v2401, %v2561
      %v2563 = vpop.f32.mrb[0].mxu0
      %v2564 = vpop.f32.mrb[0].mxu0
      %v2565 = vadd.f32 %v2404, %v2564
      %v2566 = vpop.f32.mrb[0].mxu0
      %2567 = vmatprep.mubr.bf16.mxu0 0
      %2568 = vmatmul.mubr.bf16.gmra.mrb[0].mxu0 %v2088
      %v2569 = vpop.f32.mrb[0].mxu0
      %v2570 = vadd.f32 %v2409, %v2569
      %v2571 = vpop.f32.mrb[0].mxu0
      %v2572 = vpop.f32.mrb[0].mxu0
      %v2573 = vadd.f32 %v2412, %v2572
      %v2574 = vpop.f32.mrb[0].mxu0
      %2575 = vmatprep.mubr.bf16.mxu0 0
      %2576 = vmatmul.mubr.bf16.gmra.mrb[0].mxu0 %v2089
      %v2577 = vpop.f32.mrb[0].mxu0
      %v2578 = vadd.f32 %v2417, %v2577
      %v2579 = vpop.f32.mrb[0].mxu0
      %v2580 = vpop.f32.mrb[0].mxu0
      %v2581 = vadd.f32 %v2420, %v2580
      %v2582 = vpop.f32.mrb[0].mxu0
      %2583 = vmatprep.mubr.bf16.mxu0 0
      %2584 = vmatmul.mubr.bf16.gmra.mrb[0].mxu0 %v2090
      %v2585 = vpop.f32.mrb[0].mxu0
      %v2586 = vadd.f32 %v2425, %v2585
      %v2587 = vpop.f32.mrb[0].mxu0
      %v2588 = vpop.f32.mrb[0].mxu0
      %v2589 = vadd.f32 %v2428, %v2588
      %v2590 = vpop.f32.mrb[0].mxu0
      %2591 = vmatprep.mubr.bf16.mxu0 0
      %2592 = vmatmul.mubr.bf16.gmra.mrb[0].mxu0 %v2091
      %v2593 = vpop.f32.mrb[0].mxu0
      %v2594 = vadd.f32 %v2433, %v2593
      %v2595 = vpop.f32.mrb[0].mxu0
      %v2596 = vpop.f32.mrb[0].mxu0
      %v2597 = vadd.f32 %v2436, %v2596
      %v2598 = vpop.f32.mrb[0].mxu0
      %2599 = vmatprep.mubr.bf16.mxu0 0
      %2600 = vmatmul.mubr.bf16.gmra.mrb[0].mxu0 %v2092
      %v2601 = vpop.f32.mrb[0].mxu0
      %v2602 = vadd.f32 %v2441, %v2601
      %v2603 = vpop.f32.mrb[0].mxu0
      %v2604 = vpop.f32.mrb[0].mxu0
      %v2605 = vadd.f32 %v2444, %v2604
      %v2606 = vpop.f32.mrb[0].mxu0
      %2607 = vdwg.mxu0
      %v2608 = vadd.f32 %v1802, %v2482
      %v2609 = vadd.f32 %v1805, %v2485
      %v2610 = vadd.f32 %v1810, %v2490
      %v2611 = vadd.f32 %v1813, %v2493
      %v2612 = vadd.f32 %v1818, %v2498
      %v2613 = vadd.f32 %v1821, %v2501
      %v2614 = vadd.f32 %v1826, %v2506
      %v2615 = vadd.f32 %v1829, %v2509
      %v2616 = vadd.f32 %v1834, %v2514
      %v2617 = vadd.f32 %v1837, %v2517
      %v2618 = vadd.f32 %v1842, %v2522
      %v2619 = vadd.f32 %v1845, %v2525
      %v2620 = vadd.f32 %v1850, %v2530
      %v2621 = vadd.f32 %v1853, %v2533
      %v2622 = vadd.f32 %v1858, %v2538
      %v2623 = vadd.f32 %v1861, %v2541
      %v2624 = vadd.f32 %v1866, %v2546
      %v2625 = vadd.f32 %v1869, %v2549
      %v2626 = vadd.f32 %v1874, %v2554
      %v2627 = vadd.f32 %v1877, %v2557
      %v2628 = vadd.f32 %v1882, %v2562
      %v2629 = vadd.f32 %v1885, %v2565
      %v2630 = vadd.f32 %v1890, %v2570
      %v2631 = vadd.f32 %v1893, %v2573
      %v2632 = vadd.f32 %v1898, %v2578
      %v2633 = vadd.f32 %v1901, %v2581
      %v2634 = vadd.f32 %v1906, %v2586
      %v2635 = vadd.f32 %v1909, %v2589
      %v2636 = vadd.f32 %v1914, %v2594
      %v2637 = vadd.f32 %v1917, %v2597
      %v2638 = vadd.f32 %v1922, %v2602
      %v2639 = vadd.f32 %v1925, %v2605
      %v2640 = vpack.c.bf16 %v2609, %v2608
      %v2641 = vpack.c.bf16 %v2611, %v2610
      %v2642 = vpack.c.bf16 %v2613, %v2612
      %v2643 = vpack.c.bf16 %v2615, %v2614
      %v2644 = vpack.c.bf16 %v2617, %v2616
      %v2645 = vpack.c.bf16 %v2619, %v2618
      %v2646 = vpack.c.bf16 %v2621, %v2620
      %v2647 = vpack.c.bf16 %v2623, %v2622
      %v2648 = vpack.c.bf16 %v2625, %v2624
      %v2649 = vpack.c.bf16 %v2627, %v2626
      %v2650 = vpack.c.bf16 %v2629, %v2628
      %v2651 = vpack.c.bf16 %v2631, %v2630
      %v2652 = vpack.c.bf16 %v2633, %v2632
      %v2653 = vpack.c.bf16 %v2635, %v2634
      %v2654 = vpack.c.bf16 %v2637, %v2636
      %v2655 = vpack.c.bf16 %v2639, %v2638
      %v2672 = vunpack.c.l.b16 %v2640
      %v2673 = vunpack.c.h.b16 %v2640
      %v2674 = vunpack.c.l.b16 %v2641
      %v2675 = vunpack.c.h.b16 %v2641
      %v2676 = vunpack.c.l.b16 %v2642
      %v2677 = vunpack.c.h.b16 %v2642
      %v2678 = vunpack.c.l.b16 %v2643
      %v2679 = vunpack.c.h.b16 %v2643
      %v2680 = vunpack.c.l.b16 %v2644
      %v2681 = vunpack.c.h.b16 %v2644
      %v2682 = vunpack.c.l.b16 %v2645
      %v2683 = vunpack.c.h.b16 %v2645
      %v2684 = vunpack.c.l.b16 %v2646
      %v2685 = vunpack.c.h.b16 %v2646
      %v2686 = vunpack.c.l.b16 %v2647
      %v2687 = vunpack.c.h.b16 %v2647
      %v2688 = vunpack.c.l.b16 %v2648
      %v2689 = vunpack.c.h.b16 %v2648
      %v2690 = vunpack.c.l.b16 %v2649
      %v2691 = vunpack.c.h.b16 %v2649
      %v2692 = vunpack.c.l.b16 %v2650
      %v2693 = vunpack.c.h.b16 %v2650
      %v2694 = vunpack.c.l.b16 %v2651
      %v2695 = vunpack.c.h.b16 %v2651
      %v2696 = vunpack.c.l.b16 %v2652
      %v2697 = vunpack.c.h.b16 %v2652
      %v2698 = vunpack.c.l.b16 %v2653
      %v2699 = vunpack.c.h.b16 %v2653
      %v2700 = vunpack.c.l.b16 %v2654
      %v2701 = vunpack.c.h.b16 %v2654
      %v2702 = vunpack.c.l.b16 %v2655
      %v2703 = vunpack.c.h.b16 %v2655
      %v2704 = vpack.c.b16 %v2672, %v2672
      %v2705 = vpack.c.b16 %v2673, %v2673
      %v2706 = vpack.c.b16 %v2674, %v2674
      %v2707 = vpack.c.b16 %v2675, %v2675
      %v2708 = vpack.c.b16 %v2676, %v2676
      %v2709 = vpack.c.b16 %v2677, %v2677
      %v2710 = vpack.c.b16 %v2678, %v2678
      %v2711 = vpack.c.b16 %v2679, %v2679
      %v2712 = vpack.c.b16 %v2680, %v2680
      %v2713 = vpack.c.b16 %v2681, %v2681
      %v2714 = vpack.c.b16 %v2682, %v2682
      %v2715 = vpack.c.b16 %v2683, %v2683
      %v2716 = vpack.c.b16 %v2684, %v2684
      %v2717 = vpack.c.b16 %v2685, %v2685
      %v2718 = vpack.c.b16 %v2686, %v2686
      %v2719 = vpack.c.b16 %v2687, %v2687
      %v2720 = vpack.c.b16 %v2688, %v2688
      %v2721 = vpack.c.b16 %v2689, %v2689
      %v2722 = vpack.c.b16 %v2690, %v2690
      %v2723 = vpack.c.b16 %v2691, %v2691
      %v2724 = vpack.c.b16 %v2692, %v2692
      %v2725 = vpack.c.b16 %v2693, %v2693
      %v2726 = vpack.c.b16 %v2694, %v2694
      %v2727 = vpack.c.b16 %v2695, %v2695
      %v2728 = vpack.c.b16 %v2696, %v2696
      %v2729 = vpack.c.b16 %v2697, %v2697
      %v2730 = vpack.c.b16 %v2698, %v2698
      %v2731 = vpack.c.b16 %v2699, %v2699
      %v2732 = vpack.c.b16 %v2700, %v2700
      %v2733 = vpack.c.b16 %v2701, %v2701
      %v2734 = vpack.c.b16 %v2702, %v2702
      %v2735 = vpack.c.b16 %v2703, %v2703
      %2768 = vst [vmem:[%s214] sm:$0xf] %v2704
      %2769 = vst [vmem:[%s214 + $0x4] sm:$0xf] %v2705
      %2770 = vst [vmem:[%s214 + $0x8] sm:$0xf] %v2706
      %2771 = vst [vmem:[%s214 + $0xc] sm:$0xf] %v2707
      %2772 = vst [vmem:[%s214 + $0x10] sm:$0xf] %v2708
      %2773 = vst [vmem:[%s214 + $0x14] sm:$0xf] %v2709
      %2774 = vst [vmem:[%s214 + $0x18] sm:$0xf] %v2710
      %2775 = vst [vmem:[%s214 + $0x1c] sm:$0xf] %v2711
      %2776 = vst [vmem:[%s214 + $0x20] sm:$0xf] %v2712
      %2777 = vst [vmem:[%s214 + $0x24] sm:$0xf] %v2713
      %2778 = vst [vmem:[%s214 + $0x28] sm:$0xf] %v2714
      %2779 = vst [vmem:[%s214 + $0x2c] sm:$0xf] %v2715
      %2780 = vst [vmem:[%s214 + $0x30] sm:$0xf] %v2716
      %2781 = vst [vmem:[%s214 + $0x34] sm:$0xf] %v2717
      %2782 = vst [vmem:[%s214 + $0x38] sm:$0xf] %v2718
      %2783 = vst [vmem:[%s214 + $0x3c] sm:$0xf] %v2719
      %2784 = vst [vmem:[%s214 + $0x40] sm:$0xf] %v2720
      %2785 = vst [vmem:[%s214 + $0x44] sm:$0xf] %v2721
      %2786 = vst [vmem:[%s214 + $0x48] sm:$0xf] %v2722
      %2787 = vst [vmem:[%s214 + $0x4c] sm:$0xf] %v2723
      %2788 = vst [vmem:[%s214 + $0x50] sm:$0xf] %v2724
      %2789 = vst [vmem:[%s214 + $0x54] sm:$0xf] %v2725
      %2790 = vst [vmem:[%s214 + $0x58] sm:$0xf] %v2726
      %2791 = vst [vmem:[%s214 + $0x5c] sm:$0xf] %v2727
      %2792 = vst [vmem:[%s214 + $0x60] sm:$0xf] %v2728
      %2793 = vst [vmem:[%s214 + $0x64] sm:$0xf] %v2729
      %2794 = vst [vmem:[%s214 + $0x68] sm:$0xf] %v2730
      %2795 = vst [vmem:[%s214 + $0x6c] sm:$0xf] %v2731
      %2796 = vst [vmem:[%s214 + $0x70] sm:$0xf] %v2732
      %2797 = vst [vmem:[%s214 + $0x74] sm:$0xf] %v2733
      %2798 = vst [vmem:[%s214 + $0x78] sm:$0xf] %v2734
      %2799 = vst [vmem:[%s214 + $0x7c] sm:$0xf] %v2735
      %v2800 = vadd.f32 %v2608, %v2609
      %v2801 = vadd.f32 %v2800, %v2610
      %v2802 = vadd.f32 %v2801, %v2611
      %v2803 = vadd.f32 %v2802, %v2612
      %v2804 = vadd.f32 %v2803, %v2613
      %v2805 = vadd.f32 %v2804, %v2614
      %v2806 = vadd.f32 %v2805, %v2615
      %v2807 = vadd.f32 %v2806, %v2616
      %v2808 = vadd.f32 %v2807, %v2617
      %v2809 = vadd.f32 %v2808, %v2618
      %v2810 = vadd.f32 %v2809, %v2619
      %v2811 = vadd.f32 %v2810, %v2620
      %v2812 = vadd.f32 %v2811, %v2621
      %v2813 = vadd.f32 %v2812, %v2622
      %v2814 = vadd.f32 %v2813, %v2623
      %v2815 = vadd.f32 %v2814, %v2624
      %v2816 = vadd.f32 %v2815, %v2625
      %v2817 = vadd.f32 %v2816, %v2626
      %v2818 = vadd.f32 %v2817, %v2627
      %v2819 = vadd.f32 %v2818, %v2628
      %v2820 = vadd.f32 %v2819, %v2629
      %v2821 = vadd.f32 %v2820, %v2630
      %v2822 = vadd.f32 %v2821, %v2631
      %v2823 = vadd.f32 %v2822, %v2632
      %v2824 = vadd.f32 %v2823, %v2633
      %v2825 = vadd.f32 %v2824, %v2634
      %v2826 = vadd.f32 %v2825, %v2635
      %v2827 = vadd.f32 %v2826, %v2636
      %v2828 = vadd.f32 %v2827, %v2637
      %v2829 = vadd.f32 %v2828, %v2638
      %v2830 = vadd.f32 %v2829, %v2639
      %v2831 = vrot.slane %v2830, 4
      %v2832 = vadd.f32 %v2830, %v2831
      %v2833 = vrot.slane %v2832, 2
      %v2834 = vadd.f32 %v2832, %v2833
      %v2835 = vrot.slane %v2834, 1
      %v2836 = vadd.f32 %v2834, %v2835
      %v2837 = vmul.f32 %v2608, %v2608
      %v2838 = vmul.f32 %v2609, %v2609
      %v2839 = vmul.f32 %v2610, %v2610
      %v2840 = vmul.f32 %v2611, %v2611
      %v2841 = vmul.f32 %v2612, %v2612
      %v2842 = vmul.f32 %v2613, %v2613
      %v2843 = vmul.f32 %v2614, %v2614
      %v2844 = vmul.f32 %v2615, %v2615
      %v2845 = vmul.f32 %v2616, %v2616
      %v2846 = vmul.f32 %v2617, %v2617
      %v2847 = vmul.f32 %v2618, %v2618
      %v2848 = vmul.f32 %v2619, %v2619
      %v2849 = vmul.f32 %v2620, %v2620
      %v2850 = vmul.f32 %v2621, %v2621
      %v2851 = vmul.f32 %v2622, %v2622
      %v2852 = vmul.f32 %v2623, %v2623
      %v2853 = vmul.f32 %v2624, %v2624
      %v2854 = vmul.f32 %v2625, %v2625
      %v2855 = vmul.f32 %v2626, %v2626
      %v2856 = vmul.f32 %v2627, %v2627
      %v2857 = vmul.f32 %v2628, %v2628
      %v2858 = vmul.f32 %v2629, %v2629
      %v2859 = vmul.f32 %v2630, %v2630
      %v2860 = vmul.f32 %v2631, %v2631
      %v2861 = vmul.f32 %v2632, %v2632
      %v2862 = vmul.f32 %v2633, %v2633
      %v2863 = vmul.f32 %v2634, %v2634
      %v2864 = vmul.f32 %v2635, %v2635
      %v2865 = vmul.f32 %v2636, %v2636
      %v2866 = vmul.f32 %v2637, %v2637
      %v2867 = vmul.f32 %v2638, %v2638
      %v2868 = vmul.f32 %v2639, %v2639
      %v2869 = vadd.f32 %v2837, %v2838
      %v2870 = vadd.f32 %v2869, %v2839
      %v2871 = vadd.f32 %v2870, %v2840
      %v2872 = vadd.f32 %v2871, %v2841
      %v2873 = vadd.f32 %v2872, %v2842
      %v2874 = vadd.f32 %v2873, %v2843
      %v2875 = vadd.f32 %v2874, %v2844
      %v2876 = vadd.f32 %v2875, %v2845
      %v2877 = vadd.f32 %v2876, %v2846
      %v2878 = vadd.f32 %v2877, %v2847
      %v2879 = vadd.f32 %v2878, %v2848
      %v2880 = vadd.f32 %v2879, %v2849
      %v2881 = vadd.f32 %v2880, %v2850
      %v2882 = vadd.f32 %v2881, %v2851
      %v2883 = vadd.f32 %v2882, %v2852
      %v2884 = vadd.f32 %v2883, %v2853
      %v2885 = vadd.f32 %v2884, %v2854
      %v2886 = vadd.f32 %v2885, %v2855
      %v2887 = vadd.f32 %v2886, %v2856
      %v2888 = vadd.f32 %v2887, %v2857
      %v2889 = vadd.f32 %v2888, %v2858
      %v2890 = vadd.f32 %v2889, %v2859
      %v2891 = vadd.f32 %v2890, %v2860
      %v2892 = vadd.f32 %v2891, %v2861
      %v2893 = vadd.f32 %v2892, %v2862
      %v2894 = vadd.f32 %v2893, %v2863
      %v2895 = vadd.f32 %v2894, %v2864
      %v2896 = vadd.f32 %v2895, %v2865
      %v2897 = vadd.f32 %v2896, %v2866
      %v2898 = vadd.f32 %v2897, %v2867
      %v2899 = vadd.f32 %v2898, %v2868
      %v2900 = vrot.slane %v2899, 4
      %v2901 = vadd.f32 %v2899, %v2900
      %v2902 = vrot.slane %v2901, 2
      %v2903 = vadd.f32 %v2901, %v2902
      %v2904 = vrot.slane %v2903, 1
      %v2905 = vadd.f32 %v2903, %v2904
      %vm2906 = vcmask 1040384
      %v2907 = vsel %vm2906, %v2836, %v2905
      %2908 = vst [vmem:[%s222] sm:$0x3] %v2907
      %s2909 = smul.u32 16, %s22
      %p2910 = scmp.lt.s32.totalorder %s21, 1
      %s2911 = scalar_select %p2910, %s21, 1
      %p2912 = scmp.lt.s32.totalorder %s2909, 15
      %s2913 = scalar_select %p2912, %s2909, 15
      %s2914 = smul.addr %s2913, 2
      %s2915 = smul.addr %s2911, 32
      %s2916 = sadd.s32 %s2914, %s2915
      %s2917 = smul.addr %s2916, 4
      %s2918 = scalar_lea.vmem %s4, %s2917
      %p2919 = scmp.lt.s32.totalorder %s21, 1
      %s2920 = scalar_select %p2919, %s21, 1
      %p2921 = scmp.lt.s32.totalorder %s22, 0
      %s2922 = scalar_select %p2921, %s22, 0
      %s2923 = sadd.s32 %s2922, %s2920
      %s2924 = smul.addr %s2923, 2
      %s2925 = scalar_lea.vmem %s5, %s2924
      // Predicated region
      $region135: #{resnet_block.4} parent=31 // pred_check
        %p2926 = pneg %p112
      $region136: #{resnet_block.4} parent=31 // pred_check_branch
        %2928 = sbr.rel (%p2926) target = $region138
      $region137: #{resnet_block.4} parent=31 // pred_region
        %s2929 = smul.u32 16, %s22
      $region138: #{resnet_block.4} parent=31 // pred_fallthru
        _
      // Predicated region
      $region139: #{resnet_block.4} parent=31 // pred_check
        %p2930 = pneg %p140
      $region140: #{resnet_block.4} parent=31 // pred_check_branch
        %2932 = sbr.rel (%p2930) target = $region142
      $region141: #{resnet_block.4} parent=31 // pred_region
        _
      $region142: #{resnet_block.4} parent=31 // pred_fallthru
        _
    $region32: #{resnet_block.4} parent=5 // pred_fallthru
      _
    %p2933 = scmp.le.s32.totalorder 2, %s12
    // Predicated region
    $region143: #{resnet_block.4} parent=5 // pred_check
      %p2934 = pneg %p2933
    $region144: #{resnet_block.4} parent=5 // pred_check_branch
      %2936 = sbr.rel (%p2934) target = $region146
    $region145: #{resnet_block.4} parent=5 // pred_region
      %s2937 = ssub.s32 %s12, 2
      // Predicated region
      $region147: #{resnet_block.4} parent=145 // pred_check
        %p2938 = pneg %p118
      $region148: #{resnet_block.4} parent=145 // pred_check_branch
        %2940 = sbr.rel (%p2938) target = $region150
      $region149: #{resnet_block.4} parent=145 // pred_region
        %s2941 = smul.u32 16, %s24
        %p2942 = scmp.lt.s32.totalorder %s23, 1
        %s2943 = scalar_select %p2942, %s23, 1
        %p2944 = scmp.lt.s32.totalorder %s2941, 15
        %s2945 = scalar_select %p2944, %s2941, 15
        %s2946 = smul.addr %s2945, 2
        %s2947 = smul.addr %s2943, 32
        %s2948 = sadd.s32 %s2946, %s2947
        %s2949 = smul.addr %s2948, 4
        %s2950 = scalar_lea.vmem %s4, %s2949
      $region150: #{resnet_block.4} parent=145 // pred_fallthru
        _
      // Predicated region
      $region151: #{resnet_block.4} parent=145 // pred_check
        %p2951 = pneg %p146
      $region152: #{resnet_block.4} parent=145 // pred_check_branch
        %2953 = sbr.rel (%p2951) target = $region154
      $region153: #{resnet_block.4} parent=145 // pred_region
        %p2954 = scmp.lt.s32.totalorder %s23, 1
        %s2955 = scalar_select %p2954, %s23, 1
        %p2956 = scmp.lt.s32.totalorder %s24, 0
        %s2957 = scalar_select %p2956, %s24, 0
        %s2958 = sadd.s32 %s2957, %s2955
        %s2959 = smul.addr %s2958, 2
        %s2960 = scalar_lea.vmem %s5, %s2959
      $region154: #{resnet_block.4} parent=145 // pred_fallthru
        _
    $region146: #{resnet_block.4} parent=5 // pred_fallthru
      _
  $region6: #{resnet_block.4} parent=0 // loop_footer
    %s16 = sadd.s32 1, %s12
  $region7: #{resnet_block.4} parent=0 // loop_footer_branch
    %11 = sbr.rel target = $region3
  $region8: #{resnet_block.4} parent=0 // loop_exit
    _
  %2961 = vsyncmov [#allocation3]
  %s2962 = vpop.sfrf %2961
  %p2963 = scmp.eq.s32.totalorder %s2962, 0
  %p2964 = pneg %p2963
  %2966 = shalt.err (%p2964)
  %s2967 = scalar_lea.sflag [#allocation3], 1
  %2968 = vsyncmov %s2967
  %s2969 = vpop.sfrf %2968
  %p2970 = scmp.eq.s32.totalorder %s2969, 0
  %p2971 = pneg %p2970
  %2973 = shalt.err (%p2971)
  %s2974 = scalar_lea.sflag [#allocation3], 2
  %2975 = vsyncmov %s2974
  %s2976 = vpop.sfrf %2975
  %p2977 = scmp.eq.s32.totalorder %s2976, 0
  %p2978 = pneg %p2977
  %2980 = shalt.err (%p2978)

// kernel: resnet_block.3
$region0: #{resnet_block.3}
  #allocation0 [shape = 'u32[]', space=smem, size = 0x4, offset = 0x4, fixed_abs, tag = 'smem constant byte address 0x4 - core index']
  #allocation1 [shape = 'u32[144,128]{1,0:T(1,128)}', space=vmem, size = 0x12000, scoped, tag = 'internal scratch']
  #allocation2 [shape = 'bf16[18,16,128]{2,1,0:T(16,128)(2,1)}', space=vmem, size = 0x12000, scoped, tag = 'scratch operand']
  #allocation3 [shape = 's32[3]{0}', space=sflag, size = 0xc, scoped, tag = 'scratch operand']
  #allocation4 [shape = 's32[]', space=sflag, size = 0x4, offset = 0, fixed_abs, tag = 'sflag constant byte address 0x0 - dummy sync flag']
  #allocation5 [shape = 's32[]', space=sflag, size = 0x4, offset = 0, fixed_abs, tag = 'sflag constant byte address 0x0 - dummy sync flag']
  #allocation6 [shape = 's32[]', space=sflag, size = 0x4, offset = 0, fixed_abs, tag = 'sflag constant byte address 0x0 - dummy sync flag']
  %s0 = inlined_call_operand.vmem [shape: bf16[2,16,16,128], index: 0, kind: input, shape index: {}]
  %s1 = inlined_call_operand.vmem [shape: bf16[3,384,128], index: 1, kind: input, shape index: {}]
  %s2 = inlined_call_operand.vmem [shape: bf16[2,16,16,128], index: 2, kind: output, shape index: {0}]
  %s3 = inlined_call_operand.vmem [shape: f32[2,1,2,128], index: 3, kind: output, shape index: {1}]
  %4 = xla_tuple %s2, %s3
  %s5 = sld [smem:[#allocation0]]
  $region147: #{resnet_block.3} parent=0
    _
  %s7 = ssub.s32 1, %s5
  %s8 = scalar_select 0, %s7, %s5
  loop: start=0, step=1, limit=4
  $region2: #{resnet_block.3} parent=0 // loop_pre_header
    _
  $region3: #{resnet_block.3} parent=0 // loop_header
    %s10 = sphi 0, %s14
    %p11 = scmp.ge.s32.totalorder %s10, 4
    %s17 = sphi 0, %s29
    %s18 = sphi 0, %s25
    %s19 = sphi 0, %s17
    %s20 = sphi 0, %s18
    %s21 = sphi 0, %s19
    %s22 = sphi 0, %s20
    %s30 = sphi 0, %s30
    %s32 = sphi 0, %s30
    %s33 = sphi 0, %s32
    %s47 = sphi 0, %s33
    %s55 = sphi 0, %s57
    %s58 = sphi 0, %s55
    %s59 = sphi 0, %s58
    %s75 = sphi 0, %s59
    %s83 = sphi 0, %s85
    %s86 = sphi 0, %s83
    %s87 = sphi 0, %s86
    %s103 = sphi 0, %s87
  $region4: #{resnet_block.3} parent=0 // loop_header_branch
    %13 = sbr.rel (%p11) target = $region8
  $region5: #{resnet_block.3} parent=0 // loop_body
    %s15 = ssub.s32 %s10, 1
    %s16 = ssub.s32 %s10, 2
    %s23 = sadd.s32 1, %s18
    %p24 = scmp.ge.s32.totalorder %s23, 1
    %s25 = scalar_select %p24, 0, %s23
    %s26 = sadd.s32 1, %s17
    %s27 = scalar_select %p24, %s26, %s17
    %p28 = scmp.ge.s32.totalorder %s27, 2
    %s29 = scalar_select %p28, 0, %s27
    %s31 = sadd.s32 %s30, 1
    %p34 = scmp.eq.s32.totalorder %s10, 1
    %p35 = scmp.ne.s32.totalorder %s30, %s32
    %p36 = scmp.eq.s32.totalorder %s10, 0
    %p37 = por %p35, %p36
    %p38 = scmp.ne.s32.totalorder %s30, %s32
    %p39 = scmp.eq.s32.totalorder %s15, 1
    %p40 = por %p38, %p39
    %p41 = scmp.ne.s32.totalorder %s32, %s33
    %p42 = scmp.eq.s32.totalorder %s15, 0
    %p43 = por %p41, %p42
    %p44 = scmp.ne.s32.totalorder %s32, %s33
    %p45 = scmp.eq.s32.totalorder %s16, 1
    %p46 = por %p44, %p45
    %p48 = scmp.ne.s32.totalorder %s33, %s47
    %p49 = scmp.eq.s32.totalorder %s16, 0
    %p50 = por %p48, %p49
    %s51 = ssub.s32 %s17, %s29
    %s52 = ssub.s32 %s18, %s25
    %s53 = sor.u32 %s51, %s52
    %p54 = scmp.eq.s32.totalorder %s53, 0
    %s56 = sadd.s32 %s55, 1
    %s57 = scalar_select %p54, %s55, %s56
    %p60 = pneg %p54
    %p61 = scmp.eq.s32.totalorder %s10, 1
    %p62 = por %p60, %p61
    %p63 = scmp.ne.s32.totalorder %s55, %s58
    %p64 = scmp.eq.s32.totalorder %s10, 0
    %p65 = por %p63, %p64
    %p66 = scmp.ne.s32.totalorder %s55, %s58
    %p67 = scmp.eq.s32.totalorder %s15, 1
    %p68 = por %p66, %p67
    %p69 = scmp.ne.s32.totalorder %s58, %s59
    %p70 = scmp.eq.s32.totalorder %s15, 0
    %p71 = por %p69, %p70
    %p72 = scmp.ne.s32.totalorder %s58, %s59
    %p73 = scmp.eq.s32.totalorder %s16, 1
    %p74 = por %p72, %p73
    %p76 = scmp.ne.s32.totalorder %s59, %s75
    %p77 = scmp.eq.s32.totalorder %s16, 0
    %p78 = por %p76, %p77
    %s79 = ssub.s32 %s17, %s29
    %s80 = ssub.s32 %s18, %s25
    %s81 = sor.u32 %s79, %s80
    %p82 = scmp.eq.s32.totalorder %s81, 0
    %s84 = sadd.s32 %s83, 1
    %s85 = scalar_select %p82, %s83, %s84
    %p88 = pneg %p82
    %p89 = scmp.eq.s32.totalorder %s10, 1
    %p90 = por %p88, %p89
    %p91 = scmp.ne.s32.totalorder %s83, %s86
    %p92 = scmp.eq.s32.totalorder %s10, 0
    %p93 = por %p91, %p92
    %p94 = scmp.ne.s32.totalorder %s83, %s86
    %p95 = scmp.eq.s32.totalorder %s15, 1
    %p96 = por %p94, %p95
    %p97 = scmp.ne.s32.totalorder %s86, %s87
    %p98 = scmp.eq.s32.totalorder %s15, 0
    %p99 = por %p97, %p98
    %p100 = scmp.ne.s32.totalorder %s86, %s87
    %p101 = scmp.eq.s32.totalorder %s16, 1
    %p102 = por %p100, %p101
    %p104 = scmp.ne.s32.totalorder %s87, %s103
    %p105 = scmp.eq.s32.totalorder %s16, 0
    %p106 = por %p104, %p105
    %p107 = scmp.le.s32.totalorder 1, %s10
    %p108 = scmp.lt.s32.totalorder %s10, 3
    %p109 = pnand %p107, %p108
    %p110 = pneg %p109
    // Predicated region
    $region9: #{resnet_block.3} parent=5 // pred_check
      _
    $region10: #{resnet_block.3} parent=5 // pred_check_branch
      %112 = sbr.rel (%p109) target = $region12
    $region11: #{resnet_block.3} parent=5 // pred_region
      %s113 = ssub.s32 %s10, 1
      // Predicated region
      $region13: #{resnet_block.3} parent=11 // pred_check
        %p114 = pneg %p43
      $region14: #{resnet_block.3} parent=11 // pred_check_branch
        %116 = sbr.rel (%p114) target = $region16
      $region15: #{resnet_block.3} parent=11 // pred_region
        _
      $region16: #{resnet_block.3} parent=11 // pred_fallthru
        _
    $region12: #{resnet_block.3} parent=5 // pred_fallthru
      _
    %p117 = scmp.lt.s32.totalorder %s10, 2
    // Predicated region
    $region17: #{resnet_block.3} parent=5 // pred_check
      %p118 = pneg %p117
    $region18: #{resnet_block.3} parent=5 // pred_check_branch
      %120 = sbr.rel (%p118) target = $region20
    $region19: #{resnet_block.3} parent=5 // pred_region
      _
    $region20: #{resnet_block.3} parent=5 // pred_fallthru
      _
    %p121 = scmp.le.s32.totalorder 1, %s10
    %p122 = scmp.lt.s32.totalorder %s10, 3
    %p123 = pnand %p121, %p122
    %p124 = pneg %p123
    // Predicated region
    $region21: #{resnet_block.3} parent=5 // pred_check
      _
    $region22: #{resnet_block.3} parent=5 // pred_check_branch
      %126 = sbr.rel (%p123) target = $region24
    $region23: #{resnet_block.3} parent=5 // pred_region
      %s127 = ssub.s32 %s10, 1
      %p128 = pneg %p43
      %p129 = pneg %p40
      %p130 = pneg %p71
      %p131 = pneg %p68
      %s132 = smul.u32 16, %s20
      %p133 = scmp.lt.s32.totalorder %s19, 1
      %s134 = scalar_select %p133, %s19, 1
      %p135 = scmp.lt.s32.totalorder %s132, 15
      %s136 = scalar_select %p135, %s132, 15
      %s137 = smul.addr %s136, 2
      %s138 = smul.addr %s134, 32
      %s139 = sadd.s32 %s137, %s138
      %s140 = smul.addr %s139, 4
      %s141 = scalar_lea.vmem %s2, %s140
      %p142 = pneg %p99
      %p143 = pneg %p96
      %p144 = scmp.lt.s32.totalorder %s19, 1
      %s145 = scalar_select %p144, %s19, 1
      %p146 = scmp.lt.s32.totalorder %s20, 0
      %s147 = scalar_select %p146, %s20, 0
      %s148 = sadd.s32 %s147, %s145
      %s149 = smul.addr %s148, 2
      %s150 = scalar_lea.vmem %s3, %s149
      %s151 = smul.u32 16, %s20
      %p152 = scmp.lt.s32.totalorder %s19, 1
      %s153 = scalar_select %p152, %s19, 1
      %p154 = scmp.lt.s32.totalorder %s151, 15
      %s155 = scalar_select %p154, %s151, 15
      %s156 = smul.addr %s155, 2
      %s157 = smul.addr %s153, 32
      %s158 = sadd.s32 %s156, %s157
      %s159 = smul.addr %s158, 4
      %s160 = scalar_lea.vmem %s2, %s159
      %s161 = smul.u32 16, %s20
      %p162 = scmp.lt.s32.totalorder %s19, 1
      %s163 = scalar_select %p162, %s19, 1
      %p164 = scmp.lt.s32.totalorder %s20, 0
      %s165 = scalar_select %p164, %s20, 0
      %s166 = sadd.s32 %s165, %s163
      %s167 = smul.addr %s166, 2
      %s168 = scalar_lea.vmem %s3, %s167
      %s170 = smul.u32 %s20, 16
      %p171 = scmp.eq.s32.totalorder %s20, 0
      %s172 = ssub.s32 %s170, 1
      %s173 = scalar_select %p171, 1, %s172
      %s174 = sadd.s32 %s170, 16
      %s175 = scalar_select %p171, 14, %s174
      %s176 = smul.u32 %s173, 2
      %s177 = smul.u32 %s19, 32
      %s178 = sadd.s32 %s176, %s177
      %s179 = smul.addr %s178, 4
      %s180 = scalar_lea.vmem %s0, %s179
      %p182 = scmp.lt.u32.totalorder 8, 8
      %p183 = pneg %p182
      // Predicated region
      $region25: #{resnet_block.3} parent=23 // pred_check
        _
      $region26: #{resnet_block.3} parent=23 // pred_check_branch
        %185 = sbr.rel (%p182) target = $region28
      $region27: #{resnet_block.3} parent=23 // pred_region
        %s200 = sand.u32 8, 7
        %p201 = scmp.eq.s32.totalorder %s200, 0
        // Predicated region
        $region40: #{resnet_block.3} parent=27 // pred_check
          %p202 = pneg %p201
        $region41: #{resnet_block.3} parent=27 // pred_check_branch
          %204 = sbr.rel (%p202) target = $region43
        $region42: #{resnet_block.3} parent=27 // pred_region
          loop: start=0, step=1, limit=1
          $region44: #{resnet_block.3} parent=42 // loop_pre_header
            _
          $region45: #{resnet_block.3} parent=42 // loop_header
            %s206 = sphi 0, %s210
            %p207 = scmp.ge.s32.totalorder %s206, 1
            %s211 = sphi %s180, %s180
            %s212 = sphi [#allocation2], [#allocation2]
          $region46: #{resnet_block.3} parent=42 // loop_header_branch
            %209 = sbr.rel (%p207) target = $region50
          $region47: #{resnet_block.3} parent=42 // loop_body
            %v213 = vld [vmem:[%s211] sm:$0xff]
            %214 = vst [vmem:[%s212] sm:$0xff] %v213
          $region48: #{resnet_block.3} parent=42 // loop_footer
            %s210 = sadd.s32 1, %s206
          $region49: #{resnet_block.3} parent=42 // loop_footer_branch
            %205 = sbr.rel target = $region45
          $region50: #{resnet_block.3} parent=42 // loop_exit
            _
        $region43: #{resnet_block.3} parent=27 // pred_fallthru
          _
        %p215 = pneg %p201
        // Predicated region
        $region51: #{resnet_block.3} parent=27 // pred_check
          _
        $region52: #{resnet_block.3} parent=27 // pred_check_branch
          %217 = sbr.rel (%p201) target = $region54
        $region53: #{resnet_block.3} parent=27 // pred_region
          %s218 = sand.u32 8, 7
        $region54: #{resnet_block.3} parent=27 // pred_fallthru
          _
      $region28: #{resnet_block.3} parent=23 // pred_fallthru
        _
      // Predicated region
      $region29: #{resnet_block.3} parent=23 // pred_check
        %p186 = pneg %p182
      $region30: #{resnet_block.3} parent=23 // pred_check_branch
        %188 = sbr.rel (%p186) target = $region32
      $region31: #{resnet_block.3} parent=23 // pred_region
        %s189 = sshllo.u32 0, 8
        loop: start=0, step=1, limit=1
        $region33: #{resnet_block.3} parent=31 // loop_pre_header
          _
        $region34: #{resnet_block.3} parent=31 // loop_header
          %s191 = sphi 0, %s195
          %p192 = scmp.ge.s32.totalorder %s191, 1
          %s196 = sphi %s180, %s180
          %s197 = sphi [#allocation2], [#allocation2]
        $region35: #{resnet_block.3} parent=31 // loop_header_branch
          %194 = sbr.rel (%p192) target = $region39
        $region36: #{resnet_block.3} parent=31 // loop_body
          %v198 = vld [vmem:[%s196] sm:%s189]
          %199 = vst [vmem:[%s197] sm:%s189] %v198
        $region37: #{resnet_block.3} parent=31 // loop_footer
          %s195 = sadd.s32 1, %s191
        $region38: #{resnet_block.3} parent=31 // loop_footer_branch
          %190 = sbr.rel target = $region34
        $region39: #{resnet_block.3} parent=31 // loop_exit
          _
      $region32: #{resnet_block.3} parent=23 // pred_fallthru
        _
      // Predicated region
      $region55: #{resnet_block.3} parent=23 // pred_check
        _
      $region56: #{resnet_block.3} parent=23 // pred_check_branch
        %221 = sbr.rel (0) target = $region58
      $region57: #{resnet_block.3} parent=23 // pred_region
        %222 = vsyncadd [#allocation3], 128
      $region58: #{resnet_block.3} parent=23 // pred_fallthru
        _
      %s223 = smul.u32 %s170, 2
      %s224 = sadd.s32 %s223, %s177
      %s225 = smul.addr %s224, 4
      %s226 = scalar_lea.vmem %s0, %s225
      %s227 = scalar_lea.vmem [#allocation2], 8
      %s228 = scalar_lea.sflag [#allocation3], 1
      %p230 = scmp.lt.u32.totalorder 128, 8
      %p231 = pneg %p230
      // Predicated region
      $region59: #{resnet_block.3} parent=23 // pred_check
        _
      $region60: #{resnet_block.3} parent=23 // pred_check_branch
        %233 = sbr.rel (%p230) target = $region62
      $region61: #{resnet_block.3} parent=23 // pred_region
        %s248 = sand.u32 128, 7
        %p249 = scmp.eq.s32.totalorder %s248, 0
        // Predicated region
        $region74: #{resnet_block.3} parent=61 // pred_check
          %p250 = pneg %p249
        $region75: #{resnet_block.3} parent=61 // pred_check_branch
          %252 = sbr.rel (%p250) target = $region77
        $region76: #{resnet_block.3} parent=61 // pred_region
          loop: start=0, step=1, limit=1
          $region78: #{resnet_block.3} parent=76 // loop_pre_header
            _
          $region79: #{resnet_block.3} parent=76 // loop_header
            %s254 = sphi 0, %s258
            %p255 = scmp.ge.s32.totalorder %s254, 1
            %s259 = sphi %s226, %s226
            %s260 = sphi %s227, %s227
          $region80: #{resnet_block.3} parent=76 // loop_header_branch
            %257 = sbr.rel (%p255) target = $region84
          $region81: #{resnet_block.3} parent=76 // loop_body
            %v261 = vld [vmem:[%s259] sm:$0xff]
            %262 = vst [vmem:[%s260] sm:$0xff] %v261
            %v263 = vld [vmem:[%s259 + $0x8] sm:$0xff]
            %264 = vst [vmem:[%s260 + $0x8] sm:$0xff] %v263
            %v265 = vld [vmem:[%s259 + $0x10] sm:$0xff]
            %266 = vst [vmem:[%s260 + $0x10] sm:$0xff] %v265
            %v267 = vld [vmem:[%s259 + $0x18] sm:$0xff]
            %268 = vst [vmem:[%s260 + $0x18] sm:$0xff] %v267
            %v269 = vld [vmem:[%s259 + $0x20] sm:$0xff]
            %270 = vst [vmem:[%s260 + $0x20] sm:$0xff] %v269
            %v271 = vld [vmem:[%s259 + $0x28] sm:$0xff]
            %272 = vst [vmem:[%s260 + $0x28] sm:$0xff] %v271
            %v273 = vld [vmem:[%s259 + $0x30] sm:$0xff]
            %274 = vst [vmem:[%s260 + $0x30] sm:$0xff] %v273
            %v275 = vld [vmem:[%s259 + $0x38] sm:$0xff]
            %276 = vst [vmem:[%s260 + $0x38] sm:$0xff] %v275
            %v277 = vld [vmem:[%s259 + $0x40] sm:$0xff]
            %278 = vst [vmem:[%s260 + $0x40] sm:$0xff] %v277
            %v279 = vld [vmem:[%s259 + $0x48] sm:$0xff]
            %280 = vst [vmem:[%s260 + $0x48] sm:$0xff] %v279
            %v281 = vld [vmem:[%s259 + $0x50] sm:$0xff]
            %282 = vst [vmem:[%s260 + $0x50] sm:$0xff] %v281
            %v283 = vld [vmem:[%s259 + $0x58] sm:$0xff]
            %284 = vst [vmem:[%s260 + $0x58] sm:$0xff] %v283
            %v285 = vld [vmem:[%s259 + $0x60] sm:$0xff]
            %286 = vst [vmem:[%s260 + $0x60] sm:$0xff] %v285
            %v287 = vld [vmem:[%s259 + $0x68] sm:$0xff]
            %288 = vst [vmem:[%s260 + $0x68] sm:$0xff] %v287
            %v289 = vld [vmem:[%s259 + $0x70] sm:$0xff]
            %290 = vst [vmem:[%s260 + $0x70] sm:$0xff] %v289
            %v291 = vld [vmem:[%s259 + $0x78] sm:$0xff]
            %292 = vst [vmem:[%s260 + $0x78] sm:$0xff] %v291
          $region82: #{resnet_block.3} parent=76 // loop_footer
            %s258 = sadd.s32 1, %s254
          $region83: #{resnet_block.3} parent=76 // loop_footer_branch
            %253 = sbr.rel target = $region79
          $region84: #{resnet_block.3} parent=76 // loop_exit
            _
        $region77: #{resnet_block.3} parent=61 // pred_fallthru
          _
        %p293 = pneg %p249
        // Predicated region
        $region85: #{resnet_block.3} parent=61 // pred_check
          _
        $region86: #{resnet_block.3} parent=61 // pred_check_branch
          %295 = sbr.rel (%p249) target = $region88
        $region87: #{resnet_block.3} parent=61 // pred_region
          %s296 = sand.u32 128, 7
        $region88: #{resnet_block.3} parent=61 // pred_fallthru
          _
      $region62: #{resnet_block.3} parent=23 // pred_fallthru
        _
      // Predicated region
      $region63: #{resnet_block.3} parent=23 // pred_check
        %p234 = pneg %p230
      $region64: #{resnet_block.3} parent=23 // pred_check_branch
        %236 = sbr.rel (%p234) target = $region66
      $region65: #{resnet_block.3} parent=23 // pred_region
        %s237 = sshllo.u32 0, 128
        loop: start=0, step=1, limit=1
        $region67: #{resnet_block.3} parent=65 // loop_pre_header
          _
        $region68: #{resnet_block.3} parent=65 // loop_header
          %s239 = sphi 0, %s243
          %p240 = scmp.ge.s32.totalorder %s239, 1
          %s244 = sphi %s226, %s226
          %s245 = sphi %s227, %s227
        $region69: #{resnet_block.3} parent=65 // loop_header_branch
          %242 = sbr.rel (%p240) target = $region73
        $region70: #{resnet_block.3} parent=65 // loop_body
          %v246 = vld [vmem:[%s244] sm:%s237]
          %247 = vst [vmem:[%s245] sm:%s237] %v246
        $region71: #{resnet_block.3} parent=65 // loop_footer
          %s243 = sadd.s32 1, %s239
        $region72: #{resnet_block.3} parent=65 // loop_footer_branch
          %238 = sbr.rel target = $region68
        $region73: #{resnet_block.3} parent=65 // loop_exit
          _
      $region66: #{resnet_block.3} parent=23 // pred_fallthru
        _
      // Predicated region
      $region89: #{resnet_block.3} parent=23 // pred_check
        _
      $region90: #{resnet_block.3} parent=23 // pred_check_branch
        %299 = sbr.rel (0) target = $region92
      $region91: #{resnet_block.3} parent=23 // pred_region
        %300 = vsyncadd %s228, 2048
      $region92: #{resnet_block.3} parent=23 // pred_fallthru
        _
      %s301 = smul.u32 %s175, 2
      %s302 = sadd.s32 %s301, %s177
      %s303 = smul.addr %s302, 4
      %s304 = scalar_lea.vmem %s0, %s303
      %s305 = scalar_lea.vmem [#allocation2], 136
      %s306 = scalar_lea.sflag [#allocation3], 2
      %p308 = scmp.lt.u32.totalorder 8, 8
      %p309 = pneg %p308
      // Predicated region
      $region93: #{resnet_block.3} parent=23 // pred_check
        _
      $region94: #{resnet_block.3} parent=23 // pred_check_branch
        %311 = sbr.rel (%p308) target = $region96
      $region95: #{resnet_block.3} parent=23 // pred_region
        %s326 = sand.u32 8, 7
        %p327 = scmp.eq.s32.totalorder %s326, 0
        // Predicated region
        $region108: #{resnet_block.3} parent=95 // pred_check
          %p328 = pneg %p327
        $region109: #{resnet_block.3} parent=95 // pred_check_branch
          %330 = sbr.rel (%p328) target = $region111
        $region110: #{resnet_block.3} parent=95 // pred_region
          loop: start=0, step=1, limit=1
          $region112: #{resnet_block.3} parent=110 // loop_pre_header
            _
          $region113: #{resnet_block.3} parent=110 // loop_header
            %s332 = sphi 0, %s336
            %p333 = scmp.ge.s32.totalorder %s332, 1
            %s337 = sphi %s304, %s304
            %s338 = sphi %s305, %s305
          $region114: #{resnet_block.3} parent=110 // loop_header_branch
            %335 = sbr.rel (%p333) target = $region118
          $region115: #{resnet_block.3} parent=110 // loop_body
            %v339 = vld [vmem:[%s337] sm:$0xff]
            %340 = vst [vmem:[%s338] sm:$0xff] %v339
          $region116: #{resnet_block.3} parent=110 // loop_footer
            %s336 = sadd.s32 1, %s332
          $region117: #{resnet_block.3} parent=110 // loop_footer_branch
            %331 = sbr.rel target = $region113
          $region118: #{resnet_block.3} parent=110 // loop_exit
            _
        $region111: #{resnet_block.3} parent=95 // pred_fallthru
          _
        %p341 = pneg %p327
        // Predicated region
        $region119: #{resnet_block.3} parent=95 // pred_check
          _
        $region120: #{resnet_block.3} parent=95 // pred_check_branch
          %343 = sbr.rel (%p327) target = $region122
        $region121: #{resnet_block.3} parent=95 // pred_region
          %s344 = sand.u32 8, 7
        $region122: #{resnet_block.3} parent=95 // pred_fallthru
          _
      $region96: #{resnet_block.3} parent=23 // pred_fallthru
        _
      // Predicated region
      $region97: #{resnet_block.3} parent=23 // pred_check
        %p312 = pneg %p308
      $region98: #{resnet_block.3} parent=23 // pred_check_branch
        %314 = sbr.rel (%p312) target = $region100
      $region99: #{resnet_block.3} parent=23 // pred_region
        %s315 = sshllo.u32 0, 8
        loop: start=0, step=1, limit=1
        $region101: #{resnet_block.3} parent=99 // loop_pre_header
          _
        $region102: #{resnet_block.3} parent=99 // loop_header
          %s317 = sphi 0, %s321
          %p318 = scmp.ge.s32.totalorder %s317, 1
          %s322 = sphi %s304, %s304
          %s323 = sphi %s305, %s305
        $region103: #{resnet_block.3} parent=99 // loop_header_branch
          %320 = sbr.rel (%p318) target = $region107
        $region104: #{resnet_block.3} parent=99 // loop_body
          %v324 = vld [vmem:[%s322] sm:%s315]
          %325 = vst [vmem:[%s323] sm:%s315] %v324
        $region105: #{resnet_block.3} parent=99 // loop_footer
          %s321 = sadd.s32 1, %s317
        $region106: #{resnet_block.3} parent=99 // loop_footer_branch
          %316 = sbr.rel target = $region102
        $region107: #{resnet_block.3} parent=99 // loop_exit
          _
      $region100: #{resnet_block.3} parent=23 // pred_fallthru
        _
      // Predicated region
      $region123: #{resnet_block.3} parent=23 // pred_check
        _
      $region124: #{resnet_block.3} parent=23 // pred_check_branch
        %347 = sbr.rel (0) target = $region126
      $region125: #{resnet_block.3} parent=23 // pred_region
        %348 = vsyncadd %s306, 128
      $region126: #{resnet_block.3} parent=23 // pred_fallthru
        _
      %s349 = smul.u32 4, 2
      %s350 = smul.u32 %s349, 1
      %s351 = sshll.u32 %s350, 4
      %352 = dma.done [#allocation3], %s351
      %s353 = smul.u32 4, 16
      %s354 = smul.u32 %s353, 2
      %s355 = smul.u32 %s354, 1
      %s356 = sshll.u32 %s355, 4
      %357 = dma.done %s228, %s356
      %s358 = sshll.u32 %s350, 4
      %359 = dma.done %s306, %s358
      %v360 = vld [vmem:[#allocation2] sm:$0x1]
      %v361 = vld [vmem:[#allocation2 + $0x8] sm:$0x1]
      %v362 = vld [vmem:[#allocation2 + $0x10] sm:$0x1]
      %v363 = vld [vmem:[#allocation2 + $0x18] sm:$0x1]
      %v364 = vld [vmem:[#allocation2 + $0x20] sm:$0x1]
      %v365 = vld [vmem:[#allocation2 + $0x28] sm:$0x1]
      %v366 = vld [vmem:[#allocation2 + $0x30] sm:$0x1]
      %v367 = vld [vmem:[#allocation2 + $0x38] sm:$0x1]
      %v368 = vld [vmem:[#allocation2 + $0x40] sm:$0x1]
      %v369 = vld [vmem:[#allocation2 + $0x48] sm:$0x1]
      %v370 = vld [vmem:[#allocation2 + $0x50] sm:$0x1]
      %v371 = vld [vmem:[#allocation2 + $0x58] sm:$0x1]
      %v372 = vld [vmem:[#allocation2 + $0x60] sm:$0x1]
      %v373 = vld [vmem:[#allocation2 + $0x68] sm:$0x1]
      %v374 = vld [vmem:[#allocation2 + $0x70] sm:$0x1]
      %v375 = vld [vmem:[#allocation2 + $0x78] sm:$0x1]
      %v376 = vld [vmem:[#allocation2 + $0x80] sm:$0x1]
      %v377 = vld [vmem:[#allocation2 + $0x88] sm:$0x1]
      %v378 = vld [vmem:[#allocation2] sm:$0xff]
      %v379 = vld [vmem:[#allocation2 + $0x8] sm:$0xff]
      %v380 = vld [vmem:[#allocation2 + $0x10] sm:$0xff]
      %v381 = vld [vmem:[#allocation2 + $0x18] sm:$0xff]
      %v382 = vld [vmem:[#allocation2 + $0x20] sm:$0xff]
      %v383 = vld [vmem:[#allocation2 + $0x28] sm:$0xff]
      %v384 = vld [vmem:[#allocation2 + $0x30] sm:$0xff]
      %v385 = vld [vmem:[#allocation2 + $0x38] sm:$0xff]
      %v386 = vld [vmem:[#allocation2 + $0x40] sm:$0xff]
      %v387 = vld [vmem:[#allocation2 + $0x48] sm:$0xff]
      %v388 = vld [vmem:[#allocation2 + $0x50] sm:$0xff]
      %v389 = vld [vmem:[#allocation2 + $0x58] sm:$0xff]
      %v390 = vld [vmem:[#allocation2 + $0x60] sm:$0xff]
      %v391 = vld [vmem:[#allocation2 + $0x68] sm:$0xff]
      %v392 = vld [vmem:[#allocation2 + $0x70] sm:$0xff]
      %v393 = vld [vmem:[#allocation2 + $0x78] sm:$0xff]
      %v394 = vld [vmem:[#allocation2 + $0x80] sm:$0xff]
      %v395 = vld [vmem:[#allocation2 + $0x88] sm:$0xff]
      %v397 = vshrl.u32 %v360, 16
      %v400 = vshrl.u32 %v361, 16
      %v403 = vshrl.u32 %v362, 16
      %v406 = vshrl.u32 %v363, 16
      %v409 = vshrl.u32 %v364, 16
      %v412 = vshrl.u32 %v365, 16
      %v415 = vshrl.u32 %v366, 16
      %v418 = vshrl.u32 %v367, 16
      %v421 = vshrl.u32 %v368, 16
      %v424 = vshrl.u32 %v369, 16
      %v427 = vshrl.u32 %v370, 16
      %v430 = vshrl.u32 %v371, 16
      %v433 = vshrl.u32 %v372, 16
      %v436 = vshrl.u32 %v373, 16
      %v439 = vshrl.u32 %v374, 16
      %v442 = vshrl.u32 %v375, 16
      %v445 = vshrl.u32 %v376, 16
      %v448 = vshrl.u32 %v377, 16
      %v469 = vshrl.u32 %v378, 16
      %v471 = vrot.slane %v469, 7
      %v472 = vshll.u32 %v378, 16
      %v474 = vor.u32 %v471, %v472
      %v476 = vshrl.u32 %v379, 16
      %v478 = vrot.slane %v476, 7
      %v479 = vshll.u32 %v379, 16
      %v481 = vor.u32 %v478, %v479
      %v483 = vshrl.u32 %v380, 16
      %v485 = vrot.slane %v483, 7
      %v486 = vshll.u32 %v380, 16
      %v488 = vor.u32 %v485, %v486
      %v490 = vshrl.u32 %v381, 16
      %v492 = vrot.slane %v490, 7
      %v493 = vshll.u32 %v381, 16
      %v495 = vor.u32 %v492, %v493
      %v497 = vshrl.u32 %v382, 16
      %v499 = vrot.slane %v497, 7
      %v500 = vshll.u32 %v382, 16
      %v502 = vor.u32 %v499, %v500
      %v504 = vshrl.u32 %v383, 16
      %v506 = vrot.slane %v504, 7
      %v507 = vshll.u32 %v383, 16
      %v509 = vor.u32 %v506, %v507
      %v511 = vshrl.u32 %v384, 16
      %v513 = vrot.slane %v511, 7
      %v514 = vshll.u32 %v384, 16
      %v516 = vor.u32 %v513, %v514
      %v518 = vshrl.u32 %v385, 16
      %v520 = vrot.slane %v518, 7
      %v521 = vshll.u32 %v385, 16
      %v523 = vor.u32 %v520, %v521
      %v525 = vshrl.u32 %v386, 16
      %v527 = vrot.slane %v525, 7
      %v528 = vshll.u32 %v386, 16
      %v530 = vor.u32 %v527, %v528
      %v532 = vshrl.u32 %v387, 16
      %v534 = vrot.slane %v532, 7
      %v535 = vshll.u32 %v387, 16
      %v537 = vor.u32 %v534, %v535
      %v539 = vshrl.u32 %v388, 16
      %v541 = vrot.slane %v539, 7
      %v542 = vshll.u32 %v388, 16
      %v544 = vor.u32 %v541, %v542
      %v546 = vshrl.u32 %v389, 16
      %v548 = vrot.slane %v546, 7
      %v549 = vshll.u32 %v389, 16
      %v551 = vor.u32 %v548, %v549
      %v553 = vshrl.u32 %v390, 16
      %v555 = vrot.slane %v553, 7
      %v556 = vshll.u32 %v390, 16
      %v558 = vor.u32 %v555, %v556
      %v560 = vshrl.u32 %v391, 16
      %v562 = vrot.slane %v560, 7
      %v563 = vshll.u32 %v391, 16
      %v565 = vor.u32 %v562, %v563
      %v567 = vshrl.u32 %v392, 16
      %v569 = vrot.slane %v567, 7
      %v570 = vshll.u32 %v392, 16
      %v572 = vor.u32 %v569, %v570
      %v574 = vshrl.u32 %v393, 16
      %v576 = vrot.slane %v574, 7
      %v577 = vshll.u32 %v393, 16
      %v579 = vor.u32 %v576, %v577
      %v581 = vshrl.u32 %v394, 16
      %v583 = vrot.slane %v581, 7
      %v584 = vshll.u32 %v394, 16
      %v586 = vor.u32 %v583, %v584
      %v588 = vshrl.u32 %v395, 16
      %v590 = vrot.slane %v588, 7
      %v591 = vshll.u32 %v395, 16
      %v593 = vor.u32 %v590, %v591
      %vm612 = vcmask 1040384
      %vm613 = vsmask.f32 256
      %vm614 = vmand %vm612, %vm613
      %v615 = vsel %vm614, %v397, %v474
      %v616 = vsel %vm614, %v400, %v481
      %v617 = vsel %vm614, %v403, %v488
      %v618 = vsel %vm614, %v406, %v495
      %v619 = vsel %vm614, %v409, %v502
      %v620 = vsel %vm614, %v412, %v509
      %v621 = vsel %vm614, %v415, %v516
      %v622 = vsel %vm614, %v418, %v523
      %v623 = vsel %vm614, %v421, %v530
      %v624 = vsel %vm614, %v424, %v537
      %v625 = vsel %vm614, %v427, %v544
      %v626 = vsel %vm614, %v430, %v551
      %v627 = vsel %vm614, %v433, %v558
      %v628 = vsel %vm614, %v436, %v565
      %v629 = vsel %vm614, %v439, %v572
      %v630 = vsel %vm614, %v442, %v579
      %v631 = vsel %vm614, %v445, %v586
      %v632 = vsel %vm614, %v448, %v593
      %v633 = vld [vmem:[%s1] sm:$0xf]
      %v634 = vld [vmem:[%s1 + $0x4] sm:$0xf]
      %v635 = vld [vmem:[%s1 + $0x8] sm:$0xf]
      %v636 = vld [vmem:[%s1 + $0xc] sm:$0xf]
      %v637 = vld [vmem:[%s1 + $0x10] sm:$0xf]
      %v638 = vld [vmem:[%s1 + $0x14] sm:$0xf]
      %v639 = vld [vmem:[%s1 + $0x18] sm:$0xf]
      %v640 = vld [vmem:[%s1 + $0x1c] sm:$0xf]
      %v641 = vld [vmem:[%s1 + $0x20] sm:$0xf]
      %v642 = vld [vmem:[%s1 + $0x24] sm:$0xf]
      %v643 = vld [vmem:[%s1 + $0x28] sm:$0xf]
      %v644 = vld [vmem:[%s1 + $0x2c] sm:$0xf]
      %v645 = vld [vmem:[%s1 + $0x30] sm:$0xf]
      %v646 = vld [vmem:[%s1 + $0x34] sm:$0xf]
      %v647 = vld [vmem:[%s1 + $0x38] sm:$0xf]
      %v648 = vld [vmem:[%s1 + $0x3c] sm:$0xf]
      %v649 = vld [vmem:[%s1 + $0x40] sm:$0xf]
      %v650 = vld [vmem:[%s1 + $0x44] sm:$0xf]
      %v651 = vld [vmem:[%s1 + $0x48] sm:$0xf]
      %v652 = vld [vmem:[%s1 + $0x4c] sm:$0xf]
      %v653 = vld [vmem:[%s1 + $0x50] sm:$0xf]
      %v654 = vld [vmem:[%s1 + $0x54] sm:$0xf]
      %v655 = vld [vmem:[%s1 + $0x58] sm:$0xf]
      %v656 = vld [vmem:[%s1 + $0x5c] sm:$0xf]
      %v657 = vld [vmem:[%s1 + $0x60] sm:$0xf]
      %v658 = vld [vmem:[%s1 + $0x64] sm:$0xf]
      %v659 = vld [vmem:[%s1 + $0x68] sm:$0xf]
      %v660 = vld [vmem:[%s1 + $0x6c] sm:$0xf]
      %v661 = vld [vmem:[%s1 + $0x70] sm:$0xf]
      %v662 = vld [vmem:[%s1 + $0x74] sm:$0xf]
      %v663 = vld [vmem:[%s1 + $0x78] sm:$0xf]
      %v664 = vld [vmem:[%s1 + $0x7c] sm:$0xf]
      %v665 = vld [vmem:[%s1 + $0x80] sm:$0xf]
      %v666 = vld [vmem:[%s1 + $0x84] sm:$0xf]
      %v667 = vld [vmem:[%s1 + $0x88] sm:$0xf]
      %v668 = vld [vmem:[%s1 + $0x8c] sm:$0xf]
      %v669 = vld [vmem:[%s1 + $0x90] sm:$0xf]
      %v670 = vld [vmem:[%s1 + $0x94] sm:$0xf]
      %v671 = vld [vmem:[%s1 + $0x98] sm:$0xf]
      %v672 = vld [vmem:[%s1 + $0x9c] sm:$0xf]
      %v673 = vld [vmem:[%s1 + $0xa0] sm:$0xf]
      %v674 = vld [vmem:[%s1 + $0xa4] sm:$0xf]
      %v675 = vld [vmem:[%s1 + $0xa8] sm:$0xf]
      %v676 = vld [vmem:[%s1 + $0xac] sm:$0xf]
      %v677 = vld [vmem:[%s1 + $0xb0] sm:$0xf]
      %v678 = vld [vmem:[%s1 + $0xb4] sm:$0xf]
      %v679 = vld [vmem:[%s1 + $0xb8] sm:$0xf]
      %v680 = vld [vmem:[%s1 + $0xbc] sm:$0xf]
      %s681 = scalar_lea.vmem %s1, 192
      %v682 = vld [vmem:[%s681] sm:$0xf]
      %v683 = vld [vmem:[%s681 + $0x4] sm:$0xf]
      %v684 = vld [vmem:[%s681 + $0x8] sm:$0xf]
      %v685 = vld [vmem:[%s681 + $0xc] sm:$0xf]
      %v686 = vld [vmem:[%s681 + $0x10] sm:$0xf]
      %v687 = vld [vmem:[%s681 + $0x14] sm:$0xf]
      %v688 = vld [vmem:[%s681 + $0x18] sm:$0xf]
      %v689 = vld [vmem:[%s681 + $0x1c] sm:$0xf]
      %v690 = vld [vmem:[%s681 + $0x20] sm:$0xf]
      %v691 = vld [vmem:[%s681 + $0x24] sm:$0xf]
      %v692 = vld [vmem:[%s681 + $0x28] sm:$0xf]
      %v693 = vld [vmem:[%s681 + $0x2c] sm:$0xf]
      %v694 = vld [vmem:[%s681 + $0x30] sm:$0xf]
      %v695 = vld [vmem:[%s681 + $0x34] sm:$0xf]
      %v696 = vld [vmem:[%s681 + $0x38] sm:$0xf]
      %v697 = vld [vmem:[%s681 + $0x3c] sm:$0xf]
      %v698 = vld [vmem:[%s681 + $0x40] sm:$0xf]
      %v699 = vld [vmem:[%s681 + $0x44] sm:$0xf]
      %v700 = vld [vmem:[%s681 + $0x48] sm:$0xf]
      %v701 = vld [vmem:[%s681 + $0x4c] sm:$0xf]
      %v702 = vld [vmem:[%s681 + $0x50] sm:$0xf]
      %v703 = vld [vmem:[%s681 + $0x54] sm:$0xf]
      %v704 = vld [vmem:[%s681 + $0x58] sm:$0xf]
      %v705 = vld [vmem:[%s681 + $0x5c] sm:$0xf]
      %v706 = vld [vmem:[%s681 + $0x60] sm:$0xf]
      %v707 = vld [vmem:[%s681 + $0x64] sm:$0xf]
      %v708 = vld [vmem:[%s681 + $0x68] sm:$0xf]
      %v709 = vld [vmem:[%s681 + $0x6c] sm:$0xf]
      %v710 = vld [vmem:[%s681 + $0x70] sm:$0xf]
      %v711 = vld [vmem:[%s681 + $0x74] sm:$0xf]
      %v712 = vld [vmem:[%s681 + $0x78] sm:$0xf]
      %v713 = vld [vmem:[%s681 + $0x7c] sm:$0xf]
      %v714 = vld [vmem:[%s681 + $0x80] sm:$0xf]
      %v715 = vld [vmem:[%s681 + $0x84] sm:$0xf]
      %v716 = vld [vmem:[%s681 + $0x88] sm:$0xf]
      %v717 = vld [vmem:[%s681 + $0x8c] sm:$0xf]
      %v718 = vld [vmem:[%s681 + $0x90] sm:$0xf]
      %v719 = vld [vmem:[%s681 + $0x94] sm:$0xf]
      %v720 = vld [vmem:[%s681 + $0x98] sm:$0xf]
      %v721 = vld [vmem:[%s681 + $0x9c] sm:$0xf]
      %v722 = vld [vmem:[%s681 + $0xa0] sm:$0xf]
      %v723 = vld [vmem:[%s681 + $0xa4] sm:$0xf]
      %v724 = vld [vmem:[%s681 + $0xa8] sm:$0xf]
      %v725 = vld [vmem:[%s681 + $0xac] sm:$0xf]
      %v726 = vld [vmem:[%s681 + $0xb0] sm:$0xf]
      %v727 = vld [vmem:[%s681 + $0xb4] sm:$0xf]
      %v728 = vld [vmem:[%s681 + $0xb8] sm:$0xf]
      %v729 = vld [vmem:[%s681 + $0xbc] sm:$0xf]
      %v778 = vunpack.c.l.b16 %v682
      %v779 = vunpack.c.l.b16 %v683
      %v780 = vunpack.c.l.b16 %v684
      %v781 = vunpack.c.l.b16 %v685
      %v782 = vunpack.c.l.b16 %v686
      %v783 = vunpack.c.l.b16 %v687
      %v784 = vunpack.c.l.b16 %v688
      %v785 = vunpack.c.l.b16 %v689
      %v786 = vunpack.c.l.b16 %v690
      %v787 = vunpack.c.l.b16 %v691
      %v788 = vunpack.c.l.b16 %v692
      %v789 = vunpack.c.l.b16 %v693
      %v790 = vunpack.c.l.b16 %v694
      %v791 = vunpack.c.l.b16 %v695
      %v792 = vunpack.c.l.b16 %v696
      %v793 = vunpack.c.l.b16 %v697
      %v794 = vunpack.c.l.b16 %v698
      %v795 = vunpack.c.l.b16 %v699
      %v796 = vunpack.c.l.b16 %v700
      %v797 = vunpack.c.l.b16 %v701
      %v798 = vunpack.c.l.b16 %v702
      %v799 = vunpack.c.l.b16 %v703
      %v800 = vunpack.c.l.b16 %v704
      %v801 = vunpack.c.l.b16 %v705
      %v802 = vunpack.c.l.b16 %v706
      %v803 = vunpack.c.l.b16 %v707
      %v804 = vunpack.c.l.b16 %v708
      %v805 = vunpack.c.l.b16 %v709
      %v806 = vunpack.c.l.b16 %v710
      %v807 = vunpack.c.l.b16 %v711
      %v808 = vunpack.c.l.b16 %v712
      %v809 = vunpack.c.l.b16 %v713
      %v810 = vunpack.c.l.b16 %v714
      %v811 = vunpack.c.l.b16 %v715
      %v812 = vunpack.c.l.b16 %v716
      %v813 = vunpack.c.l.b16 %v717
      %v814 = vunpack.c.l.b16 %v718
      %v815 = vunpack.c.l.b16 %v719
      %v816 = vunpack.c.l.b16 %v720
      %v817 = vunpack.c.l.b16 %v721
      %v818 = vunpack.c.l.b16 %v722
      %v819 = vunpack.c.l.b16 %v723
      %v820 = vunpack.c.l.b16 %v724
      %v821 = vunpack.c.l.b16 %v725
      %v822 = vunpack.c.l.b16 %v726
      %v823 = vunpack.c.l.b16 %v727
      %v824 = vunpack.c.l.b16 %v728
      %v825 = vunpack.c.l.b16 %v729
      %v826 = vpack.c.b16 %v779, %v778
      %v827 = vpack.c.b16 %v781, %v780
      %v828 = vpack.c.b16 %v783, %v782
      %v829 = vpack.c.b16 %v785, %v784
      %v830 = vpack.c.b16 %v787, %v786
      %v831 = vpack.c.b16 %v789, %v788
      %v832 = vpack.c.b16 %v791, %v790
      %v833 = vpack.c.b16 %v793, %v792
      %v834 = vpack.c.b16 %v795, %v794
      %v835 = vpack.c.b16 %v797, %v796
      %v836 = vpack.c.b16 %v799, %v798
      %v837 = vpack.c.b16 %v801, %v800
      %v838 = vpack.c.b16 %v803, %v802
      %v839 = vpack.c.b16 %v805, %v804
      %v840 = vpack.c.b16 %v807, %v806
      %v841 = vpack.c.b16 %v809, %v808
      %v842 = vpack.c.b16 %v811, %v810
      %v843 = vpack.c.b16 %v813, %v812
      %v844 = vpack.c.b16 %v815, %v814
      %v845 = vpack.c.b16 %v817, %v816
      %v846 = vpack.c.b16 %v819, %v818
      %v847 = vpack.c.b16 %v821, %v820
      %v848 = vpack.c.b16 %v823, %v822
      %v849 = vpack.c.b16 %v825, %v824
      %874 = vmatprep.subr.bf16.mxu0 0
      %875 = vmatpush1.bf16.msra.mxu0 %v826
      %876 = vmatprep.subr.bf16.mxu0 0
      %877 = vmatpush1.bf16.msra.mxu0 %v827
      %878 = vmatprep.subr.bf16.mxu0 0
      %879 = vmatpush1.bf16.msra.mxu0 %v828
      %880 = vmatprep.subr.bf16.mxu0 0
      %881 = vmatpush1.bf16.msra.mxu0 %v829
      %882 = vmatprep.subr.bf16.mxu0 0
      %883 = vmatpush1.bf16.msra.mxu0 %v830
      %884 = vmatprep.subr.bf16.mxu0 0
      %885 = vmatpush1.bf16.msra.mxu0 %v831
      %886 = vmatprep.subr.bf16.mxu0 0
      %887 = vmatpush1.bf16.msra.mxu0 %v832
      %888 = vmatprep.subr.bf16.mxu0 0
      %889 = vmatpush1.bf16.msra.mxu0 %v833
      %890 = vmatprep.subr.bf16.mxu0 0
      %891 = vmatpush1.bf16.msra.mxu0 %v834
      %892 = vmatprep.subr.bf16.mxu0 0
      %893 = vmatpush1.bf16.msra.mxu0 %v835
      %894 = vmatprep.subr.bf16.mxu0 0
      %895 = vmatpush1.bf16.msra.mxu0 %v836
      %896 = vmatprep.subr.bf16.mxu0 0
      %897 = vmatpush1.bf16.msra.mxu0 %v837
      %898 = vmatprep.subr.bf16.mxu0 0
      %899 = vmatpush1.bf16.msra.mxu0 %v838
      %900 = vmatprep.subr.bf16.mxu0 0
      %901 = vmatpush1.bf16.msra.mxu0 %v839
      %902 = vmatprep.subr.bf16.mxu0 0
      %903 = vmatpush1.bf16.msra.mxu0 %v840
      %904 = vmatprep.subr.bf16.mxu0 0
      %905 = vmatpush1.bf16.msra.mxu0 %v841
      %906 = vmatprep.mubr.bf16.mxu0 %v379
      %907 = vmatmul.mubr.bf16.gmra.mrb[0].mxu0 %v378
      %v908 = vpop.f32.mrb[0].mxu0
      %v909 = vadd.f32 0.0, %v908
      %v910 = vpop.f32.mrb[0].mxu0
      %v911 = vpop.f32.mrb[0].mxu0
      %v912 = vadd.f32 0.0, %v911
      %v913 = vpop.f32.mrb[0].mxu0
      %914 = vmatprep.mubr.bf16.mxu0 %v380
      %915 = vmatmul.mubr.bf16.gmra.mrb[0].mxu0 %v379
      %v916 = vpop.f32.mrb[0].mxu0
      %v917 = vadd.f32 0.0, %v916
      %v918 = vpop.f32.mrb[0].mxu0
      %v919 = vpop.f32.mrb[0].mxu0
      %v920 = vadd.f32 0.0, %v919
      %v921 = vpop.f32.mrb[0].mxu0
      %922 = vmatprep.mubr.bf16.mxu0 %v381
      %923 = vmatmul.mubr.bf16.gmra.mrb[0].mxu0 %v380
      %v924 = vpop.f32.mrb[0].mxu0
      %v925 = vadd.f32 0.0, %v924
      %v926 = vpop.f32.mrb[0].mxu0
      %v927 = vpop.f32.mrb[0].mxu0
      %v928 = vadd.f32 0.0, %v927
      %v929 = vpop.f32.mrb[0].mxu0
      %930 = vmatprep.mubr.bf16.mxu0 %v382
      %931 = vmatmul.mubr.bf16.gmra.mrb[0].mxu0 %v381
      %v932 = vpop.f32.mrb[0].mxu0
      %v933 = vadd.f32 0.0, %v932
      %v934 = vpop.f32.mrb[0].mxu0
      %v935 = vpop.f32.mrb[0].mxu0
      %v936 = vadd.f32 0.0, %v935
      %v937 = vpop.f32.mrb[0].mxu0
      %938 = vmatprep.mubr.bf16.mxu0 %v383
      %939 = vmatmul.mubr.bf16.gmra.mrb[0].mxu0 %v382
      %v940 = vpop.f32.mrb[0].mxu0
      %v941 = vadd.f32 0.0, %v940
      %v942 = vpop.f32.mrb[0].mxu0
      %v943 = vpop.f32.mrb[0].mxu0
      %v944 = vadd.f32 0.0, %v943
      %v945 = vpop.f32.mrb[0].mxu0
      %946 = vmatprep.mubr.bf16.mxu0 %v384
      %947 = vmatmul.mubr.bf16.gmra.mrb[0].mxu0 %v383
      %v948 = vpop.f32.mrb[0].mxu0
      %v949 = vadd.f32 0.0, %v948
      %v950 = vpop.f32.mrb[0].mxu0
      %v951 = vpop.f32.mrb[0].mxu0
      %v952 = vadd.f32 0.0, %v951
      %v953 = vpop.f32.mrb[0].mxu0
      %954 = vmatprep.mubr.bf16.mxu0 %v385
      %955 = vmatmul.mubr.bf16.gmra.mrb[0].mxu0 %v384
      %v956 = vpop.f32.mrb[0].mxu0
      %v957 = vadd.f32 0.0, %v956
      %v958 = vpop.f32.mrb[0].mxu0
      %v959 = vpop.f32.mrb[0].mxu0
      %v960 = vadd.f32 0.0, %v959
      %v961 = vpop.f32.mrb[0].mxu0
      %962 = vmatprep.mubr.bf16.mxu0 %v386
      %963 = vmatmul.mubr.bf16.gmra.mrb[0].mxu0 %v385
      %v964 = vpop.f32.mrb[0].mxu0
      %v965 = vadd.f32 0.0, %v964
      %v966 = vpop.f32.mrb[0].mxu0
      %v967 = vpop.f32.mrb[0].mxu0
      %v968 = vadd.f32 0.0, %v967
      %v969 = vpop.f32.mrb[0].mxu0
      %970 = vmatprep.mubr.bf16.mxu0 %v387
      %971 = vmatmul.mubr.bf16.gmra.mrb[0].mxu0 %v386
      %v972 = vpop.f32.mrb[0].mxu0
      %v973 = vadd.f32 0.0, %v972
      %v974 = vpop.f32.mrb[0].mxu0
      %v975 = vpop.f32.mrb[0].mxu0
      %v976 = vadd.f32 0.0, %v975
      %v977 = vpop.f32.mrb[0].mxu0
      %978 = vmatprep.mubr.bf16.mxu0 %v388
      %979 = vmatmul.mubr.bf16.gmra.mrb[0].mxu0 %v387
      %v980 = vpop.f32.mrb[0].mxu0
      %v981 = vadd.f32 0.0, %v980
      %v982 = vpop.f32.mrb[0].mxu0
      %v983 = vpop.f32.mrb[0].mxu0
      %v984 = vadd.f32 0.0, %v983
      %v985 = vpop.f32.mrb[0].mxu0
      %986 = vmatprep.mubr.bf16.mxu0 %v389
      %987 = vmatmul.mubr.bf16.gmra.mrb[0].mxu0 %v388
      %v988 = vpop.f32.mrb[0].mxu0
      %v989 = vadd.f32 0.0, %v988
      %v990 = vpop.f32.mrb[0].mxu0
      %v991 = vpop.f32.mrb[0].mxu0
      %v992 = vadd.f32 0.0, %v991
      %v993 = vpop.f32.mrb[0].mxu0
      %994 = vmatprep.mubr.bf16.mxu0 %v390
      %995 = vmatmul.mubr.bf16.gmra.mrb[0].mxu0 %v389
      %v996 = vpop.f32.mrb[0].mxu0
      %v997 = vadd.f32 0.0, %v996
      %v998 = vpop.f32.mrb[0].mxu0
      %v999 = vpop.f32.mrb[0].mxu0
      %v1000 = vadd.f32 0.0, %v999
      %v1001 = vpop.f32.mrb[0].mxu0
      %1002 = vmatprep.mubr.bf16.mxu0 %v391
      %1003 = vmatmul.mubr.bf16.gmra.mrb[0].mxu0 %v390
      %v1004 = vpop.f32.mrb[0].mxu0
      %v1005 = vadd.f32 0.0, %v1004
      %v1006 = vpop.f32.mrb[0].mxu0
      %v1007 = vpop.f32.mrb[0].mxu0
      %v1008 = vadd.f32 0.0, %v1007
      %v1009 = vpop.f32.mrb[0].mxu0
      %1010 = vmatprep.mubr.bf16.mxu0 %v392
      %1011 = vmatmul.mubr.bf16.gmra.mrb[0].mxu0 %v391
      %v1012 = vpop.f32.mrb[0].mxu0
      %v1013 = vadd.f32 0.0, %v1012
      %v1014 = vpop.f32.mrb[0].mxu0
      %v1015 = vpop.f32.mrb[0].mxu0
      %v1016 = vadd.f32 0.0, %v1015
      %v1017 = vpop.f32.mrb[0].mxu0
      %1018 = vmatprep.mubr.bf16.mxu0 %v393
      %1019 = vmatmul.mubr.bf16.gmra.mrb[0].mxu0 %v392
      %v1020 = vpop.f32.mrb[0].mxu0
      %v1021 = vadd.f32 0.0, %v1020
      %v1022 = vpop.f32.mrb[0].mxu0
      %v1023 = vpop.f32.mrb[0].mxu0
      %v1024 = vadd.f32 0.0, %v1023
      %v1025 = vpop.f32.mrb[0].mxu0
      %1026 = vmatprep.mubr.bf16.mxu0 %v394
      %1027 = vmatmul.mubr.bf16.gmra.mrb[0].mxu0 %v393
      %v1028 = vpop.f32.mrb[0].mxu0
      %v1029 = vadd.f32 0.0, %v1028
      %v1030 = vpop.f32.mrb[0].mxu0
      %v1031 = vpop.f32.mrb[0].mxu0
      %v1032 = vadd.f32 0.0, %v1031
      %v1033 = vpop.f32.mrb[0].mxu0
      %1034 = vdwg.mxu0
      %1035 = vmatprep.subr.bf16.mxu0 0
      %1036 = vmatpush1.bf16.msra.mxu0 %v842
      %1037 = vmatprep.subr.bf16.mxu0 0
      %1038 = vmatpush1.bf16.msra.mxu0 %v843
      %1039 = vmatprep.subr.bf16.mxu0 0
      %1040 = vmatpush1.bf16.msra.mxu0 %v844
      %1041 = vmatprep.subr.bf16.mxu0 0
      %1042 = vmatpush1.bf16.msra.mxu0 %v845
      %1043 = vmatprep.subr.bf16.mxu0 0
      %1044 = vmatpush1.bf16.msra.mxu0 %v846
      %1045 = vmatprep.subr.bf16.mxu0 0
      %1046 = vmatpush1.bf16.msra.mxu0 %v847
      %1047 = vmatprep.subr.bf16.mxu0 0
      %1048 = vmatpush1.bf16.msra.mxu0 %v848
      %1049 = vmatprep.subr.bf16.mxu0 0
      %1050 = vmatpush1.bf16.msra.mxu0 %v849
      %1051 = vmatprep.subr.bf16.mxu0 0
      %1052 = vmatpush1.bf16.msra.mxu0 0
      %1053 = vmatprep.subr.bf16.mxu0 0
      %1054 = vmatpush1.bf16.msra.mxu0 0
      %1055 = vmatprep.subr.bf16.mxu0 0
      %1056 = vmatpush1.bf16.msra.mxu0 0
      %1057 = vmatprep.subr.bf16.mxu0 0
      %1058 = vmatpush1.bf16.msra.mxu0 0
      %1059 = vmatprep.subr.bf16.mxu0 0
      %1060 = vmatpush1.bf16.msra.mxu0 0
      %1061 = vmatprep.subr.bf16.mxu0 0
      %1062 = vmatpush1.bf16.msra.mxu0 0
      %1063 = vmatprep.subr.bf16.mxu0 0
      %1064 = vmatpush1.bf16.msra.mxu0 0
      %1065 = vmatprep.subr.bf16.mxu0 0
      %1066 = vmatpush1.bf16.msra.mxu0 0
      %1067 = vmatprep.mubr.bf16.mxu0 0
      %1068 = vmatmul.mubr.bf16.gmra.mrb[0].mxu0 %v380
      %v1069 = vpop.f32.mrb[0].mxu0
      %v1070 = vadd.f32 %v909, %v1069
      %v1071 = vpop.f32.mrb[0].mxu0
      %v1072 = vpop.f32.mrb[0].mxu0
      %v1073 = vadd.f32 %v912, %v1072
      %v1074 = vpop.f32.mrb[0].mxu0
      %1075 = vmatprep.mubr.bf16.mxu0 0
      %1076 = vmatmul.mubr.bf16.gmra.mrb[0].mxu0 %v381
      %v1077 = vpop.f32.mrb[0].mxu0
      %v1078 = vadd.f32 %v917, %v1077
      %v1079 = vpop.f32.mrb[0].mxu0
      %v1080 = vpop.f32.mrb[0].mxu0
      %v1081 = vadd.f32 %v920, %v1080
      %v1082 = vpop.f32.mrb[0].mxu0
      %1083 = vmatprep.mubr.bf16.mxu0 0
      %1084 = vmatmul.mubr.bf16.gmra.mrb[0].mxu0 %v382
      %v1085 = vpop.f32.mrb[0].mxu0
      %v1086 = vadd.f32 %v925, %v1085
      %v1087 = vpop.f32.mrb[0].mxu0
      %v1088 = vpop.f32.mrb[0].mxu0
      %v1089 = vadd.f32 %v928, %v1088
      %v1090 = vpop.f32.mrb[0].mxu0
      %1091 = vmatprep.mubr.bf16.mxu0 0
      %1092 = vmatmul.mubr.bf16.gmra.mrb[0].mxu0 %v383
      %v1093 = vpop.f32.mrb[0].mxu0
      %v1094 = vadd.f32 %v933, %v1093
      %v1095 = vpop.f32.mrb[0].mxu0
      %v1096 = vpop.f32.mrb[0].mxu0
      %v1097 = vadd.f32 %v936, %v1096
      %v1098 = vpop.f32.mrb[0].mxu0
      %1099 = vmatprep.mubr.bf16.mxu0 0
      %1100 = vmatmul.mubr.bf16.gmra.mrb[0].mxu0 %v384
      %v1101 = vpop.f32.mrb[0].mxu0
      %v1102 = vadd.f32 %v941, %v1101
      %v1103 = vpop.f32.mrb[0].mxu0
      %v1104 = vpop.f32.mrb[0].mxu0
      %v1105 = vadd.f32 %v944, %v1104
      %v1106 = vpop.f32.mrb[0].mxu0
      %1107 = vmatprep.mubr.bf16.mxu0 0
      %1108 = vmatmul.mubr.bf16.gmra.mrb[0].mxu0 %v385
      %v1109 = vpop.f32.mrb[0].mxu0
      %v1110 = vadd.f32 %v949, %v1109
      %v1111 = vpop.f32.mrb[0].mxu0
      %v1112 = vpop.f32.mrb[0].mxu0
      %v1113 = vadd.f32 %v952, %v1112
      %v1114 = vpop.f32.mrb[0].mxu0
      %1115 = vmatprep.mubr.bf16.mxu0 0
      %1116 = vmatmul.mubr.bf16.gmra.mrb[0].mxu0 %v386
      %v1117 = vpop.f32.mrb[0].mxu0
      %v1118 = vadd.f32 %v957, %v1117
      %v1119 = vpop.f32.mrb[0].mxu0
      %v1120 = vpop.f32.mrb[0].mxu0
      %v1121 = vadd.f32 %v960, %v1120
      %v1122 = vpop.f32.mrb[0].mxu0
      %1123 = vmatprep.mubr.bf16.mxu0 0
      %1124 = vmatmul.mubr.bf16.gmra.mrb[0].mxu0 %v387
      %v1125 = vpop.f32.mrb[0].mxu0
      %v1126 = vadd.f32 %v965, %v1125
      %v1127 = vpop.f32.mrb[0].mxu0
      %v1128 = vpop.f32.mrb[0].mxu0
      %v1129 = vadd.f32 %v968, %v1128
      %v1130 = vpop.f32.mrb[0].mxu0
      %1131 = vmatprep.mubr.bf16.mxu0 0
      %1132 = vmatmul.mubr.bf16.gmra.mrb[0].mxu0 %v388
      %v1133 = vpop.f32.mrb[0].mxu0
      %v1134 = vadd.f32 %v973, %v1133
      %v1135 = vpop.f32.mrb[0].mxu0
      %v1136 = vpop.f32.mrb[0].mxu0
      %v1137 = vadd.f32 %v976, %v1136
      %v1138 = vpop.f32.mrb[0].mxu0
      %1139 = vmatprep.mubr.bf16.mxu0 0
      %1140 = vmatmul.mubr.bf16.gmra.mrb[0].mxu0 %v389
      %v1141 = vpop.f32.mrb[0].mxu0
      %v1142 = vadd.f32 %v981, %v1141
      %v1143 = vpop.f32.mrb[0].mxu0
      %v1144 = vpop.f32.mrb[0].mxu0
      %v1145 = vadd.f32 %v984, %v1144
      %v1146 = vpop.f32.mrb[0].mxu0
      %1147 = vmatprep.mubr.bf16.mxu0 0
      %1148 = vmatmul.mubr.bf16.gmra.mrb[0].mxu0 %v390
      %v1149 = vpop.f32.mrb[0].mxu0
      %v1150 = vadd.f32 %v989, %v1149
      %v1151 = vpop.f32.mrb[0].mxu0
      %v1152 = vpop.f32.mrb[0].mxu0
      %v1153 = vadd.f32 %v992, %v1152
      %v1154 = vpop.f32.mrb[0].mxu0
      %1155 = vmatprep.mubr.bf16.mxu0 0
      %1156 = vmatmul.mubr.bf16.gmra.mrb[0].mxu0 %v391
      %v1157 = vpop.f32.mrb[0].mxu0
      %v1158 = vadd.f32 %v997, %v1157
      %v1159 = vpop.f32.mrb[0].mxu0
      %v1160 = vpop.f32.mrb[0].mxu0
      %v1161 = vadd.f32 %v1000, %v1160
      %v1162 = vpop.f32.mrb[0].mxu0
      %1163 = vmatprep.mubr.bf16.mxu0 0
      %1164 = vmatmul.mubr.bf16.gmra.mrb[0].mxu0 %v392
      %v1165 = vpop.f32.mrb[0].mxu0
      %v1166 = vadd.f32 %v1005, %v1165
      %v1167 = vpop.f32.mrb[0].mxu0
      %v1168 = vpop.f32.mrb[0].mxu0
      %v1169 = vadd.f32 %v1008, %v1168
      %v1170 = vpop.f32.mrb[0].mxu0
      %1171 = vmatprep.mubr.bf16.mxu0 0
      %1172 = vmatmul.mubr.bf16.gmra.mrb[0].mxu0 %v393
      %v1173 = vpop.f32.mrb[0].mxu0
      %v1174 = vadd.f32 %v1013, %v1173
      %v1175 = vpop.f32.mrb[0].mxu0
      %v1176 = vpop.f32.mrb[0].mxu0
      %v1177 = vadd.f32 %v1016, %v1176
      %v1178 = vpop.f32.mrb[0].mxu0
      %1179 = vmatprep.mubr.bf16.mxu0 0
      %1180 = vmatmul.mubr.bf16.gmra.mrb[0].mxu0 %v394
      %v1181 = vpop.f32.mrb[0].mxu0
      %v1182 = vadd.f32 %v1021, %v1181
      %v1183 = vpop.f32.mrb[0].mxu0
      %v1184 = vpop.f32.mrb[0].mxu0
      %v1185 = vadd.f32 %v1024, %v1184
      %v1186 = vpop.f32.mrb[0].mxu0
      %1187 = vmatprep.mubr.bf16.mxu0 0
      %1188 = vmatmul.mubr.bf16.gmra.mrb[0].mxu0 %v395
      %v1189 = vpop.f32.mrb[0].mxu0
      %v1190 = vadd.f32 %v1029, %v1189
      %v1191 = vpop.f32.mrb[0].mxu0
      %v1192 = vpop.f32.mrb[0].mxu0
      %v1193 = vadd.f32 %v1032, %v1192
      %v1194 = vpop.f32.mrb[0].mxu0
      %1195 = vdwg.mxu0
      %v1244 = vunpack.c.l.b16 %v633
      %v1245 = vunpack.c.l.b16 %v634
      %v1246 = vunpack.c.l.b16 %v635
      %v1247 = vunpack.c.l.b16 %v636
      %v1248 = vunpack.c.l.b16 %v637
      %v1249 = vunpack.c.l.b16 %v638
      %v1250 = vunpack.c.l.b16 %v639
      %v1251 = vunpack.c.l.b16 %v640
      %v1252 = vunpack.c.l.b16 %v641
      %v1253 = vunpack.c.l.b16 %v642
      %v1254 = vunpack.c.l.b16 %v643
      %v1255 = vunpack.c.l.b16 %v644
      %v1256 = vunpack.c.l.b16 %v645
      %v1257 = vunpack.c.l.b16 %v646
      %v1258 = vunpack.c.l.b16 %v647
      %v1259 = vunpack.c.l.b16 %v648
      %v1260 = vunpack.c.l.b16 %v649
      %v1261 = vunpack.c.l.b16 %v650
      %v1262 = vunpack.c.l.b16 %v651
      %v1263 = vunpack.c.l.b16 %v652
      %v1264 = vunpack.c.l.b16 %v653
      %v1265 = vunpack.c.l.b16 %v654
      %v1266 = vunpack.c.l.b16 %v655
      %v1267 = vunpack.c.l.b16 %v656
      %v1268 = vunpack.c.l.b16 %v657
      %v1269 = vunpack.c.l.b16 %v658
      %v1270 = vunpack.c.l.b16 %v659
      %v1271 = vunpack.c.l.b16 %v660
      %v1272 = vunpack.c.l.b16 %v661
      %v1273 = vunpack.c.l.b16 %v662
      %v1274 = vunpack.c.l.b16 %v663
      %v1275 = vunpack.c.l.b16 %v664
      %v1276 = vunpack.c.l.b16 %v665
      %v1277 = vunpack.c.l.b16 %v666
      %v1278 = vunpack.c.l.b16 %v667
      %v1279 = vunpack.c.l.b16 %v668
      %v1280 = vunpack.c.l.b16 %v669
      %v1281 = vunpack.c.l.b16 %v670
      %v1282 = vunpack.c.l.b16 %v671
      %v1283 = vunpack.c.l.b16 %v672
      %v1284 = vunpack.c.l.b16 %v673
      %v1285 = vunpack.c.l.b16 %v674
      %v1286 = vunpack.c.l.b16 %v675
      %v1287 = vunpack.c.l.b16 %v676
      %v1288 = vunpack.c.l.b16 %v677
      %v1289 = vunpack.c.l.b16 %v678
      %v1290 = vunpack.c.l.b16 %v679
      %v1291 = vunpack.c.l.b16 %v680
      %v1292 = vpack.c.b16 %v1245, %v1244
      %v1293 = vpack.c.b16 %v1247, %v1246
      %v1294 = vpack.c.b16 %v1249, %v1248
      %v1295 = vpack.c.b16 %v1251, %v1250
      %v1296 = vpack.c.b16 %v1253, %v1252
      %v1297 = vpack.c.b16 %v1255, %v1254
      %v1298 = vpack.c.b16 %v1257, %v1256
      %v1299 = vpack.c.b16 %v1259, %v1258
      %v1300 = vpack.c.b16 %v1261, %v1260
      %v1301 = vpack.c.b16 %v1263, %v1262
      %v1302 = vpack.c.b16 %v1265, %v1264
      %v1303 = vpack.c.b16 %v1267, %v1266
      %v1304 = vpack.c.b16 %v1269, %v1268
      %v1305 = vpack.c.b16 %v1271, %v1270
      %v1306 = vpack.c.b16 %v1273, %v1272
      %v1307 = vpack.c.b16 %v1275, %v1274
      %v1308 = vpack.c.b16 %v1277, %v1276
      %v1309 = vpack.c.b16 %v1279, %v1278
      %v1310 = vpack.c.b16 %v1281, %v1280
      %v1311 = vpack.c.b16 %v1283, %v1282
      %v1312 = vpack.c.b16 %v1285, %v1284
      %v1313 = vpack.c.b16 %v1287, %v1286
      %v1314 = vpack.c.b16 %v1289, %v1288
      %v1315 = vpack.c.b16 %v1291, %v1290
      %1340 = vmatprep.subr.bf16.mxu0 0
      %1341 = vmatpush1.bf16.msra.mxu0 %v1292
      %1342 = vmatprep.subr.bf16.mxu0 0
      %1343 = vmatpush1.bf16.msra.mxu0 %v1293
      %1344 = vmatprep.subr.bf16.mxu0 0
      %1345 = vmatpush1.bf16.msra.mxu0 %v1294
      %1346 = vmatprep.subr.bf16.mxu0 0
      %1347 = vmatpush1.bf16.msra.mxu0 %v1295
      %1348 = vmatprep.subr.bf16.mxu0 0
      %1349 = vmatpush1.bf16.msra.mxu0 %v1296
      %1350 = vmatprep.subr.bf16.mxu0 0
      %1351 = vmatpush1.bf16.msra.mxu0 %v1297
      %1352 = vmatprep.subr.bf16.mxu0 0
      %1353 = vmatpush1.bf16.msra.mxu0 %v1298
      %1354 = vmatprep.subr.bf16.mxu0 0
      %1355 = vmatpush1.bf16.msra.mxu0 %v1299
      %1356 = vmatprep.subr.bf16.mxu0 0
      %1357 = vmatpush1.bf16.msra.mxu0 %v1300
      %1358 = vmatprep.subr.bf16.mxu0 0
      %1359 = vmatpush1.bf16.msra.mxu0 %v1301
      %1360 = vmatprep.subr.bf16.mxu0 0
      %1361 = vmatpush1.bf16.msra.mxu0 %v1302
      %1362 = vmatprep.subr.bf16.mxu0 0
      %1363 = vmatpush1.bf16.msra.mxu0 %v1303
      %1364 = vmatprep.subr.bf16.mxu0 0
      %1365 = vmatpush1.bf16.msra.mxu0 %v1304
      %1366 = vmatprep.subr.bf16.mxu0 0
      %1367 = vmatpush1.bf16.msra.mxu0 %v1305
      %1368 = vmatprep.subr.bf16.mxu0 0
      %1369 = vmatpush1.bf16.msra.mxu0 %v1306
      %1370 = vmatprep.subr.bf16.mxu0 0
      %1371 = vmatpush1.bf16.msra.mxu0 %v1307
      %1372 = vmatprep.mubr.bf16.mxu0 %v616
      %1373 = vmatmul.mubr.bf16.gmra.mrb[0].mxu0 %v615
      %v1374 = vpop.f32.mrb[0].mxu0
      %v1375 = vadd.f32 %v1070, %v1374
      %v1376 = vpop.f32.mrb[0].mxu0
      %v1377 = vpop.f32.mrb[0].mxu0
      %v1378 = vadd.f32 %v1073, %v1377
      %v1379 = vpop.f32.mrb[0].mxu0
      %1380 = vmatprep.mubr.bf16.mxu0 %v617
      %1381 = vmatmul.mubr.bf16.gmra.mrb[0].mxu0 %v616
      %v1382 = vpop.f32.mrb[0].mxu0
      %v1383 = vadd.f32 %v1078, %v1382
      %v1384 = vpop.f32.mrb[0].mxu0
      %v1385 = vpop.f32.mrb[0].mxu0
      %v1386 = vadd.f32 %v1081, %v1385
      %v1387 = vpop.f32.mrb[0].mxu0
      %1388 = vmatprep.mubr.bf16.mxu0 %v618
      %1389 = vmatmul.mubr.bf16.gmra.mrb[0].mxu0 %v617
      %v1390 = vpop.f32.mrb[0].mxu0
      %v1391 = vadd.f32 %v1086, %v1390
      %v1392 = vpop.f32.mrb[0].mxu0
      %v1393 = vpop.f32.mrb[0].mxu0
      %v1394 = vadd.f32 %v1089, %v1393
      %v1395 = vpop.f32.mrb[0].mxu0
      %1396 = vmatprep.mubr.bf16.mxu0 %v619
      %1397 = vmatmul.mubr.bf16.gmra.mrb[0].mxu0 %v618
      %v1398 = vpop.f32.mrb[0].mxu0
      %v1399 = vadd.f32 %v1094, %v1398
      %v1400 = vpop.f32.mrb[0].mxu0
      %v1401 = vpop.f32.mrb[0].mxu0
      %v1402 = vadd.f32 %v1097, %v1401
      %v1403 = vpop.f32.mrb[0].mxu0
      %1404 = vmatprep.mubr.bf16.mxu0 %v620
      %1405 = vmatmul.mubr.bf16.gmra.mrb[0].mxu0 %v619
      %v1406 = vpop.f32.mrb[0].mxu0
      %v1407 = vadd.f32 %v1102, %v1406
      %v1408 = vpop.f32.mrb[0].mxu0
      %v1409 = vpop.f32.mrb[0].mxu0
      %v1410 = vadd.f32 %v1105, %v1409
      %v1411 = vpop.f32.mrb[0].mxu0
      %1412 = vmatprep.mubr.bf16.mxu0 %v621
      %1413 = vmatmul.mubr.bf16.gmra.mrb[0].mxu0 %v620
      %v1414 = vpop.f32.mrb[0].mxu0
      %v1415 = vadd.f32 %v1110, %v1414
      %v1416 = vpop.f32.mrb[0].mxu0
      %v1417 = vpop.f32.mrb[0].mxu0
      %v1418 = vadd.f32 %v1113, %v1417
      %v1419 = vpop.f32.mrb[0].mxu0
      %1420 = vmatprep.mubr.bf16.mxu0 %v622
      %1421 = vmatmul.mubr.bf16.gmra.mrb[0].mxu0 %v621
      %v1422 = vpop.f32.mrb[0].mxu0
      %v1423 = vadd.f32 %v1118, %v1422
      %v1424 = vpop.f32.mrb[0].mxu0
      %v1425 = vpop.f32.mrb[0].mxu0
      %v1426 = vadd.f32 %v1121, %v1425
      %v1427 = vpop.f32.mrb[0].mxu0
      %1428 = vmatprep.mubr.bf16.mxu0 %v623
      %1429 = vmatmul.mubr.bf16.gmra.mrb[0].mxu0 %v622
      %v1430 = vpop.f32.mrb[0].mxu0
      %v1431 = vadd.f32 %v1126, %v1430
      %v1432 = vpop.f32.mrb[0].mxu0
      %v1433 = vpop.f32.mrb[0].mxu0
      %v1434 = vadd.f32 %v1129, %v1433
      %v1435 = vpop.f32.mrb[0].mxu0
      %1436 = vmatprep.mubr.bf16.mxu0 %v624
      %1437 = vmatmul.mubr.bf16.gmra.mrb[0].mxu0 %v623
      %v1438 = vpop.f32.mrb[0].mxu0
      %v1439 = vadd.f32 %v1134, %v1438
      %v1440 = vpop.f32.mrb[0].mxu0
      %v1441 = vpop.f32.mrb[0].mxu0
      %v1442 = vadd.f32 %v1137, %v1441
      %v1443 = vpop.f32.mrb[0].mxu0
      %1444 = vmatprep.mubr.bf16.mxu0 %v625
      %1445 = vmatmul.mubr.bf16.gmra.mrb[0].mxu0 %v624
      %v1446 = vpop.f32.mrb[0].mxu0
      %v1447 = vadd.f32 %v1142, %v1446
      %v1448 = vpop.f32.mrb[0].mxu0
      %v1449 = vpop.f32.mrb[0].mxu0
      %v1450 = vadd.f32 %v1145, %v1449
      %v1451 = vpop.f32.mrb[0].mxu0
      %1452 = vmatprep.mubr.bf16.mxu0 %v626
      %1453 = vmatmul.mubr.bf16.gmra.mrb[0].mxu0 %v625
      %v1454 = vpop.f32.mrb[0].mxu0
      %v1455 = vadd.f32 %v1150, %v1454
      %v1456 = vpop.f32.mrb[0].mxu0
      %v1457 = vpop.f32.mrb[0].mxu0
      %v1458 = vadd.f32 %v1153, %v1457
      %v1459 = vpop.f32.mrb[0].mxu0
      %1460 = vmatprep.mubr.bf16.mxu0 %v627
      %1461 = vmatmul.mubr.bf16.gmra.mrb[0].mxu0 %v626
      %v1462 = vpop.f32.mrb[0].mxu0
      %v1463 = vadd.f32 %v1158, %v1462
      %v1464 = vpop.f32.mrb[0].mxu0
      %v1465 = vpop.f32.mrb[0].mxu0
      %v1466 = vadd.f32 %v1161, %v1465
      %v1467 = vpop.f32.mrb[0].mxu0
      %1468 = vmatprep.mubr.bf16.mxu0 %v628
      %1469 = vmatmul.mubr.bf16.gmra.mrb[0].mxu0 %v627
      %v1470 = vpop.f32.mrb[0].mxu0
      %v1471 = vadd.f32 %v1166, %v1470
      %v1472 = vpop.f32.mrb[0].mxu0
      %v1473 = vpop.f32.mrb[0].mxu0
      %v1474 = vadd.f32 %v1169, %v1473
      %v1475 = vpop.f32.mrb[0].mxu0
      %1476 = vmatprep.mubr.bf16.mxu0 %v629
      %1477 = vmatmul.mubr.bf16.gmra.mrb[0].mxu0 %v628
      %v1478 = vpop.f32.mrb[0].mxu0
      %v1479 = vadd.f32 %v1174, %v1478
      %v1480 = vpop.f32.mrb[0].mxu0
      %v1481 = vpop.f32.mrb[0].mxu0
      %v1482 = vadd.f32 %v1177, %v1481
      %v1483 = vpop.f32.mrb[0].mxu0
      %1484 = vmatprep.mubr.bf16.mxu0 %v630
      %1485 = vmatmul.mubr.bf16.gmra.mrb[0].mxu0 %v629
      %v1486 = vpop.f32.mrb[0].mxu0
      %v1487 = vadd.f32 %v1182, %v1486
      %v1488 = vpop.f32.mrb[0].mxu0
      %v1489 = vpop.f32.mrb[0].mxu0
      %v1490 = vadd.f32 %v1185, %v1489
      %v1491 = vpop.f32.mrb[0].mxu0
      %1492 = vmatprep.mubr.bf16.mxu0 %v631
      %1493 = vmatmul.mubr.bf16.gmra.mrb[0].mxu0 %v630
      %v1494 = vpop.f32.mrb[0].mxu0
      %v1495 = vadd.f32 %v1190, %v1494
      %v1496 = vpop.f32.mrb[0].mxu0
      %v1497 = vpop.f32.mrb[0].mxu0
      %v1498 = vadd.f32 %v1193, %v1497
      %v1499 = vpop.f32.mrb[0].mxu0
      %1500 = vdwg.mxu0
      %1501 = vmatprep.subr.bf16.mxu0 0
      %1502 = vmatpush1.bf16.msra.mxu0 %v1308
      %1503 = vmatprep.subr.bf16.mxu0 0
      %1504 = vmatpush1.bf16.msra.mxu0 %v1309
      %1505 = vmatprep.subr.bf16.mxu0 0
      %1506 = vmatpush1.bf16.msra.mxu0 %v1310
      %1507 = vmatprep.subr.bf16.mxu0 0
      %1508 = vmatpush1.bf16.msra.mxu0 %v1311
      %1509 = vmatprep.subr.bf16.mxu0 0
      %1510 = vmatpush1.bf16.msra.mxu0 %v1312
      %1511 = vmatprep.subr.bf16.mxu0 0
      %1512 = vmatpush1.bf16.msra.mxu0 %v1313
      %1513 = vmatprep.subr.bf16.mxu0 0
      %1514 = vmatpush1.bf16.msra.mxu0 %v1314
      %1515 = vmatprep.subr.bf16.mxu0 0
      %1516 = vmatpush1.bf16.msra.mxu0 %v1315
      %1517 = vmatprep.subr.bf16.mxu0 0
      %1518 = vmatpush1.bf16.msra.mxu0 0
      %1519 = vmatprep.subr.bf16.mxu0 0
      %1520 = vmatpush1.bf16.msra.mxu0 0
      %1521 = vmatprep.subr.bf16.mxu0 0
      %1522 = vmatpush1.bf16.msra.mxu0 0
      %1523 = vmatprep.subr.bf16.mxu0 0
      %1524 = vmatpush1.bf16.msra.mxu0 0
      %1525 = vmatprep.subr.bf16.mxu0 0
      %1526 = vmatpush1.bf16.msra.mxu0 0
      %1527 = vmatprep.subr.bf16.mxu0 0
      %1528 = vmatpush1.bf16.msra.mxu0 0
      %1529 = vmatprep.subr.bf16.mxu0 0
      %1530 = vmatpush1.bf16.msra.mxu0 0
      %1531 = vmatprep.subr.bf16.mxu0 0
      %1532 = vmatpush1.bf16.msra.mxu0 0
      %1533 = vmatprep.mubr.bf16.mxu0 0
      %1534 = vmatmul.mubr.bf16.gmra.mrb[0].mxu0 %v617
      %v1535 = vpop.f32.mrb[0].mxu0
      %v1536 = vadd.f32 %v1375, %v1535
      %v1537 = vpop.f32.mrb[0].mxu0
      %v1538 = vpop.f32.mrb[0].mxu0
      %v1539 = vadd.f32 %v1378, %v1538
      %v1540 = vpop.f32.mrb[0].mxu0
      %1541 = vmatprep.mubr.bf16.mxu0 0
      %1542 = vmatmul.mubr.bf16.gmra.mrb[0].mxu0 %v618
      %v1543 = vpop.f32.mrb[0].mxu0
      %v1544 = vadd.f32 %v1383, %v1543
      %v1545 = vpop.f32.mrb[0].mxu0
      %v1546 = vpop.f32.mrb[0].mxu0
      %v1547 = vadd.f32 %v1386, %v1546
      %v1548 = vpop.f32.mrb[0].mxu0
      %1549 = vmatprep.mubr.bf16.mxu0 0
      %1550 = vmatmul.mubr.bf16.gmra.mrb[0].mxu0 %v619
      %v1551 = vpop.f32.mrb[0].mxu0
      %v1552 = vadd.f32 %v1391, %v1551
      %v1553 = vpop.f32.mrb[0].mxu0
      %v1554 = vpop.f32.mrb[0].mxu0
      %v1555 = vadd.f32 %v1394, %v1554
      %v1556 = vpop.f32.mrb[0].mxu0
      %1557 = vmatprep.mubr.bf16.mxu0 0
      %1558 = vmatmul.mubr.bf16.gmra.mrb[0].mxu0 %v620
      %v1559 = vpop.f32.mrb[0].mxu0
      %v1560 = vadd.f32 %v1399, %v1559
      %v1561 = vpop.f32.mrb[0].mxu0
      %v1562 = vpop.f32.mrb[0].mxu0
      %v1563 = vadd.f32 %v1402, %v1562
      %v1564 = vpop.f32.mrb[0].mxu0
      %1565 = vmatprep.mubr.bf16.mxu0 0
      %1566 = vmatmul.mubr.bf16.gmra.mrb[0].mxu0 %v621
      %v1567 = vpop.f32.mrb[0].mxu0
      %v1568 = vadd.f32 %v1407, %v1567
      %v1569 = vpop.f32.mrb[0].mxu0
      %v1570 = vpop.f32.mrb[0].mxu0
      %v1571 = vadd.f32 %v1410, %v1570
      %v1572 = vpop.f32.mrb[0].mxu0
      %1573 = vmatprep.mubr.bf16.mxu0 0
      %1574 = vmatmul.mubr.bf16.gmra.mrb[0].mxu0 %v622
      %v1575 = vpop.f32.mrb[0].mxu0
      %v1576 = vadd.f32 %v1415, %v1575
      %v1577 = vpop.f32.mrb[0].mxu0
      %v1578 = vpop.f32.mrb[0].mxu0
      %v1579 = vadd.f32 %v1418, %v1578
      %v1580 = vpop.f32.mrb[0].mxu0
      %1581 = vmatprep.mubr.bf16.mxu0 0
      %1582 = vmatmul.mubr.bf16.gmra.mrb[0].mxu0 %v623
      %v1583 = vpop.f32.mrb[0].mxu0
      %v1584 = vadd.f32 %v1423, %v1583
      %v1585 = vpop.f32.mrb[0].mxu0
      %v1586 = vpop.f32.mrb[0].mxu0
      %v1587 = vadd.f32 %v1426, %v1586
      %v1588 = vpop.f32.mrb[0].mxu0
      %1589 = vmatprep.mubr.bf16.mxu0 0
      %1590 = vmatmul.mubr.bf16.gmra.mrb[0].mxu0 %v624
      %v1591 = vpop.f32.mrb[0].mxu0
      %v1592 = vadd.f32 %v1431, %v1591
      %v1593 = vpop.f32.mrb[0].mxu0
      %v1594 = vpop.f32.mrb[0].mxu0
      %v1595 = vadd.f32 %v1434, %v1594
      %v1596 = vpop.f32.mrb[0].mxu0
      %1597 = vmatprep.mubr.bf16.mxu0 0
      %1598 = vmatmul.mubr.bf16.gmra.mrb[0].mxu0 %v625
      %v1599 = vpop.f32.mrb[0].mxu0
      %v1600 = vadd.f32 %v1439, %v1599
      %v1601 = vpop.f32.mrb[0].mxu0
      %v1602 = vpop.f32.mrb[0].mxu0
      %v1603 = vadd.f32 %v1442, %v1602
      %v1604 = vpop.f32.mrb[0].mxu0
      %1605 = vmatprep.mubr.bf16.mxu0 0
      %1606 = vmatmul.mubr.bf16.gmra.mrb[0].mxu0 %v626
      %v1607 = vpop.f32.mrb[0].mxu0
      %v1608 = vadd.f32 %v1447, %v1607
      %v1609 = vpop.f32.mrb[0].mxu0
      %v1610 = vpop.f32.mrb[0].mxu0
      %v1611 = vadd.f32 %v1450, %v1610
      %v1612 = vpop.f32.mrb[0].mxu0
      %1613 = vmatprep.mubr.bf16.mxu0 0
      %1614 = vmatmul.mubr.bf16.gmra.mrb[0].mxu0 %v627
      %v1615 = vpop.f32.mrb[0].mxu0
      %v1616 = vadd.f32 %v1455, %v1615
      %v1617 = vpop.f32.mrb[0].mxu0
      %v1618 = vpop.f32.mrb[0].mxu0
      %v1619 = vadd.f32 %v1458, %v1618
      %v1620 = vpop.f32.mrb[0].mxu0
      %1621 = vmatprep.mubr.bf16.mxu0 0
      %1622 = vmatmul.mubr.bf16.gmra.mrb[0].mxu0 %v628
      %v1623 = vpop.f32.mrb[0].mxu0
      %v1624 = vadd.f32 %v1463, %v1623
      %v1625 = vpop.f32.mrb[0].mxu0
      %v1626 = vpop.f32.mrb[0].mxu0
      %v1627 = vadd.f32 %v1466, %v1626
      %v1628 = vpop.f32.mrb[0].mxu0
      %1629 = vmatprep.mubr.bf16.mxu0 0
      %1630 = vmatmul.mubr.bf16.gmra.mrb[0].mxu0 %v629
      %v1631 = vpop.f32.mrb[0].mxu0
      %v1632 = vadd.f32 %v1471, %v1631
      %v1633 = vpop.f32.mrb[0].mxu0
      %v1634 = vpop.f32.mrb[0].mxu0
      %v1635 = vadd.f32 %v1474, %v1634
      %v1636 = vpop.f32.mrb[0].mxu0
      %1637 = vmatprep.mubr.bf16.mxu0 0
      %1638 = vmatmul.mubr.bf16.gmra.mrb[0].mxu0 %v630
      %v1639 = vpop.f32.mrb[0].mxu0
      %v1640 = vadd.f32 %v1479, %v1639
      %v1641 = vpop.f32.mrb[0].mxu0
      %v1642 = vpop.f32.mrb[0].mxu0
      %v1643 = vadd.f32 %v1482, %v1642
      %v1644 = vpop.f32.mrb[0].mxu0
      %1645 = vmatprep.mubr.bf16.mxu0 0
      %1646 = vmatmul.mubr.bf16.gmra.mrb[0].mxu0 %v631
      %v1647 = vpop.f32.mrb[0].mxu0
      %v1648 = vadd.f32 %v1487, %v1647
      %v1649 = vpop.f32.mrb[0].mxu0
      %v1650 = vpop.f32.mrb[0].mxu0
      %v1651 = vadd.f32 %v1490, %v1650
      %v1652 = vpop.f32.mrb[0].mxu0
      %1653 = vmatprep.mubr.bf16.mxu0 0
      %1654 = vmatmul.mubr.bf16.gmra.mrb[0].mxu0 %v632
      %v1655 = vpop.f32.mrb[0].mxu0
      %v1656 = vadd.f32 %v1495, %v1655
      %v1657 = vpop.f32.mrb[0].mxu0
      %v1658 = vpop.f32.mrb[0].mxu0
      %v1659 = vadd.f32 %v1498, %v1658
      %v1660 = vpop.f32.mrb[0].mxu0
      %1661 = vdwg.mxu0
      %v1662 = vld [vmem:[#allocation2] sm:$0x80]
      %v1663 = vld [vmem:[#allocation2 + $0x8] sm:$0x80]
      %v1664 = vld [vmem:[#allocation2 + $0x10] sm:$0x80]
      %v1665 = vld [vmem:[#allocation2 + $0x18] sm:$0x80]
      %v1666 = vld [vmem:[#allocation2 + $0x20] sm:$0x80]
      %v1667 = vld [vmem:[#allocation2 + $0x28] sm:$0x80]
      %v1668 = vld [vmem:[#allocation2 + $0x30] sm:$0x80]
      %v1669 = vld [vmem:[#allocation2 + $0x38] sm:$0x80]
      %v1670 = vld [vmem:[#allocation2 + $0x40] sm:$0x80]
      %v1671 = vld [vmem:[#allocation2 + $0x48] sm:$0x80]
      %v1672 = vld [vmem:[#allocation2 + $0x50] sm:$0x80]
      %v1673 = vld [vmem:[#allocation2 + $0x58] sm:$0x80]
      %v1674 = vld [vmem:[#allocation2 + $0x60] sm:$0x80]
      %v1675 = vld [vmem:[#allocation2 + $0x68] sm:$0x80]
      %v1676 = vld [vmem:[#allocation2 + $0x70] sm:$0x80]
      %v1677 = vld [vmem:[#allocation2 + $0x78] sm:$0x80]
      %v1678 = vld [vmem:[#allocation2 + $0x80] sm:$0x80]
      %v1679 = vld [vmem:[#allocation2 + $0x88] sm:$0x80]
      %v1680 = vrot.slane %v472, 1
      %v1681 = vor.u32 %v469, %v1680
      %v1682 = vrot.slane %v479, 1
      %v1683 = vor.u32 %v476, %v1682
      %v1684 = vrot.slane %v486, 1
      %v1685 = vor.u32 %v483, %v1684
      %v1686 = vrot.slane %v493, 1
      %v1687 = vor.u32 %v490, %v1686
      %v1688 = vrot.slane %v500, 1
      %v1689 = vor.u32 %v497, %v1688
      %v1690 = vrot.slane %v507, 1
      %v1691 = vor.u32 %v504, %v1690
      %v1692 = vrot.slane %v514, 1
      %v1693 = vor.u32 %v511, %v1692
      %v1694 = vrot.slane %v521, 1
      %v1695 = vor.u32 %v518, %v1694
      %v1696 = vrot.slane %v528, 1
      %v1697 = vor.u32 %v525, %v1696
      %v1698 = vrot.slane %v535, 1
      %v1699 = vor.u32 %v532, %v1698
      %v1700 = vrot.slane %v542, 1
      %v1701 = vor.u32 %v539, %v1700
      %v1702 = vrot.slane %v549, 1
      %v1703 = vor.u32 %v546, %v1702
      %v1704 = vrot.slane %v556, 1
      %v1705 = vor.u32 %v553, %v1704
      %v1706 = vrot.slane %v563, 1
      %v1707 = vor.u32 %v560, %v1706
      %v1708 = vrot.slane %v570, 1
      %v1709 = vor.u32 %v567, %v1708
      %v1710 = vrot.slane %v577, 1
      %v1711 = vor.u32 %v574, %v1710
      %v1712 = vrot.slane %v584, 1
      %v1713 = vor.u32 %v581, %v1712
      %v1714 = vrot.slane %v591, 1
      %v1715 = vor.u32 %v588, %v1714
      %v1735 = vshll.u32 %v1662, 16
      %v1738 = vshll.u32 %v1663, 16
      %v1741 = vshll.u32 %v1664, 16
      %v1744 = vshll.u32 %v1665, 16
      %v1747 = vshll.u32 %v1666, 16
      %v1750 = vshll.u32 %v1667, 16
      %v1753 = vshll.u32 %v1668, 16
      %v1756 = vshll.u32 %v1669, 16
      %v1759 = vshll.u32 %v1670, 16
      %v1762 = vshll.u32 %v1671, 16
      %v1765 = vshll.u32 %v1672, 16
      %v1768 = vshll.u32 %v1673, 16
      %v1771 = vshll.u32 %v1674, 16
      %v1774 = vshll.u32 %v1675, 16
      %v1777 = vshll.u32 %v1676, 16
      %v1780 = vshll.u32 %v1677, 16
      %v1783 = vshll.u32 %v1678, 16
      %v1786 = vshll.u32 %v1679, 16
      %vm1806 = vcmask 1047552
      %vm1807 = vsmask.f32 7424
      %vm1808 = vmand %vm1806, %vm1807
      %v1809 = vsel %vm1808, %v1681, %v1735
      %v1810 = vsel %vm1808, %v1683, %v1738
      %v1811 = vsel %vm1808, %v1685, %v1741
      %v1812 = vsel %vm1808, %v1687, %v1744
      %v1813 = vsel %vm1808, %v1689, %v1747
      %v1814 = vsel %vm1808, %v1691, %v1750
      %v1815 = vsel %vm1808, %v1693, %v1753
      %v1816 = vsel %vm1808, %v1695, %v1756
      %v1817 = vsel %vm1808, %v1697, %v1759
      %v1818 = vsel %vm1808, %v1699, %v1762
      %v1819 = vsel %vm1808, %v1701, %v1765
      %v1820 = vsel %vm1808, %v1703, %v1768
      %v1821 = vsel %vm1808, %v1705, %v1771
      %v1822 = vsel %vm1808, %v1707, %v1774
      %v1823 = vsel %vm1808, %v1709, %v1777
      %v1824 = vsel %vm1808, %v1711, %v1780
      %v1825 = vsel %vm1808, %v1713, %v1783
      %v1826 = vsel %vm1808, %v1715, %v1786
      %s1827 = scalar_lea.vmem %s1, 384
      %v1828 = vld [vmem:[%s1827] sm:$0xf]
      %v1829 = vld [vmem:[%s1827 + $0x4] sm:$0xf]
      %v1830 = vld [vmem:[%s1827 + $0x8] sm:$0xf]
      %v1831 = vld [vmem:[%s1827 + $0xc] sm:$0xf]
      %v1832 = vld [vmem:[%s1827 + $0x10] sm:$0xf]
      %v1833 = vld [vmem:[%s1827 + $0x14] sm:$0xf]
      %v1834 = vld [vmem:[%s1827 + $0x18] sm:$0xf]
      %v1835 = vld [vmem:[%s1827 + $0x1c] sm:$0xf]
      %v1836 = vld [vmem:[%s1827 + $0x20] sm:$0xf]
      %v1837 = vld [vmem:[%s1827 + $0x24] sm:$0xf]
      %v1838 = vld [vmem:[%s1827 + $0x28] sm:$0xf]
      %v1839 = vld [vmem:[%s1827 + $0x2c] sm:$0xf]
      %v1840 = vld [vmem:[%s1827 + $0x30] sm:$0xf]
      %v1841 = vld [vmem:[%s1827 + $0x34] sm:$0xf]
      %v1842 = vld [vmem:[%s1827 + $0x38] sm:$0xf]
      %v1843 = vld [vmem:[%s1827 + $0x3c] sm:$0xf]
      %v1844 = vld [vmem:[%s1827 + $0x40] sm:$0xf]
      %v1845 = vld [vmem:[%s1827 + $0x44] sm:$0xf]
      %v1846 = vld [vmem:[%s1827 + $0x48] sm:$0xf]
      %v1847 = vld [vmem:[%s1827 + $0x4c] sm:$0xf]
      %v1848 = vld [vmem:[%s1827 + $0x50] sm:$0xf]
      %v1849 = vld [vmem:[%s1827 + $0x54] sm:$0xf]
      %v1850 = vld [vmem:[%s1827 + $0x58] sm:$0xf]
      %v1851 = vld [vmem:[%s1827 + $0x5c] sm:$0xf]
      %v1852 = vld [vmem:[%s1827 + $0x60] sm:$0xf]
      %v1853 = vld [vmem:[%s1827 + $0x64] sm:$0xf]
      %v1854 = vld [vmem:[%s1827 + $0x68] sm:$0xf]
      %v1855 = vld [vmem:[%s1827 + $0x6c] sm:$0xf]
      %v1856 = vld [vmem:[%s1827 + $0x70] sm:$0xf]
      %v1857 = vld [vmem:[%s1827 + $0x74] sm:$0xf]
      %v1858 = vld [vmem:[%s1827 + $0x78] sm:$0xf]
      %v1859 = vld [vmem:[%s1827 + $0x7c] sm:$0xf]
      %v1860 = vld [vmem:[%s1827 + $0x80] sm:$0xf]
      %v1861 = vld [vmem:[%s1827 + $0x84] sm:$0xf]
      %v1862 = vld [vmem:[%s1827 + $0x88] sm:$0xf]
      %v1863 = vld [vmem:[%s1827 + $0x8c] sm:$0xf]
      %v1864 = vld [vmem:[%s1827 + $0x90] sm:$0xf]
      %v1865 = vld [vmem:[%s1827 + $0x94] sm:$0xf]
      %v1866 = vld [vmem:[%s1827 + $0x98] sm:$0xf]
      %v1867 = vld [vmem:[%s1827 + $0x9c] sm:$0xf]
      %v1868 = vld [vmem:[%s1827 + $0xa0] sm:$0xf]
      %v1869 = vld [vmem:[%s1827 + $0xa4] sm:$0xf]
      %v1870 = vld [vmem:[%s1827 + $0xa8] sm:$0xf]
      %v1871 = vld [vmem:[%s1827 + $0xac] sm:$0xf]
      %v1872 = vld [vmem:[%s1827 + $0xb0] sm:$0xf]
      %v1873 = vld [vmem:[%s1827 + $0xb4] sm:$0xf]
      %v1874 = vld [vmem:[%s1827 + $0xb8] sm:$0xf]
      %v1875 = vld [vmem:[%s1827 + $0xbc] sm:$0xf]
      %v1924 = vunpack.c.l.b16 %v1828
      %v1925 = vunpack.c.l.b16 %v1829
      %v1926 = vunpack.c.l.b16 %v1830
      %v1927 = vunpack.c.l.b16 %v1831
      %v1928 = vunpack.c.l.b16 %v1832
      %v1929 = vunpack.c.l.b16 %v1833
      %v1930 = vunpack.c.l.b16 %v1834
      %v1931 = vunpack.c.l.b16 %v1835
      %v1932 = vunpack.c.l.b16 %v1836
      %v1933 = vunpack.c.l.b16 %v1837
      %v1934 = vunpack.c.l.b16 %v1838
      %v1935 = vunpack.c.l.b16 %v1839
      %v1936 = vunpack.c.l.b16 %v1840
      %v1937 = vunpack.c.l.b16 %v1841
      %v1938 = vunpack.c.l.b16 %v1842
      %v1939 = vunpack.c.l.b16 %v1843
      %v1940 = vunpack.c.l.b16 %v1844
      %v1941 = vunpack.c.l.b16 %v1845
      %v1942 = vunpack.c.l.b16 %v1846
      %v1943 = vunpack.c.l.b16 %v1847
      %v1944 = vunpack.c.l.b16 %v1848
      %v1945 = vunpack.c.l.b16 %v1849
      %v1946 = vunpack.c.l.b16 %v1850
      %v1947 = vunpack.c.l.b16 %v1851
      %v1948 = vunpack.c.l.b16 %v1852
      %v1949 = vunpack.c.l.b16 %v1853
      %v1950 = vunpack.c.l.b16 %v1854
      %v1951 = vunpack.c.l.b16 %v1855
      %v1952 = vunpack.c.l.b16 %v1856
      %v1953 = vunpack.c.l.b16 %v1857
      %v1954 = vunpack.c.l.b16 %v1858
      %v1955 = vunpack.c.l.b16 %v1859
      %v1956 = vunpack.c.l.b16 %v1860
      %v1957 = vunpack.c.l.b16 %v1861
      %v1958 = vunpack.c.l.b16 %v1862
      %v1959 = vunpack.c.l.b16 %v1863
      %v1960 = vunpack.c.l.b16 %v1864
      %v1961 = vunpack.c.l.b16 %v1865
      %v1962 = vunpack.c.l.b16 %v1866
      %v1963 = vunpack.c.l.b16 %v1867
      %v1964 = vunpack.c.l.b16 %v1868
      %v1965 = vunpack.c.l.b16 %v1869
      %v1966 = vunpack.c.l.b16 %v1870
      %v1967 = vunpack.c.l.b16 %v1871
      %v1968 = vunpack.c.l.b16 %v1872
      %v1969 = vunpack.c.l.b16 %v1873
      %v1970 = vunpack.c.l.b16 %v1874
      %v1971 = vunpack.c.l.b16 %v1875
      %v1972 = vpack.c.b16 %v1925, %v1924
      %v1973 = vpack.c.b16 %v1927, %v1926
      %v1974 = vpack.c.b16 %v1929, %v1928
      %v1975 = vpack.c.b16 %v1931, %v1930
      %v1976 = vpack.c.b16 %v1933, %v1932
      %v1977 = vpack.c.b16 %v1935, %v1934
      %v1978 = vpack.c.b16 %v1937, %v1936
      %v1979 = vpack.c.b16 %v1939, %v1938
      %v1980 = vpack.c.b16 %v1941, %v1940
      %v1981 = vpack.c.b16 %v1943, %v1942
      %v1982 = vpack.c.b16 %v1945, %v1944
      %v1983 = vpack.c.b16 %v1947, %v1946
      %v1984 = vpack.c.b16 %v1949, %v1948
      %v1985 = vpack.c.b16 %v1951, %v1950
      %v1986 = vpack.c.b16 %v1953, %v1952
      %v1987 = vpack.c.b16 %v1955, %v1954
      %v1988 = vpack.c.b16 %v1957, %v1956
      %v1989 = vpack.c.b16 %v1959, %v1958
      %v1990 = vpack.c.b16 %v1961, %v1960
      %v1991 = vpack.c.b16 %v1963, %v1962
      %v1992 = vpack.c.b16 %v1965, %v1964
      %v1993 = vpack.c.b16 %v1967, %v1966
      %v1994 = vpack.c.b16 %v1969, %v1968
      %v1995 = vpack.c.b16 %v1971, %v1970
      %2020 = vmatprep.subr.bf16.mxu0 0
      %2021 = vmatpush1.bf16.msra.mxu0 %v1972
      %2022 = vmatprep.subr.bf16.mxu0 0
      %2023 = vmatpush1.bf16.msra.mxu0 %v1973
      %2024 = vmatprep.subr.bf16.mxu0 0
      %2025 = vmatpush1.bf16.msra.mxu0 %v1974
      %2026 = vmatprep.subr.bf16.mxu0 0
      %2027 = vmatpush1.bf16.msra.mxu0 %v1975
      %2028 = vmatprep.subr.bf16.mxu0 0
      %2029 = vmatpush1.bf16.msra.mxu0 %v1976
      %2030 = vmatprep.subr.bf16.mxu0 0
      %2031 = vmatpush1.bf16.msra.mxu0 %v1977
      %2032 = vmatprep.subr.bf16.mxu0 0
      %2033 = vmatpush1.bf16.msra.mxu0 %v1978
      %2034 = vmatprep.subr.bf16.mxu0 0
      %2035 = vmatpush1.bf16.msra.mxu0 %v1979
      %2036 = vmatprep.subr.bf16.mxu0 0
      %2037 = vmatpush1.bf16.msra.mxu0 %v1980
      %2038 = vmatprep.subr.bf16.mxu0 0
      %2039 = vmatpush1.bf16.msra.mxu0 %v1981
      %2040 = vmatprep.subr.bf16.mxu0 0
      %2041 = vmatpush1.bf16.msra.mxu0 %v1982
      %2042 = vmatprep.subr.bf16.mxu0 0
      %2043 = vmatpush1.bf16.msra.mxu0 %v1983
      %2044 = vmatprep.subr.bf16.mxu0 0
      %2045 = vmatpush1.bf16.msra.mxu0 %v1984
      %2046 = vmatprep.subr.bf16.mxu0 0
      %2047 = vmatpush1.bf16.msra.mxu0 %v1985
      %2048 = vmatprep.subr.bf16.mxu0 0
      %2049 = vmatpush1.bf16.msra.mxu0 %v1986
      %2050 = vmatprep.subr.bf16.mxu0 0
      %2051 = vmatpush1.bf16.msra.mxu0 %v1987
      %2052 = vmatprep.mubr.bf16.mxu0 %v1810
      %2053 = vmatmul.mubr.bf16.gmra.mrb[0].mxu0 %v1809
      %v2054 = vpop.f32.mrb[0].mxu0
      %v2055 = vadd.f32 0.0, %v2054
      %v2056 = vpop.f32.mrb[0].mxu0
      %v2057 = vpop.f32.mrb[0].mxu0
      %v2058 = vadd.f32 0.0, %v2057
      %v2059 = vpop.f32.mrb[0].mxu0
      %2060 = vmatprep.mubr.bf16.mxu0 %v1811
      %2061 = vmatmul.mubr.bf16.gmra.mrb[0].mxu0 %v1810
      %v2062 = vpop.f32.mrb[0].mxu0
      %v2063 = vadd.f32 0.0, %v2062
      %v2064 = vpop.f32.mrb[0].mxu0
      %v2065 = vpop.f32.mrb[0].mxu0
      %v2066 = vadd.f32 0.0, %v2065
      %v2067 = vpop.f32.mrb[0].mxu0
      %2068 = vmatprep.mubr.bf16.mxu0 %v1812
      %2069 = vmatmul.mubr.bf16.gmra.mrb[0].mxu0 %v1811
      %v2070 = vpop.f32.mrb[0].mxu0
      %v2071 = vadd.f32 0.0, %v2070
      %v2072 = vpop.f32.mrb[0].mxu0
      %v2073 = vpop.f32.mrb[0].mxu0
      %v2074 = vadd.f32 0.0, %v2073
      %v2075 = vpop.f32.mrb[0].mxu0
      %2076 = vmatprep.mubr.bf16.mxu0 %v1813
      %2077 = vmatmul.mubr.bf16.gmra.mrb[0].mxu0 %v1812
      %v2078 = vpop.f32.mrb[0].mxu0
      %v2079 = vadd.f32 0.0, %v2078
      %v2080 = vpop.f32.mrb[0].mxu0
      %v2081 = vpop.f32.mrb[0].mxu0
      %v2082 = vadd.f32 0.0, %v2081
      %v2083 = vpop.f32.mrb[0].mxu0
      %2084 = vmatprep.mubr.bf16.mxu0 %v1814
      %2085 = vmatmul.mubr.bf16.gmra.mrb[0].mxu0 %v1813
      %v2086 = vpop.f32.mrb[0].mxu0
      %v2087 = vadd.f32 0.0, %v2086
      %v2088 = vpop.f32.mrb[0].mxu0
      %v2089 = vpop.f32.mrb[0].mxu0
      %v2090 = vadd.f32 0.0, %v2089
      %v2091 = vpop.f32.mrb[0].mxu0
      %2092 = vmatprep.mubr.bf16.mxu0 %v1815
      %2093 = vmatmul.mubr.bf16.gmra.mrb[0].mxu0 %v1814
      %v2094 = vpop.f32.mrb[0].mxu0
      %v2095 = vadd.f32 0.0, %v2094
      %v2096 = vpop.f32.mrb[0].mxu0
      %v2097 = vpop.f32.mrb[0].mxu0
      %v2098 = vadd.f32 0.0, %v2097
      %v2099 = vpop.f32.mrb[0].mxu0
      %2100 = vmatprep.mubr.bf16.mxu0 %v1816
      %2101 = vmatmul.mubr.bf16.gmra.mrb[0].mxu0 %v1815
      %v2102 = vpop.f32.mrb[0].mxu0
      %v2103 = vadd.f32 0.0, %v2102
      %v2104 = vpop.f32.mrb[0].mxu0
      %v2105 = vpop.f32.mrb[0].mxu0
      %v2106 = vadd.f32 0.0, %v2105
      %v2107 = vpop.f32.mrb[0].mxu0
      %2108 = vmatprep.mubr.bf16.mxu0 %v1817
      %2109 = vmatmul.mubr.bf16.gmra.mrb[0].mxu0 %v1816
      %v2110 = vpop.f32.mrb[0].mxu0
      %v2111 = vadd.f32 0.0, %v2110
      %v2112 = vpop.f32.mrb[0].mxu0
      %v2113 = vpop.f32.mrb[0].mxu0
      %v2114 = vadd.f32 0.0, %v2113
      %v2115 = vpop.f32.mrb[0].mxu0
      %2116 = vmatprep.mubr.bf16.mxu0 %v1818
      %2117 = vmatmul.mubr.bf16.gmra.mrb[0].mxu0 %v1817
      %v2118 = vpop.f32.mrb[0].mxu0
      %v2119 = vadd.f32 0.0, %v2118
      %v2120 = vpop.f32.mrb[0].mxu0
      %v2121 = vpop.f32.mrb[0].mxu0
      %v2122 = vadd.f32 0.0, %v2121
      %v2123 = vpop.f32.mrb[0].mxu0
      %2124 = vmatprep.mubr.bf16.mxu0 %v1819
      %2125 = vmatmul.mubr.bf16.gmra.mrb[0].mxu0 %v1818
      %v2126 = vpop.f32.mrb[0].mxu0
      %v2127 = vadd.f32 0.0, %v2126
      %v2128 = vpop.f32.mrb[0].mxu0
      %v2129 = vpop.f32.mrb[0].mxu0
      %v2130 = vadd.f32 0.0, %v2129
      %v2131 = vpop.f32.mrb[0].mxu0
      %2132 = vmatprep.mubr.bf16.mxu0 %v1820
      %2133 = vmatmul.mubr.bf16.gmra.mrb[0].mxu0 %v1819
      %v2134 = vpop.f32.mrb[0].mxu0
      %v2135 = vadd.f32 0.0, %v2134
      %v2136 = vpop.f32.mrb[0].mxu0
      %v2137 = vpop.f32.mrb[0].mxu0
      %v2138 = vadd.f32 0.0, %v2137
      %v2139 = vpop.f32.mrb[0].mxu0
      %2140 = vmatprep.mubr.bf16.mxu0 %v1821
      %2141 = vmatmul.mubr.bf16.gmra.mrb[0].mxu0 %v1820
      %v2142 = vpop.f32.mrb[0].mxu0
      %v2143 = vadd.f32 0.0, %v2142
      %v2144 = vpop.f32.mrb[0].mxu0
      %v2145 = vpop.f32.mrb[0].mxu0
      %v2146 = vadd.f32 0.0, %v2145
      %v2147 = vpop.f32.mrb[0].mxu0
      %2148 = vmatprep.mubr.bf16.mxu0 %v1822
      %2149 = vmatmul.mubr.bf16.gmra.mrb[0].mxu0 %v1821
      %v2150 = vpop.f32.mrb[0].mxu0
      %v2151 = vadd.f32 0.0, %v2150
      %v2152 = vpop.f32.mrb[0].mxu0
      %v2153 = vpop.f32.mrb[0].mxu0
      %v2154 = vadd.f32 0.0, %v2153
      %v2155 = vpop.f32.mrb[0].mxu0
      %2156 = vmatprep.mubr.bf16.mxu0 %v1823
      %2157 = vmatmul.mubr.bf16.gmra.mrb[0].mxu0 %v1822
      %v2158 = vpop.f32.mrb[0].mxu0
      %v2159 = vadd.f32 0.0, %v2158
      %v2160 = vpop.f32.mrb[0].mxu0
      %v2161 = vpop.f32.mrb[0].mxu0
      %v2162 = vadd.f32 0.0, %v2161
      %v2163 = vpop.f32.mrb[0].mxu0
      %2164 = vmatprep.mubr.bf16.mxu0 %v1824
      %2165 = vmatmul.mubr.bf16.gmra.mrb[0].mxu0 %v1823
      %v2166 = vpop.f32.mrb[0].mxu0
      %v2167 = vadd.f32 0.0, %v2166
      %v2168 = vpop.f32.mrb[0].mxu0
      %v2169 = vpop.f32.mrb[0].mxu0
      %v2170 = vadd.f32 0.0, %v2169
      %v2171 = vpop.f32.mrb[0].mxu0
      %2172 = vmatprep.mubr.bf16.mxu0 %v1825
      %2173 = vmatmul.mubr.bf16.gmra.mrb[0].mxu0 %v1824
      %v2174 = vpop.f32.mrb[0].mxu0
      %v2175 = vadd.f32 0.0, %v2174
      %v2176 = vpop.f32.mrb[0].mxu0
      %v2177 = vpop.f32.mrb[0].mxu0
      %v2178 = vadd.f32 0.0, %v2177
      %v2179 = vpop.f32.mrb[0].mxu0
      %2180 = vdwg.mxu0
      %2181 = vmatprep.subr.bf16.mxu0 0
      %2182 = vmatpush1.bf16.msra.mxu0 %v1988
      %2183 = vmatprep.subr.bf16.mxu0 0
      %2184 = vmatpush1.bf16.msra.mxu0 %v1989
      %2185 = vmatprep.subr.bf16.mxu0 0
      %2186 = vmatpush1.bf16.msra.mxu0 %v1990
      %2187 = vmatprep.subr.bf16.mxu0 0
      %2188 = vmatpush1.bf16.msra.mxu0 %v1991
      %2189 = vmatprep.subr.bf16.mxu0 0
      %2190 = vmatpush1.bf16.msra.mxu0 %v1992
      %2191 = vmatprep.subr.bf16.mxu0 0
      %2192 = vmatpush1.bf16.msra.mxu0 %v1993
      %2193 = vmatprep.subr.bf16.mxu0 0
      %2194 = vmatpush1.bf16.msra.mxu0 %v1994
      %2195 = vmatprep.subr.bf16.mxu0 0
      %2196 = vmatpush1.bf16.msra.mxu0 %v1995
      %2197 = vmatprep.subr.bf16.mxu0 0
      %2198 = vmatpush1.bf16.msra.mxu0 0
      %2199 = vmatprep.subr.bf16.mxu0 0
      %2200 = vmatpush1.bf16.msra.mxu0 0
      %2201 = vmatprep.subr.bf16.mxu0 0
      %2202 = vmatpush1.bf16.msra.mxu0 0
      %2203 = vmatprep.subr.bf16.mxu0 0
      %2204 = vmatpush1.bf16.msra.mxu0 0
      %2205 = vmatprep.subr.bf16.mxu0 0
      %2206 = vmatpush1.bf16.msra.mxu0 0
      %2207 = vmatprep.subr.bf16.mxu0 0
      %2208 = vmatpush1.bf16.msra.mxu0 0
      %2209 = vmatprep.subr.bf16.mxu0 0
      %2210 = vmatpush1.bf16.msra.mxu0 0
      %2211 = vmatprep.subr.bf16.mxu0 0
      %2212 = vmatpush1.bf16.msra.mxu0 0
      %2213 = vmatprep.mubr.bf16.mxu0 0
      %2214 = vmatmul.mubr.bf16.gmra.mrb[0].mxu0 %v1811
      %v2215 = vpop.f32.mrb[0].mxu0
      %v2216 = vadd.f32 %v2055, %v2215
      %v2217 = vpop.f32.mrb[0].mxu0
      %v2218 = vpop.f32.mrb[0].mxu0
      %v2219 = vadd.f32 %v2058, %v2218
      %v2220 = vpop.f32.mrb[0].mxu0
      %2221 = vmatprep.mubr.bf16.mxu0 0
      %2222 = vmatmul.mubr.bf16.gmra.mrb[0].mxu0 %v1812
      %v2223 = vpop.f32.mrb[0].mxu0
      %v2224 = vadd.f32 %v2063, %v2223
      %v2225 = vpop.f32.mrb[0].mxu0
      %v2226 = vpop.f32.mrb[0].mxu0
      %v2227 = vadd.f32 %v2066, %v2226
      %v2228 = vpop.f32.mrb[0].mxu0
      %2229 = vmatprep.mubr.bf16.mxu0 0
      %2230 = vmatmul.mubr.bf16.gmra.mrb[0].mxu0 %v1813
      %v2231 = vpop.f32.mrb[0].mxu0
      %v2232 = vadd.f32 %v2071, %v2231
      %v2233 = vpop.f32.mrb[0].mxu0
      %v2234 = vpop.f32.mrb[0].mxu0
      %v2235 = vadd.f32 %v2074, %v2234
      %v2236 = vpop.f32.mrb[0].mxu0
      %2237 = vmatprep.mubr.bf16.mxu0 0
      %2238 = vmatmul.mubr.bf16.gmra.mrb[0].mxu0 %v1814
      %v2239 = vpop.f32.mrb[0].mxu0
      %v2240 = vadd.f32 %v2079, %v2239
      %v2241 = vpop.f32.mrb[0].mxu0
      %v2242 = vpop.f32.mrb[0].mxu0
      %v2243 = vadd.f32 %v2082, %v2242
      %v2244 = vpop.f32.mrb[0].mxu0
      %2245 = vmatprep.mubr.bf16.mxu0 0
      %2246 = vmatmul.mubr.bf16.gmra.mrb[0].mxu0 %v1815
      %v2247 = vpop.f32.mrb[0].mxu0
      %v2248 = vadd.f32 %v2087, %v2247
      %v2249 = vpop.f32.mrb[0].mxu0
      %v2250 = vpop.f32.mrb[0].mxu0
      %v2251 = vadd.f32 %v2090, %v2250
      %v2252 = vpop.f32.mrb[0].mxu0
      %2253 = vmatprep.mubr.bf16.mxu0 0
      %2254 = vmatmul.mubr.bf16.gmra.mrb[0].mxu0 %v1816
      %v2255 = vpop.f32.mrb[0].mxu0
      %v2256 = vadd.f32 %v2095, %v2255
      %v2257 = vpop.f32.mrb[0].mxu0
      %v2258 = vpop.f32.mrb[0].mxu0
      %v2259 = vadd.f32 %v2098, %v2258
      %v2260 = vpop.f32.mrb[0].mxu0
      %2261 = vmatprep.mubr.bf16.mxu0 0
      %2262 = vmatmul.mubr.bf16.gmra.mrb[0].mxu0 %v1817
      %v2263 = vpop.f32.mrb[0].mxu0
      %v2264 = vadd.f32 %v2103, %v2263
      %v2265 = vpop.f32.mrb[0].mxu0
      %v2266 = vpop.f32.mrb[0].mxu0
      %v2267 = vadd.f32 %v2106, %v2266
      %v2268 = vpop.f32.mrb[0].mxu0
      %2269 = vmatprep.mubr.bf16.mxu0 0
      %2270 = vmatmul.mubr.bf16.gmra.mrb[0].mxu0 %v1818
      %v2271 = vpop.f32.mrb[0].mxu0
      %v2272 = vadd.f32 %v2111, %v2271
      %v2273 = vpop.f32.mrb[0].mxu0
      %v2274 = vpop.f32.mrb[0].mxu0
      %v2275 = vadd.f32 %v2114, %v2274
      %v2276 = vpop.f32.mrb[0].mxu0
      %2277 = vmatprep.mubr.bf16.mxu0 0
      %2278 = vmatmul.mubr.bf16.gmra.mrb[0].mxu0 %v1819
      %v2279 = vpop.f32.mrb[0].mxu0
      %v2280 = vadd.f32 %v2119, %v2279
      %v2281 = vpop.f32.mrb[0].mxu0
      %v2282 = vpop.f32.mrb[0].mxu0
      %v2283 = vadd.f32 %v2122, %v2282
      %v2284 = vpop.f32.mrb[0].mxu0
      %2285 = vmatprep.mubr.bf16.mxu0 0
      %2286 = vmatmul.mubr.bf16.gmra.mrb[0].mxu0 %v1820
      %v2287 = vpop.f32.mrb[0].mxu0
      %v2288 = vadd.f32 %v2127, %v2287
      %v2289 = vpop.f32.mrb[0].mxu0
      %v2290 = vpop.f32.mrb[0].mxu0
      %v2291 = vadd.f32 %v2130, %v2290
      %v2292 = vpop.f32.mrb[0].mxu0
      %2293 = vmatprep.mubr.bf16.mxu0 0
      %2294 = vmatmul.mubr.bf16.gmra.mrb[0].mxu0 %v1821
      %v2295 = vpop.f32.mrb[0].mxu0
      %v2296 = vadd.f32 %v2135, %v2295
      %v2297 = vpop.f32.mrb[0].mxu0
      %v2298 = vpop.f32.mrb[0].mxu0
      %v2299 = vadd.f32 %v2138, %v2298
      %v2300 = vpop.f32.mrb[0].mxu0
      %2301 = vmatprep.mubr.bf16.mxu0 0
      %2302 = vmatmul.mubr.bf16.gmra.mrb[0].mxu0 %v1822
      %v2303 = vpop.f32.mrb[0].mxu0
      %v2304 = vadd.f32 %v2143, %v2303
      %v2305 = vpop.f32.mrb[0].mxu0
      %v2306 = vpop.f32.mrb[0].mxu0
      %v2307 = vadd.f32 %v2146, %v2306
      %v2308 = vpop.f32.mrb[0].mxu0
      %2309 = vmatprep.mubr.bf16.mxu0 0
      %2310 = vmatmul.mubr.bf16.gmra.mrb[0].mxu0 %v1823
      %v2311 = vpop.f32.mrb[0].mxu0
      %v2312 = vadd.f32 %v2151, %v2311
      %v2313 = vpop.f32.mrb[0].mxu0
      %v2314 = vpop.f32.mrb[0].mxu0
      %v2315 = vadd.f32 %v2154, %v2314
      %v2316 = vpop.f32.mrb[0].mxu0
      %2317 = vmatprep.mubr.bf16.mxu0 0
      %2318 = vmatmul.mubr.bf16.gmra.mrb[0].mxu0 %v1824
      %v2319 = vpop.f32.mrb[0].mxu0
      %v2320 = vadd.f32 %v2159, %v2319
      %v2321 = vpop.f32.mrb[0].mxu0
      %v2322 = vpop.f32.mrb[0].mxu0
      %v2323 = vadd.f32 %v2162, %v2322
      %v2324 = vpop.f32.mrb[0].mxu0
      %2325 = vmatprep.mubr.bf16.mxu0 0
      %2326 = vmatmul.mubr.bf16.gmra.mrb[0].mxu0 %v1825
      %v2327 = vpop.f32.mrb[0].mxu0
      %v2328 = vadd.f32 %v2167, %v2327
      %v2329 = vpop.f32.mrb[0].mxu0
      %v2330 = vpop.f32.mrb[0].mxu0
      %v2331 = vadd.f32 %v2170, %v2330
      %v2332 = vpop.f32.mrb[0].mxu0
      %2333 = vmatprep.mubr.bf16.mxu0 0
      %2334 = vmatmul.mubr.bf16.gmra.mrb[0].mxu0 %v1826
      %v2335 = vpop.f32.mrb[0].mxu0
      %v2336 = vadd.f32 %v2175, %v2335
      %v2337 = vpop.f32.mrb[0].mxu0
      %v2338 = vpop.f32.mrb[0].mxu0
      %v2339 = vadd.f32 %v2178, %v2338
      %v2340 = vpop.f32.mrb[0].mxu0
      %2341 = vdwg.mxu0
      %v2342 = vadd.f32 %v1536, %v2216
      %v2343 = vadd.f32 %v1539, %v2219
      %v2344 = vadd.f32 %v1544, %v2224
      %v2345 = vadd.f32 %v1547, %v2227
      %v2346 = vadd.f32 %v1552, %v2232
      %v2347 = vadd.f32 %v1555, %v2235
      %v2348 = vadd.f32 %v1560, %v2240
      %v2349 = vadd.f32 %v1563, %v2243
      %v2350 = vadd.f32 %v1568, %v2248
      %v2351 = vadd.f32 %v1571, %v2251
      %v2352 = vadd.f32 %v1576, %v2256
      %v2353 = vadd.f32 %v1579, %v2259
      %v2354 = vadd.f32 %v1584, %v2264
      %v2355 = vadd.f32 %v1587, %v2267
      %v2356 = vadd.f32 %v1592, %v2272
      %v2357 = vadd.f32 %v1595, %v2275
      %v2358 = vadd.f32 %v1600, %v2280
      %v2359 = vadd.f32 %v1603, %v2283
      %v2360 = vadd.f32 %v1608, %v2288
      %v2361 = vadd.f32 %v1611, %v2291
      %v2362 = vadd.f32 %v1616, %v2296
      %v2363 = vadd.f32 %v1619, %v2299
      %v2364 = vadd.f32 %v1624, %v2304
      %v2365 = vadd.f32 %v1627, %v2307
      %v2366 = vadd.f32 %v1632, %v2312
      %v2367 = vadd.f32 %v1635, %v2315
      %v2368 = vadd.f32 %v1640, %v2320
      %v2369 = vadd.f32 %v1643, %v2323
      %v2370 = vadd.f32 %v1648, %v2328
      %v2371 = vadd.f32 %v1651, %v2331
      %v2372 = vadd.f32 %v1656, %v2336
      %v2373 = vadd.f32 %v1659, %v2339
      %v2374 = vpack.c.bf16 %v2343, %v2342
      %v2375 = vpack.c.bf16 %v2345, %v2344
      %v2376 = vpack.c.bf16 %v2347, %v2346
      %v2377 = vpack.c.bf16 %v2349, %v2348
      %v2378 = vpack.c.bf16 %v2351, %v2350
      %v2379 = vpack.c.bf16 %v2353, %v2352
      %v2380 = vpack.c.bf16 %v2355, %v2354
      %v2381 = vpack.c.bf16 %v2357, %v2356
      %v2382 = vpack.c.bf16 %v2359, %v2358
      %v2383 = vpack.c.bf16 %v2361, %v2360
      %v2384 = vpack.c.bf16 %v2363, %v2362
      %v2385 = vpack.c.bf16 %v2365, %v2364
      %v2386 = vpack.c.bf16 %v2367, %v2366
      %v2387 = vpack.c.bf16 %v2369, %v2368
      %v2388 = vpack.c.bf16 %v2371, %v2370
      %v2389 = vpack.c.bf16 %v2373, %v2372
      %v2406 = vunpack.c.l.b16 %v2374
      %v2407 = vunpack.c.h.b16 %v2374
      %v2408 = vunpack.c.l.b16 %v2375
      %v2409 = vunpack.c.h.b16 %v2375
      %v2410 = vunpack.c.l.b16 %v2376
      %v2411 = vunpack.c.h.b16 %v2376
      %v2412 = vunpack.c.l.b16 %v2377
      %v2413 = vunpack.c.h.b16 %v2377
      %v2414 = vunpack.c.l.b16 %v2378
      %v2415 = vunpack.c.h.b16 %v2378
      %v2416 = vunpack.c.l.b16 %v2379
      %v2417 = vunpack.c.h.b16 %v2379
      %v2418 = vunpack.c.l.b16 %v2380
      %v2419 = vunpack.c.h.b16 %v2380
      %v2420 = vunpack.c.l.b16 %v2381
      %v2421 = vunpack.c.h.b16 %v2381
      %v2422 = vunpack.c.l.b16 %v2382
      %v2423 = vunpack.c.h.b16 %v2382
      %v2424 = vunpack.c.l.b16 %v2383
      %v2425 = vunpack.c.h.b16 %v2383
      %v2426 = vunpack.c.l.b16 %v2384
      %v2427 = vunpack.c.h.b16 %v2384
      %v2428 = vunpack.c.l.b16 %v2385
      %v2429 = vunpack.c.h.b16 %v2385
      %v2430 = vunpack.c.l.b16 %v2386
      %v2431 = vunpack.c.h.b16 %v2386
      %v2432 = vunpack.c.l.b16 %v2387
      %v2433 = vunpack.c.h.b16 %v2387
      %v2434 = vunpack.c.l.b16 %v2388
      %v2435 = vunpack.c.h.b16 %v2388
      %v2436 = vunpack.c.l.b16 %v2389
      %v2437 = vunpack.c.h.b16 %v2389
      %v2438 = vpack.c.b16 %v2406, %v2406
      %v2439 = vpack.c.b16 %v2407, %v2407
      %v2440 = vpack.c.b16 %v2408, %v2408
      %v2441 = vpack.c.b16 %v2409, %v2409
      %v2442 = vpack.c.b16 %v2410, %v2410
      %v2443 = vpack.c.b16 %v2411, %v2411
      %v2444 = vpack.c.b16 %v2412, %v2412
      %v2445 = vpack.c.b16 %v2413, %v2413
      %v2446 = vpack.c.b16 %v2414, %v2414
      %v2447 = vpack.c.b16 %v2415, %v2415
      %v2448 = vpack.c.b16 %v2416, %v2416
      %v2449 = vpack.c.b16 %v2417, %v2417
      %v2450 = vpack.c.b16 %v2418, %v2418
      %v2451 = vpack.c.b16 %v2419, %v2419
      %v2452 = vpack.c.b16 %v2420, %v2420
      %v2453 = vpack.c.b16 %v2421, %v2421
      %v2454 = vpack.c.b16 %v2422, %v2422
      %v2455 = vpack.c.b16 %v2423, %v2423
      %v2456 = vpack.c.b16 %v2424, %v2424
      %v2457 = vpack.c.b16 %v2425, %v2425
      %v2458 = vpack.c.b16 %v2426, %v2426
      %v2459 = vpack.c.b16 %v2427, %v2427
      %v2460 = vpack.c.b16 %v2428, %v2428
      %v2461 = vpack.c.b16 %v2429, %v2429
      %v2462 = vpack.c.b16 %v2430, %v2430
      %v2463 = vpack.c.b16 %v2431, %v2431
      %v2464 = vpack.c.b16 %v2432, %v2432
      %v2465 = vpack.c.b16 %v2433, %v2433
      %v2466 = vpack.c.b16 %v2434, %v2434
      %v2467 = vpack.c.b16 %v2435, %v2435
      %v2468 = vpack.c.b16 %v2436, %v2436
      %v2469 = vpack.c.b16 %v2437, %v2437
      %2502 = vst [vmem:[%s160] sm:$0xf] %v2438
      %2503 = vst [vmem:[%s160 + $0x4] sm:$0xf] %v2439
      %2504 = vst [vmem:[%s160 + $0x8] sm:$0xf] %v2440
      %2505 = vst [vmem:[%s160 + $0xc] sm:$0xf] %v2441
      %2506 = vst [vmem:[%s160 + $0x10] sm:$0xf] %v2442
      %2507 = vst [vmem:[%s160 + $0x14] sm:$0xf] %v2443
      %2508 = vst [vmem:[%s160 + $0x18] sm:$0xf] %v2444
      %2509 = vst [vmem:[%s160 + $0x1c] sm:$0xf] %v2445
      %2510 = vst [vmem:[%s160 + $0x20] sm:$0xf] %v2446
      %2511 = vst [vmem:[%s160 + $0x24] sm:$0xf] %v2447
      %2512 = vst [vmem:[%s160 + $0x28] sm:$0xf] %v2448
      %2513 = vst [vmem:[%s160 + $0x2c] sm:$0xf] %v2449
      %2514 = vst [vmem:[%s160 + $0x30] sm:$0xf] %v2450
      %2515 = vst [vmem:[%s160 + $0x34] sm:$0xf] %v2451
      %2516 = vst [vmem:[%s160 + $0x38] sm:$0xf] %v2452
      %2517 = vst [vmem:[%s160 + $0x3c] sm:$0xf] %v2453
      %2518 = vst [vmem:[%s160 + $0x40] sm:$0xf] %v2454
      %2519 = vst [vmem:[%s160 + $0x44] sm:$0xf] %v2455
      %2520 = vst [vmem:[%s160 + $0x48] sm:$0xf] %v2456
      %2521 = vst [vmem:[%s160 + $0x4c] sm:$0xf] %v2457
      %2522 = vst [vmem:[%s160 + $0x50] sm:$0xf] %v2458
      %2523 = vst [vmem:[%s160 + $0x54] sm:$0xf] %v2459
      %2524 = vst [vmem:[%s160 + $0x58] sm:$0xf] %v2460
      %2525 = vst [vmem:[%s160 + $0x5c] sm:$0xf] %v2461
      %2526 = vst [vmem:[%s160 + $0x60] sm:$0xf] %v2462
      %2527 = vst [vmem:[%s160 + $0x64] sm:$0xf] %v2463
      %2528 = vst [vmem:[%s160 + $0x68] sm:$0xf] %v2464
      %2529 = vst [vmem:[%s160 + $0x6c] sm:$0xf] %v2465
      %2530 = vst [vmem:[%s160 + $0x70] sm:$0xf] %v2466
      %2531 = vst [vmem:[%s160 + $0x74] sm:$0xf] %v2467
      %2532 = vst [vmem:[%s160 + $0x78] sm:$0xf] %v2468
      %2533 = vst [vmem:[%s160 + $0x7c] sm:$0xf] %v2469
      %v2534 = vadd.f32 %v2342, %v2343
      %v2535 = vadd.f32 %v2534, %v2344
      %v2536 = vadd.f32 %v2535, %v2345
      %v2537 = vadd.f32 %v2536, %v2346
      %v2538 = vadd.f32 %v2537, %v2347
      %v2539 = vadd.f32 %v2538, %v2348
      %v2540 = vadd.f32 %v2539, %v2349
      %v2541 = vadd.f32 %v2540, %v2350
      %v2542 = vadd.f32 %v2541, %v2351
      %v2543 = vadd.f32 %v2542, %v2352
      %v2544 = vadd.f32 %v2543, %v2353
      %v2545 = vadd.f32 %v2544, %v2354
      %v2546 = vadd.f32 %v2545, %v2355
      %v2547 = vadd.f32 %v2546, %v2356
      %v2548 = vadd.f32 %v2547, %v2357
      %v2549 = vadd.f32 %v2548, %v2358
      %v2550 = vadd.f32 %v2549, %v2359
      %v2551 = vadd.f32 %v2550, %v2360
      %v2552 = vadd.f32 %v2551, %v2361
      %v2553 = vadd.f32 %v2552, %v2362
      %v2554 = vadd.f32 %v2553, %v2363
      %v2555 = vadd.f32 %v2554, %v2364
      %v2556 = vadd.f32 %v2555, %v2365
      %v2557 = vadd.f32 %v2556, %v2366
      %v2558 = vadd.f32 %v2557, %v2367
      %v2559 = vadd.f32 %v2558, %v2368
      %v2560 = vadd.f32 %v2559, %v2369
      %v2561 = vadd.f32 %v2560, %v2370
      %v2562 = vadd.f32 %v2561, %v2371
      %v2563 = vadd.f32 %v2562, %v2372
      %v2564 = vadd.f32 %v2563, %v2373
      %v2565 = vrot.slane %v2564, 4
      %v2566 = vadd.f32 %v2564, %v2565
      %v2567 = vrot.slane %v2566, 2
      %v2568 = vadd.f32 %v2566, %v2567
      %v2569 = vrot.slane %v2568, 1
      %v2570 = vadd.f32 %v2568, %v2569
      %v2571 = vmul.f32 %v2342, %v2342
      %v2572 = vmul.f32 %v2343, %v2343
      %v2573 = vmul.f32 %v2344, %v2344
      %v2574 = vmul.f32 %v2345, %v2345
      %v2575 = vmul.f32 %v2346, %v2346
      %v2576 = vmul.f32 %v2347, %v2347
      %v2577 = vmul.f32 %v2348, %v2348
      %v2578 = vmul.f32 %v2349, %v2349
      %v2579 = vmul.f32 %v2350, %v2350
      %v2580 = vmul.f32 %v2351, %v2351
      %v2581 = vmul.f32 %v2352, %v2352
      %v2582 = vmul.f32 %v2353, %v2353
      %v2583 = vmul.f32 %v2354, %v2354
      %v2584 = vmul.f32 %v2355, %v2355
      %v2585 = vmul.f32 %v2356, %v2356
      %v2586 = vmul.f32 %v2357, %v2357
      %v2587 = vmul.f32 %v2358, %v2358
      %v2588 = vmul.f32 %v2359, %v2359
      %v2589 = vmul.f32 %v2360, %v2360
      %v2590 = vmul.f32 %v2361, %v2361
      %v2591 = vmul.f32 %v2362, %v2362
      %v2592 = vmul.f32 %v2363, %v2363
      %v2593 = vmul.f32 %v2364, %v2364
      %v2594 = vmul.f32 %v2365, %v2365
      %v2595 = vmul.f32 %v2366, %v2366
      %v2596 = vmul.f32 %v2367, %v2367
      %v2597 = vmul.f32 %v2368, %v2368
      %v2598 = vmul.f32 %v2369, %v2369
      %v2599 = vmul.f32 %v2370, %v2370
      %v2600 = vmul.f32 %v2371, %v2371
      %v2601 = vmul.f32 %v2372, %v2372
      %v2602 = vmul.f32 %v2373, %v2373
      %v2603 = vadd.f32 %v2571, %v2572
      %v2604 = vadd.f32 %v2603, %v2573
      %v2605 = vadd.f32 %v2604, %v2574
      %v2606 = vadd.f32 %v2605, %v2575
      %v2607 = vadd.f32 %v2606, %v2576
      %v2608 = vadd.f32 %v2607, %v2577
      %v2609 = vadd.f32 %v2608, %v2578
      %v2610 = vadd.f32 %v2609, %v2579
      %v2611 = vadd.f32 %v2610, %v2580
      %v2612 = vadd.f32 %v2611, %v2581
      %v2613 = vadd.f32 %v2612, %v2582
      %v2614 = vadd.f32 %v2613, %v2583
      %v2615 = vadd.f32 %v2614, %v2584
      %v2616 = vadd.f32 %v2615, %v2585
      %v2617 = vadd.f32 %v2616, %v2586
      %v2618 = vadd.f32 %v2617, %v2587
      %v2619 = vadd.f32 %v2618, %v2588
      %v2620 = vadd.f32 %v2619, %v2589
      %v2621 = vadd.f32 %v2620, %v2590
      %v2622 = vadd.f32 %v2621, %v2591
      %v2623 = vadd.f32 %v2622, %v2592
      %v2624 = vadd.f32 %v2623, %v2593
      %v2625 = vadd.f32 %v2624, %v2594
      %v2626 = vadd.f32 %v2625, %v2595
      %v2627 = vadd.f32 %v2626, %v2596
      %v2628 = vadd.f32 %v2627, %v2597
      %v2629 = vadd.f32 %v2628, %v2598
      %v2630 = vadd.f32 %v2629, %v2599
      %v2631 = vadd.f32 %v2630, %v2600
      %v2632 = vadd.f32 %v2631, %v2601
      %v2633 = vadd.f32 %v2632, %v2602
      %v2634 = vrot.slane %v2633, 4
      %v2635 = vadd.f32 %v2633, %v2634
      %v2636 = vrot.slane %v2635, 2
      %v2637 = vadd.f32 %v2635, %v2636
      %v2638 = vrot.slane %v2637, 1
      %v2639 = vadd.f32 %v2637, %v2638
      %vm2640 = vcmask 1040384
      %v2641 = vsel %vm2640, %v2570, %v2639
      %2642 = vst [vmem:[%s168] sm:$0x3] %v2641
      %s2643 = smul.u32 16, %s20
      %p2644 = scmp.lt.s32.totalorder %s19, 1
      %s2645 = scalar_select %p2644, %s19, 1
      %p2646 = scmp.lt.s32.totalorder %s2643, 15
      %s2647 = scalar_select %p2646, %s2643, 15
      %s2648 = smul.addr %s2647, 2
      %s2649 = smul.addr %s2645, 32
      %s2650 = sadd.s32 %s2648, %s2649
      %s2651 = smul.addr %s2650, 4
      %s2652 = scalar_lea.vmem %s2, %s2651
      %p2653 = scmp.lt.s32.totalorder %s19, 1
      %s2654 = scalar_select %p2653, %s19, 1
      %p2655 = scmp.lt.s32.totalorder %s20, 0
      %s2656 = scalar_select %p2655, %s20, 0
      %s2657 = sadd.s32 %s2656, %s2654
      %s2658 = smul.addr %s2657, 2
      %s2659 = scalar_lea.vmem %s3, %s2658
      // Predicated region
      $region127: #{resnet_block.3} parent=23 // pred_check
        %p2660 = pneg %p68
      $region128: #{resnet_block.3} parent=23 // pred_check_branch
        %2662 = sbr.rel (%p2660) target = $region130
      $region129: #{resnet_block.3} parent=23 // pred_region
        %s2663 = smul.u32 16, %s20
      $region130: #{resnet_block.3} parent=23 // pred_fallthru
        _
      // Predicated region
      $region131: #{resnet_block.3} parent=23 // pred_check
        %p2664 = pneg %p96
      $region132: #{resnet_block.3} parent=23 // pred_check_branch
        %2666 = sbr.rel (%p2664) target = $region134
      $region133: #{resnet_block.3} parent=23 // pred_region
        _
      $region134: #{resnet_block.3} parent=23 // pred_fallthru
        _
    $region24: #{resnet_block.3} parent=5 // pred_fallthru
      _
    %p2667 = scmp.le.s32.totalorder 2, %s10
    // Predicated region
    $region135: #{resnet_block.3} parent=5 // pred_check
      %p2668 = pneg %p2667
    $region136: #{resnet_block.3} parent=5 // pred_check_branch
      %2670 = sbr.rel (%p2668) target = $region138
    $region137: #{resnet_block.3} parent=5 // pred_region
      %s2671 = ssub.s32 %s10, 2
      // Predicated region
      $region139: #{resnet_block.3} parent=137 // pred_check
        %p2672 = pneg %p74
      $region140: #{resnet_block.3} parent=137 // pred_check_branch
        %2674 = sbr.rel (%p2672) target = $region142
      $region141: #{resnet_block.3} parent=137 // pred_region
        %s2675 = smul.u32 16, %s22
        %p2676 = scmp.lt.s32.totalorder %s21, 1
        %s2677 = scalar_select %p2676, %s21, 1
        %p2678 = scmp.lt.s32.totalorder %s2675, 15
        %s2679 = scalar_select %p2678, %s2675, 15
        %s2680 = smul.addr %s2679, 2
        %s2681 = smul.addr %s2677, 32
        %s2682 = sadd.s32 %s2680, %s2681
        %s2683 = smul.addr %s2682, 4
        %s2684 = scalar_lea.vmem %s2, %s2683
      $region142: #{resnet_block.3} parent=137 // pred_fallthru
        _
      // Predicated region
      $region143: #{resnet_block.3} parent=137 // pred_check
        %p2685 = pneg %p102
      $region144: #{resnet_block.3} parent=137 // pred_check_branch
        %2687 = sbr.rel (%p2685) target = $region146
      $region145: #{resnet_block.3} parent=137 // pred_region
        %p2688 = scmp.lt.s32.totalorder %s21, 1
        %s2689 = scalar_select %p2688, %s21, 1
        %p2690 = scmp.lt.s32.totalorder %s22, 0
        %s2691 = scalar_select %p2690, %s22, 0
        %s2692 = sadd.s32 %s2691, %s2689
        %s2693 = smul.addr %s2692, 2
        %s2694 = scalar_lea.vmem %s3, %s2693
      $region146: #{resnet_block.3} parent=137 // pred_fallthru
        _
    $region138: #{resnet_block.3} parent=5 // pred_fallthru
      _
  $region6: #{resnet_block.3} parent=0 // loop_footer
    %s14 = sadd.s32 1, %s10
  $region7: #{resnet_block.3} parent=0 // loop_footer_branch
    %9 = sbr.rel target = $region3
  $region8: #{resnet_block.3} parent=0 // loop_exit
    _
  %2695 = vsyncmov [#allocation3]
  %s2696 = vpop.sfrf %2695
  %p2697 = scmp.eq.s32.totalorder %s2696, 0
  %p2698 = pneg %p2697
  %2700 = shalt.err (%p2698)
  %s2701 = scalar_lea.sflag [#allocation3], 1
  %2702 = vsyncmov %s2701
  %s2703 = vpop.sfrf %2702
  %p2704 = scmp.eq.s32.totalorder %s2703, 0
  %p2705 = pneg %p2704
  %2707 = shalt.err (%p2705)
  %s2708 = scalar_lea.sflag [#allocation3], 2
  %2709 = vsyncmov %s2708
  %s2710 = vpop.sfrf %2709
  %p2711 = scmp.eq.s32.totalorder %s2710, 0
  %p2712 = pneg %p2711
  %2714 = shalt.err (%p2712)

</llo_original>
